<compile_context>
chip_gen: v7x
topology: tpu7x:2x2x1
jax: 0.10.0
libtpu: 0.0.40
codegen_flags: <defaults>
</compile_context>

<pallas_src>
import functools

import jax
import jax.numpy as jnp
from jax.experimental import pallas as pl
from jax.experimental.pallas import tpu as pltpu


_VMEM_LIMIT = 48 * 1024 * 1024        # fits v5e/v6e (128 MiB) and v7x (64 MiB)
_TILE_ELEM_BUDGET = 1_000_000         # per-tile spatial*channel element budget


def _compiler_params():
    cp = getattr(pltpu, "CompilerParams", None) or getattr(pltpu, "TPUCompilerParams")
    return cp(dimension_semantics=("parallel", "parallel"),
              vmem_limit_bytes=_VMEM_LIMIT)


def _pick_row_tile(H, W, ch):
    """Largest even divisor of H whose (halo-padded) tile fits the VMEM budget."""
    best = 2
    for th in range(2, H + 1, 2):
        if H % th == 0 and (th + 2) * (W + 2) * ch <= _TILE_ELEM_BUDGET:
            best = th
    return best


def _erf(x):
    # Abramowitz & Stegun 7.1.26 (|err| ~1.5e-7) -> erf-based GELU matching
    # nn.GELU without relying on an erf primitive inside Mosaic.
    a1, a2, a3, a4, a5 = 0.254829592, -0.284496736, 1.421413741, -1.453152027, 1.061405429
    p = 0.3275911
    s = jnp.where(x >= 0.0, 1.0, -1.0)
    ax = jnp.abs(x)
    t = 1.0 / (1.0 + p * ax)
    poly = ((((a5 * t + a4) * t + a3) * t + a2) * t + a1) * t
    return s * (1.0 - poly * jnp.exp(-ax * ax))


def _gelu(x):
    return 0.5 * x * (1.0 + _erf(x * 0.7071067811865476))


# --------------------------- fused 3x3 conv kernel ---------------------------

def _conv3x3_kernel(*refs, Th, W, apply_ln, add_res, eps):
    xm_ref, xh_ref, w_ref, b_ref = refs[:4]
    idx = 4
    if apply_ln:
        g_ref, be_ref = refs[4], refs[5]
        idx = 6
    if add_res:
        res_ref = refs[idx]
        idx += 1
    o_ref = refs[idx]

    Cin = xm_ref.shape[-1]
    Cout = o_ref.shape[-1]

    # Assemble the halo-extended window: (Th+2, W+2, Cin).
    xw = jnp.concatenate([xm_ref[...], xh_ref[...]], axis=0).astype(jnp.bfloat16)

    # 3x3 conv as 9 shifted matmuls on the MXU, f32 accumulation.
    acc = jnp.zeros((Th * W, Cout), jnp.float32)
    for ky in range(3):
        for kx in range(3):
            patch = xw[ky:ky + Th, kx:kx + W, :].reshape(Th * W, Cin)
            acc = acc + jnp.dot(patch, w_ref[ky, kx],
                                preferred_element_type=jnp.float32)
    acc = acc + b_ref[...].astype(jnp.float32)

    if apply_ln:
        # TODO(synk): LayerNorm2d is not defined in the reference source;
        # assumed per-position channel LayerNorm (eps=1e-5).
        mu = jnp.mean(acc, axis=-1, keepdims=True)
        var = jnp.mean((acc - mu) ** 2, axis=-1, keepdims=True)
        acc = (acc - mu) * jax.lax.rsqrt(var + eps)
        acc = acc * g_ref[...].astype(jnp.float32) + be_ref[...].astype(jnp.float32)

    out = acc.reshape(Th, W, Cout)
    if add_res:
        out = out + res_ref[...].astype(jnp.float32)
    o_ref[...] = out.astype(o_ref.dtype)


def conv3x3(x, w, b, *, gamma=None, beta=None, residual=None,
            out_dtype=None, eps=1e-5):
    """3x3 conv (stride 1, zero pad 1) on NHWC x, optionally fused with a
    per-position LayerNorm (patch_embed) or a residual add (layer conv)."""
    B, H, W, Cin = x.shape
    Cout = w.shape[-1]
    out_dtype = x.dtype if out_dtype is None else out_dtype
    Th = _pick_row_tile(H, W, max(Cin, Cout))
    nT = H // Th
    xp = jnp.pad(x, ((0, 0), (1, 1), (1, 1), (0, 0)))      # conv zero-pad

    apply_ln = gamma is not None
    add_res = residual is not None

    in_specs = [
        # main row band: padded rows [i*Th, i*Th+Th)
        pl.BlockSpec((None, Th, W + 2, Cin), lambda bb, i: (bb, i, 0, 0)),
        # 2-row bottom halo: padded rows [i*Th+Th, i*Th+Th+2)
        pl.BlockSpec((None, 2, W + 2, Cin),
                     lambda bb, i: (bb, (i + 1) * (Th // 2), 0, 0)),
        pl.BlockSpec((3, 3, Cin, Cout), lambda bb, i: (0, 0, 0, 0)),
        pl.BlockSpec((1, Cout), lambda bb, i: (0, 0)),
    ]
    args = [xp, xp, w.astype(jnp.bfloat16),
            b.reshape(1, Cout).astype(jnp.float32)]
    if apply_ln:
        in_specs += [pl.BlockSpec((1, Cout), lambda bb, i: (0, 0)),
                     pl.BlockSpec((1, Cout), lambda bb, i: (0, 0))]
        args += [gamma.reshape(1, Cout).astype(jnp.float32),
                 beta.reshape(1, Cout).astype(jnp.float32)]
    if add_res:
        in_specs += [pl.BlockSpec((None, Th, W, Cout), lambda bb, i: (bb, i, 0, 0))]
        args += [residual]

    return pl.pallas_call(
        functools.partial(_conv3x3_kernel, Th=Th, W=W,
                          apply_ln=apply_ln, add_res=add_res, eps=eps),
        out_shape=jax.ShapeDtypeStruct((B, H, W, Cout), out_dtype),
        grid=(B, nT),
        in_specs=in_specs,
        out_specs=pl.BlockSpec((None, Th, W, Cout), lambda bb, i: (bb, i, 0, 0)),
        compiler_params=_compiler_params(),
    )(*args)


# -------------------- fused block (norm2 + Mlp + residual) -------------------

def _block_kernel(xm_ref, xh_ref, g_ref, b_ref, wi1_ref, wi2_ref,
                  wd1_ref, wd2_ref, wo_ref, o_ref, *, Th, W, eps):
    Wp = W + 2
    C = o_ref.shape[-1]
    half = wi1_ref.shape[-1]
    i = pl.program_id(1)
    Himg = Th * pl.num_programs(1)

    # Halo-extended input window (zero-padded x): (Th+2, Wp, C).
    xw = jnp.concatenate([xm_ref[...], xh_ref[...]], axis=0)
    x32 = xw.astype(jnp.float32)

    # norm2: per-position channel LayerNorm.
    mu = jnp.mean(x32, axis=-1, keepdims=True)
    var = jnp.mean((x32 - mu) ** 2, axis=-1, keepdims=True)
    y = (x32 - mu) * jax.lax.rsqrt(var + eps)
    y = y * g_ref[...].astype(jnp.float32) + b_ref[...].astype(jnp.float32)

    # Zero positions that correspond to image-border padding so the depthwise
    # conv below sees zeros there (it zero-pads the *hidden* activation in the
    # reference module).  Interior halo rows keep real neighbour values.
    r = jax.lax.broadcasted_iota(jnp.int32, (Th + 2, Wp, 1), 0) + i * Th
    c = jax.lax.broadcasted_iota(jnp.int32, (Th + 2, Wp, 1), 1)
    valid = (r >= 1) & (r <= Himg) & (c >= 1) & (c <= W)
    y = jnp.where(valid, y, 0.0)

    # project_in (1x1, no bias): two bf16 MXU matmuls -> gate halves land in
    # separate arrays (no in-vreg lane split at the half boundary).
    y2 = y.reshape((Th + 2) * Wp, C).astype(jnp.bfloat16)
    h1 = jnp.dot(y2, wi1_ref[...], preferred_element_type=jnp.float32)
    h2 = jnp.dot(y2, wi2_ref[...], preferred_element_type=jnp.float32)
    h1 = h1.reshape(Th + 2, Wp, half)
    h2 = h2.reshape(Th + 2, Wp, half)

    # Depthwise 3x3 conv: 9-tap VPU multiply-accumulate per half.
    wd1 = wd1_ref[...].astype(jnp.float32)
    wd2 = wd2_ref[...].astype(jnp.float32)
    acc1 = jnp.zeros((Th, W, half), jnp.float32)
    acc2 = jnp.zeros((Th, W, half), jnp.float32)
    for ky in range(3):
        for kx in range(3):
            acc1 = acc1 + h1[ky:ky + Th, kx:kx + W, :] * wd1[ky, kx][None, None, :]
            acc2 = acc2 + h2[ky:ky + Th, kx:kx + W, :] * wd2[ky, kx][None, None, :]

    gate = _gelu(acc1) * acc2                       # gelu(x1) * x2, (Th, W, half)

    # project_out (1x1, no bias).
    gb = gate.reshape(Th * W, half).astype(jnp.bfloat16)
    out = jnp.dot(gb, wo_ref[...], preferred_element_type=jnp.float32)

    # Residual add with the original (unnormalised) x of this output band.
    x1 = x32[1:Th + 1, 1:W + 1, :]
    o_ref[...] = (x1 + out.reshape(Th, W, C)).astype(o_ref.dtype)


def block_forward(x, p, *, eps=1e-5):
    """Shared FFN path of Swin_BiFormerBlock / ConvNatBlock, fully fused.
    TODO(synk): the attention residual branch x1 = x + drop_path(attn(norm1(x)))
    is omitted (swin_bra / nchwAttentionLePE / ConvNat are not defined in the
    reference source), so x1 = x and norm1/attn parameters are not used."""
    B, H, W, C = x.shape
    hidden = p['w_in'].shape[1]
    half = hidden // 2
    Th = _pick_row_tile(H, W, hidden)
    nT = H // Th
    xp = jnp.pad(x, ((0, 0), (1, 1), (1, 1), (0, 0)))

    wi = p['w_in'].astype(jnp.bfloat16)
    wi1, wi2 = wi[:, :half], wi[:, half:]
    wd = p['w_dw'].astype(jnp.float32)
    wd1, wd2 = wd[..., :half], wd[..., half:]
    wo = p['w_out'].astype(jnp.bfloat16)
    g = p['n2_g'].reshape(1, C).astype(jnp.float32)
    b = p['n2_b'].reshape(1, C).astype(jnp.float32)

    return pl.pallas_call(
        functools.partial(_block_kernel, Th=Th, W=W, eps=eps),
        out_shape=jax.ShapeDtypeStruct((B, H, W, C), x.dtype),
        grid=(B, nT),
        in_specs=[
            pl.BlockSpec((None, Th, W + 2, C), lambda bb, i: (bb, i, 0, 0)),
            pl.BlockSpec((None, 2, W + 2, C),
                         lambda bb, i: (bb, (i + 1) * (Th // 2), 0, 0)),
            pl.BlockSpec((1, C), lambda bb, i: (0, 0)),
            pl.BlockSpec((1, C), lambda bb, i: (0, 0)),
            pl.BlockSpec((C, half), lambda bb, i: (0, 0)),
            pl.BlockSpec((C, half), lambda bb, i: (0, 0)),
            pl.BlockSpec((3, 3, half), lambda bb, i: (0, 0, 0)),
            pl.BlockSpec((3, 3, half), lambda bb, i: (0, 0, 0)),
            pl.BlockSpec((half, C), lambda bb, i: (0, 0)),
        ],
        out_specs=pl.BlockSpec((None, Th, W, C), lambda bb, i: (bb, i, 0, 0)),
        compiler_params=_compiler_params(),
    )(xp, xp, g, b, wi1, wi2, wd1, wd2, wo)


# ------------------------------ model glue (JAX) -----------------------------

def pixel_shuffle(x_nchw, r):
    B, Cr2, H, W = x_nchw.shape
    C = Cr2 // (r * r)
    x = x_nchw.reshape(B, C, r, r, H, W)
    x = jnp.transpose(x, (0, 1, 4, 2, 5, 3))
    return x.reshape(B, C, H * r, W * r)


def _cubic_taps(n, scale):
    A = -0.75  # PyTorch bicubic kernel parameter
    out = n * scale
    dst = jnp.arange(out, dtype=jnp.float32)
    src = (dst + 0.5) / scale - 0.5
    i0 = jnp.floor(src).astype(jnp.int32)
    offs = jnp.array([-1, 0, 1, 2], jnp.int32)
    idx = i0[None, :] + offs[:, None]                  # (4, out)
    d = jnp.abs(src[None, :] - idx.astype(jnp.float32))
    w = jnp.where(d <= 1.0, ((A + 2.0) * d - (A + 3.0)) * d * d + 1.0,
                  jnp.where(d < 2.0, ((A * d - 5.0 * A) * d + 8.0 * A) * d - 4.0 * A, 0.0))
    return jnp.clip(idx, 0, n - 1), w


def bicubic_upsample(x_nchw, scale):
    # nn.Upsample(scale_factor, mode='bicubic', align_corners=False) semantics.
    ih, wh = _cubic_taps(x_nchw.shape[2], scale)
    iw, ww = _cubic_taps(x_nchw.shape[3], scale)
    xh = jnp.sum(x_nchw[:, :, ih, :] * wh[None, None, :, :, None], axis=2)
    return jnp.sum(xh[:, :, :, iw] * ww[None, None, None, :, :], axis=3)


def pht_forward(x_nchw, params, *, upscale, win_size, img_range=1.0):
    B, Cin, H, W = x_nchw.shape
    # check_image_size: reflect-pad H, W to multiples of win_size
    mh = (win_size - H % win_size) % win_size
    mw = (win_size - W % win_size) % win_size
    x = jnp.pad(x_nchw, ((0, 0), (0, 0), (0, mh), (0, mw)), mode='reflect') \
        if (mh or mw) else x_nchw

    x_bicubic = bicubic_upsample(x, upscale)
    mean = params['mean'].astype(x.dtype)
    x = (x - mean) * img_range

    # NCHW -> NHWC, bf16 storage for the Pallas kernels
    x = jnp.transpose(x, (0, 2, 3, 1)).astype(jnp.bfloat16)

    # patch_embed: Conv2d(in, embed, 3, 1, 1) fused with LayerNorm2d
    x = conv3x3(x, params['pe_w'], params['pe_b'],
                gamma=params['pe_ln_g'], beta=params['pe_ln_b'])

    # Swin_BiformerLayer stack
    for lp in params['layers']:
        res = x
        for bp in lp['blocks']:
            x = block_forward(x, bp)
        x = conv3x3(x, lp['conv_w'], lp['conv_b'], residual=res)

    # UpsampleOneStep: Conv2d(embed, scale^2*out_ch, 3, 1, 1) + PixelShuffle
    x = conv3x3(x, params['up_w'], params['up_b'], out_dtype=jnp.float32)
    x = jnp.transpose(x, (0, 3, 1, 2))                 # back to NCHW
    x = pixel_shuffle(x, upscale)

    x = x + x_bicubic
    x = x / img_range + mean
    return x[:, :, :H * upscale, :W * upscale]


# ------------------------------ parameter init ------------------------------

def init_params(key, *, in_chans=3, embed_dim=32, depth=(2, 2), mlp_ratio=2, upscale=2):
    n_keys = 16 + sum(depth) * 4 + len(depth) * 4
    keys = iter(jax.random.split(key, n_keys))

    def nrm(shape, scale=0.02):
        return scale * jax.random.normal(next(keys), shape, jnp.float32)

    C = embed_dim
    hidden = C * mlp_ratio  # mlp_ratio must be 2 (project_out expects hidden//2 == C)
    params = {
        'mean': jnp.array([0.4488, 0.4371, 0.4040], jnp.float32).reshape(1, 3, 1, 1),
        'pe_w': nrm((3, 3, in_chans, C)),
        'pe_b': nrm((C,)),
        'pe_ln_g': jnp.ones((C,), jnp.float32),
        'pe_ln_b': jnp.zeros((C,), jnp.float32),
        'up_w': nrm((3, 3, C, in_chans * upscale * upscale)),
        'up_b': nrm((in_chans * upscale * upscale,)),
    }
    layers = []
    for d in depth:
        blocks = []
        for _ in range(d):
            blocks.append(dict(
                n2_g=jnp.ones((C,), jnp.float32),
                n2_b=jnp.zeros((C,), jnp.float32),
                w_in=nrm((C, hidden)),          # project_in  (1x1, no bias)
                w_dw=nrm((3, 3, hidden)),       # depthwise 3x3, no bias
                w_out=nrm((hidden // 2, C)),    # project_out (1x1, no bias)
            ))
        layers.append(dict(blocks=blocks,
                           conv_w=nrm((3, 3, C, C)),
                           conv_b=nrm((C,))))
    params['layers'] = layers
    return params


# ----------------------------------- main ------------------------------------

if __name__ == "__main__":
    key = jax.random.PRNGKey(0)
    kx, kp = jax.random.split(key)

    B, Cin, H, W = 2, 3, 8, 8
    upscale, win_size, img_range = 2, 8, 1.0
    embed_dim, depth, mlp_ratio = 32, (2, 2), 2

    x = jax.random.uniform(kx, (B, Cin, H, W), jnp.float32)
    params = init_params(kp, in_chans=Cin, embed_dim=embed_dim,
                         depth=depth, mlp_ratio=mlp_ratio, upscale=upscale)

    fwd = jax.jit(functools.partial(pht_forward, upscale=upscale,
                                    win_size=win_size, img_range=img_range))
    y = fwd(x, params)
    jax.block_until_ready(y)

    assert y.shape == (B, Cin, H * upscale, W * upscale), y.shape
    assert jnp.all(jnp.isfinite(y))
    print("KERNEL_OK")
</pallas_src>

<mosaic_0001>
module attributes {stable_mosaic.version = 11 : i64} {
  func.func @_conv3x3_kernel(%arg0: i32, %arg1: i32, %arg2: memref<1x8x10x3xbf16, #tpu.memory_space<vmem>>, %arg3: memref<1x2x10x3xbf16, #tpu.memory_space<vmem>>, %arg4: memref<3x3x3x32xbf16, #tpu.memory_space<vmem>>, %arg5: memref<1x32xf32, #tpu.memory_space<vmem>>, %arg6: memref<1x32xf32, #tpu.memory_space<vmem>>, %arg7: memref<1x32xf32, #tpu.memory_space<vmem>>, %arg8: memref<1x8x8x32xbf16, #tpu.memory_space<vmem>>) attributes {dimension_semantics = [#tpu.dimension_semantics<parallel>, #tpu.dimension_semantics<parallel>], iteration_bounds = array<i64: 2, 1>, scalar_prefetch = 0 : i64, scratch_operands = 0 : i64, tpu.core_type = #tpu.core_type<tc>, window_params = [{transform_indices = @transform_0, window_bounds = array<i64: 1, 8, 10, 3>}, {transform_indices = @transform_1, window_bounds = array<i64: 1, 2, 10, 3>}, {pipeline_mode = #tpu.pipeline_mode<synchronous>, transform_indices = @transform_2, window_bounds = array<i64: 3, 3, 3, 32>}, {pipeline_mode = #tpu.pipeline_mode<synchronous>, transform_indices = @transform_3, window_bounds = array<i64: 1, 32>}, {pipeline_mode = #tpu.pipeline_mode<synchronous>, transform_indices = @transform_4, window_bounds = array<i64: 1, 32>}, {pipeline_mode = #tpu.pipeline_mode<synchronous>, transform_indices = @transform_5, window_bounds = array<i64: 1, 32>}, {transform_indices = @transform_6, window_bounds = array<i64: 1, 8, 8, 32>}]} {
    %c0 = arith.constant 0 : index
    %c0_0 = arith.constant 0 : index
    %c0_1 = arith.constant 0 : index
    %c0_2 = arith.constant 0 : index
    %0 = vector.load %arg2[%c0, %c0_0, %c0_1, %c0_2] : memref<1x8x10x3xbf16, #tpu.memory_space<vmem>>, vector<1x8x10x3xbf16>
    %1 = vector.shape_cast %0 : vector<1x8x10x3xbf16> to vector<8x10x3xbf16>
    %c0_3 = arith.constant 0 : index
    %c0_4 = arith.constant 0 : index
    %c0_5 = arith.constant 0 : index
    %c0_6 = arith.constant 0 : index
    %2 = vector.load %arg3[%c0_3, %c0_4, %c0_5, %c0_6] : memref<1x2x10x3xbf16, #tpu.memory_space<vmem>>, vector<1x2x10x3xbf16>
    %3 = vector.shape_cast %2 : vector<1x2x10x3xbf16> to vector<2x10x3xbf16>
    %4 = tpu.concatenate %1, %3 in 0 : vector<8x10x3xbf16>, vector<2x10x3xbf16> -> vector<10x10x3xbf16>
    %cst = arith.constant 0.000000e+00 : f32
    %5 = vector.broadcast %cst : f32 to vector<64x32xf32>
    %6 = vector.extract_strided_slice %4 {offsets = [0, 0, 0], sizes = [8, 8, 3], strides = [1, 1, 1]} : vector<10x10x3xbf16> to vector<8x8x3xbf16>
    %7 = vector.shape_cast %6 : vector<8x8x3xbf16> to vector<64x3xbf16>
    %c0_7 = arith.constant 0 : index
    %c0_8 = arith.constant 0 : index
    %c0_9 = arith.constant 0 : index
    %c0_10 = arith.constant 0 : index
    %8 = vector.load %arg4[%c0_7, %c0_8, %c0_9, %c0_10] : memref<3x3x3x32xbf16, #tpu.memory_space<vmem>>, vector<1x1x3x32xbf16>
    %9 = vector.shape_cast %8 : vector<1x1x3x32xbf16> to vector<3x32xbf16>
    %cst_11 = arith.constant dense<0.000000e+00> : vector<64x32xf32>
    %10 = tpu.matmul %7, %9, %cst_11 {dimension_numbers = #tpu.dot_dimension_numbers<[1], [0], [0], [1], [0, 0, 1, 1], [], []>} : vector<64x3xbf16>, vector<3x32xbf16>, vector<64x32xf32> -> vector<64x32xf32>
    %11 = arith.addf %5, %10 : vector<64x32xf32>
    %12 = vector.extract_strided_slice %4 {offsets = [0, 1, 0], sizes = [8, 8, 3], strides = [1, 1, 1]} : vector<10x10x3xbf16> to vector<8x8x3xbf16>
    %13 = vector.shape_cast %12 : vector<8x8x3xbf16> to vector<64x3xbf16>
    %c0_12 = arith.constant 0 : index
    %c1 = arith.constant 1 : index
    %c0_13 = arith.constant 0 : index
    %c0_14 = arith.constant 0 : index
    %14 = vector.load %arg4[%c0_12, %c1, %c0_13, %c0_14] : memref<3x3x3x32xbf16, #tpu.memory_space<vmem>>, vector<1x1x3x32xbf16>
    %15 = vector.shape_cast %14 : vector<1x1x3x32xbf16> to vector<3x32xbf16>
    %cst_15 = arith.constant dense<0.000000e+00> : vector<64x32xf32>
    %16 = tpu.matmul %13, %15, %cst_15 {dimension_numbers = #tpu.dot_dimension_numbers<[1], [0], [0], [1], [0, 0, 1, 1], [], []>} : vector<64x3xbf16>, vector<3x32xbf16>, vector<64x32xf32> -> vector<64x32xf32>
    %17 = arith.addf %11, %16 : vector<64x32xf32>
    %18 = vector.extract_strided_slice %4 {offsets = [0, 2, 0], sizes = [8, 8, 3], strides = [1, 1, 1]} : vector<10x10x3xbf16> to vector<8x8x3xbf16>
    %19 = vector.shape_cast %18 : vector<8x8x3xbf16> to vector<64x3xbf16>
    %c0_16 = arith.constant 0 : index
    %c2 = arith.constant 2 : index
    %c0_17 = arith.constant 0 : index
    %c0_18 = arith.constant 0 : index
    %20 = vector.load %arg4[%c0_16, %c2, %c0_17, %c0_18] : memref<3x3x3x32xbf16, #tpu.memory_space<vmem>>, vector<1x1x3x32xbf16>
    %21 = vector.shape_cast %20 : vector<1x1x3x32xbf16> to vector<3x32xbf16>
    %cst_19 = arith.constant dense<0.000000e+00> : vector<64x32xf32>
    %22 = tpu.matmul %19, %21, %cst_19 {dimension_numbers = #tpu.dot_dimension_numbers<[1], [0], [0], [1], [0, 0, 1, 1], [], []>} : vector<64x3xbf16>, vector<3x32xbf16>, vector<64x32xf32> -> vector<64x32xf32>
    %23 = arith.addf %17, %22 : vector<64x32xf32>
    %24 = vector.extract_strided_slice %4 {offsets = [1, 0, 0], sizes = [8, 8, 3], strides = [1, 1, 1]} : vector<10x10x3xbf16> to vector<8x8x3xbf16>
    %25 = vector.shape_cast %24 : vector<8x8x3xbf16> to vector<64x3xbf16>
    %c1_20 = arith.constant 1 : index
    %c0_21 = arith.constant 0 : index
    %c0_22 = arith.constant 0 : index
    %c0_23 = arith.constant 0 : index
    %26 = vector.load %arg4[%c1_20, %c0_21, %c0_22, %c0_23] : memref<3x3x3x32xbf16, #tpu.memory_space<vmem>>, vector<1x1x3x32xbf16>
    %27 = vector.shape_cast %26 : vector<1x1x3x32xbf16> to vector<3x32xbf16>
    %cst_24 = arith.constant dense<0.000000e+00> : vector<64x32xf32>
    %28 = tpu.matmul %25, %27, %cst_24 {dimension_numbers = #tpu.dot_dimension_numbers<[1], [0], [0], [1], [0, 0, 1, 1], [], []>} : vector<64x3xbf16>, vector<3x32xbf16>, vector<64x32xf32> -> vector<64x32xf32>
    %29 = arith.addf %23, %28 : vector<64x32xf32>
    %30 = vector.extract_strided_slice %4 {offsets = [1, 1, 0], sizes = [8, 8, 3], strides = [1, 1, 1]} : vector<10x10x3xbf16> to vector<8x8x3xbf16>
    %31 = vector.shape_cast %30 : vector<8x8x3xbf16> to vector<64x3xbf16>
    %c1_25 = arith.constant 1 : index
    %c1_26 = arith.constant 1 : index
    %c0_27 = arith.constant 0 : index
    %c0_28 = arith.constant 0 : index
    %32 = vector.load %arg4[%c1_25, %c1_26, %c0_27, %c0_28] : memref<3x3x3x32xbf16, #tpu.memory_space<vmem>>, vector<1x1x3x32xbf16>
    %33 = vector.shape_cast %32 : vector<1x1x3x32xbf16> to vector<3x32xbf16>
    %cst_29 = arith.constant dense<0.000000e+00> : vector<64x32xf32>
    %34 = tpu.matmul %31, %33, %cst_29 {dimension_numbers = #tpu.dot_dimension_numbers<[1], [0], [0], [1], [0, 0, 1, 1], [], []>} : vector<64x3xbf16>, vector<3x32xbf16>, vector<64x32xf32> -> vector<64x32xf32>
    %35 = arith.addf %29, %34 : vector<64x32xf32>
    %36 = vector.extract_strided_slice %4 {offsets = [1, 2, 0], sizes = [8, 8, 3], strides = [1, 1, 1]} : vector<10x10x3xbf16> to vector<8x8x3xbf16>
    %37 = vector.shape_cast %36 : vector<8x8x3xbf16> to vector<64x3xbf16>
    %c1_30 = arith.constant 1 : index
    %c2_31 = arith.constant 2 : index
    %c0_32 = arith.constant 0 : index
    %c0_33 = arith.constant 0 : index
    %38 = vector.load %arg4[%c1_30, %c2_31, %c0_32, %c0_33] : memref<3x3x3x32xbf16, #tpu.memory_space<vmem>>, vector<1x1x3x32xbf16>
    %39 = vector.shape_cast %38 : vector<1x1x3x32xbf16> to vector<3x32xbf16>
    %cst_34 = arith.constant dense<0.000000e+00> : vector<64x32xf32>
    %40 = tpu.matmul %37, %39, %cst_34 {dimension_numbers = #tpu.dot_dimension_numbers<[1], [0], [0], [1], [0, 0, 1, 1], [], []>} : vector<64x3xbf16>, vector<3x32xbf16>, vector<64x32xf32> -> vector<64x32xf32>
    %41 = arith.addf %35, %40 : vector<64x32xf32>
    %42 = vector.extract_strided_slice %4 {offsets = [2, 0, 0], sizes = [8, 8, 3], strides = [1, 1, 1]} : vector<10x10x3xbf16> to vector<8x8x3xbf16>
    %43 = vector.shape_cast %42 : vector<8x8x3xbf16> to vector<64x3xbf16>
    %c2_35 = arith.constant 2 : index
    %c0_36 = arith.constant 0 : index
    %c0_37 = arith.constant 0 : index
    %c0_38 = arith.constant 0 : index
    %44 = vector.load %arg4[%c2_35, %c0_36, %c0_37, %c0_38] : memref<3x3x3x32xbf16, #tpu.memory_space<vmem>>, vector<1x1x3x32xbf16>
    %45 = vector.shape_cast %44 : vector<1x1x3x32xbf16> to vector<3x32xbf16>
    %cst_39 = arith.constant dense<0.000000e+00> : vector<64x32xf32>
    %46 = tpu.matmul %43, %45, %cst_39 {dimension_numbers = #tpu.dot_dimension_numbers<[1], [0], [0], [1], [0, 0, 1, 1], [], []>} : vector<64x3xbf16>, vector<3x32xbf16>, vector<64x32xf32> -> vector<64x32xf32>
    %47 = arith.addf %41, %46 : vector<64x32xf32>
    %48 = vector.extract_strided_slice %4 {offsets = [2, 1, 0], sizes = [8, 8, 3], strides = [1, 1, 1]} : vector<10x10x3xbf16> to vector<8x8x3xbf16>
    %49 = vector.shape_cast %48 : vector<8x8x3xbf16> to vector<64x3xbf16>
    %c2_40 = arith.constant 2 : index
    %c1_41 = arith.constant 1 : index
    %c0_42 = arith.constant 0 : index
    %c0_43 = arith.constant 0 : index
    %50 = vector.load %arg4[%c2_40, %c1_41, %c0_42, %c0_43] : memref<3x3x3x32xbf16, #tpu.memory_space<vmem>>, vector<1x1x3x32xbf16>
    %51 = vector.shape_cast %50 : vector<1x1x3x32xbf16> to vector<3x32xbf16>
    %cst_44 = arith.constant dense<0.000000e+00> : vector<64x32xf32>
    %52 = tpu.matmul %49, %51, %cst_44 {dimension_numbers = #tpu.dot_dimension_numbers<[1], [0], [0], [1], [0, 0, 1, 1], [], []>} : vector<64x3xbf16>, vector<3x32xbf16>, vector<64x32xf32> -> vector<64x32xf32>
    %53 = arith.addf %47, %52 : vector<64x32xf32>
    %54 = vector.extract_strided_slice %4 {offsets = [2, 2, 0], sizes = [8, 8, 3], strides = [1, 1, 1]} : vector<10x10x3xbf16> to vector<8x8x3xbf16>
    %55 = vector.shape_cast %54 : vector<8x8x3xbf16> to vector<64x3xbf16>
    %c2_45 = arith.constant 2 : index
    %c2_46 = arith.constant 2 : index
    %c0_47 = arith.constant 0 : index
    %c0_48 = arith.constant 0 : index
    %56 = vector.load %arg4[%c2_45, %c2_46, %c0_47, %c0_48] : memref<3x3x3x32xbf16, #tpu.memory_space<vmem>>, vector<1x1x3x32xbf16>
    %57 = vector.shape_cast %56 : vector<1x1x3x32xbf16> to vector<3x32xbf16>
    %cst_49 = arith.constant dense<0.000000e+00> : vector<64x32xf32>
    %58 = tpu.matmul %55, %57, %cst_49 {dimension_numbers = #tpu.dot_dimension_numbers<[1], [0], [0], [1], [0, 0, 1, 1], [], []>} : vector<64x3xbf16>, vector<3x32xbf16>, vector<64x32xf32> -> vector<64x32xf32>
    %59 = arith.addf %53, %58 : vector<64x32xf32>
    %c0_50 = arith.constant 0 : index
    %c0_51 = arith.constant 0 : index
    %60 = vector.load %arg5[%c0_50, %c0_51] : memref<1x32xf32, #tpu.memory_space<vmem>>, vector<1x32xf32>
    %61 = vector.broadcast %60 : vector<1x32xf32> to vector<64x32xf32>
    %62 = arith.addf %59, %61 : vector<64x32xf32>
    %cst_52 = arith.constant dense<0.000000e+00> : vector<64xf32>
    %63 = vector.multi_reduction <add>, %62, %cst_52 [1] : vector<64x32xf32> to vector<64xf32>
    %64 = vector.shape_cast %63 : vector<64xf32> to vector<64x1xf32>
    %cst_53 = arith.constant 3.200000e+01 : f32
    %65 = vector.broadcast %cst_53 : f32 to vector<64x1xf32>
    %66 = arith.divf %64, %65 : vector<64x1xf32>
    %67 = vector.broadcast %66 : vector<64x1xf32> to vector<64x32xf32>
    %68 = arith.subf %62, %67 : vector<64x32xf32>
    %69 = arith.mulf %68, %68 : vector<64x32xf32>
    %cst_54 = arith.constant dense<0.000000e+00> : vector<64xf32>
    %70 = vector.multi_reduction <add>, %69, %cst_54 [1] : vector<64x32xf32> to vector<64xf32>
    %71 = vector.shape_cast %70 : vector<64xf32> to vector<64x1xf32>
    %cst_55 = arith.constant 3.200000e+01 : f32
    %72 = vector.broadcast %cst_55 : f32 to vector<64x1xf32>
    %73 = arith.divf %71, %72 : vector<64x1xf32>
    %74 = vector.broadcast %66 : vector<64x1xf32> to vector<64x32xf32>
    %75 = arith.subf %62, %74 : vector<64x32xf32>
    %cst_56 = arith.constant 9.99999974E-6 : f32
    %76 = vector.broadcast %cst_56 : f32 to vector<64x1xf32>
    %77 = arith.addf %73, %76 : vector<64x1xf32>
    %78 = math.rsqrt %77 : vector<64x1xf32>
    %79 = vector.broadcast %78 : vector<64x1xf32> to vector<64x32xf32>
    %80 = arith.mulf %75, %79 : vector<64x32xf32>
    %c0_57 = arith.constant 0 : index
    %c0_58 = arith.constant 0 : index
    %81 = vector.load %arg6[%c0_57, %c0_58] : memref<1x32xf32, #tpu.memory_space<vmem>>, vector<1x32xf32>
    %82 = vector.broadcast %81 : vector<1x32xf32> to vector<64x32xf32>
    %83 = arith.mulf %80, %82 : vector<64x32xf32>
    %c0_59 = arith.constant 0 : index
    %c0_60 = arith.constant 0 : index
    %84 = vector.load %arg7[%c0_59, %c0_60] : memref<1x32xf32, #tpu.memory_space<vmem>>, vector<1x32xf32>
    %85 = vector.broadcast %84 : vector<1x32xf32> to vector<64x32xf32>
    %86 = arith.addf %83, %85 : vector<64x32xf32>
    %87 = vector.shape_cast %86 : vector<64x32xf32> to vector<8x8x32xf32>
    %88 = arith.truncf %87 : vector<8x8x32xf32> to vector<8x8x32xbf16>
    %c0_61 = arith.constant 0 : index
    %c0_62 = arith.constant 0 : index
    %c0_63 = arith.constant 0 : index
    %c0_64 = arith.constant 0 : index
    %89 = vector.load %arg8[%c0_61, %c0_62, %c0_63, %c0_64] : memref<1x8x8x32xbf16, #tpu.memory_space<vmem>>, vector<1x8x8x32xbf16>
    %90 = vector.shape_cast %89 : vector<1x8x8x32xbf16> to vector<8x8x32xbf16>
    %91 = vector.shape_cast %88 : vector<8x8x32xbf16> to vector<1x8x8x32xbf16>
    tpu.vector_store %arg8[%c0_61, %c0_62, %c0_63, %c0_64], %91 {strides = array<i32>} : memref<1x8x8x32xbf16, #tpu.memory_space<vmem>>, vector<1x8x8x32xbf16>,
    return
  }
  func.func @transform_0(%arg0: i32, %arg1: i32) -> (i32, i32, i32, i32) {
    %c0_i32 = arith.constant 0 : i32
    %c0_i32_0 = arith.constant 0 : i32
    %c0_i32_1 = arith.constant 0 : i32
    return %arg0, %arg1, %c0_i32, %c0_i32_0 : i32, i32, i32, i32
  }
  func.func @transform_1(%arg0: i32, %arg1: i32) -> (i32, i32, i32, i32) {
    %c1_i32 = arith.constant 1 : i32
    %0 = arith.addi %arg1, %c1_i32 : i32
    %c4_i32 = arith.constant 4 : i32
    %1 = arith.muli %0, %c4_i32 : i32
    %c0_i32 = arith.constant 0 : i32
    %c0_i32_0 = arith.constant 0 : i32
    %c0_i32_1 = arith.constant 0 : i32
    return %arg0, %1, %c0_i32, %c0_i32_0 : i32, i32, i32, i32
  }
  func.func @transform_2(%arg0: i32, %arg1: i32) -> (i32, i32, i32, i32) {
    %c0_i32 = arith.constant 0 : i32
    %c0_i32_0 = arith.constant 0 : i32
    %c0_i32_1 = arith.constant 0 : i32
    %c0_i32_2 = arith.constant 0 : i32
    %c0_i32_3 = arith.constant 0 : i32
    return %c0_i32, %c0_i32_0, %c0_i32_1, %c0_i32_2 : i32, i32, i32, i32
  }
  func.func @transform_3(%arg0: i32, %arg1: i32) -> (i32, i32) {
    %c0_i32 = arith.constant 0 : i32
    %c0_i32_0 = arith.constant 0 : i32
    %c0_i32_1 = arith.constant 0 : i32
    return %c0_i32, %c0_i32_0 : i32, i32
  }
  func.func @transform_4(%arg0: i32, %arg1: i32) -> (i32, i32) {
    %c0_i32 = arith.constant 0 : i32
    %c0_i32_0 = arith.constant 0 : i32
    %c0_i32_1 = arith.constant 0 : i32
    return %c0_i32, %c0_i32_0 : i32, i32
  }
  func.func @transform_5(%arg0: i32, %arg1: i32) -> (i32, i32) {
    %c0_i32 = arith.constant 0 : i32
    %c0_i32_0 = arith.constant 0 : i32
    %c0_i32_1 = arith.constant 0 : i32
    return %c0_i32, %c0_i32_0 : i32, i32
  }
  func.func @transform_6(%arg0: i32, %arg1: i32) -> (i32, i32, i32, i32) {
    %c0_i32 = arith.constant 0 : i32
    %c0_i32_0 = arith.constant 0 : i32
    %c0_i32_1 = arith.constant 0 : i32
    return %arg0, %arg1, %c0_i32, %c0_i32_0 : i32, i32, i32, i32
  }
}

module attributes {stable_mosaic.version = 11 : i64} {
  func.func @_conv3x3_kernel(%arg0: i32, %arg1: i32, %arg2: memref<1x8x10x32xbf16, #tpu.memory_space<vmem>>, %arg3: memref<1x2x10x32xbf16, #tpu.memory_space<vmem>>, %arg4: memref<3x3x32x32xbf16, #tpu.memory_space<vmem>>, %arg5: memref<1x32xf32, #tpu.memory_space<vmem>>, %arg6: memref<1x8x8x32xbf16, #tpu.memory_space<vmem>>, %arg7: memref<1x8x8x32xbf16, #tpu.memory_space<vmem>>) attributes {dimension_semantics = [#tpu.dimension_semantics<parallel>, #tpu.dimension_semantics<parallel>], iteration_bounds = array<i64: 2, 1>, scalar_prefetch = 0 : i64, scratch_operands = 0 : i64, tpu.core_type = #tpu.core_type<tc>, window_params = [{transform_indices = @transform_0, window_bounds = array<i64: 1, 8, 10, 32>}, {transform_indices = @transform_1, window_bounds = array<i64: 1, 2, 10, 32>}, {pipeline_mode = #tpu.pipeline_mode<synchronous>, transform_indices = @transform_2, window_bounds = array<i64: 3, 3, 32, 32>}, {pipeline_mode = #tpu.pipeline_mode<synchronous>, transform_indices = @transform_3, window_bounds = array<i64: 1, 32>}, {transform_indices = @transform_4, window_bounds = array<i64: 1, 8, 8, 32>}, {transform_indices = @transform_5, window_bounds = array<i64: 1, 8, 8, 32>}]} {
    %c0 = arith.constant 0 : index
    %c0_0 = arith.constant 0 : index
    %c0_1 = arith.constant 0 : index
    %c0_2 = arith.constant 0 : index
    %0 = vector.load %arg2[%c0, %c0_0, %c0_1, %c0_2] : memref<1x8x10x32xbf16, #tpu.memory_space<vmem>>, vector<1x8x10x32xbf16>
    %1 = vector.shape_cast %0 : vector<1x8x10x32xbf16> to vector<8x10x32xbf16>
    %c0_3 = arith.constant 0 : index
    %c0_4 = arith.constant 0 : index
    %c0_5 = arith.constant 0 : index
    %c0_6 = arith.constant 0 : index
    %2 = vector.load %arg3[%c0_3, %c0_4, %c0_5, %c0_6] : memref<1x2x10x32xbf16, #tpu.memory_space<vmem>>, vector<1x2x10x32xbf16>
    %3 = vector.shape_cast %2 : vector<1x2x10x32xbf16> to vector<2x10x32xbf16>
    %4 = tpu.concatenate %1, %3 in 0 : vector<8x10x32xbf16>, vector<2x10x32xbf16> -> vector<10x10x32xbf16>
    %cst = arith.constant 0.000000e+00 : f32
    %5 = vector.broadcast %cst : f32 to vector<64x32xf32>
    %6 = vector.extract_strided_slice %4 {offsets = [0, 0, 0], sizes = [8, 8, 32], strides = [1, 1, 1]} : vector<10x10x32xbf16> to vector<8x8x32xbf16>
    %7 = vector.shape_cast %6 : vector<8x8x32xbf16> to vector<64x32xbf16>
    %c0_7 = arith.constant 0 : index
    %c0_8 = arith.constant 0 : index
    %c0_9 = arith.constant 0 : index
    %c0_10 = arith.constant 0 : index
    %8 = vector.load %arg4[%c0_7, %c0_8, %c0_9, %c0_10] : memref<3x3x32x32xbf16, #tpu.memory_space<vmem>>, vector<1x1x32x32xbf16>
    %9 = vector.shape_cast %8 : vector<1x1x32x32xbf16> to vector<32x32xbf16>
    %cst_11 = arith.constant dense<0.000000e+00> : vector<64x32xf32>
    %10 = tpu.matmul %7, %9, %cst_11 {dimension_numbers = #tpu.dot_dimension_numbers<[1], [0], [0], [1], [0, 0, 1, 1], [], []>} : vector<64x32xbf16>, vector<32x32xbf16>, vector<64x32xf32> -> vector<64x32xf32>
    %11 = arith.addf %5, %10 : vector<64x32xf32>
    %12 = vector.extract_strided_slice %4 {offsets = [0, 1, 0], sizes = [8, 8, 32], strides = [1, 1, 1]} : vector<10x10x32xbf16> to vector<8x8x32xbf16>
    %13 = vector.shape_cast %12 : vector<8x8x32xbf16> to vector<64x32xbf16>
    %c0_12 = arith.constant 0 : index
    %c1 = arith.constant 1 : index
    %c0_13 = arith.constant 0 : index
    %c0_14 = arith.constant 0 : index
    %14 = vector.load %arg4[%c0_12, %c1, %c0_13, %c0_14] : memref<3x3x32x32xbf16, #tpu.memory_space<vmem>>, vector<1x1x32x32xbf16>
    %15 = vector.shape_cast %14 : vector<1x1x32x32xbf16> to vector<32x32xbf16>
    %cst_15 = arith.constant dense<0.000000e+00> : vector<64x32xf32>
    %16 = tpu.matmul %13, %15, %cst_15 {dimension_numbers = #tpu.dot_dimension_numbers<[1], [0], [0], [1], [0, 0, 1, 1], [], []>} : vector<64x32xbf16>, vector<32x32xbf16>, vector<64x32xf32> -> vector<64x32xf32>
    %17 = arith.addf %11, %16 : vector<64x32xf32>
    %18 = vector.extract_strided_slice %4 {offsets = [0, 2, 0], sizes = [8, 8, 32], strides = [1, 1, 1]} : vector<10x10x32xbf16> to vector<8x8x32xbf16>
    %19 = vector.shape_cast %18 : vector<8x8x32xbf16> to vector<64x32xbf16>
    %c0_16 = arith.constant 0 : index
    %c2 = arith.constant 2 : index
    %c0_17 = arith.constant 0 : index
    %c0_18 = arith.constant 0 : index
    %20 = vector.load %arg4[%c0_16, %c2, %c0_17, %c0_18] : memref<3x3x32x32xbf16, #tpu.memory_space<vmem>>, vector<1x1x32x32xbf16>
    %21 = vector.shape_cast %20 : vector<1x1x32x32xbf16> to vector<32x32xbf16>
    %cst_19 = arith.constant dense<0.000000e+00> : vector<64x32xf32>
    %22 = tpu.matmul %19, %21, %cst_19 {dimension_numbers = #tpu.dot_dimension_numbers<[1], [0], [0], [1], [0, 0, 1, 1], [], []>} : vector<64x32xbf16>, vector<32x32xbf16>, vector<64x32xf32> -> vector<64x32xf32>
    %23 = arith.addf %17, %22 : vector<64x32xf32>
    %24 = vector.extract_strided_slice %4 {offsets = [1, 0, 0], sizes = [8, 8, 32], strides = [1, 1, 1]} : vector<10x10x32xbf16> to vector<8x8x32xbf16>
    %25 = vector.shape_cast %24 : vector<8x8x32xbf16> to vector<64x32xbf16>
    %c1_20 = arith.constant 1 : index
    %c0_21 = arith.constant 0 : index
    %c0_22 = arith.constant 0 : index
    %c0_23 = arith.constant 0 : index
    %26 = vector.load %arg4[%c1_20, %c0_21, %c0_22, %c0_23] : memref<3x3x32x32xbf16, #tpu.memory_space<vmem>>, vector<1x1x32x32xbf16>
    %27 = vector.shape_cast %26 : vector<1x1x32x32xbf16> to vector<32x32xbf16>
    %cst_24 = arith.constant dense<0.000000e+00> : vector<64x32xf32>
    %28 = tpu.matmul %25, %27, %cst_24 {dimension_numbers = #tpu.dot_dimension_numbers<[1], [0], [0], [1], [0, 0, 1, 1], [], []>} : vector<64x32xbf16>, vector<32x32xbf16>, vector<64x32xf32> -> vector<64x32xf32>
    %29 = arith.addf %23, %28 : vector<64x32xf32>
    %30 = vector.extract_strided_slice %4 {offsets = [1, 1, 0], sizes = [8, 8, 32], strides = [1, 1, 1]} : vector<10x10x32xbf16> to vector<8x8x32xbf16>
    %31 = vector.shape_cast %30 : vector<8x8x32xbf16> to vector<64x32xbf16>
    %c1_25 = arith.constant 1 : index
    %c1_26 = arith.constant 1 : index
    %c0_27 = arith.constant 0 : index
    %c0_28 = arith.constant 0 : index
    %32 = vector.load %arg4[%c1_25, %c1_26, %c0_27, %c0_28] : memref<3x3x32x32xbf16, #tpu.memory_space<vmem>>, vector<1x1x32x32xbf16>
    %33 = vector.shape_cast %32 : vector<1x1x32x32xbf16> to vector<32x32xbf16>
    %cst_29 = arith.constant dense<0.000000e+00> : vector<64x32xf32>
    %34 = tpu.matmul %31, %33, %cst_29 {dimension_numbers = #tpu.dot_dimension_numbers<[1], [0], [0], [1], [0, 0, 1, 1], [], []>} : vector<64x32xbf16>, vector<32x32xbf16>, vector<64x32xf32> -> vector<64x32xf32>
    %35 = arith.addf %29, %34 : vector<64x32xf32>
    %36 = vector.extract_strided_slice %4 {offsets = [1, 2, 0], sizes = [8, 8, 32], strides = [1, 1, 1]} : vector<10x10x32xbf16> to vector<8x8x32xbf16>
    %37 = vector.shape_cast %36 : vector<8x8x32xbf16> to vector<64x32xbf16>
    %c1_30 = arith.constant 1 : index
    %c2_31 = arith.constant 2 : index
    %c0_32 = arith.constant 0 : index
    %c0_33 = arith.constant 0 : index
    %38 = vector.load %arg4[%c1_30, %c2_31, %c0_32, %c0_33] : memref<3x3x32x32xbf16, #tpu.memory_space<vmem>>, vector<1x1x32x32xbf16>
    %39 = vector.shape_cast %38 : vector<1x1x32x32xbf16> to vector<32x32xbf16>
    %cst_34 = arith.constant dense<0.000000e+00> : vector<64x32xf32>
    %40 = tpu.matmul %37, %39, %cst_34 {dimension_numbers = #tpu.dot_dimension_numbers<[1], [0], [0], [1], [0, 0, 1, 1], [], []>} : vector<64x32xbf16>, vector<32x32xbf16>, vector<64x32xf32> -> vector<64x32xf32>
    %41 = arith.addf %35, %40 : vector<64x32xf32>
    %42 = vector.extract_strided_slice %4 {offsets = [2, 0, 0], sizes = [8, 8, 32], strides = [1, 1, 1]} : vector<10x10x32xbf16> to vector<8x8x32xbf16>
    %43 = vector.shape_cast %42 : vector<8x8x32xbf16> to vector<64x32xbf16>
    %c2_35 = arith.constant 2 : index
    %c0_36 = arith.constant 0 : index
    %c0_37 = arith.constant 0 : index
    %c0_38 = arith.constant 0 : index
    %44 = vector.load %arg4[%c2_35, %c0_36, %c0_37, %c0_38] : memref<3x3x32x32xbf16, #tpu.memory_space<vmem>>, vector<1x1x32x32xbf16>
    %45 = vector.shape_cast %44 : vector<1x1x32x32xbf16> to vector<32x32xbf16>
    %cst_39 = arith.constant dense<0.000000e+00> : vector<64x32xf32>
    %46 = tpu.matmul %43, %45, %cst_39 {dimension_numbers = #tpu.dot_dimension_numbers<[1], [0], [0], [1], [0, 0, 1, 1], [], []>} : vector<64x32xbf16>, vector<32x32xbf16>, vector<64x32xf32> -> vector<64x32xf32>
    %47 = arith.addf %41, %46 : vector<64x32xf32>
    %48 = vector.extract_strided_slice %4 {offsets = [2, 1, 0], sizes = [8, 8, 32], strides = [1, 1, 1]} : vector<10x10x32xbf16> to vector<8x8x32xbf16>
    %49 = vector.shape_cast %48 : vector<8x8x32xbf16> to vector<64x32xbf16>
    %c2_40 = arith.constant 2 : index
    %c1_41 = arith.constant 1 : index
    %c0_42 = arith.constant 0 : index
    %c0_43 = arith.constant 0 : index
    %50 = vector.load %arg4[%c2_40, %c1_41, %c0_42, %c0_43] : memref<3x3x32x32xbf16, #tpu.memory_space<vmem>>, vector<1x1x32x32xbf16>
    %51 = vector.shape_cast %50 : vector<1x1x32x32xbf16> to vector<32x32xbf16>
    %cst_44 = arith.constant dense<0.000000e+00> : vector<64x32xf32>
    %52 = tpu.matmul %49, %51, %cst_44 {dimension_numbers = #tpu.dot_dimension_numbers<[1], [0], [0], [1], [0, 0, 1, 1], [], []>} : vector<64x32xbf16>, vector<32x32xbf16>, vector<64x32xf32> -> vector<64x32xf32>
    %53 = arith.addf %47, %52 : vector<64x32xf32>
    %54 = vector.extract_strided_slice %4 {offsets = [2, 2, 0], sizes = [8, 8, 32], strides = [1, 1, 1]} : vector<10x10x32xbf16> to vector<8x8x32xbf16>
    %55 = vector.shape_cast %54 : vector<8x8x32xbf16> to vector<64x32xbf16>
    %c2_45 = arith.constant 2 : index
    %c2_46 = arith.constant 2 : index
    %c0_47 = arith.constant 0 : index
    %c0_48 = arith.constant 0 : index
    %56 = vector.load %arg4[%c2_45, %c2_46, %c0_47, %c0_48] : memref<3x3x32x32xbf16, #tpu.memory_space<vmem>>, vector<1x1x32x32xbf16>
    %57 = vector.shape_cast %56 : vector<1x1x32x32xbf16> to vector<32x32xbf16>
    %cst_49 = arith.constant dense<0.000000e+00> : vector<64x32xf32>
    %58 = tpu.matmul %55, %57, %cst_49 {dimension_numbers = #tpu.dot_dimension_numbers<[1], [0], [0], [1], [0, 0, 1, 1], [], []>} : vector<64x32xbf16>, vector<32x32xbf16>, vector<64x32xf32> -> vector<64x32xf32>
    %59 = arith.addf %53, %58 : vector<64x32xf32>
    %c0_50 = arith.constant 0 : index
    %c0_51 = arith.constant 0 : index
    %60 = vector.load %arg5[%c0_50, %c0_51] : memref<1x32xf32, #tpu.memory_space<vmem>>, vector<1x32xf32>
    %61 = vector.broadcast %60 : vector<1x32xf32> to vector<64x32xf32>
    %62 = arith.addf %59, %61 : vector<64x32xf32>
    %63 = vector.shape_cast %62 : vector<64x32xf32> to vector<8x8x32xf32>
    %c0_52 = arith.constant 0 : index
    %c0_53 = arith.constant 0 : index
    %c0_54 = arith.constant 0 : index
    %c0_55 = arith.constant 0 : index
    %64 = vector.load %arg6[%c0_52, %c0_53, %c0_54, %c0_55] : memref<1x8x8x32xbf16, #tpu.memory_space<vmem>>, vector<1x8x8x32xbf16>
    %65 = vector.shape_cast %64 : vector<1x8x8x32xbf16> to vector<8x8x32xbf16>
    %66 = arith.extf %65 : vector<8x8x32xbf16> to vector<8x8x32xf32>
    %67 = arith.addf %63, %66 : vector<8x8x32xf32>
    %68 = arith.truncf %67 : vector<8x8x32xf32> to vector<8x8x32xbf16>
    %c0_56 = arith.constant 0 : index
    %c0_57 = arith.constant 0 : index
    %c0_58 = arith.constant 0 : index
    %c0_59 = arith.constant 0 : index
    %69 = vector.load %arg7[%c0_56, %c0_57, %c0_58, %c0_59] : memref<1x8x8x32xbf16, #tpu.memory_space<vmem>>, vector<1x8x8x32xbf16>
    %70 = vector.shape_cast %69 : vector<1x8x8x32xbf16> to vector<8x8x32xbf16>
    %71 = vector.shape_cast %68 : vector<8x8x32xbf16> to vector<1x8x8x32xbf16>
    tpu.vector_store %arg7[%c0_56, %c0_57, %c0_58, %c0_59], %71 {strides = array<i32>} : memref<1x8x8x32xbf16, #tpu.memory_space<vmem>>, vector<1x8x8x32xbf16>,
    return
  }
  func.func @transform_0(%arg0: i32, %arg1: i32) -> (i32, i32, i32, i32) {
    %c0_i32 = arith.constant 0 : i32
    %c0_i32_0 = arith.constant 0 : i32
    %c0_i32_1 = arith.constant 0 : i32
    return %arg0, %arg1, %c0_i32, %c0_i32_0 : i32, i32, i32, i32
  }
  func.func @transform_1(%arg0: i32, %arg1: i32) -> (i32, i32, i32, i32) {
    %c1_i32 = arith.constant 1 : i32
    %0 = arith.addi %arg1, %c1_i32 : i32
    %c4_i32 = arith.constant 4 : i32
    %1 = arith.muli %0, %c4_i32 : i32
    %c0_i32 = arith.constant 0 : i32
    %c0_i32_0 = arith.constant 0 : i32
    %c0_i32_1 = arith.constant 0 : i32
    return %arg0, %1, %c0_i32, %c0_i32_0 : i32, i32, i32, i32
  }
  func.func @transform_2(%arg0: i32, %arg1: i32) -> (i32, i32, i32, i32) {
    %c0_i32 = arith.constant 0 : i32
    %c0_i32_0 = arith.constant 0 : i32
    %c0_i32_1 = arith.constant 0 : i32
    %c0_i32_2 = arith.constant 0 : i32
    %c0_i32_3 = arith.constant 0 : i32
    return %c0_i32, %c0_i32_0, %c0_i32_1, %c0_i32_2 : i32, i32, i32, i32
  }
  func.func @transform_3(%arg0: i32, %arg1: i32) -> (i32, i32) {
    %c0_i32 = arith.constant 0 : i32
    %c0_i32_0 = arith.constant 0 : i32
    %c0_i32_1 = arith.constant 0 : i32
    return %c0_i32, %c0_i32_0 : i32, i32
  }
  func.func @transform_4(%arg0: i32, %arg1: i32) -> (i32, i32, i32, i32) {
    %c0_i32 = arith.constant 0 : i32
    %c0_i32_0 = arith.constant 0 : i32
    %c0_i32_1 = arith.constant 0 : i32
    return %arg0, %arg1, %c0_i32, %c0_i32_0 : i32, i32, i32, i32
  }
  func.func @transform_5(%arg0: i32, %arg1: i32) -> (i32, i32, i32, i32) {
    %c0_i32 = arith.constant 0 : i32
    %c0_i32_0 = arith.constant 0 : i32
    %c0_i32_1 = arith.constant 0 : i32
    return %arg0, %arg1, %c0_i32, %c0_i32_0 : i32, i32, i32, i32
  }
}

module attributes {stable_mosaic.version = 11 : i64} {
  func.func @_block_kernel(%arg0: i32, %arg1: i32, %arg2: memref<1x8x10x32xbf16, #tpu.memory_space<vmem>>, %arg3: memref<1x2x10x32xbf16, #tpu.memory_space<vmem>>, %arg4: memref<1x32xf32, #tpu.memory_space<vmem>>, %arg5: memref<1x32xf32, #tpu.memory_space<vmem>>, %arg6: memref<32x32xbf16, #tpu.memory_space<vmem>>, %arg7: memref<32x32xbf16, #tpu.memory_space<vmem>>, %arg8: memref<3x3x32xf32, #tpu.memory_space<vmem>>, %arg9: memref<3x3x32xf32, #tpu.memory_space<vmem>>, %arg10: memref<32x32xbf16, #tpu.memory_space<vmem>>, %arg11: memref<1x8x8x32xbf16, #tpu.memory_space<vmem>>) attributes {dimension_semantics = [#tpu.dimension_semantics<parallel>, #tpu.dimension_semantics<parallel>], iteration_bounds = array<i64: 2, 1>, scalar_prefetch = 0 : i64, scratch_operands = 0 : i64, tpu.core_type = #tpu.core_type<tc>, window_params = [{transform_indices = @transform_0, window_bounds = array<i64: 1, 8, 10, 32>}, {transform_indices = @transform_1, window_bounds = array<i64: 1, 2, 10, 32>}, {pipeline_mode = #tpu.pipeline_mode<synchronous>, transform_indices = @transform_2, window_bounds = array<i64: 1, 32>}, {pipeline_mode = #tpu.pipeline_mode<synchronous>, transform_indices = @transform_3, window_bounds = array<i64: 1, 32>}, {pipeline_mode = #tpu.pipeline_mode<synchronous>, transform_indices = @transform_4, window_bounds = array<i64: 32, 32>}, {pipeline_mode = #tpu.pipeline_mode<synchronous>, transform_indices = @transform_5, window_bounds = array<i64: 32, 32>}, {pipeline_mode = #tpu.pipeline_mode<synchronous>, transform_indices = @transform_6, window_bounds = array<i64: 3, 3, 32>}, {pipeline_mode = #tpu.pipeline_mode<synchronous>, transform_indices = @transform_7, window_bounds = array<i64: 3, 3, 32>}, {pipeline_mode = #tpu.pipeline_mode<synchronous>, transform_indices = @transform_8, window_bounds = array<i64: 32, 32>}, {transform_indices = @transform_9, window_bounds = array<i64: 1, 8, 8, 32>}]} {
    %c0 = arith.constant 0 : index
    %c0_0 = arith.constant 0 : index
    %c0_1 = arith.constant 0 : index
    %c0_2 = arith.constant 0 : index
    %0 = vector.load %arg2[%c0, %c0_0, %c0_1, %c0_2] : memref<1x8x10x32xbf16, #tpu.memory_space<vmem>>, vector<1x8x10x32xbf16>
    %1 = vector.shape_cast %0 : vector<1x8x10x32xbf16> to vector<8x10x32xbf16>
    %c0_3 = arith.constant 0 : index
    %c0_4 = arith.constant 0 : index
    %c0_5 = arith.constant 0 : index
    %c0_6 = arith.constant 0 : index
    %2 = vector.load %arg3[%c0_3, %c0_4, %c0_5, %c0_6] : memref<1x2x10x32xbf16, #tpu.memory_space<vmem>>, vector<1x2x10x32xbf16>
    %3 = vector.shape_cast %2 : vector<1x2x10x32xbf16> to vector<2x10x32xbf16>
    %4 = tpu.concatenate %1, %3 in 0 : vector<8x10x32xbf16>, vector<2x10x32xbf16> -> vector<10x10x32xbf16>
    %5 = arith.extf %4 : vector<10x10x32xbf16> to vector<10x10x32xf32>
    %cst = arith.constant dense<0.000000e+00> : vector<10x10xf32>
    %6 = vector.multi_reduction <add>, %5, %cst [2] : vector<10x10x32xf32> to vector<10x10xf32>
    %7 = vector.shape_cast %6 : vector<10x10xf32> to vector<10x10x1xf32>
    %cst_7 = arith.constant 3.200000e+01 : f32
    %8 = vector.broadcast %cst_7 : f32 to vector<10x10x1xf32>
    %9 = arith.divf %7, %8 : vector<10x10x1xf32>
    %10 = vector.broadcast %9 : vector<10x10x1xf32> to vector<10x10x32xf32>
    %11 = arith.subf %5, %10 : vector<10x10x32xf32>
    %12 = arith.mulf %11, %11 : vector<10x10x32xf32>
    %cst_8 = arith.constant dense<0.000000e+00> : vector<10x10xf32>
    %13 = vector.multi_reduction <add>, %12, %cst_8 [2] : vector<10x10x32xf32> to vector<10x10xf32>
    %14 = vector.shape_cast %13 : vector<10x10xf32> to vector<10x10x1xf32>
    %cst_9 = arith.constant 3.200000e+01 : f32
    %15 = vector.broadcast %cst_9 : f32 to vector<10x10x1xf32>
    %16 = arith.divf %14, %15 : vector<10x10x1xf32>
    %17 = vector.broadcast %9 : vector<10x10x1xf32> to vector<10x10x32xf32>
    %18 = arith.subf %5, %17 : vector<10x10x32xf32>
    %cst_10 = arith.constant 9.99999974E-6 : f32
    %19 = vector.broadcast %cst_10 : f32 to vector<10x10x1xf32>
    %20 = arith.addf %16, %19 : vector<10x10x1xf32>
    %21 = math.rsqrt %20 : vector<10x10x1xf32>
    %22 = vector.broadcast %21 : vector<10x10x1xf32> to vector<10x10x32xf32>
    %23 = arith.mulf %18, %22 : vector<10x10x32xf32>
    %c0_11 = arith.constant 0 : index
    %c0_12 = arith.constant 0 : index
    %24 = vector.load %arg4[%c0_11, %c0_12] : memref<1x32xf32, #tpu.memory_space<vmem>>, vector<1x32xf32>
    %25 = vector.shape_cast %24 : vector<1x32xf32> to vector<1x1x32xf32>
    %26 = vector.broadcast %25 : vector<1x1x32xf32> to vector<10x10x32xf32>
    %27 = arith.mulf %23, %26 : vector<10x10x32xf32>
    %c0_13 = arith.constant 0 : index
    %c0_14 = arith.constant 0 : index
    %28 = vector.load %arg5[%c0_13, %c0_14] : memref<1x32xf32, #tpu.memory_space<vmem>>, vector<1x32xf32>
    %29 = vector.shape_cast %28 : vector<1x32xf32> to vector<1x1x32xf32>
    %30 = vector.broadcast %29 : vector<1x1x32xf32> to vector<10x10x32xf32>
    %31 = arith.addf %27, %30 : vector<10x10x32xf32>
    %32 = tpu.iota {dimensions = array<i32: 0>} : vector<10x10x1xi32>
    %c8_i32 = arith.constant 8 : i32
    %33 = arith.muli %arg1, %c8_i32 : i32
    %34 = vector.broadcast %33 : i32 to vector<10x10x1xi32>
    %35 = arith.addi %32, %34 : vector<10x10x1xi32>
    %36 = tpu.iota {dimensions = array<i32: 1>} : vector<10x10x1xi32>
    %c1_i32 = arith.constant 1 : i32
    %37 = vector.broadcast %c1_i32 : i32 to vector<10x10x1xi32>
    %38 = arith.cmpi sge, %35, %37 : vector<10x10x1xi32>
    %c8_i32_15 = arith.constant 8 : i32
    %39 = vector.broadcast %c8_i32_15 : i32 to vector<10x10x1xi32>
    %40 = arith.cmpi sle, %35, %39 : vector<10x10x1xi32>
    %41 = arith.andi %38, %40 : vector<10x10x1xi1>
    %c1_i32_16 = arith.constant 1 : i32
    %42 = vector.broadcast %c1_i32_16 : i32 to vector<10x10x1xi32>
    %43 = arith.cmpi sge, %36, %42 : vector<10x10x1xi32>
    %44 = arith.andi %41, %43 : vector<10x10x1xi1>
    %c8_i32_17 = arith.constant 8 : i32
    %45 = vector.broadcast %c8_i32_17 : i32 to vector<10x10x1xi32>
    %46 = arith.cmpi sle, %36, %45 : vector<10x10x1xi32>
    %47 = arith.andi %44, %46 : vector<10x10x1xi1>
    %cst_18 = arith.constant 0.000000e+00 : f32
    %48 = vector.shape_cast %47 : vector<10x10x1xi1> to vector<10x10x1xi1>
    %49 = vector.broadcast %48 : vector<10x10x1xi1> to vector<10x10x32xi1>
    %50 = vector.broadcast %cst_18 : f32 to vector<10x10x32xf32>
    %51 = arith.select %49, %31, %50 : vector<10x10x32xi1>, vector<10x10x32xf32>
    %52 = vector.shape_cast %51 : vector<10x10x32xf32> to vector<100x32xf32>
    %53 = arith.truncf %52 : vector<100x32xf32> to vector<100x32xbf16>
    %c0_19 = arith.constant 0 : index
    %c0_20 = arith.constant 0 : index
    %54 = vector.load %arg6[%c0_19, %c0_20] : memref<32x32xbf16, #tpu.memory_space<vmem>>, vector<32x32xbf16>
    %cst_21 = arith.constant dense<0.000000e+00> : vector<100x32xf32>
    %55 = tpu.matmul %53, %54, %cst_21 {dimension_numbers = #tpu.dot_dimension_numbers<[1], [0], [0], [1], [0, 0, 1, 1], [], []>} : vector<100x32xbf16>, vector<32x32xbf16>, vector<100x32xf32> -> vector<100x32xf32>
    %c0_22 = arith.constant 0 : index
    %c0_23 = arith.constant 0 : index
    %56 = vector.load %arg7[%c0_22, %c0_23] : memref<32x32xbf16, #tpu.memory_space<vmem>>, vector<32x32xbf16>
    %cst_24 = arith.constant dense<0.000000e+00> : vector<100x32xf32>
    %57 = tpu.matmul %53, %56, %cst_24 {dimension_numbers = #tpu.dot_dimension_numbers<[1], [0], [0], [1], [0, 0, 1, 1], [], []>} : vector<100x32xbf16>, vector<32x32xbf16>, vector<100x32xf32> -> vector<100x32xf32>
    %58 = vector.shape_cast %55 : vector<100x32xf32> to vector<10x10x32xf32>
    %59 = vector.shape_cast %57 : vector<100x32xf32> to vector<10x10x32xf32>
    %c0_25 = arith.constant 0 : index
    %c0_26 = arith.constant 0 : index
    %c0_27 = arith.constant 0 : index
    %60 = vector.load %arg8[%c0_25, %c0_26, %c0_27] : memref<3x3x32xf32, #tpu.memory_space<vmem>>, vector<3x3x32xf32>
    %c0_28 = arith.constant 0 : index
    %c0_29 = arith.constant 0 : index
    %c0_30 = arith.constant 0 : index
    %61 = vector.load %arg9[%c0_28, %c0_29, %c0_30] : memref<3x3x32xf32, #tpu.memory_space<vmem>>, vector<3x3x32xf32>
    %cst_31 = arith.constant 0.000000e+00 : f32
    %62 = vector.broadcast %cst_31 : f32 to vector<8x8x32xf32>
    %cst_32 = arith.constant 0.000000e+00 : f32
    %63 = vector.broadcast %cst_32 : f32 to vector<8x8x32xf32>
    %64 = vector.extract_strided_slice %58 {offsets = [0, 0, 0], sizes = [8, 8, 32], strides = [1, 1, 1]} : vector<10x10x32xf32> to vector<8x8x32xf32>
    %65 = vector.extract_strided_slice %60 {offsets = [0, 0, 0], sizes = [1, 1, 32], strides = [1, 1, 1]} : vector<3x3x32xf32> to vector<1x1x32xf32>
    %66 = vector.shape_cast %65 : vector<1x1x32xf32> to vector<32xf32>
    %67 = vector.shape_cast %66 : vector<32xf32> to vector<1x1x32xf32>
    %68 = vector.broadcast %67 : vector<1x1x32xf32> to vector<8x8x32xf32>
    %69 = arith.mulf %64, %68 : vector<8x8x32xf32>
    %70 = arith.addf %62, %69 : vector<8x8x32xf32>
    %71 = vector.extract_strided_slice %59 {offsets = [0, 0, 0], sizes = [8, 8, 32], strides = [1, 1, 1]} : vector<10x10x32xf32> to vector<8x8x32xf32>
    %72 = vector.extract_strided_slice %61 {offsets = [0, 0, 0], sizes = [1, 1, 32], strides = [1, 1, 1]} : vector<3x3x32xf32> to vector<1x1x32xf32>
    %73 = vector.shape_cast %72 : vector<1x1x32xf32> to vector<32xf32>
    %74 = vector.shape_cast %73 : vector<32xf32> to vector<1x1x32xf32>
    %75 = vector.broadcast %74 : vector<1x1x32xf32> to vector<8x8x32xf32>
    %76 = arith.mulf %71, %75 : vector<8x8x32xf32>
    %77 = arith.addf %63, %76 : vector<8x8x32xf32>
    %78 = vector.extract_strided_slice %58 {offsets = [0, 1, 0], sizes = [8, 8, 32], strides = [1, 1, 1]} : vector<10x10x32xf32> to vector<8x8x32xf32>
    %79 = vector.extract_strided_slice %60 {offsets = [0, 1, 0], sizes = [1, 1, 32], strides = [1, 1, 1]} : vector<3x3x32xf32> to vector<1x1x32xf32>
    %80 = vector.shape_cast %79 : vector<1x1x32xf32> to vector<32xf32>
    %81 = vector.shape_cast %80 : vector<32xf32> to vector<1x1x32xf32>
    %82 = vector.broadcast %81 : vector<1x1x32xf32> to vector<8x8x32xf32>
    %83 = arith.mulf %78, %82 : vector<8x8x32xf32>
    %84 = arith.addf %70, %83 : vector<8x8x32xf32>
    %85 = vector.extract_strided_slice %59 {offsets = [0, 1, 0], sizes = [8, 8, 32], strides = [1, 1, 1]} : vector<10x10x32xf32> to vector<8x8x32xf32>
    %86 = vector.extract_strided_slice %61 {offsets = [0, 1, 0], sizes = [1, 1, 32], strides = [1, 1, 1]} : vector<3x3x32xf32> to vector<1x1x32xf32>
    %87 = vector.shape_cast %86 : vector<1x1x32xf32> to vector<32xf32>
    %88 = vector.shape_cast %87 : vector<32xf32> to vector<1x1x32xf32>
    %89 = vector.broadcast %88 : vector<1x1x32xf32> to vector<8x8x32xf32>
    %90 = arith.mulf %85, %89 : vector<8x8x32xf32>
    %91 = arith.addf %77, %90 : vector<8x8x32xf32>
    %92 = vector.extract_strided_slice %58 {offsets = [0, 2, 0], sizes = [8, 8, 32], strides = [1, 1, 1]} : vector<10x10x32xf32> to vector<8x8x32xf32>
    %93 = vector.extract_strided_slice %60 {offsets = [0, 2, 0], sizes = [1, 1, 32], strides = [1, 1, 1]} : vector<3x3x32xf32> to vector<1x1x32xf32>
    %94 = vector.shape_cast %93 : vector<1x1x32xf32> to vector<32xf32>
    %95 = vector.shape_cast %94 : vector<32xf32> to vector<1x1x32xf32>
    %96 = vector.broadcast %95 : vector<1x1x32xf32> to vector<8x8x32xf32>
    %97 = arith.mulf %92, %96 : vector<8x8x32xf32>
    %98 = arith.addf %84, %97 : vector<8x8x32xf32>
    %99 = vector.extract_strided_slice %59 {offsets = [0, 2, 0], sizes = [8, 8, 32], strides = [1, 1, 1]} : vector<10x10x32xf32> to vector<8x8x32xf32>
    %100 = vector.extract_strided_slice %61 {offsets = [0, 2, 0], sizes = [1, 1, 32], strides = [1, 1, 1]} : vector<3x3x32xf32> to vector<1x1x32xf32>
    %101 = vector.shape_cast %100 : vector<1x1x32xf32> to vector<32xf32>
    %102 = vector.shape_cast %101 : vector<32xf32> to vector<1x1x32xf32>
    %103 = vector.broadcast %102 : vector<1x1x32xf32> to vector<8x8x32xf32>
    %104 = arith.mulf %99, %103 : vector<8x8x32xf32>
    %105 = arith.addf %91, %104 : vector<8x8x32xf32>
    %106 = vector.extract_strided_slice %58 {offsets = [1, 0, 0], sizes = [8, 8, 32], strides = [1, 1, 1]} : vector<10x10x32xf32> to vector<8x8x32xf32>
    %107 = vector.extract_strided_slice %60 {offsets = [1, 0, 0], sizes = [1, 1, 32], strides = [1, 1, 1]} : vector<3x3x32xf32> to vector<1x1x32xf32>
    %108 = vector.shape_cast %107 : vector<1x1x32xf32> to vector<32xf32>
    %109 = vector.shape_cast %108 : vector<32xf32> to vector<1x1x32xf32>
    %110 = vector.broadcast %109 : vector<1x1x32xf32> to vector<8x8x32xf32>
    %111 = arith.mulf %106, %110 : vector<8x8x32xf32>
    %112 = arith.addf %98, %111 : vector<8x8x32xf32>
    %113 = vector.extract_strided_slice %59 {offsets = [1, 0, 0], sizes = [8, 8, 32], strides = [1, 1, 1]} : vector<10x10x32xf32> to vector<8x8x32xf32>
    %114 = vector.extract_strided_slice %61 {offsets = [1, 0, 0], sizes = [1, 1, 32], strides = [1, 1, 1]} : vector<3x3x32xf32> to vector<1x1x32xf32>
    %115 = vector.shape_cast %114 : vector<1x1x32xf32> to vector<32xf32>
    %116 = vector.shape_cast %115 : vector<32xf32> to vector<1x1x32xf32>
    %117 = vector.broadcast %116 : vector<1x1x32xf32> to vector<8x8x32xf32>
    %118 = arith.mulf %113, %117 : vector<8x8x32xf32>
    %119 = arith.addf %105, %118 : vector<8x8x32xf32>
    %120 = vector.extract_strided_slice %58 {offsets = [1, 1, 0], sizes = [8, 8, 32], strides = [1, 1, 1]} : vector<10x10x32xf32> to vector<8x8x32xf32>
    %121 = vector.extract_strided_slice %60 {offsets = [1, 1, 0], sizes = [1, 1, 32], strides = [1, 1, 1]} : vector<3x3x32xf32> to vector<1x1x32xf32>
    %122 = vector.shape_cast %121 : vector<1x1x32xf32> to vector<32xf32>
    %123 = vector.shape_cast %122 : vector<32xf32> to vector<1x1x32xf32>
    %124 = vector.broadcast %123 : vector<1x1x32xf32> to vector<8x8x32xf32>
    %125 = arith.mulf %120, %124 : vector<8x8x32xf32>
    %126 = arith.addf %112, %125 : vector<8x8x32xf32>
    %127 = vector.extract_strided_slice %59 {offsets = [1, 1, 0], sizes = [8, 8, 32], strides = [1, 1, 1]} : vector<10x10x32xf32> to vector<8x8x32xf32>
    %128 = vector.extract_strided_slice %61 {offsets = [1, 1, 0], sizes = [1, 1, 32], strides = [1, 1, 1]} : vector<3x3x32xf32> to vector<1x1x32xf32>
    %129 = vector.shape_cast %128 : vector<1x1x32xf32> to vector<32xf32>
    %130 = vector.shape_cast %129 : vector<32xf32> to vector<1x1x32xf32>
    %131 = vector.broadcast %130 : vector<1x1x32xf32> to vector<8x8x32xf32>
    %132 = arith.mulf %127, %131 : vector<8x8x32xf32>
    %133 = arith.addf %119, %132 : vector<8x8x32xf32>
    %134 = vector.extract_strided_slice %58 {offsets = [1, 2, 0], sizes = [8, 8, 32], strides = [1, 1, 1]} : vector<10x10x32xf32> to vector<8x8x32xf32>
    %135 = vector.extract_strided_slice %60 {offsets = [1, 2, 0], sizes = [1, 1, 32], strides = [1, 1, 1]} : vector<3x3x32xf32> to vector<1x1x32xf32>
    %136 = vector.shape_cast %135 : vector<1x1x32xf32> to vector<32xf32>
    %137 = vector.shape_cast %136 : vector<32xf32> to vector<1x1x32xf32>
    %138 = vector.broadcast %137 : vector<1x1x32xf32> to vector<8x8x32xf32>
    %139 = arith.mulf %134, %138 : vector<8x8x32xf32>
    %140 = arith.addf %126, %139 : vector<8x8x32xf32>
    %141 = vector.extract_strided_slice %59 {offsets = [1, 2, 0], sizes = [8, 8, 32], strides = [1, 1, 1]} : vector<10x10x32xf32> to vector<8x8x32xf32>
    %142 = vector.extract_strided_slice %61 {offsets = [1, 2, 0], sizes = [1, 1, 32], strides = [1, 1, 1]} : vector<3x3x32xf32> to vector<1x1x32xf32>
    %143 = vector.shape_cast %142 : vector<1x1x32xf32> to vector<32xf32>
    %144 = vector.shape_cast %143 : vector<32xf32> to vector<1x1x32xf32>
    %145 = vector.broadcast %144 : vector<1x1x32xf32> to vector<8x8x32xf32>
    %146 = arith.mulf %141, %145 : vector<8x8x32xf32>
    %147 = arith.addf %133, %146 : vector<8x8x32xf32>
    %148 = vector.extract_strided_slice %58 {offsets = [2, 0, 0], sizes = [8, 8, 32], strides = [1, 1, 1]} : vector<10x10x32xf32> to vector<8x8x32xf32>
    %149 = vector.extract_strided_slice %60 {offsets = [2, 0, 0], sizes = [1, 1, 32], strides = [1, 1, 1]} : vector<3x3x32xf32> to vector<1x1x32xf32>
    %150 = vector.shape_cast %149 : vector<1x1x32xf32> to vector<32xf32>
    %151 = vector.shape_cast %150 : vector<32xf32> to vector<1x1x32xf32>
    %152 = vector.broadcast %151 : vector<1x1x32xf32> to vector<8x8x32xf32>
    %153 = arith.mulf %148, %152 : vector<8x8x32xf32>
    %154 = arith.addf %140, %153 : vector<8x8x32xf32>
    %155 = vector.extract_strided_slice %59 {offsets = [2, 0, 0], sizes = [8, 8, 32], strides = [1, 1, 1]} : vector<10x10x32xf32> to vector<8x8x32xf32>
    %156 = vector.extract_strided_slice %61 {offsets = [2, 0, 0], sizes = [1, 1, 32], strides = [1, 1, 1]} : vector<3x3x32xf32> to vector<1x1x32xf32>
    %157 = vector.shape_cast %156 : vector<1x1x32xf32> to vector<32xf32>
    %158 = vector.shape_cast %157 : vector<32xf32> to vector<1x1x32xf32>
    %159 = vector.broadcast %158 : vector<1x1x32xf32> to vector<8x8x32xf32>
    %160 = arith.mulf %155, %159 : vector<8x8x32xf32>
    %161 = arith.addf %147, %160 : vector<8x8x32xf32>
    %162 = vector.extract_strided_slice %58 {offsets = [2, 1, 0], sizes = [8, 8, 32], strides = [1, 1, 1]} : vector<10x10x32xf32> to vector<8x8x32xf32>
    %163 = vector.extract_strided_slice %60 {offsets = [2, 1, 0], sizes = [1, 1, 32], strides = [1, 1, 1]} : vector<3x3x32xf32> to vector<1x1x32xf32>
    %164 = vector.shape_cast %163 : vector<1x1x32xf32> to vector<32xf32>
    %165 = vector.shape_cast %164 : vector<32xf32> to vector<1x1x32xf32>
    %166 = vector.broadcast %165 : vector<1x1x32xf32> to vector<8x8x32xf32>
    %167 = arith.mulf %162, %166 : vector<8x8x32xf32>
    %168 = arith.addf %154, %167 : vector<8x8x32xf32>
    %169 = vector.extract_strided_slice %59 {offsets = [2, 1, 0], sizes = [8, 8, 32], strides = [1, 1, 1]} : vector<10x10x32xf32> to vector<8x8x32xf32>
    %170 = vector.extract_strided_slice %61 {offsets = [2, 1, 0], sizes = [1, 1, 32], strides = [1, 1, 1]} : vector<3x3x32xf32> to vector<1x1x32xf32>
    %171 = vector.shape_cast %170 : vector<1x1x32xf32> to vector<32xf32>
    %172 = vector.shape_cast %171 : vector<32xf32> to vector<1x1x32xf32>
    %173 = vector.broadcast %172 : vector<1x1x32xf32> to vector<8x8x32xf32>
    %174 = arith.mulf %169, %173 : vector<8x8x32xf32>
    %175 = arith.addf %161, %174 : vector<8x8x32xf32>
    %176 = vector.extract_strided_slice %58 {offsets = [2, 2, 0], sizes = [8, 8, 32], strides = [1, 1, 1]} : vector<10x10x32xf32> to vector<8x8x32xf32>
    %177 = vector.extract_strided_slice %60 {offsets = [2, 2, 0], sizes = [1, 1, 32], strides = [1, 1, 1]} : vector<3x3x32xf32> to vector<1x1x32xf32>
    %178 = vector.shape_cast %177 : vector<1x1x32xf32> to vector<32xf32>
    %179 = vector.shape_cast %178 : vector<32xf32> to vector<1x1x32xf32>
    %180 = vector.broadcast %179 : vector<1x1x32xf32> to vector<8x8x32xf32>
    %181 = arith.mulf %176, %180 : vector<8x8x32xf32>
    %182 = arith.addf %168, %181 : vector<8x8x32xf32>
    %183 = vector.extract_strided_slice %59 {offsets = [2, 2, 0], sizes = [8, 8, 32], strides = [1, 1, 1]} : vector<10x10x32xf32> to vector<8x8x32xf32>
    %184 = vector.extract_strided_slice %61 {offsets = [2, 2, 0], sizes = [1, 1, 32], strides = [1, 1, 1]} : vector<3x3x32xf32> to vector<1x1x32xf32>
    %185 = vector.shape_cast %184 : vector<1x1x32xf32> to vector<32xf32>
    %186 = vector.shape_cast %185 : vector<32xf32> to vector<1x1x32xf32>
    %187 = vector.broadcast %186 : vector<1x1x32xf32> to vector<8x8x32xf32>
    %188 = arith.mulf %183, %187 : vector<8x8x32xf32>
    %189 = arith.addf %175, %188 : vector<8x8x32xf32>
    %cst_33 = arith.constant 5.000000e-01 : f32
    %190 = vector.broadcast %cst_33 : f32 to vector<8x8x32xf32>
    %191 = arith.mulf %190, %182 : vector<8x8x32xf32>
    %cst_34 = arith.constant 0.707106769 : f32
    %192 = vector.broadcast %cst_34 : f32 to vector<8x8x32xf32>
    %193 = arith.mulf %182, %192 : vector<8x8x32xf32>
    %cst_35 = arith.constant 0.000000e+00 : f32
    %194 = vector.broadcast %cst_35 : f32 to vector<8x8x32xf32>
    %195 = arith.cmpf oge, %193, %194 : vector<8x8x32xf32>
    %cst_36 = arith.constant 1.000000e+00 : f32
    %cst_37 = arith.constant -1.000000e+00 : f32
    %196 = vector.broadcast %cst_36 : f32 to vector<8x8x32xf32>
    %197 = vector.broadcast %cst_37 : f32 to vector<8x8x32xf32>
    %198 = arith.select %195, %196, %197 : vector<8x8x32xi1>, vector<8x8x32xf32>
    %199 = math.absf %193 : vector<8x8x32xf32>
    %cst_38 = arith.constant 0.327591091 : f32
    %200 = vector.broadcast %cst_38 : f32 to vector<8x8x32xf32>
    %201 = arith.mulf %200, %199 : vector<8x8x32xf32>
    %cst_39 = arith.constant 1.000000e+00 : f32
    %202 = vector.broadcast %cst_39 : f32 to vector<8x8x32xf32>
    %203 = arith.addf %202, %201 : vector<8x8x32xf32>
    %cst_40 = arith.constant 1.000000e+00 : f32
    %204 = vector.broadcast %cst_40 : f32 to vector<8x8x32xf32>
    %205 = arith.divf %204, %203 : vector<8x8x32xf32>
    %cst_41 = arith.constant 1.06140542 : f32
    %206 = vector.broadcast %cst_41 : f32 to vector<8x8x32xf32>
    %207 = arith.mulf %206, %205 : vector<8x8x32xf32>
    %cst_42 = arith.constant -1.45315206 : f32
    %208 = vector.broadcast %cst_42 : f32 to vector<8x8x32xf32>
    %209 = arith.addf %207, %208 : vector<8x8x32xf32>
    %210 = arith.mulf %209, %205 : vector<8x8x32xf32>
    %cst_43 = arith.constant 1.42141378 : f32
    %211 = vector.broadcast %cst_43 : f32 to vector<8x8x32xf32>
    %212 = arith.addf %210, %211 : vector<8x8x32xf32>
    %213 = arith.mulf %212, %205 : vector<8x8x32xf32>
    %cst_44 = arith.constant -0.284496725 : f32
    %214 = vector.broadcast %cst_44 : f32 to vector<8x8x32xf32>
    %215 = arith.addf %213, %214 : vector<8x8x32xf32>
    %216 = arith.mulf %215, %205 : vector<8x8x32xf32>
    %cst_45 = arith.constant 0.254829586 : f32
    %217 = vector.broadcast %cst_45 : f32 to vector<8x8x32xf32>
    %218 = arith.addf %216, %217 : vector<8x8x32xf32>
    %219 = arith.mulf %218, %205 : vector<8x8x32xf32>
    %cst_46 = arith.constant 0.000000e+00 : f32
    %220 = vector.broadcast %cst_46 : f32 to vector<8x8x32xf32>
    %221 = arith.subf %220, %199 : vector<8x8x32xf32>
    %222 = arith.mulf %221, %199 : vector<8x8x32xf32>
    %223 = math.exp %222 : vector<8x8x32xf32>
    %224 = arith.mulf %219, %223 : vector<8x8x32xf32>
    %cst_47 = arith.constant 1.000000e+00 : f32
    %225 = vector.broadcast %cst_47 : f32 to vector<8x8x32xf32>
    %226 = arith.subf %225, %224 : vector<8x8x32xf32>
    %227 = arith.mulf %198, %226 : vector<8x8x32xf32>
    %cst_48 = arith.constant 1.000000e+00 : f32
    %228 = vector.broadcast %cst_48 : f32 to vector<8x8x32xf32>
    %229 = arith.addf %228, %227 : vector<8x8x32xf32>
    %230 = arith.mulf %191, %229 : vector<8x8x32xf32>
    %231 = arith.mulf %230, %189 : vector<8x8x32xf32>
    %232 = vector.shape_cast %231 : vector<8x8x32xf32> to vector<64x32xf32>
    %233 = arith.truncf %232 : vector<64x32xf32> to vector<64x32xbf16>
    %c0_49 = arith.constant 0 : index
    %c0_50 = arith.constant 0 : index
    %234 = vector.load %arg10[%c0_49, %c0_50] : memref<32x32xbf16, #tpu.memory_space<vmem>>, vector<32x32xbf16>
    %cst_51 = arith.constant dense<0.000000e+00> : vector<64x32xf32>
    %235 = tpu.matmul %233, %234, %cst_51 {dimension_numbers = #tpu.dot_dimension_numbers<[1], [0], [0], [1], [0, 0, 1, 1], [], []>} : vector<64x32xbf16>, vector<32x32xbf16>, vector<64x32xf32> -> vector<64x32xf32>
    %236 = vector.extract_strided_slice %5 {offsets = [1, 1, 0], sizes = [8, 8, 32], strides = [1, 1, 1]} : vector<10x10x32xf32> to vector<8x8x32xf32>
    %237 = vector.shape_cast %235 : vector<64x32xf32> to vector<8x8x32xf32>
    %238 = arith.addf %236, %237 : vector<8x8x32xf32>
    %239 = arith.truncf %238 : vector<8x8x32xf32> to vector<8x8x32xbf16>
    %c0_52 = arith.constant 0 : index
    %c0_53 = arith.constant 0 : index
    %c0_54 = arith.constant 0 : index
    %c0_55 = arith.constant 0 : index
    %240 = vector.load %arg11[%c0_52, %c0_53, %c0_54, %c0_55] : memref<1x8x8x32xbf16, #tpu.memory_space<vmem>>, vector<1x8x8x32xbf16>
    %241 = vector.shape_cast %240 : vector<1x8x8x32xbf16> to vector<8x8x32xbf16>
    %242 = vector.shape_cast %239 : vector<8x8x32xbf16> to vector<1x8x8x32xbf16>
    tpu.vector_store %arg11[%c0_52, %c0_53, %c0_54, %c0_55], %242 {strides = array<i32>} : memref<1x8x8x32xbf16, #tpu.memory_space<vmem>>, vector<1x8x8x32xbf16>,
    return
  }
  func.func @transform_0(%arg0: i32, %arg1: i32) -> (i32, i32, i32, i32) {
    %c0_i32 = arith.constant 0 : i32
    %c0_i32_0 = arith.constant 0 : i32
    %c0_i32_1 = arith.constant 0 : i32
    return %arg0, %arg1, %c0_i32, %c0_i32_0 : i32, i32, i32, i32
  }
  func.func @transform_1(%arg0: i32, %arg1: i32) -> (i32, i32, i32, i32) {
    %c1_i32 = arith.constant 1 : i32
    %0 = arith.addi %arg1, %c1_i32 : i32
    %c4_i32 = arith.constant 4 : i32
    %1 = arith.muli %0, %c4_i32 : i32
    %c0_i32 = arith.constant 0 : i32
    %c0_i32_0 = arith.constant 0 : i32
    %c0_i32_1 = arith.constant 0 : i32
    return %arg0, %1, %c0_i32, %c0_i32_0 : i32, i32, i32, i32
  }
  func.func @transform_2(%arg0: i32, %arg1: i32) -> (i32, i32) {
    %c0_i32 = arith.constant 0 : i32
    %c0_i32_0 = arith.constant 0 : i32
    %c0_i32_1 = arith.constant 0 : i32
    return %c0_i32, %c0_i32_0 : i32, i32
  }
  func.func @transform_3(%arg0: i32, %arg1: i32) -> (i32, i32) {
    %c0_i32 = arith.constant 0 : i32
    %c0_i32_0 = arith.constant 0 : i32
    %c0_i32_1 = arith.constant 0 : i32
    return %c0_i32, %c0_i32_0 : i32, i32
  }
  func.func @transform_4(%arg0: i32, %arg1: i32) -> (i32, i32) {
    %c0_i32 = arith.constant 0 : i32
    %c0_i32_0 = arith.constant 0 : i32
    %c0_i32_1 = arith.constant 0 : i32
    return %c0_i32, %c0_i32_0 : i32, i32
  }
  func.func @transform_5(%arg0: i32, %arg1: i32) -> (i32, i32) {
    %c0_i32 = arith.constant 0 : i32
    %c0_i32_0 = arith.constant 0 : i32
    %c0_i32_1 = arith.constant 0 : i32
    return %c0_i32, %c0_i32_0 : i32, i32
  }
  func.func @transform_6(%arg0: i32, %arg1: i32) -> (i32, i32, i32) {
    %c0_i32 = arith.constant 0 : i32
    %c0_i32_0 = arith.constant 0 : i32
    %c0_i32_1 = arith.constant 0 : i32
    %c0_i32_2 = arith.constant 0 : i32
    return %c0_i32, %c0_i32_0, %c0_i32_1 : i32, i32, i32
  }
  func.func @transform_7(%arg0: i32, %arg1: i32) -> (i32, i32, i32) {
    %c0_i32 = arith.constant 0 : i32
    %c0_i32_0 = arith.constant 0 : i32
    %c0_i32_1 = arith.constant 0 : i32
    %c0_i32_2 = arith.constant 0 : i32
    return %c0_i32, %c0_i32_0, %c0_i32_1 : i32, i32, i32
  }
  func.func @transform_8(%arg0: i32, %arg1: i32) -> (i32, i32) {
    %c0_i32 = arith.constant 0 : i32
    %c0_i32_0 = arith.constant 0 : i32
    %c0_i32_1 = arith.constant 0 : i32
    return %c0_i32, %c0_i32_0 : i32, i32
  }
  func.func @transform_9(%arg0: i32, %arg1: i32) -> (i32, i32, i32, i32) {
    %c0_i32 = arith.constant 0 : i32
    %c0_i32_0 = arith.constant 0 : i32
    %c0_i32_1 = arith.constant 0 : i32
    return %arg0, %arg1, %c0_i32, %c0_i32_0 : i32, i32, i32, i32
  }
}

module attributes {stable_mosaic.version = 11 : i64} {
  func.func @_conv3x3_kernel(%arg0: i32, %arg1: i32, %arg2: memref<1x8x10x32xbf16, #tpu.memory_space<vmem>>, %arg3: memref<1x2x10x32xbf16, #tpu.memory_space<vmem>>, %arg4: memref<3x3x32x12xbf16, #tpu.memory_space<vmem>>, %arg5: memref<1x12xf32, #tpu.memory_space<vmem>>, %arg6: memref<1x8x8x12xf32, #tpu.memory_space<vmem>>) attributes {dimension_semantics = [#tpu.dimension_semantics<parallel>, #tpu.dimension_semantics<parallel>], iteration_bounds = array<i64: 2, 1>, scalar_prefetch = 0 : i64, scratch_operands = 0 : i64, tpu.core_type = #tpu.core_type<tc>, window_params = [{transform_indices = @transform_0, window_bounds = array<i64: 1, 8, 10, 32>}, {transform_indices = @transform_1, window_bounds = array<i64: 1, 2, 10, 32>}, {pipeline_mode = #tpu.pipeline_mode<synchronous>, transform_indices = @transform_2, window_bounds = array<i64: 3, 3, 32, 12>}, {pipeline_mode = #tpu.pipeline_mode<synchronous>, transform_indices = @transform_3, window_bounds = array<i64: 1, 12>}, {transform_indices = @transform_4, window_bounds = array<i64: 1, 8, 8, 12>}]} {
    %c0 = arith.constant 0 : index
    %c0_0 = arith.constant 0 : index
    %c0_1 = arith.constant 0 : index
    %c0_2 = arith.constant 0 : index
    %0 = vector.load %arg2[%c0, %c0_0, %c0_1, %c0_2] : memref<1x8x10x32xbf16, #tpu.memory_space<vmem>>, vector<1x8x10x32xbf16>
    %1 = vector.shape_cast %0 : vector<1x8x10x32xbf16> to vector<8x10x32xbf16>
    %c0_3 = arith.constant 0 : index
    %c0_4 = arith.constant 0 : index
    %c0_5 = arith.constant 0 : index
    %c0_6 = arith.constant 0 : index
    %2 = vector.load %arg3[%c0_3, %c0_4, %c0_5, %c0_6] : memref<1x2x10x32xbf16, #tpu.memory_space<vmem>>, vector<1x2x10x32xbf16>
    %3 = vector.shape_cast %2 : vector<1x2x10x32xbf16> to vector<2x10x32xbf16>
    %4 = tpu.concatenate %1, %3 in 0 : vector<8x10x32xbf16>, vector<2x10x32xbf16> -> vector<10x10x32xbf16>
    %cst = arith.constant 0.000000e+00 : f32
    %5 = vector.broadcast %cst : f32 to vector<64x12xf32>
    %6 = vector.extract_strided_slice %4 {offsets = [0, 0, 0], sizes = [8, 8, 32], strides = [1, 1, 1]} : vector<10x10x32xbf16> to vector<8x8x32xbf16>
    %7 = vector.shape_cast %6 : vector<8x8x32xbf16> to vector<64x32xbf16>
    %c0_7 = arith.constant 0 : index
    %c0_8 = arith.constant 0 : index
    %c0_9 = arith.constant 0 : index
    %c0_10 = arith.constant 0 : index
    %8 = vector.load %arg4[%c0_7, %c0_8, %c0_9, %c0_10] : memref<3x3x32x12xbf16, #tpu.memory_space<vmem>>, vector<1x1x32x12xbf16>
    %9 = vector.shape_cast %8 : vector<1x1x32x12xbf16> to vector<32x12xbf16>
    %cst_11 = arith.constant dense<0.000000e+00> : vector<64x12xf32>
    %10 = tpu.matmul %7, %9, %cst_11 {dimension_numbers = #tpu.dot_dimension_numbers<[1], [0], [0], [1], [0, 0, 1, 1], [], []>} : vector<64x32xbf16>, vector<32x12xbf16>, vector<64x12xf32> -> vector<64x12xf32>
    %11 = arith.addf %5, %10 : vector<64x12xf32>
    %12 = vector.extract_strided_slice %4 {offsets = [0, 1, 0], sizes = [8, 8, 32], strides = [1, 1, 1]} : vector<10x10x32xbf16> to vector<8x8x32xbf16>
    %13 = vector.shape_cast %12 : vector<8x8x32xbf16> to vector<64x32xbf16>
    %c0_12 = arith.constant 0 : index
    %c1 = arith.constant 1 : index
    %c0_13 = arith.constant 0 : index
    %c0_14 = arith.constant 0 : index
    %14 = vector.load %arg4[%c0_12, %c1, %c0_13, %c0_14] : memref<3x3x32x12xbf16, #tpu.memory_space<vmem>>, vector<1x1x32x12xbf16>
    %15 = vector.shape_cast %14 : vector<1x1x32x12xbf16> to vector<32x12xbf16>
    %cst_15 = arith.constant dense<0.000000e+00> : vector<64x12xf32>
    %16 = tpu.matmul %13, %15, %cst_15 {dimension_numbers = #tpu.dot_dimension_numbers<[1], [0], [0], [1], [0, 0, 1, 1], [], []>} : vector<64x32xbf16>, vector<32x12xbf16>, vector<64x12xf32> -> vector<64x12xf32>
    %17 = arith.addf %11, %16 : vector<64x12xf32>
    %18 = vector.extract_strided_slice %4 {offsets = [0, 2, 0], sizes = [8, 8, 32], strides = [1, 1, 1]} : vector<10x10x32xbf16> to vector<8x8x32xbf16>
    %19 = vector.shape_cast %18 : vector<8x8x32xbf16> to vector<64x32xbf16>
    %c0_16 = arith.constant 0 : index
    %c2 = arith.constant 2 : index
    %c0_17 = arith.constant 0 : index
    %c0_18 = arith.constant 0 : index
    %20 = vector.load %arg4[%c0_16, %c2, %c0_17, %c0_18] : memref<3x3x32x12xbf16, #tpu.memory_space<vmem>>, vector<1x1x32x12xbf16>
    %21 = vector.shape_cast %20 : vector<1x1x32x12xbf16> to vector<32x12xbf16>
    %cst_19 = arith.constant dense<0.000000e+00> : vector<64x12xf32>
    %22 = tpu.matmul %19, %21, %cst_19 {dimension_numbers = #tpu.dot_dimension_numbers<[1], [0], [0], [1], [0, 0, 1, 1], [], []>} : vector<64x32xbf16>, vector<32x12xbf16>, vector<64x12xf32> -> vector<64x12xf32>
    %23 = arith.addf %17, %22 : vector<64x12xf32>
    %24 = vector.extract_strided_slice %4 {offsets = [1, 0, 0], sizes = [8, 8, 32], strides = [1, 1, 1]} : vector<10x10x32xbf16> to vector<8x8x32xbf16>
    %25 = vector.shape_cast %24 : vector<8x8x32xbf16> to vector<64x32xbf16>
    %c1_20 = arith.constant 1 : index
    %c0_21 = arith.constant 0 : index
    %c0_22 = arith.constant 0 : index
    %c0_23 = arith.constant 0 : index
    %26 = vector.load %arg4[%c1_20, %c0_21, %c0_22, %c0_23] : memref<3x3x32x12xbf16, #tpu.memory_space<vmem>>, vector<1x1x32x12xbf16>
    %27 = vector.shape_cast %26 : vector<1x1x32x12xbf16> to vector<32x12xbf16>
    %cst_24 = arith.constant dense<0.000000e+00> : vector<64x12xf32>
    %28 = tpu.matmul %25, %27, %cst_24 {dimension_numbers = #tpu.dot_dimension_numbers<[1], [0], [0], [1], [0, 0, 1, 1], [], []>} : vector<64x32xbf16>, vector<32x12xbf16>, vector<64x12xf32> -> vector<64x12xf32>
    %29 = arith.addf %23, %28 : vector<64x12xf32>
    %30 = vector.extract_strided_slice %4 {offsets = [1, 1, 0], sizes = [8, 8, 32], strides = [1, 1, 1]} : vector<10x10x32xbf16> to vector<8x8x32xbf16>
    %31 = vector.shape_cast %30 : vector<8x8x32xbf16> to vector<64x32xbf16>
    %c1_25 = arith.constant 1 : index
    %c1_26 = arith.constant 1 : index
    %c0_27 = arith.constant 0 : index
    %c0_28 = arith.constant 0 : index
    %32 = vector.load %arg4[%c1_25, %c1_26, %c0_27, %c0_28] : memref<3x3x32x12xbf16, #tpu.memory_space<vmem>>, vector<1x1x32x12xbf16>
    %33 = vector.shape_cast %32 : vector<1x1x32x12xbf16> to vector<32x12xbf16>
    %cst_29 = arith.constant dense<0.000000e+00> : vector<64x12xf32>
    %34 = tpu.matmul %31, %33, %cst_29 {dimension_numbers = #tpu.dot_dimension_numbers<[1], [0], [0], [1], [0, 0, 1, 1], [], []>} : vector<64x32xbf16>, vector<32x12xbf16>, vector<64x12xf32> -> vector<64x12xf32>
    %35 = arith.addf %29, %34 : vector<64x12xf32>
    %36 = vector.extract_strided_slice %4 {offsets = [1, 2, 0], sizes = [8, 8, 32], strides = [1, 1, 1]} : vector<10x10x32xbf16> to vector<8x8x32xbf16>
    %37 = vector.shape_cast %36 : vector<8x8x32xbf16> to vector<64x32xbf16>
    %c1_30 = arith.constant 1 : index
    %c2_31 = arith.constant 2 : index
    %c0_32 = arith.constant 0 : index
    %c0_33 = arith.constant 0 : index
    %38 = vector.load %arg4[%c1_30, %c2_31, %c0_32, %c0_33] : memref<3x3x32x12xbf16, #tpu.memory_space<vmem>>, vector<1x1x32x12xbf16>
    %39 = vector.shape_cast %38 : vector<1x1x32x12xbf16> to vector<32x12xbf16>
    %cst_34 = arith.constant dense<0.000000e+00> : vector<64x12xf32>
    %40 = tpu.matmul %37, %39, %cst_34 {dimension_numbers = #tpu.dot_dimension_numbers<[1], [0], [0], [1], [0, 0, 1, 1], [], []>} : vector<64x32xbf16>, vector<32x12xbf16>, vector<64x12xf32> -> vector<64x12xf32>
    %41 = arith.addf %35, %40 : vector<64x12xf32>
    %42 = vector.extract_strided_slice %4 {offsets = [2, 0, 0], sizes = [8, 8, 32], strides = [1, 1, 1]} : vector<10x10x32xbf16> to vector<8x8x32xbf16>
    %43 = vector.shape_cast %42 : vector<8x8x32xbf16> to vector<64x32xbf16>
    %c2_35 = arith.constant 2 : index
    %c0_36 = arith.constant 0 : index
    %c0_37 = arith.constant 0 : index
    %c0_38 = arith.constant 0 : index
    %44 = vector.load %arg4[%c2_35, %c0_36, %c0_37, %c0_38] : memref<3x3x32x12xbf16, #tpu.memory_space<vmem>>, vector<1x1x32x12xbf16>
    %45 = vector.shape_cast %44 : vector<1x1x32x12xbf16> to vector<32x12xbf16>
    %cst_39 = arith.constant dense<0.000000e+00> : vector<64x12xf32>
    %46 = tpu.matmul %43, %45, %cst_39 {dimension_numbers = #tpu.dot_dimension_numbers<[1], [0], [0], [1], [0, 0, 1, 1], [], []>} : vector<64x32xbf16>, vector<32x12xbf16>, vector<64x12xf32> -> vector<64x12xf32>
    %47 = arith.addf %41, %46 : vector<64x12xf32>
    %48 = vector.extract_strided_slice %4 {offsets = [2, 1, 0], sizes = [8, 8, 32], strides = [1, 1, 1]} : vector<10x10x32xbf16> to vector<8x8x32xbf16>
    %49 = vector.shape_cast %48 : vector<8x8x32xbf16> to vector<64x32xbf16>
    %c2_40 = arith.constant 2 : index
    %c1_41 = arith.constant 1 : index
    %c0_42 = arith.constant 0 : index
    %c0_43 = arith.constant 0 : index
    %50 = vector.load %arg4[%c2_40, %c1_41, %c0_42, %c0_43] : memref<3x3x32x12xbf16, #tpu.memory_space<vmem>>, vector<1x1x32x12xbf16>
    %51 = vector.shape_cast %50 : vector<1x1x32x12xbf16> to vector<32x12xbf16>
    %cst_44 = arith.constant dense<0.000000e+00> : vector<64x12xf32>
    %52 = tpu.matmul %49, %51, %cst_44 {dimension_numbers = #tpu.dot_dimension_numbers<[1], [0], [0], [1], [0, 0, 1, 1], [], []>} : vector<64x32xbf16>, vector<32x12xbf16>, vector<64x12xf32> -> vector<64x12xf32>
    %53 = arith.addf %47, %52 : vector<64x12xf32>
    %54 = vector.extract_strided_slice %4 {offsets = [2, 2, 0], sizes = [8, 8, 32], strides = [1, 1, 1]} : vector<10x10x32xbf16> to vector<8x8x32xbf16>
    %55 = vector.shape_cast %54 : vector<8x8x32xbf16> to vector<64x32xbf16>
    %c2_45 = arith.constant 2 : index
    %c2_46 = arith.constant 2 : index
    %c0_47 = arith.constant 0 : index
    %c0_48 = arith.constant 0 : index
    %56 = vector.load %arg4[%c2_45, %c2_46, %c0_47, %c0_48] : memref<3x3x32x12xbf16, #tpu.memory_space<vmem>>, vector<1x1x32x12xbf16>
    %57 = vector.shape_cast %56 : vector<1x1x32x12xbf16> to vector<32x12xbf16>
    %cst_49 = arith.constant dense<0.000000e+00> : vector<64x12xf32>
    %58 = tpu.matmul %55, %57, %cst_49 {dimension_numbers = #tpu.dot_dimension_numbers<[1], [0], [0], [1], [0, 0, 1, 1], [], []>} : vector<64x32xbf16>, vector<32x12xbf16>, vector<64x12xf32> -> vector<64x12xf32>
    %59 = arith.addf %53, %58 : vector<64x12xf32>
    %c0_50 = arith.constant 0 : index
    %c0_51 = arith.constant 0 : index
    %60 = vector.load %arg5[%c0_50, %c0_51] : memref<1x12xf32, #tpu.memory_space<vmem>>, vector<1x12xf32>
    %61 = vector.broadcast %60 : vector<1x12xf32> to vector<64x12xf32>
    %62 = arith.addf %59, %61 : vector<64x12xf32>
    %63 = vector.shape_cast %62 : vector<64x12xf32> to vector<8x8x12xf32>
    %c0_52 = arith.constant 0 : index
    %c0_53 = arith.constant 0 : index
    %c0_54 = arith.constant 0 : index
    %c0_55 = arith.constant 0 : index
    %64 = vector.load %arg6[%c0_52, %c0_53, %c0_54, %c0_55] : memref<1x8x8x12xf32, #tpu.memory_space<vmem>>, vector<1x8x8x12xf32>
    %65 = vector.shape_cast %64 : vector<1x8x8x12xf32> to vector<8x8x12xf32>
    %66 = vector.shape_cast %63 : vector<8x8x12xf32> to vector<1x8x8x12xf32>
    tpu.vector_store %arg6[%c0_52, %c0_53, %c0_54, %c0_55], %66 {strides = array<i32>} : memref<1x8x8x12xf32, #tpu.memory_space<vmem>>, vector<1x8x8x12xf32>,
    return
  }
  func.func @transform_0(%arg0: i32, %arg1: i32) -> (i32, i32, i32, i32) {
    %c0_i32 = arith.constant 0 : i32
    %c0_i32_0 = arith.constant 0 : i32
    %c0_i32_1 = arith.constant 0 : i32
    return %arg0, %arg1, %c0_i32, %c0_i32_0 : i32, i32, i32, i32
  }
  func.func @transform_1(%arg0: i32, %arg1: i32) -> (i32, i32, i32, i32) {
    %c1_i32 = arith.constant 1 : i32
    %0 = arith.addi %arg1, %c1_i32 : i32
    %c4_i32 = arith.constant 4 : i32
    %1 = arith.muli %0, %c4_i32 : i32
    %c0_i32 = arith.constant 0 : i32
    %c0_i32_0 = arith.constant 0 : i32
    %c0_i32_1 = arith.constant 0 : i32
    return %arg0, %1, %c0_i32, %c0_i32_0 : i32, i32, i32, i32
  }
  func.func @transform_2(%arg0: i32, %arg1: i32) -> (i32, i32, i32, i32) {
    %c0_i32 = arith.constant 0 : i32
    %c0_i32_0 = arith.constant 0 : i32
    %c0_i32_1 = arith.constant 0 : i32
    %c0_i32_2 = arith.constant 0 : i32
    %c0_i32_3 = arith.constant 0 : i32
    return %c0_i32, %c0_i32_0, %c0_i32_1, %c0_i32_2 : i32, i32, i32, i32
  }
  func.func @transform_3(%arg0: i32, %arg1: i32) -> (i32, i32) {
    %c0_i32 = arith.constant 0 : i32
    %c0_i32_0 = arith.constant 0 : i32
    %c0_i32_1 = arith.constant 0 : i32
    return %c0_i32, %c0_i32_0 : i32, i32
  }
  func.func @transform_4(%arg0: i32, %arg1: i32) -> (i32, i32, i32, i32) {
    %c0_i32 = arith.constant 0 : i32
    %c0_i32_0 = arith.constant 0 : i32
    %c0_i32_1 = arith.constant 0 : i32
    return %arg0, %arg1, %c0_i32, %c0_i32_0 : i32, i32, i32, i32
  }
}

</mosaic_0001>

<llo_original>
// kernel: pht_forward.11
$region0: #{pht_forward.11}
  #allocation0 [shape = 'u32[]', space=smem, size = 0x4, offset = 0x4, fixed_abs, tag = 'smem constant byte address 0x4 - core index']
  #allocation1 [shape = 'u32[144,128]{1,0:T(1,128)}', space=vmem, size = 0x12000, scoped, tag = 'internal scratch']
  %s0 = inlined_call_operand.vmem [shape: bf16[2,10,10,32], index: 0, kind: input, shape index: {}, may-alias: {0,1}]
  %s1 = inlined_call_operand.vmem [shape: bf16[2,10,10,32], index: 1, kind: input, shape index: {}, may-alias: {0,1}]
  %s2 = inlined_call_operand.vmem [shape: bf16[3,3,32,32], index: 2, kind: input, shape index: {}]
  %s3 = inlined_call_operand.vmem [shape: f32[1,32], index: 3, kind: input, shape index: {}]
  %s4 = inlined_call_operand.vmem [shape: bf16[2,8,8,32], index: 4, kind: input, shape index: {}]
  %s5 = inlined_call_operand.vmem [shape: bf16[2,8,8,32], index: 5, kind: output, shape index: {}]
  %s6 = sld [smem:[#allocation0]]
  $region53: #{pht_forward.11} parent=0
    _
  %s8 = ssub.s32 1, %s6
  %s9 = scalar_select 0, %s8, %s6
  loop: start=0, step=1, limit=4
  $region2: #{pht_forward.11} parent=0 // loop_pre_header
    _
  $region3: #{pht_forward.11} parent=0 // loop_header
    %s11 = sphi 0, %s15
    %p12 = scmp.ge.s32.totalorder %s11, 4
    %s18 = sphi 0, %s30
    %s19 = sphi 0, %s26
    %s20 = sphi 0, %s18
    %s21 = sphi 0, %s19
    %s22 = sphi 0, %s20
    %s23 = sphi 0, %s21
    %s35 = sphi 0, %s37
    %s38 = sphi 0, %s35
    %s39 = sphi 0, %s38
    %s55 = sphi 0, %s39
    %s67 = sphi 0, %s69
    %s70 = sphi 0, %s67
    %s71 = sphi 0, %s70
    %s87 = sphi 0, %s71
    %s91 = sphi 0, %s91
    %s93 = sphi 0, %s91
    %s94 = sphi 0, %s93
    %s108 = sphi 0, %s94
    %s112 = sphi 0, %s112
    %s114 = sphi 0, %s112
    %s115 = sphi 0, %s114
    %s129 = sphi 0, %s115
    %s137 = sphi 0, %s139
    %s140 = sphi 0, %s137
    %s141 = sphi 0, %s140
    %s157 = sphi 0, %s141
    %s165 = sphi 0, %s167
    %s168 = sphi 0, %s165
    %s169 = sphi 0, %s168
    %s185 = sphi 0, %s169
  $region4: #{pht_forward.11} parent=0 // loop_header_branch
    %14 = sbr.rel (%p12) target = $region8
  $region5: #{pht_forward.11} parent=0 // loop_body
    %s16 = ssub.s32 %s11, 1
    %s17 = ssub.s32 %s11, 2
    %s24 = sadd.s32 1, %s19
    %p25 = scmp.ge.s32.totalorder %s24, 1
    %s26 = scalar_select %p25, 0, %s24
    %s27 = sadd.s32 1, %s18
    %s28 = scalar_select %p25, %s27, %s18
    %p29 = scmp.ge.s32.totalorder %s28, 2
    %s30 = scalar_select %p29, 0, %s28
    %s31 = ssub.s32 %s18, %s30
    %s32 = ssub.s32 %s19, %s26
    %s33 = sor.u32 %s31, %s32
    %p34 = scmp.eq.s32.totalorder %s33, 0
    %s36 = sadd.s32 %s35, 1
    %s37 = scalar_select %p34, %s35, %s36
    %p40 = pneg %p34
    %p41 = scmp.eq.s32.totalorder %s11, 1
    %p42 = por %p40, %p41
    %p43 = scmp.ne.s32.totalorder %s35, %s38
    %p44 = scmp.eq.s32.totalorder %s11, 0
    %p45 = por %p43, %p44
    %p46 = scmp.ne.s32.totalorder %s35, %s38
    %p47 = scmp.eq.s32.totalorder %s16, 1
    %p48 = por %p46, %p47
    %p49 = scmp.ne.s32.totalorder %s38, %s39
    %p50 = scmp.eq.s32.totalorder %s16, 0
    %p51 = por %p49, %p50
    %p52 = scmp.ne.s32.totalorder %s38, %s39
    %p53 = scmp.eq.s32.totalorder %s17, 1
    %p54 = por %p52, %p53
    %p56 = scmp.ne.s32.totalorder %s39, %s55
    %p57 = scmp.eq.s32.totalorder %s17, 0
    %p58 = por %p56, %p57
    %s59 = sadd.s32 %s19, 1
    %s60 = smul.u32 %s59, 4
    %s61 = sadd.s32 %s26, 1
    %s62 = smul.u32 %s61, 4
    %s63 = ssub.s32 %s18, %s30
    %s64 = ssub.s32 %s60, %s62
    %s65 = sor.u32 %s63, %s64
    %p66 = scmp.eq.s32.totalorder %s65, 0
    %s68 = sadd.s32 %s67, 1
    %s69 = scalar_select %p66, %s67, %s68
    %p72 = pneg %p66
    %p73 = scmp.eq.s32.totalorder %s11, 1
    %p74 = por %p72, %p73
    %p75 = scmp.ne.s32.totalorder %s67, %s70
    %p76 = scmp.eq.s32.totalorder %s11, 0
    %p77 = por %p75, %p76
    %p78 = scmp.ne.s32.totalorder %s67, %s70
    %p79 = scmp.eq.s32.totalorder %s16, 1
    %p80 = por %p78, %p79
    %p81 = scmp.ne.s32.totalorder %s70, %s71
    %p82 = scmp.eq.s32.totalorder %s16, 0
    %p83 = por %p81, %p82
    %p84 = scmp.ne.s32.totalorder %s70, %s71
    %p85 = scmp.eq.s32.totalorder %s17, 1
    %p86 = por %p84, %p85
    %p88 = scmp.ne.s32.totalorder %s71, %s87
    %p89 = scmp.eq.s32.totalorder %s17, 0
    %p90 = por %p88, %p89
    %s92 = sadd.s32 %s91, 1
    %p95 = scmp.eq.s32.totalorder %s11, 1
    %p96 = scmp.ne.s32.totalorder %s91, %s93
    %p97 = scmp.eq.s32.totalorder %s11, 0
    %p98 = por %p96, %p97
    %p99 = scmp.ne.s32.totalorder %s91, %s93
    %p100 = scmp.eq.s32.totalorder %s16, 1
    %p101 = por %p99, %p100
    %p102 = scmp.ne.s32.totalorder %s93, %s94
    %p103 = scmp.eq.s32.totalorder %s16, 0
    %p104 = por %p102, %p103
    %p105 = scmp.ne.s32.totalorder %s93, %s94
    %p106 = scmp.eq.s32.totalorder %s17, 1
    %p107 = por %p105, %p106
    %p109 = scmp.ne.s32.totalorder %s94, %s108
    %p110 = scmp.eq.s32.totalorder %s17, 0
    %p111 = por %p109, %p110
    %s113 = sadd.s32 %s112, 1
    %p116 = scmp.eq.s32.totalorder %s11, 1
    %p117 = scmp.ne.s32.totalorder %s112, %s114
    %p118 = scmp.eq.s32.totalorder %s11, 0
    %p119 = por %p117, %p118
    %p120 = scmp.ne.s32.totalorder %s112, %s114
    %p121 = scmp.eq.s32.totalorder %s16, 1
    %p122 = por %p120, %p121
    %p123 = scmp.ne.s32.totalorder %s114, %s115
    %p124 = scmp.eq.s32.totalorder %s16, 0
    %p125 = por %p123, %p124
    %p126 = scmp.ne.s32.totalorder %s114, %s115
    %p127 = scmp.eq.s32.totalorder %s17, 1
    %p128 = por %p126, %p127
    %p130 = scmp.ne.s32.totalorder %s115, %s129
    %p131 = scmp.eq.s32.totalorder %s17, 0
    %p132 = por %p130, %p131
    %s133 = ssub.s32 %s18, %s30
    %s134 = ssub.s32 %s19, %s26
    %s135 = sor.u32 %s133, %s134
    %p136 = scmp.eq.s32.totalorder %s135, 0
    %s138 = sadd.s32 %s137, 1
    %s139 = scalar_select %p136, %s137, %s138
    %p142 = pneg %p136
    %p143 = scmp.eq.s32.totalorder %s11, 1
    %p144 = por %p142, %p143
    %p145 = scmp.ne.s32.totalorder %s137, %s140
    %p146 = scmp.eq.s32.totalorder %s11, 0
    %p147 = por %p145, %p146
    %p148 = scmp.ne.s32.totalorder %s137, %s140
    %p149 = scmp.eq.s32.totalorder %s16, 1
    %p150 = por %p148, %p149
    %p151 = scmp.ne.s32.totalorder %s140, %s141
    %p152 = scmp.eq.s32.totalorder %s16, 0
    %p153 = por %p151, %p152
    %p154 = scmp.ne.s32.totalorder %s140, %s141
    %p155 = scmp.eq.s32.totalorder %s17, 1
    %p156 = por %p154, %p155
    %p158 = scmp.ne.s32.totalorder %s141, %s157
    %p159 = scmp.eq.s32.totalorder %s17, 0
    %p160 = por %p158, %p159
    %s161 = ssub.s32 %s18, %s30
    %s162 = ssub.s32 %s19, %s26
    %s163 = sor.u32 %s161, %s162
    %p164 = scmp.eq.s32.totalorder %s163, 0
    %s166 = sadd.s32 %s165, 1
    %s167 = scalar_select %p164, %s165, %s166
    %p170 = pneg %p164
    %p171 = scmp.eq.s32.totalorder %s11, 1
    %p172 = por %p170, %p171
    %p173 = scmp.ne.s32.totalorder %s165, %s168
    %p174 = scmp.eq.s32.totalorder %s11, 0
    %p175 = por %p173, %p174
    %p176 = scmp.ne.s32.totalorder %s165, %s168
    %p177 = scmp.eq.s32.totalorder %s16, 1
    %p178 = por %p176, %p177
    %p179 = scmp.ne.s32.totalorder %s168, %s169
    %p180 = scmp.eq.s32.totalorder %s16, 0
    %p181 = por %p179, %p180
    %p182 = scmp.ne.s32.totalorder %s168, %s169
    %p183 = scmp.eq.s32.totalorder %s17, 1
    %p184 = por %p182, %p183
    %p186 = scmp.ne.s32.totalorder %s169, %s185
    %p187 = scmp.eq.s32.totalorder %s17, 0
    %p188 = por %p186, %p187
    %p189 = scmp.le.s32.totalorder 1, %s11
    %p190 = scmp.lt.s32.totalorder %s11, 3
    %p191 = pnand %p189, %p190
    %p192 = pneg %p191
    // Predicated region
    $region9: #{pht_forward.11} parent=5 // pred_check
      _
    $region10: #{pht_forward.11} parent=5 // pred_check_branch
      %194 = sbr.rel (%p191) target = $region12
    $region11: #{pht_forward.11} parent=5 // pred_region
      %s195 = ssub.s32 %s11, 1
      // Predicated region
      $region13: #{pht_forward.11} parent=11 // pred_check
        %p196 = pneg %p104
      $region14: #{pht_forward.11} parent=11 // pred_check_branch
        %198 = sbr.rel (%p196) target = $region16
      $region15: #{pht_forward.11} parent=11 // pred_region
        _
      $region16: #{pht_forward.11} parent=11 // pred_fallthru
        _
      // Predicated region
      $region17: #{pht_forward.11} parent=11 // pred_check
        %p199 = pneg %p125
      $region18: #{pht_forward.11} parent=11 // pred_check_branch
        %201 = sbr.rel (%p199) target = $region20
      $region19: #{pht_forward.11} parent=11 // pred_region
        _
      $region20: #{pht_forward.11} parent=11 // pred_fallthru
        _
    $region12: #{pht_forward.11} parent=5 // pred_fallthru
      _
    %p202 = scmp.lt.s32.totalorder %s11, 2
    // Predicated region
    $region21: #{pht_forward.11} parent=5 // pred_check
      %p203 = pneg %p202
    $region22: #{pht_forward.11} parent=5 // pred_check_branch
      %205 = sbr.rel (%p203) target = $region24
    $region23: #{pht_forward.11} parent=5 // pred_region
      // Predicated region
      $region25: #{pht_forward.11} parent=23 // pred_check
        %p206 = pneg %p45
      $region26: #{pht_forward.11} parent=23 // pred_check_branch
        %208 = sbr.rel (%p206) target = $region28
      $region27: #{pht_forward.11} parent=23 // pred_region
        %s209 = smul.u32 8, %s19
        %s210 = ssub.s32 10, %s209
        %p211 = scmp.lt.s32.totalorder %s210, 8
        %s212 = scalar_select %p211, %s210, 8
        %s213 = smul.u32 64, %s212
        %s214 = smul.u32 %s213, 2
        %p215 = scmp.lt.s32.totalorder %s18, 1
        %s216 = scalar_select %p215, %s18, 1
        %p217 = scmp.lt.s32.totalorder %s209, 9
        %s218 = scalar_select %p217, %s209, 9
        %s219 = smul.addr %s218, 2
        %s220 = smul.addr %s216, 20
        %s221 = sadd.s32 %s219, %s220
        %s222 = smul.addr %s221, 4
        %s223 = scalar_lea.vmem %s0, %s222
        %s224 = smul.u32 8, %s19
        %s225 = ssub.s32 10, %s224
        %p226 = scmp.lt.s32.totalorder %s225, 8
        %s227 = scalar_select %p226, %s225, 8
        %s228 = smul.u32 64, %s227
        %s229 = smul.u32 %s228, 2
      $region28: #{pht_forward.11} parent=23 // pred_fallthru
        _
      // Predicated region
      $region29: #{pht_forward.11} parent=23 // pred_check
        %p230 = pneg %p77
      $region30: #{pht_forward.11} parent=23 // pred_check_branch
        %232 = sbr.rel (%p230) target = $region32
      $region31: #{pht_forward.11} parent=23 // pred_region
        %s233 = sadd.s32 %s19, 1
        %s234 = smul.u32 %s233, 4
        %s235 = smul.u32 2, %s234
        %p236 = scmp.lt.s32.totalorder %s18, 1
        %s237 = scalar_select %p236, %s18, 1
        %p238 = scmp.lt.s32.totalorder %s235, 9
        %s239 = scalar_select %p238, %s235, 9
        %s240 = smul.addr %s239, 2
        %s241 = smul.addr %s237, 20
        %s242 = sadd.s32 %s240, %s241
        %s243 = smul.addr %s242, 4
        %s244 = scalar_lea.vmem %s1, %s243
        %s245 = sadd.s32 %s19, 1
        %s246 = smul.u32 %s245, 4
        %s247 = smul.u32 2, %s246
      $region32: #{pht_forward.11} parent=23 // pred_fallthru
        _
      // Predicated region
      $region33: #{pht_forward.11} parent=23 // pred_check
        %p248 = pneg %p147
      $region34: #{pht_forward.11} parent=23 // pred_check_branch
        %250 = sbr.rel (%p248) target = $region36
      $region35: #{pht_forward.11} parent=23 // pred_region
        %s251 = smul.u32 8, %s19
        %p252 = scmp.lt.s32.totalorder %s18, 1
        %s253 = scalar_select %p252, %s18, 1
        %p254 = scmp.lt.s32.totalorder %s251, 7
        %s255 = scalar_select %p254, %s251, 7
        %s256 = smul.addr %s253, 8
        %s257 = sadd.s32 %s255, %s256
        %s258 = smul.addr %s257, 4
        %s259 = scalar_lea.vmem %s4, %s258
        %s260 = smul.u32 8, %s19
      $region36: #{pht_forward.11} parent=23 // pred_fallthru
        _
    $region24: #{pht_forward.11} parent=5 // pred_fallthru
      _
    %p261 = scmp.le.s32.totalorder 1, %s11
    %p262 = scmp.lt.s32.totalorder %s11, 3
    %p263 = pnand %p261, %p262
    %p264 = pneg %p263
    // Predicated region
    $region37: #{pht_forward.11} parent=5 // pred_check
      _
    $region38: #{pht_forward.11} parent=5 // pred_check_branch
      %266 = sbr.rel (%p263) target = $region40
    $region39: #{pht_forward.11} parent=5 // pred_region
      %s267 = ssub.s32 %s11, 1
      %s268 = smul.u32 8, %s21
      %s269 = ssub.s32 10, %s268
      %p270 = scmp.lt.s32.totalorder %s269, 8
      %s271 = scalar_select %p270, %s269, 8
      %s272 = smul.u32 64, %s271
      %s273 = smul.u32 %s272, 2
      %p274 = scmp.lt.s32.totalorder %s20, 1
      %s275 = scalar_select %p274, %s20, 1
      %p276 = scmp.lt.s32.totalorder %s268, 9
      %s277 = scalar_select %p276, %s268, 9
      %s278 = smul.addr %s277, 2
      %s279 = smul.addr %s275, 20
      %s280 = sadd.s32 %s278, %s279
      %s281 = smul.addr %s280, 4
      %s282 = scalar_lea.vmem %s0, %s281
      %p283 = pneg %p51
      %p284 = pneg %p48
      %s285 = sadd.s32 %s21, 1
      %s286 = smul.u32 %s285, 4
      %s287 = smul.u32 2, %s286
      %p288 = scmp.lt.s32.totalorder %s20, 1
      %s289 = scalar_select %p288, %s20, 1
      %p290 = scmp.lt.s32.totalorder %s287, 9
      %s291 = scalar_select %p290, %s287, 9
      %s292 = smul.addr %s291, 2
      %s293 = smul.addr %s289, 20
      %s294 = sadd.s32 %s292, %s293
      %s295 = smul.addr %s294, 4
      %s296 = scalar_lea.vmem %s1, %s295
      %p297 = pneg %p83
      %p298 = pneg %p80
      %p299 = pneg %p104
      %p300 = pneg %p101
      %p301 = pneg %p125
      %p302 = pneg %p122
      %s303 = smul.u32 8, %s21
      %p304 = scmp.lt.s32.totalorder %s20, 1
      %s305 = scalar_select %p304, %s20, 1
      %p306 = scmp.lt.s32.totalorder %s303, 7
      %s307 = scalar_select %p306, %s303, 7
      %s308 = smul.addr %s305, 8
      %s309 = sadd.s32 %s307, %s308
      %s310 = smul.addr %s309, 4
      %s311 = scalar_lea.vmem %s4, %s310
      %p312 = pneg %p153
      %p313 = pneg %p150
      %p314 = pneg %p181
      %p315 = pneg %p178
      %s316 = smul.u32 8, %s21
      %p317 = scmp.lt.s32.totalorder %s20, 1
      %s318 = scalar_select %p317, %s20, 1
      %p319 = scmp.lt.s32.totalorder %s316, 7
      %s320 = scalar_select %p319, %s316, 7
      %s321 = smul.addr %s318, 8
      %s322 = sadd.s32 %s320, %s321
      %s323 = smul.addr %s322, 4
      %s324 = scalar_lea.vmem %s5, %s323
      %s325 = smul.u32 8, %s21
      %s326 = ssub.s32 10, %s325
      %p327 = scmp.lt.s32.totalorder %s326, 8
      %s328 = scalar_select %p327, %s326, 8
      %s329 = smul.u32 64, %s328
      %s330 = smul.u32 %s329, 2
      %p331 = scmp.lt.s32.totalorder %s20, 1
      %s332 = scalar_select %p331, %s20, 1
      %p333 = scmp.lt.s32.totalorder %s325, 9
      %s334 = scalar_select %p333, %s325, 9
      %s335 = smul.addr %s334, 2
      %s336 = smul.addr %s332, 20
      %s337 = sadd.s32 %s335, %s336
      %s338 = smul.addr %s337, 4
      %s339 = scalar_lea.vmem %s0, %s338
      %s340 = smul.u32 8, %s21
      %s341 = ssub.s32 10, %s340
      %p342 = scmp.lt.s32.totalorder %s341, 8
      %s343 = scalar_select %p342, %s341, 8
      %s344 = smul.u32 64, %s343
      %s345 = smul.u32 %s344, 2
      %s346 = sadd.s32 %s21, 1
      %s347 = smul.u32 %s346, 4
      %s348 = smul.u32 2, %s347
      %p349 = scmp.lt.s32.totalorder %s20, 1
      %s350 = scalar_select %p349, %s20, 1
      %p351 = scmp.lt.s32.totalorder %s348, 9
      %s352 = scalar_select %p351, %s348, 9
      %s353 = smul.addr %s352, 2
      %s354 = smul.addr %s350, 20
      %s355 = sadd.s32 %s353, %s354
      %s356 = smul.addr %s355, 4
      %s357 = scalar_lea.vmem %s1, %s356
      %s358 = sadd.s32 %s21, 1
      %s359 = smul.u32 %s358, 4
      %s360 = smul.u32 2, %s359
      %s361 = smul.u32 8, %s21
      %p362 = scmp.lt.s32.totalorder %s20, 1
      %s363 = scalar_select %p362, %s20, 1
      %p364 = scmp.lt.s32.totalorder %s361, 7
      %s365 = scalar_select %p364, %s361, 7
      %s366 = smul.addr %s363, 8
      %s367 = sadd.s32 %s365, %s366
      %s368 = smul.addr %s367, 4
      %s369 = scalar_lea.vmem %s4, %s368
      %s370 = smul.u32 8, %s21
      %s371 = smul.u32 8, %s21
      %p372 = scmp.lt.s32.totalorder %s20, 1
      %s373 = scalar_select %p372, %s20, 1
      %p374 = scmp.lt.s32.totalorder %s371, 7
      %s375 = scalar_select %p374, %s371, 7
      %s376 = smul.addr %s373, 8
      %s377 = sadd.s32 %s375, %s376
      %s378 = smul.addr %s377, 4
      %s379 = scalar_lea.vmem %s5, %s378
      %s380 = smul.u32 8, %s21
      %v382 = vld [vmem:[%s339] sm:$0xf]
      %v383 = vld [vmem:[%s339 + $0x4] sm:$0x1]
      %v384 = vld [vmem:[%s339 + $0x8] sm:$0xf]
      %v385 = vld [vmem:[%s339 + $0xc] sm:$0x1]
      %v386 = vld [vmem:[%s339 + $0x10] sm:$0xf]
      %v387 = vld [vmem:[%s339 + $0x14] sm:$0x1]
      %v388 = vld [vmem:[%s339 + $0x18] sm:$0xf]
      %v389 = vld [vmem:[%s339 + $0x1c] sm:$0x1]
      %v390 = vld [vmem:[%s339 + $0x20] sm:$0xf]
      %v391 = vld [vmem:[%s339 + $0x24] sm:$0x1]
      %v392 = vld [vmem:[%s339 + $0x28] sm:$0xf]
      %v393 = vld [vmem:[%s339 + $0x2c] sm:$0x1]
      %v394 = vld [vmem:[%s339 + $0x30] sm:$0xf]
      %v395 = vld [vmem:[%s339 + $0x34] sm:$0x1]
      %v396 = vld [vmem:[%s339 + $0x38] sm:$0xf]
      %v397 = vld [vmem:[%s339 + $0x3c] sm:$0x1]
      %v398 = vld [vmem:[%s357] sm:$0xf]
      %v399 = vld [vmem:[%s357 + $0x4] sm:$0x1]
      %v400 = vld [vmem:[%s357 + $0x8] sm:$0xf]
      %v401 = vld [vmem:[%s357 + $0xc] sm:$0x1]
      %v402 = vld [vmem:[%s2] sm:$0xf]
      %v403 = vld [vmem:[%s2 + $0x4] sm:$0xf]
      %v404 = vld [vmem:[%s2 + $0x8] sm:$0xf]
      %v405 = vld [vmem:[%s2 + $0xc] sm:$0xf]
      %vm406 = vsmask.f32 3328
      %vm407 = vsmask.f32 7440
      %vm408 = vmor %vm406, %vm407
      %v410 = vshrl.u32 %v382, 16
      %v412 = vrot.slane %v410, 4
      %v413 = vshll.u32 %v382, 16
      %v415 = vrot.slane %v413, 5
      %v416 = vor.u32 %v412, %v415
      %v417 = vrot.slane %v416, 4
      %v419 = vshll.u32 %v383, 16
      %v421 = vrot.slane %v419, 5
      %v422 = vsel %vm408, %v417, %v421
      %v424 = vshrl.u32 %v384, 16
      %v426 = vrot.slane %v424, 4
      %v427 = vshll.u32 %v384, 16
      %v429 = vrot.slane %v427, 5
      %v430 = vor.u32 %v426, %v429
      %v431 = vrot.slane %v430, 4
      %v433 = vshll.u32 %v385, 16
      %v435 = vrot.slane %v433, 5
      %v436 = vsel %vm408, %v431, %v435
      %v438 = vshrl.u32 %v386, 16
      %v440 = vrot.slane %v438, 4
      %v441 = vshll.u32 %v386, 16
      %v443 = vrot.slane %v441, 5
      %v444 = vor.u32 %v440, %v443
      %v445 = vrot.slane %v444, 4
      %v447 = vshll.u32 %v387, 16
      %v449 = vrot.slane %v447, 5
      %v450 = vsel %vm408, %v445, %v449
      %v452 = vshrl.u32 %v388, 16
      %v454 = vrot.slane %v452, 4
      %v455 = vshll.u32 %v388, 16
      %v457 = vrot.slane %v455, 5
      %v458 = vor.u32 %v454, %v457
      %v459 = vrot.slane %v458, 4
      %v461 = vshll.u32 %v389, 16
      %v463 = vrot.slane %v461, 5
      %v464 = vsel %vm408, %v459, %v463
      %v466 = vshrl.u32 %v390, 16
      %v468 = vrot.slane %v466, 4
      %v469 = vshll.u32 %v390, 16
      %v471 = vrot.slane %v469, 5
      %v472 = vor.u32 %v468, %v471
      %v473 = vrot.slane %v472, 4
      %v475 = vshll.u32 %v391, 16
      %v477 = vrot.slane %v475, 5
      %v478 = vsel %vm408, %v473, %v477
      %v480 = vshrl.u32 %v392, 16
      %v482 = vrot.slane %v480, 4
      %v483 = vshll.u32 %v392, 16
      %v485 = vrot.slane %v483, 5
      %v486 = vor.u32 %v482, %v485
      %v487 = vrot.slane %v486, 4
      %v489 = vshll.u32 %v393, 16
      %v491 = vrot.slane %v489, 5
      %v492 = vsel %vm408, %v487, %v491
      %v494 = vshrl.u32 %v394, 16
      %v496 = vrot.slane %v494, 4
      %v497 = vshll.u32 %v394, 16
      %v499 = vrot.slane %v497, 5
      %v500 = vor.u32 %v496, %v499
      %v501 = vrot.slane %v500, 4
      %v503 = vshll.u32 %v395, 16
      %v505 = vrot.slane %v503, 5
      %v506 = vsel %vm408, %v501, %v505
      %v508 = vshrl.u32 %v396, 16
      %v510 = vrot.slane %v508, 4
      %v511 = vshll.u32 %v396, 16
      %v513 = vrot.slane %v511, 5
      %v514 = vor.u32 %v510, %v513
      %v515 = vrot.slane %v514, 4
      %v517 = vshll.u32 %v397, 16
      %v519 = vrot.slane %v517, 5
      %v520 = vsel %vm408, %v515, %v519
      %s521 = scalar_lea.vmem %s2, 16
      %v522 = vld [vmem:[%s521] sm:$0xf]
      %v523 = vld [vmem:[%s521 + $0x4] sm:$0xf]
      %v524 = vld [vmem:[%s521 + $0x8] sm:$0xf]
      %v525 = vld [vmem:[%s521 + $0xc] sm:$0xf]
      %v526 = vunpack.c.l.b16 %v422
      %v527 = vunpack.c.l.b16 %v436
      %v528 = vunpack.c.l.b16 %v450
      %v529 = vunpack.c.l.b16 %v464
      %v530 = vunpack.c.l.b16 %v478
      %v531 = vunpack.c.l.b16 %v492
      %v532 = vunpack.c.l.b16 %v506
      %v533 = vunpack.c.l.b16 %v520
      %v534 = vpack.c.b16 %v527, %v526
      %v535 = vpack.c.b16 %v529, %v528
      %v536 = vpack.c.b16 %v531, %v530
      %v537 = vpack.c.b16 %v533, %v532
      %v542 = vunpack.c.l.b16 %v522
      %v543 = vunpack.c.l.b16 %v523
      %v544 = vunpack.c.l.b16 %v524
      %v545 = vunpack.c.l.b16 %v525
      %v546 = vpack.c.b16 %v543, %v542
      %v547 = vpack.c.b16 %v545, %v544
      %vm550 = vcmask 261120
      %v552 = vsel %vm550, %v534, 0
      %v555 = vsel %vm550, %v535, 0
      %v558 = vsel %vm550, %v536, 0
      %v561 = vsel %vm550, %v537, 0
      %563 = vmatprep.subr.bf16.mxu0 0
      %564 = vmatpush1.bf16.msra.mxu0 %v546
      %565 = vmatprep.subr.bf16.mxu0 0
      %566 = vmatpush1.bf16.msra.mxu0 %v547
      %567 = vmatprep.subr.bf16.mxu0 0
      %568 = vmatpush1.bf16.msra.mxu0 0
      %569 = vmatprep.subr.bf16.mxu0 0
      %570 = vmatpush1.bf16.msra.mxu0 0
      %571 = vmatprep.subr.bf16.mxu0 0
      %572 = vmatpush1.bf16.msra.mxu0 0
      %573 = vmatprep.subr.bf16.mxu0 0
      %574 = vmatpush1.bf16.msra.mxu0 0
      %575 = vmatprep.subr.bf16.mxu0 0
      %576 = vmatpush1.bf16.msra.mxu0 0
      %577 = vmatprep.subr.bf16.mxu0 0
      %578 = vmatpush1.bf16.msra.mxu0 0
      %579 = vmatprep.subr.bf16.mxu0 0
      %580 = vmatpush1.bf16.msra.mxu0 0
      %581 = vmatprep.subr.bf16.mxu0 0
      %582 = vmatpush1.bf16.msra.mxu0 0
      %583 = vmatprep.subr.bf16.mxu0 0
      %584 = vmatpush1.bf16.msra.mxu0 0
      %585 = vmatprep.subr.bf16.mxu0 0
      %586 = vmatpush1.bf16.msra.mxu0 0
      %587 = vmatprep.subr.bf16.mxu0 0
      %588 = vmatpush1.bf16.msra.mxu0 0
      %589 = vmatprep.subr.bf16.mxu0 0
      %590 = vmatpush1.bf16.msra.mxu0 0
      %591 = vmatprep.subr.bf16.mxu0 0
      %592 = vmatpush1.bf16.msra.mxu0 0
      %593 = vmatprep.subr.bf16.mxu0 0
      %594 = vmatpush1.bf16.msra.mxu0 0
      %595 = vmatprep.mubr.bf16.mxu0 0
      %596 = vmatmul.mubr.bf16.gmra.mrb[0].mxu0 %v552
      %v597 = vpop.f32.mrb[0].mxu0
      %v598 = vadd.f32 0.0, %v597
      %v599 = vpop.f32.mrb[0].mxu0
      %v600 = vpop.f32.mrb[0].mxu0
      %v601 = vadd.f32 0.0, %v600
      %v602 = vpop.f32.mrb[0].mxu0
      %603 = vmatprep.mubr.bf16.mxu0 0
      %604 = vmatmul.mubr.bf16.gmra.mrb[0].mxu0 %v555
      %v605 = vpop.f32.mrb[0].mxu0
      %v606 = vadd.f32 0.0, %v605
      %v607 = vpop.f32.mrb[0].mxu0
      %v608 = vpop.f32.mrb[0].mxu0
      %v609 = vadd.f32 0.0, %v608
      %v610 = vpop.f32.mrb[0].mxu0
      %611 = vmatprep.mubr.bf16.mxu0 0
      %612 = vmatmul.mubr.bf16.gmra.mrb[0].mxu0 %v558
      %v613 = vpop.f32.mrb[0].mxu0
      %v614 = vadd.f32 0.0, %v613
      %v615 = vpop.f32.mrb[0].mxu0
      %v616 = vpop.f32.mrb[0].mxu0
      %v617 = vadd.f32 0.0, %v616
      %v618 = vpop.f32.mrb[0].mxu0
      %619 = vmatprep.mubr.bf16.mxu0 0
      %620 = vmatmul.mubr.bf16.gmra.mrb[0].mxu0 %v561
      %v621 = vpop.f32.mrb[0].mxu0
      %v622 = vadd.f32 0.0, %v621
      %v623 = vpop.f32.mrb[0].mxu0
      %v624 = vpop.f32.mrb[0].mxu0
      %v625 = vadd.f32 0.0, %v624
      %v626 = vpop.f32.mrb[0].mxu0
      %627 = vdwg.mxu0
      %v636 = vunpack.c.l.b16 %v382
      %v637 = vunpack.c.l.b16 %v384
      %v638 = vunpack.c.l.b16 %v386
      %v639 = vunpack.c.l.b16 %v388
      %v640 = vunpack.c.l.b16 %v390
      %v641 = vunpack.c.l.b16 %v392
      %v642 = vunpack.c.l.b16 %v394
      %v643 = vunpack.c.l.b16 %v396
      %v644 = vpack.c.b16 %v637, %v636
      %v645 = vpack.c.b16 %v639, %v638
      %v646 = vpack.c.b16 %v641, %v640
      %v647 = vpack.c.b16 %v643, %v642
      %v652 = vunpack.c.l.b16 %v402
      %v653 = vunpack.c.l.b16 %v403
      %v654 = vunpack.c.l.b16 %v404
      %v655 = vunpack.c.l.b16 %v405
      %v656 = vpack.c.b16 %v653, %v652
      %v657 = vpack.c.b16 %v655, %v654
      %v661 = vsel %vm550, %v644, 0
      %v664 = vsel %vm550, %v645, 0
      %v667 = vsel %vm550, %v646, 0
      %v670 = vsel %vm550, %v647, 0
      %672 = vmatprep.subr.bf16.mxu0 0
      %673 = vmatpush1.bf16.msra.mxu0 %v656
      %674 = vmatprep.subr.bf16.mxu0 0
      %675 = vmatpush1.bf16.msra.mxu0 %v657
      %676 = vmatprep.subr.bf16.mxu0 0
      %677 = vmatpush1.bf16.msra.mxu0 0
      %678 = vmatprep.subr.bf16.mxu0 0
      %679 = vmatpush1.bf16.msra.mxu0 0
      %680 = vmatprep.subr.bf16.mxu0 0
      %681 = vmatpush1.bf16.msra.mxu0 0
      %682 = vmatprep.subr.bf16.mxu0 0
      %683 = vmatpush1.bf16.msra.mxu0 0
      %684 = vmatprep.subr.bf16.mxu0 0
      %685 = vmatpush1.bf16.msra.mxu0 0
      %686 = vmatprep.subr.bf16.mxu0 0
      %687 = vmatpush1.bf16.msra.mxu0 0
      %688 = vmatprep.subr.bf16.mxu0 0
      %689 = vmatpush1.bf16.msra.mxu0 0
      %690 = vmatprep.subr.bf16.mxu0 0
      %691 = vmatpush1.bf16.msra.mxu0 0
      %692 = vmatprep.subr.bf16.mxu0 0
      %693 = vmatpush1.bf16.msra.mxu0 0
      %694 = vmatprep.subr.bf16.mxu0 0
      %695 = vmatpush1.bf16.msra.mxu0 0
      %696 = vmatprep.subr.bf16.mxu0 0
      %697 = vmatpush1.bf16.msra.mxu0 0
      %698 = vmatprep.subr.bf16.mxu0 0
      %699 = vmatpush1.bf16.msra.mxu0 0
      %700 = vmatprep.subr.bf16.mxu0 0
      %701 = vmatpush1.bf16.msra.mxu0 0
      %702 = vmatprep.subr.bf16.mxu0 0
      %703 = vmatpush1.bf16.msra.mxu0 0
      %704 = vmatprep.mubr.bf16.mxu0 0
      %705 = vmatmul.mubr.bf16.gmra.mrb[0].mxu0 %v661
      %v706 = vpop.f32.mrb[0].mxu0
      %v707 = vadd.f32 %v598, %v706
      %v708 = vpop.f32.mrb[0].mxu0
      %v709 = vpop.f32.mrb[0].mxu0
      %v710 = vadd.f32 %v601, %v709
      %v711 = vpop.f32.mrb[0].mxu0
      %712 = vmatprep.mubr.bf16.mxu0 0
      %713 = vmatmul.mubr.bf16.gmra.mrb[0].mxu0 %v664
      %v714 = vpop.f32.mrb[0].mxu0
      %v715 = vadd.f32 %v606, %v714
      %v716 = vpop.f32.mrb[0].mxu0
      %v717 = vpop.f32.mrb[0].mxu0
      %v718 = vadd.f32 %v609, %v717
      %v719 = vpop.f32.mrb[0].mxu0
      %720 = vmatprep.mubr.bf16.mxu0 0
      %721 = vmatmul.mubr.bf16.gmra.mrb[0].mxu0 %v667
      %v722 = vpop.f32.mrb[0].mxu0
      %v723 = vadd.f32 %v614, %v722
      %v724 = vpop.f32.mrb[0].mxu0
      %v725 = vpop.f32.mrb[0].mxu0
      %v726 = vadd.f32 %v617, %v725
      %v727 = vpop.f32.mrb[0].mxu0
      %728 = vmatprep.mubr.bf16.mxu0 0
      %729 = vmatmul.mubr.bf16.gmra.mrb[0].mxu0 %v670
      %v730 = vpop.f32.mrb[0].mxu0
      %v731 = vadd.f32 %v622, %v730
      %v732 = vpop.f32.mrb[0].mxu0
      %v733 = vpop.f32.mrb[0].mxu0
      %v734 = vadd.f32 %v625, %v733
      %v735 = vpop.f32.mrb[0].mxu0
      %736 = vdwg.mxu0
      %vm745 = vcmask 1042432
      %vm746 = vcmask 1046532
      %vm747 = vmor %vm745, %vm746
      %v748 = vrot.slane %v382, 5
      %v749 = vrot.slane %v748, 4
      %v750 = vrot.slane %v383, 5
      %v751 = vsel %vm747, %v749, %v750
      %v752 = vrot.slane %v384, 5
      %v753 = vrot.slane %v752, 4
      %v754 = vrot.slane %v385, 5
      %v755 = vsel %vm747, %v753, %v754
      %v756 = vrot.slane %v386, 5
      %v757 = vrot.slane %v756, 4
      %v758 = vrot.slane %v387, 5
      %v759 = vsel %vm747, %v757, %v758
      %v760 = vrot.slane %v388, 5
      %v761 = vrot.slane %v760, 4
      %v762 = vrot.slane %v389, 5
      %v763 = vsel %vm747, %v761, %v762
      %v764 = vrot.slane %v390, 5
      %v765 = vrot.slane %v764, 4
      %v766 = vrot.slane %v391, 5
      %v767 = vsel %vm747, %v765, %v766
      %v768 = vrot.slane %v392, 5
      %v769 = vrot.slane %v768, 4
      %v770 = vrot.slane %v393, 5
      %v771 = vsel %vm747, %v769, %v770
      %v772 = vrot.slane %v394, 5
      %v773 = vrot.slane %v772, 4
      %v774 = vrot.slane %v395, 5
      %v775 = vsel %vm747, %v773, %v774
      %v776 = vrot.slane %v396, 5
      %v777 = vrot.slane %v776, 4
      %v778 = vrot.slane %v397, 5
      %v779 = vsel %vm747, %v777, %v778
      %s780 = scalar_lea.vmem %s2, 32
      %v781 = vld [vmem:[%s780] sm:$0xf]
      %v782 = vld [vmem:[%s780 + $0x4] sm:$0xf]
      %v783 = vld [vmem:[%s780 + $0x8] sm:$0xf]
      %v784 = vld [vmem:[%s780 + $0xc] sm:$0xf]
      %v785 = vunpack.c.l.b16 %v751
      %v786 = vunpack.c.l.b16 %v755
      %v787 = vunpack.c.l.b16 %v759
      %v788 = vunpack.c.l.b16 %v763
      %v789 = vunpack.c.l.b16 %v767
      %v790 = vunpack.c.l.b16 %v771
      %v791 = vunpack.c.l.b16 %v775
      %v792 = vunpack.c.l.b16 %v779
      %v793 = vpack.c.b16 %v786, %v785
      %v794 = vpack.c.b16 %v788, %v787
      %v795 = vpack.c.b16 %v790, %v789
      %v796 = vpack.c.b16 %v792, %v791
      %v801 = vunpack.c.l.b16 %v781
      %v802 = vunpack.c.l.b16 %v782
      %v803 = vunpack.c.l.b16 %v783
      %v804 = vunpack.c.l.b16 %v784
      %v805 = vpack.c.b16 %v802, %v801
      %v806 = vpack.c.b16 %v804, %v803
      %v810 = vsel %vm550, %v793, 0
      %v813 = vsel %vm550, %v794, 0
      %v816 = vsel %vm550, %v795, 0
      %v819 = vsel %vm550, %v796, 0
      %821 = vmatprep.subr.bf16.mxu0 0
      %822 = vmatpush1.bf16.msra.mxu0 %v805
      %823 = vmatprep.subr.bf16.mxu0 0
      %824 = vmatpush1.bf16.msra.mxu0 %v806
      %825 = vmatprep.subr.bf16.mxu0 0
      %826 = vmatpush1.bf16.msra.mxu0 0
      %827 = vmatprep.subr.bf16.mxu0 0
      %828 = vmatpush1.bf16.msra.mxu0 0
      %829 = vmatprep.subr.bf16.mxu0 0
      %830 = vmatpush1.bf16.msra.mxu0 0
      %831 = vmatprep.subr.bf16.mxu0 0
      %832 = vmatpush1.bf16.msra.mxu0 0
      %833 = vmatprep.subr.bf16.mxu0 0
      %834 = vmatpush1.bf16.msra.mxu0 0
      %835 = vmatprep.subr.bf16.mxu0 0
      %836 = vmatpush1.bf16.msra.mxu0 0
      %837 = vmatprep.subr.bf16.mxu0 0
      %838 = vmatpush1.bf16.msra.mxu0 0
      %839 = vmatprep.subr.bf16.mxu0 0
      %840 = vmatpush1.bf16.msra.mxu0 0
      %841 = vmatprep.subr.bf16.mxu0 0
      %842 = vmatpush1.bf16.msra.mxu0 0
      %843 = vmatprep.subr.bf16.mxu0 0
      %844 = vmatpush1.bf16.msra.mxu0 0
      %845 = vmatprep.subr.bf16.mxu0 0
      %846 = vmatpush1.bf16.msra.mxu0 0
      %847 = vmatprep.subr.bf16.mxu0 0
      %848 = vmatpush1.bf16.msra.mxu0 0
      %849 = vmatprep.subr.bf16.mxu0 0
      %850 = vmatpush1.bf16.msra.mxu0 0
      %851 = vmatprep.subr.bf16.mxu0 0
      %852 = vmatpush1.bf16.msra.mxu0 0
      %853 = vmatprep.mubr.bf16.mxu0 0
      %854 = vmatmul.mubr.bf16.gmra.mrb[0].mxu0 %v810
      %v855 = vpop.f32.mrb[0].mxu0
      %v856 = vadd.f32 0.0, %v855
      %v857 = vpop.f32.mrb[0].mxu0
      %v858 = vpop.f32.mrb[0].mxu0
      %v859 = vadd.f32 0.0, %v858
      %v860 = vpop.f32.mrb[0].mxu0
      %861 = vmatprep.mubr.bf16.mxu0 0
      %862 = vmatmul.mubr.bf16.gmra.mrb[0].mxu0 %v813
      %v863 = vpop.f32.mrb[0].mxu0
      %v864 = vadd.f32 0.0, %v863
      %v865 = vpop.f32.mrb[0].mxu0
      %v866 = vpop.f32.mrb[0].mxu0
      %v867 = vadd.f32 0.0, %v866
      %v868 = vpop.f32.mrb[0].mxu0
      %869 = vmatprep.mubr.bf16.mxu0 0
      %870 = vmatmul.mubr.bf16.gmra.mrb[0].mxu0 %v816
      %v871 = vpop.f32.mrb[0].mxu0
      %v872 = vadd.f32 0.0, %v871
      %v873 = vpop.f32.mrb[0].mxu0
      %v874 = vpop.f32.mrb[0].mxu0
      %v875 = vadd.f32 0.0, %v874
      %v876 = vpop.f32.mrb[0].mxu0
      %877 = vmatprep.mubr.bf16.mxu0 0
      %878 = vmatmul.mubr.bf16.gmra.mrb[0].mxu0 %v819
      %v879 = vpop.f32.mrb[0].mxu0
      %v880 = vadd.f32 0.0, %v879
      %v881 = vpop.f32.mrb[0].mxu0
      %v882 = vpop.f32.mrb[0].mxu0
      %v883 = vadd.f32 0.0, %v882
      %v884 = vpop.f32.mrb[0].mxu0
      %885 = vdwg.mxu0
      %v886 = vadd.f32 %v707, %v856
      %v887 = vadd.f32 %v710, %v859
      %v888 = vadd.f32 %v715, %v864
      %v889 = vadd.f32 %v718, %v867
      %v890 = vadd.f32 %v723, %v872
      %v891 = vadd.f32 %v726, %v875
      %v892 = vadd.f32 %v731, %v880
      %v893 = vadd.f32 %v734, %v883
      %s894 = scalar_lea.vmem %s2, 48
      %v895 = vld [vmem:[%s894] sm:$0xf]
      %v896 = vld [vmem:[%s894 + $0x4] sm:$0xf]
      %v897 = vld [vmem:[%s894 + $0x8] sm:$0xf]
      %v898 = vld [vmem:[%s894 + $0xc] sm:$0xf]
      %v900 = vunpack.c.l.b16 %v398
      %v901 = vpack.c.b16 %v638, %v637
      %v902 = vpack.c.b16 %v640, %v639
      %v903 = vpack.c.b16 %v642, %v641
      %v904 = vpack.c.b16 %v900, %v643
      %v909 = vunpack.c.l.b16 %v895
      %v910 = vunpack.c.l.b16 %v896
      %v911 = vunpack.c.l.b16 %v897
      %v912 = vunpack.c.l.b16 %v898
      %v913 = vpack.c.b16 %v910, %v909
      %v914 = vpack.c.b16 %v912, %v911
      %v918 = vsel %vm550, %v901, 0
      %v921 = vsel %vm550, %v902, 0
      %v924 = vsel %vm550, %v903, 0
      %v927 = vsel %vm550, %v904, 0
      %929 = vmatprep.subr.bf16.mxu0 0
      %930 = vmatpush1.bf16.msra.mxu0 %v913
      %931 = vmatprep.subr.bf16.mxu0 0
      %932 = vmatpush1.bf16.msra.mxu0 %v914
      %933 = vmatprep.subr.bf16.mxu0 0
      %934 = vmatpush1.bf16.msra.mxu0 0
      %935 = vmatprep.subr.bf16.mxu0 0
      %936 = vmatpush1.bf16.msra.mxu0 0
      %937 = vmatprep.subr.bf16.mxu0 0
      %938 = vmatpush1.bf16.msra.mxu0 0
      %939 = vmatprep.subr.bf16.mxu0 0
      %940 = vmatpush1.bf16.msra.mxu0 0
      %941 = vmatprep.subr.bf16.mxu0 0
      %942 = vmatpush1.bf16.msra.mxu0 0
      %943 = vmatprep.subr.bf16.mxu0 0
      %944 = vmatpush1.bf16.msra.mxu0 0
      %945 = vmatprep.subr.bf16.mxu0 0
      %946 = vmatpush1.bf16.msra.mxu0 0
      %947 = vmatprep.subr.bf16.mxu0 0
      %948 = vmatpush1.bf16.msra.mxu0 0
      %949 = vmatprep.subr.bf16.mxu0 0
      %950 = vmatpush1.bf16.msra.mxu0 0
      %951 = vmatprep.subr.bf16.mxu0 0
      %952 = vmatpush1.bf16.msra.mxu0 0
      %953 = vmatprep.subr.bf16.mxu0 0
      %954 = vmatpush1.bf16.msra.mxu0 0
      %955 = vmatprep.subr.bf16.mxu0 0
      %956 = vmatpush1.bf16.msra.mxu0 0
      %957 = vmatprep.subr.bf16.mxu0 0
      %958 = vmatpush1.bf16.msra.mxu0 0
      %959 = vmatprep.subr.bf16.mxu0 0
      %960 = vmatpush1.bf16.msra.mxu0 0
      %961 = vmatprep.mubr.bf16.mxu0 0
      %962 = vmatmul.mubr.bf16.gmra.mrb[0].mxu0 %v918
      %v963 = vpop.f32.mrb[0].mxu0
      %v964 = vadd.f32 0.0, %v963
      %v965 = vpop.f32.mrb[0].mxu0
      %v966 = vpop.f32.mrb[0].mxu0
      %v967 = vadd.f32 0.0, %v966
      %v968 = vpop.f32.mrb[0].mxu0
      %969 = vmatprep.mubr.bf16.mxu0 0
      %970 = vmatmul.mubr.bf16.gmra.mrb[0].mxu0 %v921
      %v971 = vpop.f32.mrb[0].mxu0
      %v972 = vadd.f32 0.0, %v971
      %v973 = vpop.f32.mrb[0].mxu0
      %v974 = vpop.f32.mrb[0].mxu0
      %v975 = vadd.f32 0.0, %v974
      %v976 = vpop.f32.mrb[0].mxu0
      %977 = vmatprep.mubr.bf16.mxu0 0
      %978 = vmatmul.mubr.bf16.gmra.mrb[0].mxu0 %v924
      %v979 = vpop.f32.mrb[0].mxu0
      %v980 = vadd.f32 0.0, %v979
      %v981 = vpop.f32.mrb[0].mxu0
      %v982 = vpop.f32.mrb[0].mxu0
      %v983 = vadd.f32 0.0, %v982
      %v984 = vpop.f32.mrb[0].mxu0
      %985 = vmatprep.mubr.bf16.mxu0 0
      %986 = vmatmul.mubr.bf16.gmra.mrb[0].mxu0 %v927
      %v987 = vpop.f32.mrb[0].mxu0
      %v988 = vadd.f32 0.0, %v987
      %v989 = vpop.f32.mrb[0].mxu0
      %v990 = vpop.f32.mrb[0].mxu0
      %v991 = vadd.f32 0.0, %v990
      %v992 = vpop.f32.mrb[0].mxu0
      %993 = vdwg.mxu0
      %v994 = vadd.f32 %v886, %v964
      %v995 = vadd.f32 %v887, %v967
      %v996 = vadd.f32 %v888, %v972
      %v997 = vadd.f32 %v889, %v975
      %v998 = vadd.f32 %v890, %v980
      %v999 = vadd.f32 %v891, %v983
      %v1000 = vadd.f32 %v892, %v988
      %v1001 = vadd.f32 %v893, %v991
      %v1003 = vshrl.u32 %v398, 16
      %v1005 = vrot.slane %v1003, 4
      %v1006 = vshll.u32 %v398, 16
      %v1008 = vrot.slane %v1006, 5
      %v1009 = vor.u32 %v1005, %v1008
      %v1010 = vrot.slane %v1009, 4
      %v1012 = vshll.u32 %v399, 16
      %v1014 = vrot.slane %v1012, 5
      %v1015 = vsel %vm408, %v1010, %v1014
      %s1016 = scalar_lea.vmem %s2, 64
      %v1017 = vld [vmem:[%s1016] sm:$0xf]
      %v1018 = vld [vmem:[%s1016 + $0x4] sm:$0xf]
      %v1019 = vld [vmem:[%s1016 + $0x8] sm:$0xf]
      %v1020 = vld [vmem:[%s1016 + $0xc] sm:$0xf]
      %v1021 = vunpack.c.l.b16 %v1015
      %v1022 = vpack.c.b16 %v528, %v527
      %v1023 = vpack.c.b16 %v530, %v529
      %v1024 = vpack.c.b16 %v532, %v531
      %v1025 = vpack.c.b16 %v1021, %v533
      %v1030 = vunpack.c.l.b16 %v1017
      %v1031 = vunpack.c.l.b16 %v1018
      %v1032 = vunpack.c.l.b16 %v1019
      %v1033 = vunpack.c.l.b16 %v1020
      %v1034 = vpack.c.b16 %v1031, %v1030
      %v1035 = vpack.c.b16 %v1033, %v1032
      %v1039 = vsel %vm550, %v1022, 0
      %v1042 = vsel %vm550, %v1023, 0
      %v1045 = vsel %vm550, %v1024, 0
      %v1048 = vsel %vm550, %v1025, 0
      %1050 = vmatprep.subr.bf16.mxu0 0
      %1051 = vmatpush1.bf16.msra.mxu0 %v1034
      %1052 = vmatprep.subr.bf16.mxu0 0
      %1053 = vmatpush1.bf16.msra.mxu0 %v1035
      %1054 = vmatprep.subr.bf16.mxu0 0
      %1055 = vmatpush1.bf16.msra.mxu0 0
      %1056 = vmatprep.subr.bf16.mxu0 0
      %1057 = vmatpush1.bf16.msra.mxu0 0
      %1058 = vmatprep.subr.bf16.mxu0 0
      %1059 = vmatpush1.bf16.msra.mxu0 0
      %1060 = vmatprep.subr.bf16.mxu0 0
      %1061 = vmatpush1.bf16.msra.mxu0 0
      %1062 = vmatprep.subr.bf16.mxu0 0
      %1063 = vmatpush1.bf16.msra.mxu0 0
      %1064 = vmatprep.subr.bf16.mxu0 0
      %1065 = vmatpush1.bf16.msra.mxu0 0
      %1066 = vmatprep.subr.bf16.mxu0 0
      %1067 = vmatpush1.bf16.msra.mxu0 0
      %1068 = vmatprep.subr.bf16.mxu0 0
      %1069 = vmatpush1.bf16.msra.mxu0 0
      %1070 = vmatprep.subr.bf16.mxu0 0
      %1071 = vmatpush1.bf16.msra.mxu0 0
      %1072 = vmatprep.subr.bf16.mxu0 0
      %1073 = vmatpush1.bf16.msra.mxu0 0
      %1074 = vmatprep.subr.bf16.mxu0 0
      %1075 = vmatpush1.bf16.msra.mxu0 0
      %1076 = vmatprep.subr.bf16.mxu0 0
      %1077 = vmatpush1.bf16.msra.mxu0 0
      %1078 = vmatprep.subr.bf16.mxu0 0
      %1079 = vmatpush1.bf16.msra.mxu0 0
      %1080 = vmatprep.subr.bf16.mxu0 0
      %1081 = vmatpush1.bf16.msra.mxu0 0
      %1082 = vmatprep.mubr.bf16.mxu0 0
      %1083 = vmatmul.mubr.bf16.gmra.mrb[0].mxu0 %v1039
      %v1084 = vpop.f32.mrb[0].mxu0
      %v1085 = vadd.f32 0.0, %v1084
      %v1086 = vpop.f32.mrb[0].mxu0
      %v1087 = vpop.f32.mrb[0].mxu0
      %v1088 = vadd.f32 0.0, %v1087
      %v1089 = vpop.f32.mrb[0].mxu0
      %1090 = vmatprep.mubr.bf16.mxu0 0
      %1091 = vmatmul.mubr.bf16.gmra.mrb[0].mxu0 %v1042
      %v1092 = vpop.f32.mrb[0].mxu0
      %v1093 = vadd.f32 0.0, %v1092
      %v1094 = vpop.f32.mrb[0].mxu0
      %v1095 = vpop.f32.mrb[0].mxu0
      %v1096 = vadd.f32 0.0, %v1095
      %v1097 = vpop.f32.mrb[0].mxu0
      %1098 = vmatprep.mubr.bf16.mxu0 0
      %1099 = vmatmul.mubr.bf16.gmra.mrb[0].mxu0 %v1045
      %v1100 = vpop.f32.mrb[0].mxu0
      %v1101 = vadd.f32 0.0, %v1100
      %v1102 = vpop.f32.mrb[0].mxu0
      %v1103 = vpop.f32.mrb[0].mxu0
      %v1104 = vadd.f32 0.0, %v1103
      %v1105 = vpop.f32.mrb[0].mxu0
      %1106 = vmatprep.mubr.bf16.mxu0 0
      %1107 = vmatmul.mubr.bf16.gmra.mrb[0].mxu0 %v1048
      %v1108 = vpop.f32.mrb[0].mxu0
      %v1109 = vadd.f32 0.0, %v1108
      %v1110 = vpop.f32.mrb[0].mxu0
      %v1111 = vpop.f32.mrb[0].mxu0
      %v1112 = vadd.f32 0.0, %v1111
      %v1113 = vpop.f32.mrb[0].mxu0
      %1114 = vdwg.mxu0
      %v1115 = vadd.f32 %v994, %v1085
      %v1116 = vadd.f32 %v995, %v1088
      %v1117 = vadd.f32 %v996, %v1093
      %v1118 = vadd.f32 %v997, %v1096
      %v1119 = vadd.f32 %v998, %v1101
      %v1120 = vadd.f32 %v999, %v1104
      %v1121 = vadd.f32 %v1000, %v1109
      %v1122 = vadd.f32 %v1001, %v1112
      %v1124 = vrot.slane %v398, 5
      %v1125 = vrot.slane %v1124, 4
      %v1126 = vrot.slane %v399, 5
      %v1127 = vsel %vm747, %v1125, %v1126
      %s1128 = scalar_lea.vmem %s2, 80
      %v1129 = vld [vmem:[%s1128] sm:$0xf]
      %v1130 = vld [vmem:[%s1128 + $0x4] sm:$0xf]
      %v1131 = vld [vmem:[%s1128 + $0x8] sm:$0xf]
      %v1132 = vld [vmem:[%s1128 + $0xc] sm:$0xf]
      %v1133 = vunpack.c.l.b16 %v1127
      %v1134 = vpack.c.b16 %v787, %v786
      %v1135 = vpack.c.b16 %v789, %v788
      %v1136 = vpack.c.b16 %v791, %v790
      %v1137 = vpack.c.b16 %v1133, %v792
      %v1142 = vunpack.c.l.b16 %v1129
      %v1143 = vunpack.c.l.b16 %v1130
      %v1144 = vunpack.c.l.b16 %v1131
      %v1145 = vunpack.c.l.b16 %v1132
      %v1146 = vpack.c.b16 %v1143, %v1142
      %v1147 = vpack.c.b16 %v1145, %v1144
      %v1151 = vsel %vm550, %v1134, 0
      %v1154 = vsel %vm550, %v1135, 0
      %v1157 = vsel %vm550, %v1136, 0
      %v1160 = vsel %vm550, %v1137, 0
      %1162 = vmatprep.subr.bf16.mxu0 0
      %1163 = vmatpush1.bf16.msra.mxu0 %v1146
      %1164 = vmatprep.subr.bf16.mxu0 0
      %1165 = vmatpush1.bf16.msra.mxu0 %v1147
      %1166 = vmatprep.subr.bf16.mxu0 0
      %1167 = vmatpush1.bf16.msra.mxu0 0
      %1168 = vmatprep.subr.bf16.mxu0 0
      %1169 = vmatpush1.bf16.msra.mxu0 0
      %1170 = vmatprep.subr.bf16.mxu0 0
      %1171 = vmatpush1.bf16.msra.mxu0 0
      %1172 = vmatprep.subr.bf16.mxu0 0
      %1173 = vmatpush1.bf16.msra.mxu0 0
      %1174 = vmatprep.subr.bf16.mxu0 0
      %1175 = vmatpush1.bf16.msra.mxu0 0
      %1176 = vmatprep.subr.bf16.mxu0 0
      %1177 = vmatpush1.bf16.msra.mxu0 0
      %1178 = vmatprep.subr.bf16.mxu0 0
      %1179 = vmatpush1.bf16.msra.mxu0 0
      %1180 = vmatprep.subr.bf16.mxu0 0
      %1181 = vmatpush1.bf16.msra.mxu0 0
      %1182 = vmatprep.subr.bf16.mxu0 0
      %1183 = vmatpush1.bf16.msra.mxu0 0
      %1184 = vmatprep.subr.bf16.mxu0 0
      %1185 = vmatpush1.bf16.msra.mxu0 0
      %1186 = vmatprep.subr.bf16.mxu0 0
      %1187 = vmatpush1.bf16.msra.mxu0 0
      %1188 = vmatprep.subr.bf16.mxu0 0
      %1189 = vmatpush1.bf16.msra.mxu0 0
      %1190 = vmatprep.subr.bf16.mxu0 0
      %1191 = vmatpush1.bf16.msra.mxu0 0
      %1192 = vmatprep.subr.bf16.mxu0 0
      %1193 = vmatpush1.bf16.msra.mxu0 0
      %1194 = vmatprep.mubr.bf16.mxu0 0
      %1195 = vmatmul.mubr.bf16.gmra.mrb[0].mxu0 %v1151
      %v1196 = vpop.f32.mrb[0].mxu0
      %v1197 = vadd.f32 0.0, %v1196
      %v1198 = vpop.f32.mrb[0].mxu0
      %v1199 = vpop.f32.mrb[0].mxu0
      %v1200 = vadd.f32 0.0, %v1199
      %v1201 = vpop.f32.mrb[0].mxu0
      %1202 = vmatprep.mubr.bf16.mxu0 0
      %1203 = vmatmul.mubr.bf16.gmra.mrb[0].mxu0 %v1154
      %v1204 = vpop.f32.mrb[0].mxu0
      %v1205 = vadd.f32 0.0, %v1204
      %v1206 = vpop.f32.mrb[0].mxu0
      %v1207 = vpop.f32.mrb[0].mxu0
      %v1208 = vadd.f32 0.0, %v1207
      %v1209 = vpop.f32.mrb[0].mxu0
      %1210 = vmatprep.mubr.bf16.mxu0 0
      %1211 = vmatmul.mubr.bf16.gmra.mrb[0].mxu0 %v1157
      %v1212 = vpop.f32.mrb[0].mxu0
      %v1213 = vadd.f32 0.0, %v1212
      %v1214 = vpop.f32.mrb[0].mxu0
      %v1215 = vpop.f32.mrb[0].mxu0
      %v1216 = vadd.f32 0.0, %v1215
      %v1217 = vpop.f32.mrb[0].mxu0
      %1218 = vmatprep.mubr.bf16.mxu0 0
      %1219 = vmatmul.mubr.bf16.gmra.mrb[0].mxu0 %v1160
      %v1220 = vpop.f32.mrb[0].mxu0
      %v1221 = vadd.f32 0.0, %v1220
      %v1222 = vpop.f32.mrb[0].mxu0
      %v1223 = vpop.f32.mrb[0].mxu0
      %v1224 = vadd.f32 0.0, %v1223
      %v1225 = vpop.f32.mrb[0].mxu0
      %1226 = vdwg.mxu0
      %v1227 = vadd.f32 %v1115, %v1197
      %v1228 = vadd.f32 %v1116, %v1200
      %v1229 = vadd.f32 %v1117, %v1205
      %v1230 = vadd.f32 %v1118, %v1208
      %v1231 = vadd.f32 %v1119, %v1213
      %v1232 = vadd.f32 %v1120, %v1216
      %v1233 = vadd.f32 %v1121, %v1221
      %v1234 = vadd.f32 %v1122, %v1224
      %s1235 = scalar_lea.vmem %s2, 96
      %v1236 = vld [vmem:[%s1235] sm:$0xf]
      %v1237 = vld [vmem:[%s1235 + $0x4] sm:$0xf]
      %v1238 = vld [vmem:[%s1235 + $0x8] sm:$0xf]
      %v1239 = vld [vmem:[%s1235 + $0xc] sm:$0xf]
      %v1241 = vunpack.c.l.b16 %v400
      %v1242 = vpack.c.b16 %v1241, %v900
      %v1247 = vunpack.c.l.b16 %v1236
      %v1248 = vunpack.c.l.b16 %v1237
      %v1249 = vunpack.c.l.b16 %v1238
      %v1250 = vunpack.c.l.b16 %v1239
      %v1251 = vpack.c.b16 %v1248, %v1247
      %v1252 = vpack.c.b16 %v1250, %v1249
      %v1256 = vsel %vm550, %v1242, 0
      %1258 = vmatprep.subr.bf16.mxu0 0
      %1259 = vmatpush1.bf16.msra.mxu0 %v1251
      %1260 = vmatprep.subr.bf16.mxu0 0
      %1261 = vmatpush1.bf16.msra.mxu0 %v1252
      %1262 = vmatprep.subr.bf16.mxu0 0
      %1263 = vmatpush1.bf16.msra.mxu0 0
      %1264 = vmatprep.subr.bf16.mxu0 0
      %1265 = vmatpush1.bf16.msra.mxu0 0
      %1266 = vmatprep.subr.bf16.mxu0 0
      %1267 = vmatpush1.bf16.msra.mxu0 0
      %1268 = vmatprep.subr.bf16.mxu0 0
      %1269 = vmatpush1.bf16.msra.mxu0 0
      %1270 = vmatprep.subr.bf16.mxu0 0
      %1271 = vmatpush1.bf16.msra.mxu0 0
      %1272 = vmatprep.subr.bf16.mxu0 0
      %1273 = vmatpush1.bf16.msra.mxu0 0
      %1274 = vmatprep.subr.bf16.mxu0 0
      %1275 = vmatpush1.bf16.msra.mxu0 0
      %1276 = vmatprep.subr.bf16.mxu0 0
      %1277 = vmatpush1.bf16.msra.mxu0 0
      %1278 = vmatprep.subr.bf16.mxu0 0
      %1279 = vmatpush1.bf16.msra.mxu0 0
      %1280 = vmatprep.subr.bf16.mxu0 0
      %1281 = vmatpush1.bf16.msra.mxu0 0
      %1282 = vmatprep.subr.bf16.mxu0 0
      %1283 = vmatpush1.bf16.msra.mxu0 0
      %1284 = vmatprep.subr.bf16.mxu0 0
      %1285 = vmatpush1.bf16.msra.mxu0 0
      %1286 = vmatprep.subr.bf16.mxu0 0
      %1287 = vmatpush1.bf16.msra.mxu0 0
      %1288 = vmatprep.subr.bf16.mxu0 0
      %1289 = vmatpush1.bf16.msra.mxu0 0
      %1290 = vmatprep.mubr.bf16.mxu0 0
      %1291 = vmatmul.mubr.bf16.gmra.mrb[0].mxu0 %v664
      %v1292 = vpop.f32.mrb[0].mxu0
      %v1293 = vadd.f32 0.0, %v1292
      %v1294 = vpop.f32.mrb[0].mxu0
      %v1295 = vpop.f32.mrb[0].mxu0
      %v1296 = vadd.f32 0.0, %v1295
      %v1297 = vpop.f32.mrb[0].mxu0
      %1298 = vmatprep.mubr.bf16.mxu0 0
      %1299 = vmatmul.mubr.bf16.gmra.mrb[0].mxu0 %v667
      %v1300 = vpop.f32.mrb[0].mxu0
      %v1301 = vadd.f32 0.0, %v1300
      %v1302 = vpop.f32.mrb[0].mxu0
      %v1303 = vpop.f32.mrb[0].mxu0
      %v1304 = vadd.f32 0.0, %v1303
      %v1305 = vpop.f32.mrb[0].mxu0
      %1306 = vmatprep.mubr.bf16.mxu0 0
      %1307 = vmatmul.mubr.bf16.gmra.mrb[0].mxu0 %v670
      %v1308 = vpop.f32.mrb[0].mxu0
      %v1309 = vadd.f32 0.0, %v1308
      %v1310 = vpop.f32.mrb[0].mxu0
      %v1311 = vpop.f32.mrb[0].mxu0
      %v1312 = vadd.f32 0.0, %v1311
      %v1313 = vpop.f32.mrb[0].mxu0
      %1314 = vmatprep.mubr.bf16.mxu0 0
      %1315 = vmatmul.mubr.bf16.gmra.mrb[0].mxu0 %v1256
      %v1316 = vpop.f32.mrb[0].mxu0
      %v1317 = vadd.f32 0.0, %v1316
      %v1318 = vpop.f32.mrb[0].mxu0
      %v1319 = vpop.f32.mrb[0].mxu0
      %v1320 = vadd.f32 0.0, %v1319
      %v1321 = vpop.f32.mrb[0].mxu0
      %1322 = vdwg.mxu0
      %v1323 = vadd.f32 %v1227, %v1293
      %v1324 = vadd.f32 %v1228, %v1296
      %v1325 = vadd.f32 %v1229, %v1301
      %v1326 = vadd.f32 %v1230, %v1304
      %v1327 = vadd.f32 %v1231, %v1309
      %v1328 = vadd.f32 %v1232, %v1312
      %v1329 = vadd.f32 %v1233, %v1317
      %v1330 = vadd.f32 %v1234, %v1320
      %v1332 = vshrl.u32 %v400, 16
      %v1334 = vrot.slane %v1332, 4
      %v1335 = vshll.u32 %v400, 16
      %v1337 = vrot.slane %v1335, 5
      %v1338 = vor.u32 %v1334, %v1337
      %v1339 = vrot.slane %v1338, 4
      %v1341 = vshll.u32 %v401, 16
      %v1343 = vrot.slane %v1341, 5
      %v1344 = vsel %vm408, %v1339, %v1343
      %s1345 = scalar_lea.vmem %s2, 112
      %v1346 = vld [vmem:[%s1345] sm:$0xf]
      %v1347 = vld [vmem:[%s1345 + $0x4] sm:$0xf]
      %v1348 = vld [vmem:[%s1345 + $0x8] sm:$0xf]
      %v1349 = vld [vmem:[%s1345 + $0xc] sm:$0xf]
      %v1350 = vunpack.c.l.b16 %v1344
      %v1351 = vpack.c.b16 %v1350, %v1021
      %v1356 = vunpack.c.l.b16 %v1346
      %v1357 = vunpack.c.l.b16 %v1347
      %v1358 = vunpack.c.l.b16 %v1348
      %v1359 = vunpack.c.l.b16 %v1349
      %v1360 = vpack.c.b16 %v1357, %v1356
      %v1361 = vpack.c.b16 %v1359, %v1358
      %v1365 = vsel %vm550, %v1351, 0
      %1367 = vmatprep.subr.bf16.mxu0 0
      %1368 = vmatpush1.bf16.msra.mxu0 %v1360
      %1369 = vmatprep.subr.bf16.mxu0 0
      %1370 = vmatpush1.bf16.msra.mxu0 %v1361
      %1371 = vmatprep.subr.bf16.mxu0 0
      %1372 = vmatpush1.bf16.msra.mxu0 0
      %1373 = vmatprep.subr.bf16.mxu0 0
      %1374 = vmatpush1.bf16.msra.mxu0 0
      %1375 = vmatprep.subr.bf16.mxu0 0
      %1376 = vmatpush1.bf16.msra.mxu0 0
      %1377 = vmatprep.subr.bf16.mxu0 0
      %1378 = vmatpush1.bf16.msra.mxu0 0
      %1379 = vmatprep.subr.bf16.mxu0 0
      %1380 = vmatpush1.bf16.msra.mxu0 0
      %1381 = vmatprep.subr.bf16.mxu0 0
      %1382 = vmatpush1.bf16.msra.mxu0 0
      %1383 = vmatprep.subr.bf16.mxu0 0
      %1384 = vmatpush1.bf16.msra.mxu0 0
      %1385 = vmatprep.subr.bf16.mxu0 0
      %1386 = vmatpush1.bf16.msra.mxu0 0
      %1387 = vmatprep.subr.bf16.mxu0 0
      %1388 = vmatpush1.bf16.msra.mxu0 0
      %1389 = vmatprep.subr.bf16.mxu0 0
      %1390 = vmatpush1.bf16.msra.mxu0 0
      %1391 = vmatprep.subr.bf16.mxu0 0
      %1392 = vmatpush1.bf16.msra.mxu0 0
      %1393 = vmatprep.subr.bf16.mxu0 0
      %1394 = vmatpush1.bf16.msra.mxu0 0
      %1395 = vmatprep.subr.bf16.mxu0 0
      %1396 = vmatpush1.bf16.msra.mxu0 0
      %1397 = vmatprep.subr.bf16.mxu0 0
      %1398 = vmatpush1.bf16.msra.mxu0 0
      %1399 = vmatprep.mubr.bf16.mxu0 0
      %1400 = vmatmul.mubr.bf16.gmra.mrb[0].mxu0 %v555
      %v1401 = vpop.f32.mrb[0].mxu0
      %v1402 = vadd.f32 0.0, %v1401
      %v1403 = vpop.f32.mrb[0].mxu0
      %v1404 = vpop.f32.mrb[0].mxu0
      %v1405 = vadd.f32 0.0, %v1404
      %v1406 = vpop.f32.mrb[0].mxu0
      %1407 = vmatprep.mubr.bf16.mxu0 0
      %1408 = vmatmul.mubr.bf16.gmra.mrb[0].mxu0 %v558
      %v1409 = vpop.f32.mrb[0].mxu0
      %v1410 = vadd.f32 0.0, %v1409
      %v1411 = vpop.f32.mrb[0].mxu0
      %v1412 = vpop.f32.mrb[0].mxu0
      %v1413 = vadd.f32 0.0, %v1412
      %v1414 = vpop.f32.mrb[0].mxu0
      %1415 = vmatprep.mubr.bf16.mxu0 0
      %1416 = vmatmul.mubr.bf16.gmra.mrb[0].mxu0 %v561
      %v1417 = vpop.f32.mrb[0].mxu0
      %v1418 = vadd.f32 0.0, %v1417
      %v1419 = vpop.f32.mrb[0].mxu0
      %v1420 = vpop.f32.mrb[0].mxu0
      %v1421 = vadd.f32 0.0, %v1420
      %v1422 = vpop.f32.mrb[0].mxu0
      %1423 = vmatprep.mubr.bf16.mxu0 0
      %1424 = vmatmul.mubr.bf16.gmra.mrb[0].mxu0 %v1365
      %v1425 = vpop.f32.mrb[0].mxu0
      %v1426 = vadd.f32 0.0, %v1425
      %v1427 = vpop.f32.mrb[0].mxu0
      %v1428 = vpop.f32.mrb[0].mxu0
      %v1429 = vadd.f32 0.0, %v1428
      %v1430 = vpop.f32.mrb[0].mxu0
      %1431 = vdwg.mxu0
      %v1432 = vadd.f32 %v1323, %v1402
      %v1433 = vadd.f32 %v1324, %v1405
      %v1434 = vadd.f32 %v1325, %v1410
      %v1435 = vadd.f32 %v1326, %v1413
      %v1436 = vadd.f32 %v1327, %v1418
      %v1437 = vadd.f32 %v1328, %v1421
      %v1438 = vadd.f32 %v1329, %v1426
      %v1439 = vadd.f32 %v1330, %v1429
      %v1441 = vrot.slane %v400, 5
      %v1442 = vrot.slane %v1441, 4
      %v1443 = vrot.slane %v401, 5
      %v1444 = vsel %vm747, %v1442, %v1443
      %s1445 = scalar_lea.vmem %s2, 128
      %v1446 = vld [vmem:[%s1445] sm:$0xf]
      %v1447 = vld [vmem:[%s1445 + $0x4] sm:$0xf]
      %v1448 = vld [vmem:[%s1445 + $0x8] sm:$0xf]
      %v1449 = vld [vmem:[%s1445 + $0xc] sm:$0xf]
      %v1450 = vunpack.c.l.b16 %v1444
      %v1451 = vpack.c.b16 %v1450, %v1133
      %v1456 = vunpack.c.l.b16 %v1446
      %v1457 = vunpack.c.l.b16 %v1447
      %v1458 = vunpack.c.l.b16 %v1448
      %v1459 = vunpack.c.l.b16 %v1449
      %v1460 = vpack.c.b16 %v1457, %v1456
      %v1461 = vpack.c.b16 %v1459, %v1458
      %v1465 = vsel %vm550, %v1451, 0
      %1467 = vmatprep.subr.bf16.mxu0 0
      %1468 = vmatpush1.bf16.msra.mxu0 %v1460
      %1469 = vmatprep.subr.bf16.mxu0 0
      %1470 = vmatpush1.bf16.msra.mxu0 %v1461
      %1471 = vmatprep.subr.bf16.mxu0 0
      %1472 = vmatpush1.bf16.msra.mxu0 0
      %1473 = vmatprep.subr.bf16.mxu0 0
      %1474 = vmatpush1.bf16.msra.mxu0 0
      %1475 = vmatprep.subr.bf16.mxu0 0
      %1476 = vmatpush1.bf16.msra.mxu0 0
      %1477 = vmatprep.subr.bf16.mxu0 0
      %1478 = vmatpush1.bf16.msra.mxu0 0
      %1479 = vmatprep.subr.bf16.mxu0 0
      %1480 = vmatpush1.bf16.msra.mxu0 0
      %1481 = vmatprep.subr.bf16.mxu0 0
      %1482 = vmatpush1.bf16.msra.mxu0 0
      %1483 = vmatprep.subr.bf16.mxu0 0
      %1484 = vmatpush1.bf16.msra.mxu0 0
      %1485 = vmatprep.subr.bf16.mxu0 0
      %1486 = vmatpush1.bf16.msra.mxu0 0
      %1487 = vmatprep.subr.bf16.mxu0 0
      %1488 = vmatpush1.bf16.msra.mxu0 0
      %1489 = vmatprep.subr.bf16.mxu0 0
      %1490 = vmatpush1.bf16.msra.mxu0 0
      %1491 = vmatprep.subr.bf16.mxu0 0
      %1492 = vmatpush1.bf16.msra.mxu0 0
      %1493 = vmatprep.subr.bf16.mxu0 0
      %1494 = vmatpush1.bf16.msra.mxu0 0
      %1495 = vmatprep.subr.bf16.mxu0 0
      %1496 = vmatpush1.bf16.msra.mxu0 0
      %1497 = vmatprep.subr.bf16.mxu0 0
      %1498 = vmatpush1.bf16.msra.mxu0 0
      %1499 = vmatprep.mubr.bf16.mxu0 0
      %1500 = vmatmul.mubr.bf16.gmra.mrb[0].mxu0 %v813
      %v1501 = vpop.f32.mrb[0].mxu0
      %v1502 = vadd.f32 0.0, %v1501
      %v1503 = vpop.f32.mrb[0].mxu0
      %v1504 = vpop.f32.mrb[0].mxu0
      %v1505 = vadd.f32 0.0, %v1504
      %v1506 = vpop.f32.mrb[0].mxu0
      %1507 = vmatprep.mubr.bf16.mxu0 0
      %1508 = vmatmul.mubr.bf16.gmra.mrb[0].mxu0 %v816
      %v1509 = vpop.f32.mrb[0].mxu0
      %v1510 = vadd.f32 0.0, %v1509
      %v1511 = vpop.f32.mrb[0].mxu0
      %v1512 = vpop.f32.mrb[0].mxu0
      %v1513 = vadd.f32 0.0, %v1512
      %v1514 = vpop.f32.mrb[0].mxu0
      %1515 = vmatprep.mubr.bf16.mxu0 0
      %1516 = vmatmul.mubr.bf16.gmra.mrb[0].mxu0 %v819
      %v1517 = vpop.f32.mrb[0].mxu0
      %v1518 = vadd.f32 0.0, %v1517
      %v1519 = vpop.f32.mrb[0].mxu0
      %v1520 = vpop.f32.mrb[0].mxu0
      %v1521 = vadd.f32 0.0, %v1520
      %v1522 = vpop.f32.mrb[0].mxu0
      %1523 = vmatprep.mubr.bf16.mxu0 0
      %1524 = vmatmul.mubr.bf16.gmra.mrb[0].mxu0 %v1465
      %v1525 = vpop.f32.mrb[0].mxu0
      %v1526 = vadd.f32 0.0, %v1525
      %v1527 = vpop.f32.mrb[0].mxu0
      %v1528 = vpop.f32.mrb[0].mxu0
      %v1529 = vadd.f32 0.0, %v1528
      %v1530 = vpop.f32.mrb[0].mxu0
      %1531 = vdwg.mxu0
      %v1532 = vadd.f32 %v1432, %v1502
      %v1533 = vadd.f32 %v1433, %v1505
      %v1534 = vadd.f32 %v1434, %v1510
      %v1535 = vadd.f32 %v1435, %v1513
      %v1536 = vadd.f32 %v1436, %v1518
      %v1537 = vadd.f32 %v1437, %v1521
      %v1538 = vadd.f32 %v1438, %v1526
      %v1539 = vadd.f32 %v1439, %v1529
      %v1540 = vld [vmem:[%s3] sm:$0x1]
      %v1542 = vlaneseq
      %v1543 = vshrl.u32 %v1542, 7
      %v1544 = vsub.s32 0, %v1543
      %v1545 = vrot.slane %v1540, %v1544
      %v1547 = vadd.f32 %v1532, %v1545
      %v1548 = vadd.f32 %v1533, %v1545
      %v1549 = vadd.f32 %v1534, %v1545
      %v1550 = vadd.f32 %v1535, %v1545
      %v1551 = vadd.f32 %v1536, %v1545
      %v1552 = vadd.f32 %v1537, %v1545
      %v1553 = vadd.f32 %v1538, %v1545
      %v1554 = vadd.f32 %v1539, %v1545
      %v1555 = vld [vmem:[%s369] sm:$0xf]
      %v1556 = vld [vmem:[%s369 + $0x4] sm:$0xf]
      %v1557 = vld [vmem:[%s369 + $0x8] sm:$0xf]
      %v1558 = vld [vmem:[%s369 + $0xc] sm:$0xf]
      %v1559 = vld [vmem:[%s369 + $0x10] sm:$0xf]
      %v1560 = vld [vmem:[%s369 + $0x14] sm:$0xf]
      %v1561 = vld [vmem:[%s369 + $0x18] sm:$0xf]
      %v1562 = vld [vmem:[%s369 + $0x1c] sm:$0xf]
      %v1563 = vunpack.c.l.bf16 %v1555
      %v1564 = vunpack.c.l.bf16 %v1556
      %v1565 = vunpack.c.l.bf16 %v1557
      %v1566 = vunpack.c.l.bf16 %v1558
      %v1567 = vunpack.c.l.bf16 %v1559
      %v1568 = vunpack.c.l.bf16 %v1560
      %v1569 = vunpack.c.l.bf16 %v1561
      %v1570 = vunpack.c.l.bf16 %v1562
      %v1571 = vadd.f32 %v1547, %v1563
      %v1572 = vadd.f32 %v1548, %v1564
      %v1573 = vadd.f32 %v1549, %v1565
      %v1574 = vadd.f32 %v1550, %v1566
      %v1575 = vadd.f32 %v1551, %v1567
      %v1576 = vadd.f32 %v1552, %v1568
      %v1577 = vadd.f32 %v1553, %v1569
      %v1578 = vadd.f32 %v1554, %v1570
      %v1579 = vpack.c.bf16 %v1571, %v1571
      %v1580 = vpack.c.bf16 %v1572, %v1572
      %v1581 = vpack.c.bf16 %v1573, %v1573
      %v1582 = vpack.c.bf16 %v1574, %v1574
      %v1583 = vpack.c.bf16 %v1575, %v1575
      %v1584 = vpack.c.bf16 %v1576, %v1576
      %v1585 = vpack.c.bf16 %v1577, %v1577
      %v1586 = vpack.c.bf16 %v1578, %v1578
      %vm1587 = vcmask 257024
      %1588 = vst.msk [vmem:[%s379] sm:$0xf] %vm1587, %v1579
      %1589 = vst.msk [vmem:[%s379 + $0x4] sm:$0xf] %vm1587, %v1580
      %1590 = vst.msk [vmem:[%s379 + $0x8] sm:$0xf] %vm1587, %v1581
      %1591 = vst.msk [vmem:[%s379 + $0xc] sm:$0xf] %vm1587, %v1582
      %1592 = vst.msk [vmem:[%s379 + $0x10] sm:$0xf] %vm1587, %v1583
      %1593 = vst.msk [vmem:[%s379 + $0x14] sm:$0xf] %vm1587, %v1584
      %1594 = vst.msk [vmem:[%s379 + $0x18] sm:$0xf] %vm1587, %v1585
      %1595 = vst.msk [vmem:[%s379 + $0x1c] sm:$0xf] %vm1587, %v1586
      %s1596 = smul.u32 8, %s21
      %p1597 = scmp.lt.s32.totalorder %s20, 1
      %s1598 = scalar_select %p1597, %s20, 1
      %p1599 = scmp.lt.s32.totalorder %s1596, 7
      %s1600 = scalar_select %p1599, %s1596, 7
      %s1601 = smul.addr %s1598, 8
      %s1602 = sadd.s32 %s1600, %s1601
      %s1603 = smul.addr %s1602, 4
      %s1604 = scalar_lea.vmem %s5, %s1603
      // Predicated region
      $region41: #{pht_forward.11} parent=39 // pred_check
        %p1605 = pneg %p178
      $region42: #{pht_forward.11} parent=39 // pred_check_branch
        %1607 = sbr.rel (%p1605) target = $region44
      $region43: #{pht_forward.11} parent=39 // pred_region
        %s1608 = smul.u32 8, %s21
      $region44: #{pht_forward.11} parent=39 // pred_fallthru
        _
    $region40: #{pht_forward.11} parent=5 // pred_fallthru
      _
    %p1609 = scmp.le.s32.totalorder 2, %s11
    // Predicated region
    $region45: #{pht_forward.11} parent=5 // pred_check
      %p1610 = pneg %p1609
    $region46: #{pht_forward.11} parent=5 // pred_check_branch
      %1612 = sbr.rel (%p1610) target = $region48
    $region47: #{pht_forward.11} parent=5 // pred_region
      %s1613 = ssub.s32 %s11, 2
      // Predicated region
      $region49: #{pht_forward.11} parent=47 // pred_check
        %p1614 = pneg %p184
      $region50: #{pht_forward.11} parent=47 // pred_check_branch
        %1616 = sbr.rel (%p1614) target = $region52
      $region51: #{pht_forward.11} parent=47 // pred_region
        %s1617 = smul.u32 8, %s23
        %p1618 = scmp.lt.s32.totalorder %s22, 1
        %s1619 = scalar_select %p1618, %s22, 1
        %p1620 = scmp.lt.s32.totalorder %s1617, 7
        %s1621 = scalar_select %p1620, %s1617, 7
        %s1622 = smul.addr %s1619, 8
        %s1623 = sadd.s32 %s1621, %s1622
        %s1624 = smul.addr %s1623, 4
        %s1625 = scalar_lea.vmem %s5, %s1624
      $region52: #{pht_forward.11} parent=47 // pred_fallthru
        _
    $region48: #{pht_forward.11} parent=5 // pred_fallthru
      _
  $region6: #{pht_forward.11} parent=0 // loop_footer
    %s15 = sadd.s32 1, %s11
  $region7: #{pht_forward.11} parent=0 // loop_footer_branch
    %10 = sbr.rel target = $region3
  $region8: #{pht_forward.11} parent=0 // loop_exit
    _

// kernel: pht_forward.8
$region0: #{pht_forward.8}
  #allocation0 [shape = 'u32[]', space=smem, size = 0x4, offset = 0x4, fixed_abs, tag = 'smem constant byte address 0x4 - core index']
  #allocation1 [shape = 'u32[144,128]{1,0:T(1,128)}', space=vmem, size = 0x12000, scoped, tag = 'internal scratch']
  %s0 = inlined_call_operand.vmem [shape: bf16[2,10,10,3], index: 0, kind: input, shape index: {}, may-alias: {0,1}]
  %s1 = inlined_call_operand.vmem [shape: bf16[2,10,10,3], index: 1, kind: input, shape index: {}, may-alias: {0,1}]
  %s2 = inlined_call_operand.vmem [shape: bf16[3,3,3,32], index: 2, kind: input, shape index: {}]
  %s3 = inlined_call_operand.vmem [shape: f32[1,32], index: 3, kind: input, shape index: {}]
  %s4 = inlined_call_operand.vmem [shape: f32[1,32], index: 4, kind: input, shape index: {}]
  %s5 = inlined_call_operand.vmem [shape: f32[1,32], index: 5, kind: input, shape index: {}]
  %s6 = inlined_call_operand.vmem [shape: bf16[2,8,8,32], index: 6, kind: output, shape index: {}]
  %s7 = sld [smem:[#allocation0]]
  $region57: #{pht_forward.8} parent=0
    _
  %s9 = ssub.s32 1, %s7
  %s10 = scalar_select 0, %s9, %s7
  loop: start=0, step=1, limit=4
  $region2: #{pht_forward.8} parent=0 // loop_pre_header
    _
  $region3: #{pht_forward.8} parent=0 // loop_header
    %s12 = sphi 0, %s16
    %p13 = scmp.ge.s32.totalorder %s12, 4
    %s19 = sphi 0, %s31
    %s20 = sphi 0, %s27
    %s21 = sphi 0, %s19
    %s22 = sphi 0, %s20
    %s23 = sphi 0, %s21
    %s24 = sphi 0, %s22
    %s36 = sphi 0, %s38
    %s39 = sphi 0, %s36
    %s40 = sphi 0, %s39
    %s56 = sphi 0, %s40
    %s68 = sphi 0, %s70
    %s71 = sphi 0, %s68
    %s72 = sphi 0, %s71
    %s88 = sphi 0, %s72
    %s92 = sphi 0, %s92
    %s94 = sphi 0, %s92
    %s95 = sphi 0, %s94
    %s109 = sphi 0, %s95
    %s113 = sphi 0, %s113
    %s115 = sphi 0, %s113
    %s116 = sphi 0, %s115
    %s130 = sphi 0, %s116
    %s134 = sphi 0, %s134
    %s136 = sphi 0, %s134
    %s137 = sphi 0, %s136
    %s151 = sphi 0, %s137
    %s155 = sphi 0, %s155
    %s157 = sphi 0, %s155
    %s158 = sphi 0, %s157
    %s172 = sphi 0, %s158
    %s180 = sphi 0, %s182
    %s183 = sphi 0, %s180
    %s184 = sphi 0, %s183
    %s200 = sphi 0, %s184
  $region4: #{pht_forward.8} parent=0 // loop_header_branch
    %15 = sbr.rel (%p13) target = $region8
  $region5: #{pht_forward.8} parent=0 // loop_body
    %s17 = ssub.s32 %s12, 1
    %s18 = ssub.s32 %s12, 2
    %s25 = sadd.s32 1, %s20
    %p26 = scmp.ge.s32.totalorder %s25, 1
    %s27 = scalar_select %p26, 0, %s25
    %s28 = sadd.s32 1, %s19
    %s29 = scalar_select %p26, %s28, %s19
    %p30 = scmp.ge.s32.totalorder %s29, 2
    %s31 = scalar_select %p30, 0, %s29
    %s32 = ssub.s32 %s19, %s31
    %s33 = ssub.s32 %s20, %s27
    %s34 = sor.u32 %s32, %s33
    %p35 = scmp.eq.s32.totalorder %s34, 0
    %s37 = sadd.s32 %s36, 1
    %s38 = scalar_select %p35, %s36, %s37
    %p41 = pneg %p35
    %p42 = scmp.eq.s32.totalorder %s12, 1
    %p43 = por %p41, %p42
    %p44 = scmp.ne.s32.totalorder %s36, %s39
    %p45 = scmp.eq.s32.totalorder %s12, 0
    %p46 = por %p44, %p45
    %p47 = scmp.ne.s32.totalorder %s36, %s39
    %p48 = scmp.eq.s32.totalorder %s17, 1
    %p49 = por %p47, %p48
    %p50 = scmp.ne.s32.totalorder %s39, %s40
    %p51 = scmp.eq.s32.totalorder %s17, 0
    %p52 = por %p50, %p51
    %p53 = scmp.ne.s32.totalorder %s39, %s40
    %p54 = scmp.eq.s32.totalorder %s18, 1
    %p55 = por %p53, %p54
    %p57 = scmp.ne.s32.totalorder %s40, %s56
    %p58 = scmp.eq.s32.totalorder %s18, 0
    %p59 = por %p57, %p58
    %s60 = sadd.s32 %s20, 1
    %s61 = smul.u32 %s60, 4
    %s62 = sadd.s32 %s27, 1
    %s63 = smul.u32 %s62, 4
    %s64 = ssub.s32 %s19, %s31
    %s65 = ssub.s32 %s61, %s63
    %s66 = sor.u32 %s64, %s65
    %p67 = scmp.eq.s32.totalorder %s66, 0
    %s69 = sadd.s32 %s68, 1
    %s70 = scalar_select %p67, %s68, %s69
    %p73 = pneg %p67
    %p74 = scmp.eq.s32.totalorder %s12, 1
    %p75 = por %p73, %p74
    %p76 = scmp.ne.s32.totalorder %s68, %s71
    %p77 = scmp.eq.s32.totalorder %s12, 0
    %p78 = por %p76, %p77
    %p79 = scmp.ne.s32.totalorder %s68, %s71
    %p80 = scmp.eq.s32.totalorder %s17, 1
    %p81 = por %p79, %p80
    %p82 = scmp.ne.s32.totalorder %s71, %s72
    %p83 = scmp.eq.s32.totalorder %s17, 0
    %p84 = por %p82, %p83
    %p85 = scmp.ne.s32.totalorder %s71, %s72
    %p86 = scmp.eq.s32.totalorder %s18, 1
    %p87 = por %p85, %p86
    %p89 = scmp.ne.s32.totalorder %s72, %s88
    %p90 = scmp.eq.s32.totalorder %s18, 0
    %p91 = por %p89, %p90
    %s93 = sadd.s32 %s92, 1
    %p96 = scmp.eq.s32.totalorder %s12, 1
    %p97 = scmp.ne.s32.totalorder %s92, %s94
    %p98 = scmp.eq.s32.totalorder %s12, 0
    %p99 = por %p97, %p98
    %p100 = scmp.ne.s32.totalorder %s92, %s94
    %p101 = scmp.eq.s32.totalorder %s17, 1
    %p102 = por %p100, %p101
    %p103 = scmp.ne.s32.totalorder %s94, %s95
    %p104 = scmp.eq.s32.totalorder %s17, 0
    %p105 = por %p103, %p104
    %p106 = scmp.ne.s32.totalorder %s94, %s95
    %p107 = scmp.eq.s32.totalorder %s18, 1
    %p108 = por %p106, %p107
    %p110 = scmp.ne.s32.totalorder %s95, %s109
    %p111 = scmp.eq.s32.totalorder %s18, 0
    %p112 = por %p110, %p111
    %s114 = sadd.s32 %s113, 1
    %p117 = scmp.eq.s32.totalorder %s12, 1
    %p118 = scmp.ne.s32.totalorder %s113, %s115
    %p119 = scmp.eq.s32.totalorder %s12, 0
    %p120 = por %p118, %p119
    %p121 = scmp.ne.s32.totalorder %s113, %s115
    %p122 = scmp.eq.s32.totalorder %s17, 1
    %p123 = por %p121, %p122
    %p124 = scmp.ne.s32.totalorder %s115, %s116
    %p125 = scmp.eq.s32.totalorder %s17, 0
    %p126 = por %p124, %p125
    %p127 = scmp.ne.s32.totalorder %s115, %s116
    %p128 = scmp.eq.s32.totalorder %s18, 1
    %p129 = por %p127, %p128
    %p131 = scmp.ne.s32.totalorder %s116, %s130
    %p132 = scmp.eq.s32.totalorder %s18, 0
    %p133 = por %p131, %p132
    %s135 = sadd.s32 %s134, 1
    %p138 = scmp.eq.s32.totalorder %s12, 1
    %p139 = scmp.ne.s32.totalorder %s134, %s136
    %p140 = scmp.eq.s32.totalorder %s12, 0
    %p141 = por %p139, %p140
    %p142 = scmp.ne.s32.totalorder %s134, %s136
    %p143 = scmp.eq.s32.totalorder %s17, 1
    %p144 = por %p142, %p143
    %p145 = scmp.ne.s32.totalorder %s136, %s137
    %p146 = scmp.eq.s32.totalorder %s17, 0
    %p147 = por %p145, %p146
    %p148 = scmp.ne.s32.totalorder %s136, %s137
    %p149 = scmp.eq.s32.totalorder %s18, 1
    %p150 = por %p148, %p149
    %p152 = scmp.ne.s32.totalorder %s137, %s151
    %p153 = scmp.eq.s32.totalorder %s18, 0
    %p154 = por %p152, %p153
    %s156 = sadd.s32 %s155, 1
    %p159 = scmp.eq.s32.totalorder %s12, 1
    %p160 = scmp.ne.s32.totalorder %s155, %s157
    %p161 = scmp.eq.s32.totalorder %s12, 0
    %p162 = por %p160, %p161
    %p163 = scmp.ne.s32.totalorder %s155, %s157
    %p164 = scmp.eq.s32.totalorder %s17, 1
    %p165 = por %p163, %p164
    %p166 = scmp.ne.s32.totalorder %s157, %s158
    %p167 = scmp.eq.s32.totalorder %s17, 0
    %p168 = por %p166, %p167
    %p169 = scmp.ne.s32.totalorder %s157, %s158
    %p170 = scmp.eq.s32.totalorder %s18, 1
    %p171 = por %p169, %p170
    %p173 = scmp.ne.s32.totalorder %s158, %s172
    %p174 = scmp.eq.s32.totalorder %s18, 0
    %p175 = por %p173, %p174
    %s176 = ssub.s32 %s19, %s31
    %s177 = ssub.s32 %s20, %s27
    %s178 = sor.u32 %s176, %s177
    %p179 = scmp.eq.s32.totalorder %s178, 0
    %s181 = sadd.s32 %s180, 1
    %s182 = scalar_select %p179, %s180, %s181
    %p185 = pneg %p179
    %p186 = scmp.eq.s32.totalorder %s12, 1
    %p187 = por %p185, %p186
    %p188 = scmp.ne.s32.totalorder %s180, %s183
    %p189 = scmp.eq.s32.totalorder %s12, 0
    %p190 = por %p188, %p189
    %p191 = scmp.ne.s32.totalorder %s180, %s183
    %p192 = scmp.eq.s32.totalorder %s17, 1
    %p193 = por %p191, %p192
    %p194 = scmp.ne.s32.totalorder %s183, %s184
    %p195 = scmp.eq.s32.totalorder %s17, 0
    %p196 = por %p194, %p195
    %p197 = scmp.ne.s32.totalorder %s183, %s184
    %p198 = scmp.eq.s32.totalorder %s18, 1
    %p199 = por %p197, %p198
    %p201 = scmp.ne.s32.totalorder %s184, %s200
    %p202 = scmp.eq.s32.totalorder %s18, 0
    %p203 = por %p201, %p202
    %p204 = scmp.le.s32.totalorder 1, %s12
    %p205 = scmp.lt.s32.totalorder %s12, 3
    %p206 = pnand %p204, %p205
    %p207 = pneg %p206
    // Predicated region
    $region9: #{pht_forward.8} parent=5 // pred_check
      _
    $region10: #{pht_forward.8} parent=5 // pred_check_branch
      %209 = sbr.rel (%p206) target = $region12
    $region11: #{pht_forward.8} parent=5 // pred_region
      %s210 = ssub.s32 %s12, 1
      // Predicated region
      $region13: #{pht_forward.8} parent=11 // pred_check
        %p211 = pneg %p105
      $region14: #{pht_forward.8} parent=11 // pred_check_branch
        %213 = sbr.rel (%p211) target = $region16
      $region15: #{pht_forward.8} parent=11 // pred_region
        _
      $region16: #{pht_forward.8} parent=11 // pred_fallthru
        _
      // Predicated region
      $region17: #{pht_forward.8} parent=11 // pred_check
        %p214 = pneg %p126
      $region18: #{pht_forward.8} parent=11 // pred_check_branch
        %216 = sbr.rel (%p214) target = $region20
      $region19: #{pht_forward.8} parent=11 // pred_region
        _
      $region20: #{pht_forward.8} parent=11 // pred_fallthru
        _
      // Predicated region
      $region21: #{pht_forward.8} parent=11 // pred_check
        %p217 = pneg %p147
      $region22: #{pht_forward.8} parent=11 // pred_check_branch
        %219 = sbr.rel (%p217) target = $region24
      $region23: #{pht_forward.8} parent=11 // pred_region
        _
      $region24: #{pht_forward.8} parent=11 // pred_fallthru
        _
      // Predicated region
      $region25: #{pht_forward.8} parent=11 // pred_check
        %p220 = pneg %p168
      $region26: #{pht_forward.8} parent=11 // pred_check_branch
        %222 = sbr.rel (%p220) target = $region28
      $region27: #{pht_forward.8} parent=11 // pred_region
        _
      $region28: #{pht_forward.8} parent=11 // pred_fallthru
        _
    $region12: #{pht_forward.8} parent=5 // pred_fallthru
      _
    %p223 = scmp.lt.s32.totalorder %s12, 2
    // Predicated region
    $region29: #{pht_forward.8} parent=5 // pred_check
      %p224 = pneg %p223
    $region30: #{pht_forward.8} parent=5 // pred_check_branch
      %226 = sbr.rel (%p224) target = $region32
    $region31: #{pht_forward.8} parent=5 // pred_region
      // Predicated region
      $region33: #{pht_forward.8} parent=31 // pred_check
        %p227 = pneg %p46
      $region34: #{pht_forward.8} parent=31 // pred_check_branch
        %229 = sbr.rel (%p227) target = $region36
      $region35: #{pht_forward.8} parent=31 // pred_region
        %s230 = smul.u32 8, %s20
        %s231 = ssub.s32 10, %s230
        %p232 = scmp.lt.s32.totalorder %s231, 8
        %s233 = scalar_select %p232, %s231, 8
        %s234 = smul.u32 64, %s233
        %s235 = smul.u32 %s234, 2
        %p236 = scmp.lt.s32.totalorder %s19, 1
        %s237 = scalar_select %p236, %s19, 1
        %p238 = scmp.lt.s32.totalorder %s230, 9
        %s239 = scalar_select %p238, %s230, 9
        %s240 = smul.addr %s239, 2
        %s241 = smul.addr %s237, 20
        %s242 = sadd.s32 %s240, %s241
        %s243 = smul.addr %s242, 4
        %s244 = scalar_lea.vmem %s0, %s243
        %s245 = smul.u32 8, %s20
        %s246 = ssub.s32 10, %s245
        %p247 = scmp.lt.s32.totalorder %s246, 8
        %s248 = scalar_select %p247, %s246, 8
        %s249 = smul.u32 64, %s248
        %s250 = smul.u32 %s249, 2
      $region36: #{pht_forward.8} parent=31 // pred_fallthru
        _
      // Predicated region
      $region37: #{pht_forward.8} parent=31 // pred_check
        %p251 = pneg %p78
      $region38: #{pht_forward.8} parent=31 // pred_check_branch
        %253 = sbr.rel (%p251) target = $region40
      $region39: #{pht_forward.8} parent=31 // pred_region
        %s254 = sadd.s32 %s20, 1
        %s255 = smul.u32 %s254, 4
        %s256 = smul.u32 2, %s255
        %p257 = scmp.lt.s32.totalorder %s19, 1
        %s258 = scalar_select %p257, %s19, 1
        %p259 = scmp.lt.s32.totalorder %s256, 9
        %s260 = scalar_select %p259, %s256, 9
        %s261 = smul.addr %s260, 2
        %s262 = smul.addr %s258, 20
        %s263 = sadd.s32 %s261, %s262
        %s264 = smul.addr %s263, 4
        %s265 = scalar_lea.vmem %s1, %s264
        %s266 = sadd.s32 %s20, 1
        %s267 = smul.u32 %s266, 4
        %s268 = smul.u32 2, %s267
      $region40: #{pht_forward.8} parent=31 // pred_fallthru
        _
    $region32: #{pht_forward.8} parent=5 // pred_fallthru
      _
    %p269 = scmp.le.s32.totalorder 1, %s12
    %p270 = scmp.lt.s32.totalorder %s12, 3
    %p271 = pnand %p269, %p270
    %p272 = pneg %p271
    // Predicated region
    $region41: #{pht_forward.8} parent=5 // pred_check
      _
    $region42: #{pht_forward.8} parent=5 // pred_check_branch
      %274 = sbr.rel (%p271) target = $region44
    $region43: #{pht_forward.8} parent=5 // pred_region
      %s275 = ssub.s32 %s12, 1
      %s276 = smul.u32 8, %s22
      %s277 = ssub.s32 10, %s276
      %p278 = scmp.lt.s32.totalorder %s277, 8
      %s279 = scalar_select %p278, %s277, 8
      %s280 = smul.u32 64, %s279
      %s281 = smul.u32 %s280, 2
      %p282 = scmp.lt.s32.totalorder %s21, 1
      %s283 = scalar_select %p282, %s21, 1
      %p284 = scmp.lt.s32.totalorder %s276, 9
      %s285 = scalar_select %p284, %s276, 9
      %s286 = smul.addr %s285, 2
      %s287 = smul.addr %s283, 20
      %s288 = sadd.s32 %s286, %s287
      %s289 = smul.addr %s288, 4
      %s290 = scalar_lea.vmem %s0, %s289
      %p291 = pneg %p52
      %p292 = pneg %p49
      %s293 = sadd.s32 %s22, 1
      %s294 = smul.u32 %s293, 4
      %s295 = smul.u32 2, %s294
      %p296 = scmp.lt.s32.totalorder %s21, 1
      %s297 = scalar_select %p296, %s21, 1
      %p298 = scmp.lt.s32.totalorder %s295, 9
      %s299 = scalar_select %p298, %s295, 9
      %s300 = smul.addr %s299, 2
      %s301 = smul.addr %s297, 20
      %s302 = sadd.s32 %s300, %s301
      %s303 = smul.addr %s302, 4
      %s304 = scalar_lea.vmem %s1, %s303
      %p305 = pneg %p84
      %p306 = pneg %p81
      %p307 = pneg %p105
      %p308 = pneg %p102
      %p309 = pneg %p126
      %p310 = pneg %p123
      %p311 = pneg %p147
      %p312 = pneg %p144
      %p313 = pneg %p168
      %p314 = pneg %p165
      %p315 = pneg %p196
      %p316 = pneg %p193
      %s317 = smul.u32 8, %s22
      %p318 = scmp.lt.s32.totalorder %s21, 1
      %s319 = scalar_select %p318, %s21, 1
      %p320 = scmp.lt.s32.totalorder %s317, 7
      %s321 = scalar_select %p320, %s317, 7
      %s322 = smul.addr %s319, 8
      %s323 = sadd.s32 %s321, %s322
      %s324 = smul.addr %s323, 4
      %s325 = scalar_lea.vmem %s6, %s324
      %s326 = smul.u32 8, %s22
      %s327 = ssub.s32 10, %s326
      %p328 = scmp.lt.s32.totalorder %s327, 8
      %s329 = scalar_select %p328, %s327, 8
      %s330 = smul.u32 64, %s329
      %s331 = smul.u32 %s330, 2
      %p332 = scmp.lt.s32.totalorder %s21, 1
      %s333 = scalar_select %p332, %s21, 1
      %p334 = scmp.lt.s32.totalorder %s326, 9
      %s335 = scalar_select %p334, %s326, 9
      %s336 = smul.addr %s335, 2
      %s337 = smul.addr %s333, 20
      %s338 = sadd.s32 %s336, %s337
      %s339 = smul.addr %s338, 4
      %s340 = scalar_lea.vmem %s0, %s339
      %s341 = smul.u32 8, %s22
      %s342 = ssub.s32 10, %s341
      %p343 = scmp.lt.s32.totalorder %s342, 8
      %s344 = scalar_select %p343, %s342, 8
      %s345 = smul.u32 64, %s344
      %s346 = smul.u32 %s345, 2
      %s347 = sadd.s32 %s22, 1
      %s348 = smul.u32 %s347, 4
      %s349 = smul.u32 2, %s348
      %p350 = scmp.lt.s32.totalorder %s21, 1
      %s351 = scalar_select %p350, %s21, 1
      %p352 = scmp.lt.s32.totalorder %s349, 9
      %s353 = scalar_select %p352, %s349, 9
      %s354 = smul.addr %s353, 2
      %s355 = smul.addr %s351, 20
      %s356 = sadd.s32 %s354, %s355
      %s357 = smul.addr %s356, 4
      %s358 = scalar_lea.vmem %s1, %s357
      %s359 = sadd.s32 %s22, 1
      %s360 = smul.u32 %s359, 4
      %s361 = smul.u32 2, %s360
      %s362 = smul.u32 8, %s22
      %p363 = scmp.lt.s32.totalorder %s21, 1
      %s364 = scalar_select %p363, %s21, 1
      %p365 = scmp.lt.s32.totalorder %s362, 7
      %s366 = scalar_select %p365, %s362, 7
      %s367 = smul.addr %s364, 8
      %s368 = sadd.s32 %s366, %s367
      %s369 = smul.addr %s368, 4
      %s370 = scalar_lea.vmem %s6, %s369
      %s371 = smul.u32 8, %s22
      %v373 = vld [vmem:[%s340] sm:$0xf]
      %v374 = vld [vmem:[%s340 + $0x4] sm:$0x1]
      %v375 = vld [vmem:[%s340 + $0x8] sm:$0xf]
      %v376 = vld [vmem:[%s340 + $0xc] sm:$0x1]
      %v377 = vld [vmem:[%s340 + $0x10] sm:$0xf]
      %v378 = vld [vmem:[%s340 + $0x14] sm:$0x1]
      %v379 = vld [vmem:[%s340 + $0x18] sm:$0xf]
      %v380 = vld [vmem:[%s340 + $0x1c] sm:$0x1]
      %v381 = vld [vmem:[%s340 + $0x20] sm:$0xf]
      %v382 = vld [vmem:[%s340 + $0x24] sm:$0x1]
      %v383 = vld [vmem:[%s340 + $0x28] sm:$0xf]
      %v384 = vld [vmem:[%s340 + $0x2c] sm:$0x1]
      %v385 = vld [vmem:[%s340 + $0x30] sm:$0xf]
      %v386 = vld [vmem:[%s340 + $0x34] sm:$0x1]
      %v387 = vld [vmem:[%s340 + $0x38] sm:$0xf]
      %v388 = vld [vmem:[%s340 + $0x3c] sm:$0x1]
      %v389 = vld [vmem:[%s358] sm:$0xf]
      %v390 = vld [vmem:[%s358 + $0x4] sm:$0x1]
      %v391 = vld [vmem:[%s358 + $0x8] sm:$0xf]
      %v392 = vld [vmem:[%s358 + $0xc] sm:$0x1]
      %v393 = vld [vmem:[%s2] sm:$0x3]
      %vm394 = vsmask.f32 3328
      %vm395 = vsmask.f32 7440
      %vm396 = vmor %vm394, %vm395
      %v398 = vshrl.u32 %v373, 16
      %v400 = vrot.slane %v398, 4
      %v401 = vshll.u32 %v373, 16
      %v403 = vrot.slane %v401, 5
      %v404 = vor.u32 %v400, %v403
      %v405 = vrot.slane %v404, 4
      %v407 = vshll.u32 %v374, 16
      %v409 = vrot.slane %v407, 5
      %v410 = vsel %vm396, %v405, %v409
      %v412 = vshrl.u32 %v375, 16
      %v414 = vrot.slane %v412, 4
      %v415 = vshll.u32 %v375, 16
      %v417 = vrot.slane %v415, 5
      %v418 = vor.u32 %v414, %v417
      %v419 = vrot.slane %v418, 4
      %v421 = vshll.u32 %v376, 16
      %v423 = vrot.slane %v421, 5
      %v424 = vsel %vm396, %v419, %v423
      %v426 = vshrl.u32 %v377, 16
      %v428 = vrot.slane %v426, 4
      %v429 = vshll.u32 %v377, 16
      %v431 = vrot.slane %v429, 5
      %v432 = vor.u32 %v428, %v431
      %v433 = vrot.slane %v432, 4
      %v435 = vshll.u32 %v378, 16
      %v437 = vrot.slane %v435, 5
      %v438 = vsel %vm396, %v433, %v437
      %v440 = vshrl.u32 %v379, 16
      %v442 = vrot.slane %v440, 4
      %v443 = vshll.u32 %v379, 16
      %v445 = vrot.slane %v443, 5
      %v446 = vor.u32 %v442, %v445
      %v447 = vrot.slane %v446, 4
      %v449 = vshll.u32 %v380, 16
      %v451 = vrot.slane %v449, 5
      %v452 = vsel %vm396, %v447, %v451
      %v454 = vshrl.u32 %v381, 16
      %v456 = vrot.slane %v454, 4
      %v457 = vshll.u32 %v381, 16
      %v459 = vrot.slane %v457, 5
      %v460 = vor.u32 %v456, %v459
      %v461 = vrot.slane %v460, 4
      %v463 = vshll.u32 %v382, 16
      %v465 = vrot.slane %v463, 5
      %v466 = vsel %vm396, %v461, %v465
      %v468 = vshrl.u32 %v383, 16
      %v470 = vrot.slane %v468, 4
      %v471 = vshll.u32 %v383, 16
      %v473 = vrot.slane %v471, 5
      %v474 = vor.u32 %v470, %v473
      %v475 = vrot.slane %v474, 4
      %v477 = vshll.u32 %v384, 16
      %v479 = vrot.slane %v477, 5
      %v480 = vsel %vm396, %v475, %v479
      %v482 = vshrl.u32 %v385, 16
      %v484 = vrot.slane %v482, 4
      %v485 = vshll.u32 %v385, 16
      %v487 = vrot.slane %v485, 5
      %v488 = vor.u32 %v484, %v487
      %v489 = vrot.slane %v488, 4
      %v491 = vshll.u32 %v386, 16
      %v493 = vrot.slane %v491, 5
      %v494 = vsel %vm396, %v489, %v493
      %v496 = vshrl.u32 %v387, 16
      %v498 = vrot.slane %v496, 4
      %v499 = vshll.u32 %v387, 16
      %v501 = vrot.slane %v499, 5
      %v502 = vor.u32 %v498, %v501
      %v503 = vrot.slane %v502, 4
      %v505 = vshll.u32 %v388, 16
      %v507 = vrot.slane %v505, 5
      %v508 = vsel %vm396, %v503, %v507
      %s509 = scalar_lea.vmem %s2, 2
      %v510 = vld [vmem:[%s509] sm:$0x3]
      %v511 = vunpack.c.l.b16 %v410
      %v512 = vunpack.c.l.b16 %v424
      %v513 = vunpack.c.l.b16 %v438
      %v514 = vunpack.c.l.b16 %v452
      %v515 = vunpack.c.l.b16 %v466
      %v516 = vunpack.c.l.b16 %v480
      %v517 = vunpack.c.l.b16 %v494
      %v518 = vunpack.c.l.b16 %v508
      %v519 = vpack.c.b16 %v512, %v511
      %v520 = vpack.c.b16 %v514, %v513
      %v521 = vpack.c.b16 %v516, %v515
      %v522 = vpack.c.b16 %v518, %v517
      %vm523 = vcmask 23552
      %v525 = vsel %vm523, %v519, 0
      %v528 = vsel %vm523, %v520, 0
      %v531 = vsel %vm523, %v521, 0
      %v534 = vsel %vm523, %v522, 0
      %vm536 = vcmask 1040384
      %vm537 = vcmask 1041408
      %v538 = vsel %vm536, 4294967295, 65535
      %v539 = vsel %vm537, %v538, 0
      %v541 = vand.u32 %v510, %v539
      %543 = vmatprep.subr.bf16.mxu0 0
      %544 = vmatpush1.bf16.msra.mxu0 %v541
      %545 = vmatprep.subr.bf16.mxu0 0
      %546 = vmatpush1.bf16.msra.mxu0 0
      %547 = vmatprep.subr.bf16.mxu0 0
      %548 = vmatpush1.bf16.msra.mxu0 0
      %549 = vmatprep.subr.bf16.mxu0 0
      %550 = vmatpush1.bf16.msra.mxu0 0
      %551 = vmatprep.subr.bf16.mxu0 0
      %552 = vmatpush1.bf16.msra.mxu0 0
      %553 = vmatprep.subr.bf16.mxu0 0
      %554 = vmatpush1.bf16.msra.mxu0 0
      %555 = vmatprep.subr.bf16.mxu0 0
      %556 = vmatpush1.bf16.msra.mxu0 0
      %557 = vmatprep.subr.bf16.mxu0 0
      %558 = vmatpush1.bf16.msra.mxu0 0
      %559 = vmatprep.subr.bf16.mxu0 0
      %560 = vmatpush1.bf16.msra.mxu0 0
      %561 = vmatprep.subr.bf16.mxu0 0
      %562 = vmatpush1.bf16.msra.mxu0 0
      %563 = vmatprep.subr.bf16.mxu0 0
      %564 = vmatpush1.bf16.msra.mxu0 0
      %565 = vmatprep.subr.bf16.mxu0 0
      %566 = vmatpush1.bf16.msra.mxu0 0
      %567 = vmatprep.subr.bf16.mxu0 0
      %568 = vmatpush1.bf16.msra.mxu0 0
      %569 = vmatprep.subr.bf16.mxu0 0
      %570 = vmatpush1.bf16.msra.mxu0 0
      %571 = vmatprep.subr.bf16.mxu0 0
      %572 = vmatpush1.bf16.msra.mxu0 0
      %573 = vmatprep.subr.bf16.mxu0 0
      %574 = vmatpush1.bf16.msra.mxu0 0
      %575 = vmatprep.mubr.bf16.mxu0 0
      %576 = vmatmul.mubr.bf16.gmra.mrb[0].mxu0 %v525
      %v577 = vpop.f32.mrb[0].mxu0
      %v578 = vadd.f32 0.0, %v577
      %v579 = vpop.f32.mrb[0].mxu0
      %v580 = vpop.f32.mrb[0].mxu0
      %v581 = vadd.f32 0.0, %v580
      %v582 = vpop.f32.mrb[0].mxu0
      %583 = vmatprep.mubr.bf16.mxu0 0
      %584 = vmatmul.mubr.bf16.gmra.mrb[0].mxu0 %v528
      %v585 = vpop.f32.mrb[0].mxu0
      %v586 = vadd.f32 0.0, %v585
      %v587 = vpop.f32.mrb[0].mxu0
      %v588 = vpop.f32.mrb[0].mxu0
      %v589 = vadd.f32 0.0, %v588
      %v590 = vpop.f32.mrb[0].mxu0
      %591 = vmatprep.mubr.bf16.mxu0 0
      %592 = vmatmul.mubr.bf16.gmra.mrb[0].mxu0 %v531
      %v593 = vpop.f32.mrb[0].mxu0
      %v594 = vadd.f32 0.0, %v593
      %v595 = vpop.f32.mrb[0].mxu0
      %v596 = vpop.f32.mrb[0].mxu0
      %v597 = vadd.f32 0.0, %v596
      %v598 = vpop.f32.mrb[0].mxu0
      %599 = vmatprep.mubr.bf16.mxu0 0
      %600 = vmatmul.mubr.bf16.gmra.mrb[0].mxu0 %v534
      %v601 = vpop.f32.mrb[0].mxu0
      %v602 = vadd.f32 0.0, %v601
      %v603 = vpop.f32.mrb[0].mxu0
      %v604 = vpop.f32.mrb[0].mxu0
      %v605 = vadd.f32 0.0, %v604
      %v606 = vpop.f32.mrb[0].mxu0
      %607 = vdwg.mxu0
      %v616 = vunpack.c.l.b16 %v373
      %v617 = vunpack.c.l.b16 %v375
      %v618 = vunpack.c.l.b16 %v377
      %v619 = vunpack.c.l.b16 %v379
      %v620 = vunpack.c.l.b16 %v381
      %v621 = vunpack.c.l.b16 %v383
      %v622 = vunpack.c.l.b16 %v385
      %v623 = vunpack.c.l.b16 %v387
      %v624 = vpack.c.b16 %v617, %v616
      %v625 = vpack.c.b16 %v619, %v618
      %v626 = vpack.c.b16 %v621, %v620
      %v627 = vpack.c.b16 %v623, %v622
      %v629 = vsel %vm523, %v624, 0
      %v632 = vsel %vm523, %v625, 0
      %v635 = vsel %vm523, %v626, 0
      %v638 = vsel %vm523, %v627, 0
      %v641 = vand.u32 %v393, %v539
      %643 = vmatprep.subr.bf16.mxu0 0
      %644 = vmatpush1.bf16.msra.mxu0 %v641
      %645 = vmatprep.subr.bf16.mxu0 0
      %646 = vmatpush1.bf16.msra.mxu0 0
      %647 = vmatprep.subr.bf16.mxu0 0
      %648 = vmatpush1.bf16.msra.mxu0 0
      %649 = vmatprep.subr.bf16.mxu0 0
      %650 = vmatpush1.bf16.msra.mxu0 0
      %651 = vmatprep.subr.bf16.mxu0 0
      %652 = vmatpush1.bf16.msra.mxu0 0
      %653 = vmatprep.subr.bf16.mxu0 0
      %654 = vmatpush1.bf16.msra.mxu0 0
      %655 = vmatprep.subr.bf16.mxu0 0
      %656 = vmatpush1.bf16.msra.mxu0 0
      %657 = vmatprep.subr.bf16.mxu0 0
      %658 = vmatpush1.bf16.msra.mxu0 0
      %659 = vmatprep.subr.bf16.mxu0 0
      %660 = vmatpush1.bf16.msra.mxu0 0
      %661 = vmatprep.subr.bf16.mxu0 0
      %662 = vmatpush1.bf16.msra.mxu0 0
      %663 = vmatprep.subr.bf16.mxu0 0
      %664 = vmatpush1.bf16.msra.mxu0 0
      %665 = vmatprep.subr.bf16.mxu0 0
      %666 = vmatpush1.bf16.msra.mxu0 0
      %667 = vmatprep.subr.bf16.mxu0 0
      %668 = vmatpush1.bf16.msra.mxu0 0
      %669 = vmatprep.subr.bf16.mxu0 0
      %670 = vmatpush1.bf16.msra.mxu0 0
      %671 = vmatprep.subr.bf16.mxu0 0
      %672 = vmatpush1.bf16.msra.mxu0 0
      %673 = vmatprep.subr.bf16.mxu0 0
      %674 = vmatpush1.bf16.msra.mxu0 0
      %675 = vmatprep.mubr.bf16.mxu0 0
      %676 = vmatmul.mubr.bf16.gmra.mrb[0].mxu0 %v629
      %v677 = vpop.f32.mrb[0].mxu0
      %v678 = vadd.f32 %v578, %v677
      %v679 = vpop.f32.mrb[0].mxu0
      %v680 = vpop.f32.mrb[0].mxu0
      %v681 = vadd.f32 %v581, %v680
      %v682 = vpop.f32.mrb[0].mxu0
      %683 = vmatprep.mubr.bf16.mxu0 0
      %684 = vmatmul.mubr.bf16.gmra.mrb[0].mxu0 %v632
      %v685 = vpop.f32.mrb[0].mxu0
      %v686 = vadd.f32 %v586, %v685
      %v687 = vpop.f32.mrb[0].mxu0
      %v688 = vpop.f32.mrb[0].mxu0
      %v689 = vadd.f32 %v589, %v688
      %v690 = vpop.f32.mrb[0].mxu0
      %691 = vmatprep.mubr.bf16.mxu0 0
      %692 = vmatmul.mubr.bf16.gmra.mrb[0].mxu0 %v635
      %v693 = vpop.f32.mrb[0].mxu0
      %v694 = vadd.f32 %v594, %v693
      %v695 = vpop.f32.mrb[0].mxu0
      %v696 = vpop.f32.mrb[0].mxu0
      %v697 = vadd.f32 %v597, %v696
      %v698 = vpop.f32.mrb[0].mxu0
      %699 = vmatprep.mubr.bf16.mxu0 0
      %700 = vmatmul.mubr.bf16.gmra.mrb[0].mxu0 %v638
      %v701 = vpop.f32.mrb[0].mxu0
      %v702 = vadd.f32 %v602, %v701
      %v703 = vpop.f32.mrb[0].mxu0
      %v704 = vpop.f32.mrb[0].mxu0
      %v705 = vadd.f32 %v605, %v704
      %v706 = vpop.f32.mrb[0].mxu0
      %707 = vdwg.mxu0
      %vm716 = vcmask 1042432
      %vm717 = vcmask 1046532
      %vm718 = vmor %vm716, %vm717
      %v719 = vrot.slane %v373, 5
      %v720 = vrot.slane %v719, 4
      %v721 = vrot.slane %v374, 5
      %v722 = vsel %vm718, %v720, %v721
      %v723 = vrot.slane %v375, 5
      %v724 = vrot.slane %v723, 4
      %v725 = vrot.slane %v376, 5
      %v726 = vsel %vm718, %v724, %v725
      %v727 = vrot.slane %v377, 5
      %v728 = vrot.slane %v727, 4
      %v729 = vrot.slane %v378, 5
      %v730 = vsel %vm718, %v728, %v729
      %v731 = vrot.slane %v379, 5
      %v732 = vrot.slane %v731, 4
      %v733 = vrot.slane %v380, 5
      %v734 = vsel %vm718, %v732, %v733
      %v735 = vrot.slane %v381, 5
      %v736 = vrot.slane %v735, 4
      %v737 = vrot.slane %v382, 5
      %v738 = vsel %vm718, %v736, %v737
      %v739 = vrot.slane %v383, 5
      %v740 = vrot.slane %v739, 4
      %v741 = vrot.slane %v384, 5
      %v742 = vsel %vm718, %v740, %v741
      %v743 = vrot.slane %v385, 5
      %v744 = vrot.slane %v743, 4
      %v745 = vrot.slane %v386, 5
      %v746 = vsel %vm718, %v744, %v745
      %v747 = vrot.slane %v387, 5
      %v748 = vrot.slane %v747, 4
      %v749 = vrot.slane %v388, 5
      %v750 = vsel %vm718, %v748, %v749
      %s751 = scalar_lea.vmem %s2, 4
      %v752 = vld [vmem:[%s751] sm:$0x3]
      %v753 = vunpack.c.l.b16 %v722
      %v754 = vunpack.c.l.b16 %v726
      %v755 = vunpack.c.l.b16 %v730
      %v756 = vunpack.c.l.b16 %v734
      %v757 = vunpack.c.l.b16 %v738
      %v758 = vunpack.c.l.b16 %v742
      %v759 = vunpack.c.l.b16 %v746
      %v760 = vunpack.c.l.b16 %v750
      %v761 = vpack.c.b16 %v754, %v753
      %v762 = vpack.c.b16 %v756, %v755
      %v763 = vpack.c.b16 %v758, %v757
      %v764 = vpack.c.b16 %v760, %v759
      %v766 = vsel %vm523, %v761, 0
      %v769 = vsel %vm523, %v762, 0
      %v772 = vsel %vm523, %v763, 0
      %v775 = vsel %vm523, %v764, 0
      %v778 = vand.u32 %v752, %v539
      %780 = vmatprep.subr.bf16.mxu0 0
      %781 = vmatpush1.bf16.msra.mxu0 %v778
      %782 = vmatprep.subr.bf16.mxu0 0
      %783 = vmatpush1.bf16.msra.mxu0 0
      %784 = vmatprep.subr.bf16.mxu0 0
      %785 = vmatpush1.bf16.msra.mxu0 0
      %786 = vmatprep.subr.bf16.mxu0 0
      %787 = vmatpush1.bf16.msra.mxu0 0
      %788 = vmatprep.subr.bf16.mxu0 0
      %789 = vmatpush1.bf16.msra.mxu0 0
      %790 = vmatprep.subr.bf16.mxu0 0
      %791 = vmatpush1.bf16.msra.mxu0 0
      %792 = vmatprep.subr.bf16.mxu0 0
      %793 = vmatpush1.bf16.msra.mxu0 0
      %794 = vmatprep.subr.bf16.mxu0 0
      %795 = vmatpush1.bf16.msra.mxu0 0
      %796 = vmatprep.subr.bf16.mxu0 0
      %797 = vmatpush1.bf16.msra.mxu0 0
      %798 = vmatprep.subr.bf16.mxu0 0
      %799 = vmatpush1.bf16.msra.mxu0 0
      %800 = vmatprep.subr.bf16.mxu0 0
      %801 = vmatpush1.bf16.msra.mxu0 0
      %802 = vmatprep.subr.bf16.mxu0 0
      %803 = vmatpush1.bf16.msra.mxu0 0
      %804 = vmatprep.subr.bf16.mxu0 0
      %805 = vmatpush1.bf16.msra.mxu0 0
      %806 = vmatprep.subr.bf16.mxu0 0
      %807 = vmatpush1.bf16.msra.mxu0 0
      %808 = vmatprep.subr.bf16.mxu0 0
      %809 = vmatpush1.bf16.msra.mxu0 0
      %810 = vmatprep.subr.bf16.mxu0 0
      %811 = vmatpush1.bf16.msra.mxu0 0
      %812 = vmatprep.mubr.bf16.mxu0 0
      %813 = vmatmul.mubr.bf16.gmra.mrb[0].mxu0 %v766
      %v814 = vpop.f32.mrb[0].mxu0
      %v815 = vadd.f32 0.0, %v814
      %v816 = vpop.f32.mrb[0].mxu0
      %v817 = vpop.f32.mrb[0].mxu0
      %v818 = vadd.f32 0.0, %v817
      %v819 = vpop.f32.mrb[0].mxu0
      %820 = vmatprep.mubr.bf16.mxu0 0
      %821 = vmatmul.mubr.bf16.gmra.mrb[0].mxu0 %v769
      %v822 = vpop.f32.mrb[0].mxu0
      %v823 = vadd.f32 0.0, %v822
      %v824 = vpop.f32.mrb[0].mxu0
      %v825 = vpop.f32.mrb[0].mxu0
      %v826 = vadd.f32 0.0, %v825
      %v827 = vpop.f32.mrb[0].mxu0
      %828 = vmatprep.mubr.bf16.mxu0 0
      %829 = vmatmul.mubr.bf16.gmra.mrb[0].mxu0 %v772
      %v830 = vpop.f32.mrb[0].mxu0
      %v831 = vadd.f32 0.0, %v830
      %v832 = vpop.f32.mrb[0].mxu0
      %v833 = vpop.f32.mrb[0].mxu0
      %v834 = vadd.f32 0.0, %v833
      %v835 = vpop.f32.mrb[0].mxu0
      %836 = vmatprep.mubr.bf16.mxu0 0
      %837 = vmatmul.mubr.bf16.gmra.mrb[0].mxu0 %v775
      %v838 = vpop.f32.mrb[0].mxu0
      %v839 = vadd.f32 0.0, %v838
      %v840 = vpop.f32.mrb[0].mxu0
      %v841 = vpop.f32.mrb[0].mxu0
      %v842 = vadd.f32 0.0, %v841
      %v843 = vpop.f32.mrb[0].mxu0
      %844 = vdwg.mxu0
      %v845 = vadd.f32 %v678, %v815
      %v846 = vadd.f32 %v681, %v818
      %v847 = vadd.f32 %v686, %v823
      %v848 = vadd.f32 %v689, %v826
      %v849 = vadd.f32 %v694, %v831
      %v850 = vadd.f32 %v697, %v834
      %v851 = vadd.f32 %v702, %v839
      %v852 = vadd.f32 %v705, %v842
      %s853 = scalar_lea.vmem %s2, 6
      %v854 = vld [vmem:[%s853] sm:$0x3]
      %v856 = vunpack.c.l.b16 %v389
      %v857 = vpack.c.b16 %v618, %v617
      %v858 = vpack.c.b16 %v620, %v619
      %v859 = vpack.c.b16 %v622, %v621
      %v860 = vpack.c.b16 %v856, %v623
      %v862 = vsel %vm523, %v857, 0
      %v865 = vsel %vm523, %v858, 0
      %v868 = vsel %vm523, %v859, 0
      %v871 = vsel %vm523, %v860, 0
      %v874 = vand.u32 %v854, %v539
      %876 = vmatprep.subr.bf16.mxu0 0
      %877 = vmatpush1.bf16.msra.mxu0 %v874
      %878 = vmatprep.subr.bf16.mxu0 0
      %879 = vmatpush1.bf16.msra.mxu0 0
      %880 = vmatprep.subr.bf16.mxu0 0
      %881 = vmatpush1.bf16.msra.mxu0 0
      %882 = vmatprep.subr.bf16.mxu0 0
      %883 = vmatpush1.bf16.msra.mxu0 0
      %884 = vmatprep.subr.bf16.mxu0 0
      %885 = vmatpush1.bf16.msra.mxu0 0
      %886 = vmatprep.subr.bf16.mxu0 0
      %887 = vmatpush1.bf16.msra.mxu0 0
      %888 = vmatprep.subr.bf16.mxu0 0
      %889 = vmatpush1.bf16.msra.mxu0 0
      %890 = vmatprep.subr.bf16.mxu0 0
      %891 = vmatpush1.bf16.msra.mxu0 0
      %892 = vmatprep.subr.bf16.mxu0 0
      %893 = vmatpush1.bf16.msra.mxu0 0
      %894 = vmatprep.subr.bf16.mxu0 0
      %895 = vmatpush1.bf16.msra.mxu0 0
      %896 = vmatprep.subr.bf16.mxu0 0
      %897 = vmatpush1.bf16.msra.mxu0 0
      %898 = vmatprep.subr.bf16.mxu0 0
      %899 = vmatpush1.bf16.msra.mxu0 0
      %900 = vmatprep.subr.bf16.mxu0 0
      %901 = vmatpush1.bf16.msra.mxu0 0
      %902 = vmatprep.subr.bf16.mxu0 0
      %903 = vmatpush1.bf16.msra.mxu0 0
      %904 = vmatprep.subr.bf16.mxu0 0
      %905 = vmatpush1.bf16.msra.mxu0 0
      %906 = vmatprep.subr.bf16.mxu0 0
      %907 = vmatpush1.bf16.msra.mxu0 0
      %908 = vmatprep.mubr.bf16.mxu0 0
      %909 = vmatmul.mubr.bf16.gmra.mrb[0].mxu0 %v862
      %v910 = vpop.f32.mrb[0].mxu0
      %v911 = vadd.f32 0.0, %v910
      %v912 = vpop.f32.mrb[0].mxu0
      %v913 = vpop.f32.mrb[0].mxu0
      %v914 = vadd.f32 0.0, %v913
      %v915 = vpop.f32.mrb[0].mxu0
      %916 = vmatprep.mubr.bf16.mxu0 0
      %917 = vmatmul.mubr.bf16.gmra.mrb[0].mxu0 %v865
      %v918 = vpop.f32.mrb[0].mxu0
      %v919 = vadd.f32 0.0, %v918
      %v920 = vpop.f32.mrb[0].mxu0
      %v921 = vpop.f32.mrb[0].mxu0
      %v922 = vadd.f32 0.0, %v921
      %v923 = vpop.f32.mrb[0].mxu0
      %924 = vmatprep.mubr.bf16.mxu0 0
      %925 = vmatmul.mubr.bf16.gmra.mrb[0].mxu0 %v868
      %v926 = vpop.f32.mrb[0].mxu0
      %v927 = vadd.f32 0.0, %v926
      %v928 = vpop.f32.mrb[0].mxu0
      %v929 = vpop.f32.mrb[0].mxu0
      %v930 = vadd.f32 0.0, %v929
      %v931 = vpop.f32.mrb[0].mxu0
      %932 = vmatprep.mubr.bf16.mxu0 0
      %933 = vmatmul.mubr.bf16.gmra.mrb[0].mxu0 %v871
      %v934 = vpop.f32.mrb[0].mxu0
      %v935 = vadd.f32 0.0, %v934
      %v936 = vpop.f32.mrb[0].mxu0
      %v937 = vpop.f32.mrb[0].mxu0
      %v938 = vadd.f32 0.0, %v937
      %v939 = vpop.f32.mrb[0].mxu0
      %940 = vdwg.mxu0
      %v941 = vadd.f32 %v845, %v911
      %v942 = vadd.f32 %v846, %v914
      %v943 = vadd.f32 %v847, %v919
      %v944 = vadd.f32 %v848, %v922
      %v945 = vadd.f32 %v849, %v927
      %v946 = vadd.f32 %v850, %v930
      %v947 = vadd.f32 %v851, %v935
      %v948 = vadd.f32 %v852, %v938
      %v950 = vshrl.u32 %v389, 16
      %v952 = vrot.slane %v950, 4
      %v953 = vshll.u32 %v389, 16
      %v955 = vrot.slane %v953, 5
      %v956 = vor.u32 %v952, %v955
      %v957 = vrot.slane %v956, 4
      %v959 = vshll.u32 %v390, 16
      %v961 = vrot.slane %v959, 5
      %v962 = vsel %vm396, %v957, %v961
      %s963 = scalar_lea.vmem %s2, 8
      %v964 = vld [vmem:[%s963] sm:$0x3]
      %v965 = vunpack.c.l.b16 %v962
      %v966 = vpack.c.b16 %v513, %v512
      %v967 = vpack.c.b16 %v515, %v514
      %v968 = vpack.c.b16 %v517, %v516
      %v969 = vpack.c.b16 %v965, %v518
      %v971 = vsel %vm523, %v966, 0
      %v974 = vsel %vm523, %v967, 0
      %v977 = vsel %vm523, %v968, 0
      %v980 = vsel %vm523, %v969, 0
      %v983 = vand.u32 %v964, %v539
      %985 = vmatprep.subr.bf16.mxu0 0
      %986 = vmatpush1.bf16.msra.mxu0 %v983
      %987 = vmatprep.subr.bf16.mxu0 0
      %988 = vmatpush1.bf16.msra.mxu0 0
      %989 = vmatprep.subr.bf16.mxu0 0
      %990 = vmatpush1.bf16.msra.mxu0 0
      %991 = vmatprep.subr.bf16.mxu0 0
      %992 = vmatpush1.bf16.msra.mxu0 0
      %993 = vmatprep.subr.bf16.mxu0 0
      %994 = vmatpush1.bf16.msra.mxu0 0
      %995 = vmatprep.subr.bf16.mxu0 0
      %996 = vmatpush1.bf16.msra.mxu0 0
      %997 = vmatprep.subr.bf16.mxu0 0
      %998 = vmatpush1.bf16.msra.mxu0 0
      %999 = vmatprep.subr.bf16.mxu0 0
      %1000 = vmatpush1.bf16.msra.mxu0 0
      %1001 = vmatprep.subr.bf16.mxu0 0
      %1002 = vmatpush1.bf16.msra.mxu0 0
      %1003 = vmatprep.subr.bf16.mxu0 0
      %1004 = vmatpush1.bf16.msra.mxu0 0
      %1005 = vmatprep.subr.bf16.mxu0 0
      %1006 = vmatpush1.bf16.msra.mxu0 0
      %1007 = vmatprep.subr.bf16.mxu0 0
      %1008 = vmatpush1.bf16.msra.mxu0 0
      %1009 = vmatprep.subr.bf16.mxu0 0
      %1010 = vmatpush1.bf16.msra.mxu0 0
      %1011 = vmatprep.subr.bf16.mxu0 0
      %1012 = vmatpush1.bf16.msra.mxu0 0
      %1013 = vmatprep.subr.bf16.mxu0 0
      %1014 = vmatpush1.bf16.msra.mxu0 0
      %1015 = vmatprep.subr.bf16.mxu0 0
      %1016 = vmatpush1.bf16.msra.mxu0 0
      %1017 = vmatprep.mubr.bf16.mxu0 0
      %1018 = vmatmul.mubr.bf16.gmra.mrb[0].mxu0 %v971
      %v1019 = vpop.f32.mrb[0].mxu0
      %v1020 = vadd.f32 0.0, %v1019
      %v1021 = vpop.f32.mrb[0].mxu0
      %v1022 = vpop.f32.mrb[0].mxu0
      %v1023 = vadd.f32 0.0, %v1022
      %v1024 = vpop.f32.mrb[0].mxu0
      %1025 = vmatprep.mubr.bf16.mxu0 0
      %1026 = vmatmul.mubr.bf16.gmra.mrb[0].mxu0 %v974
      %v1027 = vpop.f32.mrb[0].mxu0
      %v1028 = vadd.f32 0.0, %v1027
      %v1029 = vpop.f32.mrb[0].mxu0
      %v1030 = vpop.f32.mrb[0].mxu0
      %v1031 = vadd.f32 0.0, %v1030
      %v1032 = vpop.f32.mrb[0].mxu0
      %1033 = vmatprep.mubr.bf16.mxu0 0
      %1034 = vmatmul.mubr.bf16.gmra.mrb[0].mxu0 %v977
      %v1035 = vpop.f32.mrb[0].mxu0
      %v1036 = vadd.f32 0.0, %v1035
      %v1037 = vpop.f32.mrb[0].mxu0
      %v1038 = vpop.f32.mrb[0].mxu0
      %v1039 = vadd.f32 0.0, %v1038
      %v1040 = vpop.f32.mrb[0].mxu0
      %1041 = vmatprep.mubr.bf16.mxu0 0
      %1042 = vmatmul.mubr.bf16.gmra.mrb[0].mxu0 %v980
      %v1043 = vpop.f32.mrb[0].mxu0
      %v1044 = vadd.f32 0.0, %v1043
      %v1045 = vpop.f32.mrb[0].mxu0
      %v1046 = vpop.f32.mrb[0].mxu0
      %v1047 = vadd.f32 0.0, %v1046
      %v1048 = vpop.f32.mrb[0].mxu0
      %1049 = vdwg.mxu0
      %v1050 = vadd.f32 %v941, %v1020
      %v1051 = vadd.f32 %v942, %v1023
      %v1052 = vadd.f32 %v943, %v1028
      %v1053 = vadd.f32 %v944, %v1031
      %v1054 = vadd.f32 %v945, %v1036
      %v1055 = vadd.f32 %v946, %v1039
      %v1056 = vadd.f32 %v947, %v1044
      %v1057 = vadd.f32 %v948, %v1047
      %v1059 = vrot.slane %v389, 5
      %v1060 = vrot.slane %v1059, 4
      %v1061 = vrot.slane %v390, 5
      %v1062 = vsel %vm718, %v1060, %v1061
      %s1063 = scalar_lea.vmem %s2, 10
      %v1064 = vld [vmem:[%s1063] sm:$0x3]
      %v1065 = vunpack.c.l.b16 %v1062
      %v1066 = vpack.c.b16 %v755, %v754
      %v1067 = vpack.c.b16 %v757, %v756
      %v1068 = vpack.c.b16 %v759, %v758
      %v1069 = vpack.c.b16 %v1065, %v760
      %v1071 = vsel %vm523, %v1066, 0
      %v1074 = vsel %vm523, %v1067, 0
      %v1077 = vsel %vm523, %v1068, 0
      %v1080 = vsel %vm523, %v1069, 0
      %v1083 = vand.u32 %v1064, %v539
      %1085 = vmatprep.subr.bf16.mxu0 0
      %1086 = vmatpush1.bf16.msra.mxu0 %v1083
      %1087 = vmatprep.subr.bf16.mxu0 0
      %1088 = vmatpush1.bf16.msra.mxu0 0
      %1089 = vmatprep.subr.bf16.mxu0 0
      %1090 = vmatpush1.bf16.msra.mxu0 0
      %1091 = vmatprep.subr.bf16.mxu0 0
      %1092 = vmatpush1.bf16.msra.mxu0 0
      %1093 = vmatprep.subr.bf16.mxu0 0
      %1094 = vmatpush1.bf16.msra.mxu0 0
      %1095 = vmatprep.subr.bf16.mxu0 0
      %1096 = vmatpush1.bf16.msra.mxu0 0
      %1097 = vmatprep.subr.bf16.mxu0 0
      %1098 = vmatpush1.bf16.msra.mxu0 0
      %1099 = vmatprep.subr.bf16.mxu0 0
      %1100 = vmatpush1.bf16.msra.mxu0 0
      %1101 = vmatprep.subr.bf16.mxu0 0
      %1102 = vmatpush1.bf16.msra.mxu0 0
      %1103 = vmatprep.subr.bf16.mxu0 0
      %1104 = vmatpush1.bf16.msra.mxu0 0
      %1105 = vmatprep.subr.bf16.mxu0 0
      %1106 = vmatpush1.bf16.msra.mxu0 0
      %1107 = vmatprep.subr.bf16.mxu0 0
      %1108 = vmatpush1.bf16.msra.mxu0 0
      %1109 = vmatprep.subr.bf16.mxu0 0
      %1110 = vmatpush1.bf16.msra.mxu0 0
      %1111 = vmatprep.subr.bf16.mxu0 0
      %1112 = vmatpush1.bf16.msra.mxu0 0
      %1113 = vmatprep.subr.bf16.mxu0 0
      %1114 = vmatpush1.bf16.msra.mxu0 0
      %1115 = vmatprep.subr.bf16.mxu0 0
      %1116 = vmatpush1.bf16.msra.mxu0 0
      %1117 = vmatprep.mubr.bf16.mxu0 0
      %1118 = vmatmul.mubr.bf16.gmra.mrb[0].mxu0 %v1071
      %v1119 = vpop.f32.mrb[0].mxu0
      %v1120 = vadd.f32 0.0, %v1119
      %v1121 = vpop.f32.mrb[0].mxu0
      %v1122 = vpop.f32.mrb[0].mxu0
      %v1123 = vadd.f32 0.0, %v1122
      %v1124 = vpop.f32.mrb[0].mxu0
      %1125 = vmatprep.mubr.bf16.mxu0 0
      %1126 = vmatmul.mubr.bf16.gmra.mrb[0].mxu0 %v1074
      %v1127 = vpop.f32.mrb[0].mxu0
      %v1128 = vadd.f32 0.0, %v1127
      %v1129 = vpop.f32.mrb[0].mxu0
      %v1130 = vpop.f32.mrb[0].mxu0
      %v1131 = vadd.f32 0.0, %v1130
      %v1132 = vpop.f32.mrb[0].mxu0
      %1133 = vmatprep.mubr.bf16.mxu0 0
      %1134 = vmatmul.mubr.bf16.gmra.mrb[0].mxu0 %v1077
      %v1135 = vpop.f32.mrb[0].mxu0
      %v1136 = vadd.f32 0.0, %v1135
      %v1137 = vpop.f32.mrb[0].mxu0
      %v1138 = vpop.f32.mrb[0].mxu0
      %v1139 = vadd.f32 0.0, %v1138
      %v1140 = vpop.f32.mrb[0].mxu0
      %1141 = vmatprep.mubr.bf16.mxu0 0
      %1142 = vmatmul.mubr.bf16.gmra.mrb[0].mxu0 %v1080
      %v1143 = vpop.f32.mrb[0].mxu0
      %v1144 = vadd.f32 0.0, %v1143
      %v1145 = vpop.f32.mrb[0].mxu0
      %v1146 = vpop.f32.mrb[0].mxu0
      %v1147 = vadd.f32 0.0, %v1146
      %v1148 = vpop.f32.mrb[0].mxu0
      %1149 = vdwg.mxu0
      %v1150 = vadd.f32 %v1050, %v1120
      %v1151 = vadd.f32 %v1051, %v1123
      %v1152 = vadd.f32 %v1052, %v1128
      %v1153 = vadd.f32 %v1053, %v1131
      %v1154 = vadd.f32 %v1054, %v1136
      %v1155 = vadd.f32 %v1055, %v1139
      %v1156 = vadd.f32 %v1056, %v1144
      %v1157 = vadd.f32 %v1057, %v1147
      %s1158 = scalar_lea.vmem %s2, 12
      %v1159 = vld [vmem:[%s1158] sm:$0x3]
      %v1161 = vunpack.c.l.b16 %v391
      %v1162 = vpack.c.b16 %v1161, %v856
      %v1164 = vsel %vm523, %v1162, 0
      %v1167 = vand.u32 %v1159, %v539
      %1169 = vmatprep.subr.bf16.mxu0 0
      %1170 = vmatpush1.bf16.msra.mxu0 %v1167
      %1171 = vmatprep.subr.bf16.mxu0 0
      %1172 = vmatpush1.bf16.msra.mxu0 0
      %1173 = vmatprep.subr.bf16.mxu0 0
      %1174 = vmatpush1.bf16.msra.mxu0 0
      %1175 = vmatprep.subr.bf16.mxu0 0
      %1176 = vmatpush1.bf16.msra.mxu0 0
      %1177 = vmatprep.subr.bf16.mxu0 0
      %1178 = vmatpush1.bf16.msra.mxu0 0
      %1179 = vmatprep.subr.bf16.mxu0 0
      %1180 = vmatpush1.bf16.msra.mxu0 0
      %1181 = vmatprep.subr.bf16.mxu0 0
      %1182 = vmatpush1.bf16.msra.mxu0 0
      %1183 = vmatprep.subr.bf16.mxu0 0
      %1184 = vmatpush1.bf16.msra.mxu0 0
      %1185 = vmatprep.subr.bf16.mxu0 0
      %1186 = vmatpush1.bf16.msra.mxu0 0
      %1187 = vmatprep.subr.bf16.mxu0 0
      %1188 = vmatpush1.bf16.msra.mxu0 0
      %1189 = vmatprep.subr.bf16.mxu0 0
      %1190 = vmatpush1.bf16.msra.mxu0 0
      %1191 = vmatprep.subr.bf16.mxu0 0
      %1192 = vmatpush1.bf16.msra.mxu0 0
      %1193 = vmatprep.subr.bf16.mxu0 0
      %1194 = vmatpush1.bf16.msra.mxu0 0
      %1195 = vmatprep.subr.bf16.mxu0 0
      %1196 = vmatpush1.bf16.msra.mxu0 0
      %1197 = vmatprep.subr.bf16.mxu0 0
      %1198 = vmatpush1.bf16.msra.mxu0 0
      %1199 = vmatprep.subr.bf16.mxu0 0
      %1200 = vmatpush1.bf16.msra.mxu0 0
      %1201 = vmatprep.mubr.bf16.mxu0 0
      %1202 = vmatmul.mubr.bf16.gmra.mrb[0].mxu0 %v632
      %v1203 = vpop.f32.mrb[0].mxu0
      %v1204 = vadd.f32 0.0, %v1203
      %v1205 = vpop.f32.mrb[0].mxu0
      %v1206 = vpop.f32.mrb[0].mxu0
      %v1207 = vadd.f32 0.0, %v1206
      %v1208 = vpop.f32.mrb[0].mxu0
      %1209 = vmatprep.mubr.bf16.mxu0 0
      %1210 = vmatmul.mubr.bf16.gmra.mrb[0].mxu0 %v635
      %v1211 = vpop.f32.mrb[0].mxu0
      %v1212 = vadd.f32 0.0, %v1211
      %v1213 = vpop.f32.mrb[0].mxu0
      %v1214 = vpop.f32.mrb[0].mxu0
      %v1215 = vadd.f32 0.0, %v1214
      %v1216 = vpop.f32.mrb[0].mxu0
      %1217 = vmatprep.mubr.bf16.mxu0 0
      %1218 = vmatmul.mubr.bf16.gmra.mrb[0].mxu0 %v638
      %v1219 = vpop.f32.mrb[0].mxu0
      %v1220 = vadd.f32 0.0, %v1219
      %v1221 = vpop.f32.mrb[0].mxu0
      %v1222 = vpop.f32.mrb[0].mxu0
      %v1223 = vadd.f32 0.0, %v1222
      %v1224 = vpop.f32.mrb[0].mxu0
      %1225 = vmatprep.mubr.bf16.mxu0 0
      %1226 = vmatmul.mubr.bf16.gmra.mrb[0].mxu0 %v1164
      %v1227 = vpop.f32.mrb[0].mxu0
      %v1228 = vadd.f32 0.0, %v1227
      %v1229 = vpop.f32.mrb[0].mxu0
      %v1230 = vpop.f32.mrb[0].mxu0
      %v1231 = vadd.f32 0.0, %v1230
      %v1232 = vpop.f32.mrb[0].mxu0
      %1233 = vdwg.mxu0
      %v1234 = vadd.f32 %v1150, %v1204
      %v1235 = vadd.f32 %v1151, %v1207
      %v1236 = vadd.f32 %v1152, %v1212
      %v1237 = vadd.f32 %v1153, %v1215
      %v1238 = vadd.f32 %v1154, %v1220
      %v1239 = vadd.f32 %v1155, %v1223
      %v1240 = vadd.f32 %v1156, %v1228
      %v1241 = vadd.f32 %v1157, %v1231
      %v1243 = vshrl.u32 %v391, 16
      %v1245 = vrot.slane %v1243, 4
      %v1246 = vshll.u32 %v391, 16
      %v1248 = vrot.slane %v1246, 5
      %v1249 = vor.u32 %v1245, %v1248
      %v1250 = vrot.slane %v1249, 4
      %v1252 = vshll.u32 %v392, 16
      %v1254 = vrot.slane %v1252, 5
      %v1255 = vsel %vm396, %v1250, %v1254
      %s1256 = scalar_lea.vmem %s2, 14
      %v1257 = vld [vmem:[%s1256] sm:$0x3]
      %v1258 = vunpack.c.l.b16 %v1255
      %v1259 = vpack.c.b16 %v1258, %v965
      %v1261 = vsel %vm523, %v1259, 0
      %v1264 = vand.u32 %v1257, %v539
      %1266 = vmatprep.subr.bf16.mxu0 0
      %1267 = vmatpush1.bf16.msra.mxu0 %v1264
      %1268 = vmatprep.subr.bf16.mxu0 0
      %1269 = vmatpush1.bf16.msra.mxu0 0
      %1270 = vmatprep.subr.bf16.mxu0 0
      %1271 = vmatpush1.bf16.msra.mxu0 0
      %1272 = vmatprep.subr.bf16.mxu0 0
      %1273 = vmatpush1.bf16.msra.mxu0 0
      %1274 = vmatprep.subr.bf16.mxu0 0
      %1275 = vmatpush1.bf16.msra.mxu0 0
      %1276 = vmatprep.subr.bf16.mxu0 0
      %1277 = vmatpush1.bf16.msra.mxu0 0
      %1278 = vmatprep.subr.bf16.mxu0 0
      %1279 = vmatpush1.bf16.msra.mxu0 0
      %1280 = vmatprep.subr.bf16.mxu0 0
      %1281 = vmatpush1.bf16.msra.mxu0 0
      %1282 = vmatprep.subr.bf16.mxu0 0
      %1283 = vmatpush1.bf16.msra.mxu0 0
      %1284 = vmatprep.subr.bf16.mxu0 0
      %1285 = vmatpush1.bf16.msra.mxu0 0
      %1286 = vmatprep.subr.bf16.mxu0 0
      %1287 = vmatpush1.bf16.msra.mxu0 0
      %1288 = vmatprep.subr.bf16.mxu0 0
      %1289 = vmatpush1.bf16.msra.mxu0 0
      %1290 = vmatprep.subr.bf16.mxu0 0
      %1291 = vmatpush1.bf16.msra.mxu0 0
      %1292 = vmatprep.subr.bf16.mxu0 0
      %1293 = vmatpush1.bf16.msra.mxu0 0
      %1294 = vmatprep.subr.bf16.mxu0 0
      %1295 = vmatpush1.bf16.msra.mxu0 0
      %1296 = vmatprep.subr.bf16.mxu0 0
      %1297 = vmatpush1.bf16.msra.mxu0 0
      %1298 = vmatprep.mubr.bf16.mxu0 0
      %1299 = vmatmul.mubr.bf16.gmra.mrb[0].mxu0 %v528
      %v1300 = vpop.f32.mrb[0].mxu0
      %v1301 = vadd.f32 0.0, %v1300
      %v1302 = vpop.f32.mrb[0].mxu0
      %v1303 = vpop.f32.mrb[0].mxu0
      %v1304 = vadd.f32 0.0, %v1303
      %v1305 = vpop.f32.mrb[0].mxu0
      %1306 = vmatprep.mubr.bf16.mxu0 0
      %1307 = vmatmul.mubr.bf16.gmra.mrb[0].mxu0 %v531
      %v1308 = vpop.f32.mrb[0].mxu0
      %v1309 = vadd.f32 0.0, %v1308
      %v1310 = vpop.f32.mrb[0].mxu0
      %v1311 = vpop.f32.mrb[0].mxu0
      %v1312 = vadd.f32 0.0, %v1311
      %v1313 = vpop.f32.mrb[0].mxu0
      %1314 = vmatprep.mubr.bf16.mxu0 0
      %1315 = vmatmul.mubr.bf16.gmra.mrb[0].mxu0 %v534
      %v1316 = vpop.f32.mrb[0].mxu0
      %v1317 = vadd.f32 0.0, %v1316
      %v1318 = vpop.f32.mrb[0].mxu0
      %v1319 = vpop.f32.mrb[0].mxu0
      %v1320 = vadd.f32 0.0, %v1319
      %v1321 = vpop.f32.mrb[0].mxu0
      %1322 = vmatprep.mubr.bf16.mxu0 0
      %1323 = vmatmul.mubr.bf16.gmra.mrb[0].mxu0 %v1261
      %v1324 = vpop.f32.mrb[0].mxu0
      %v1325 = vadd.f32 0.0, %v1324
      %v1326 = vpop.f32.mrb[0].mxu0
      %v1327 = vpop.f32.mrb[0].mxu0
      %v1328 = vadd.f32 0.0, %v1327
      %v1329 = vpop.f32.mrb[0].mxu0
      %1330 = vdwg.mxu0
      %v1331 = vadd.f32 %v1234, %v1301
      %v1332 = vadd.f32 %v1235, %v1304
      %v1333 = vadd.f32 %v1236, %v1309
      %v1334 = vadd.f32 %v1237, %v1312
      %v1335 = vadd.f32 %v1238, %v1317
      %v1336 = vadd.f32 %v1239, %v1320
      %v1337 = vadd.f32 %v1240, %v1325
      %v1338 = vadd.f32 %v1241, %v1328
      %v1340 = vrot.slane %v391, 5
      %v1341 = vrot.slane %v1340, 4
      %v1342 = vrot.slane %v392, 5
      %v1343 = vsel %vm718, %v1341, %v1342
      %s1344 = scalar_lea.vmem %s2, 16
      %v1345 = vld [vmem:[%s1344] sm:$0x3]
      %v1346 = vunpack.c.l.b16 %v1343
      %v1347 = vpack.c.b16 %v1346, %v1065
      %v1349 = vsel %vm523, %v1347, 0
      %v1352 = vand.u32 %v1345, %v539
      %1354 = vmatprep.subr.bf16.mxu0 0
      %1355 = vmatpush1.bf16.msra.mxu0 %v1352
      %1356 = vmatprep.subr.bf16.mxu0 0
      %1357 = vmatpush1.bf16.msra.mxu0 0
      %1358 = vmatprep.subr.bf16.mxu0 0
      %1359 = vmatpush1.bf16.msra.mxu0 0
      %1360 = vmatprep.subr.bf16.mxu0 0
      %1361 = vmatpush1.bf16.msra.mxu0 0
      %1362 = vmatprep.subr.bf16.mxu0 0
      %1363 = vmatpush1.bf16.msra.mxu0 0
      %1364 = vmatprep.subr.bf16.mxu0 0
      %1365 = vmatpush1.bf16.msra.mxu0 0
      %1366 = vmatprep.subr.bf16.mxu0 0
      %1367 = vmatpush1.bf16.msra.mxu0 0
      %1368 = vmatprep.subr.bf16.mxu0 0
      %1369 = vmatpush1.bf16.msra.mxu0 0
      %1370 = vmatprep.subr.bf16.mxu0 0
      %1371 = vmatpush1.bf16.msra.mxu0 0
      %1372 = vmatprep.subr.bf16.mxu0 0
      %1373 = vmatpush1.bf16.msra.mxu0 0
      %1374 = vmatprep.subr.bf16.mxu0 0
      %1375 = vmatpush1.bf16.msra.mxu0 0
      %1376 = vmatprep.subr.bf16.mxu0 0
      %1377 = vmatpush1.bf16.msra.mxu0 0
      %1378 = vmatprep.subr.bf16.mxu0 0
      %1379 = vmatpush1.bf16.msra.mxu0 0
      %1380 = vmatprep.subr.bf16.mxu0 0
      %1381 = vmatpush1.bf16.msra.mxu0 0
      %1382 = vmatprep.subr.bf16.mxu0 0
      %1383 = vmatpush1.bf16.msra.mxu0 0
      %1384 = vmatprep.subr.bf16.mxu0 0
      %1385 = vmatpush1.bf16.msra.mxu0 0
      %1386 = vmatprep.mubr.bf16.mxu0 0
      %1387 = vmatmul.mubr.bf16.gmra.mrb[0].mxu0 %v769
      %v1388 = vpop.f32.mrb[0].mxu0
      %v1389 = vadd.f32 0.0, %v1388
      %v1390 = vpop.f32.mrb[0].mxu0
      %v1391 = vpop.f32.mrb[0].mxu0
      %v1392 = vadd.f32 0.0, %v1391
      %v1393 = vpop.f32.mrb[0].mxu0
      %1394 = vmatprep.mubr.bf16.mxu0 0
      %1395 = vmatmul.mubr.bf16.gmra.mrb[0].mxu0 %v772
      %v1396 = vpop.f32.mrb[0].mxu0
      %v1397 = vadd.f32 0.0, %v1396
      %v1398 = vpop.f32.mrb[0].mxu0
      %v1399 = vpop.f32.mrb[0].mxu0
      %v1400 = vadd.f32 0.0, %v1399
      %v1401 = vpop.f32.mrb[0].mxu0
      %1402 = vmatprep.mubr.bf16.mxu0 0
      %1403 = vmatmul.mubr.bf16.gmra.mrb[0].mxu0 %v775
      %v1404 = vpop.f32.mrb[0].mxu0
      %v1405 = vadd.f32 0.0, %v1404
      %v1406 = vpop.f32.mrb[0].mxu0
      %v1407 = vpop.f32.mrb[0].mxu0
      %v1408 = vadd.f32 0.0, %v1407
      %v1409 = vpop.f32.mrb[0].mxu0
      %1410 = vmatprep.mubr.bf16.mxu0 0
      %1411 = vmatmul.mubr.bf16.gmra.mrb[0].mxu0 %v1349
      %v1412 = vpop.f32.mrb[0].mxu0
      %v1413 = vadd.f32 0.0, %v1412
      %v1414 = vpop.f32.mrb[0].mxu0
      %v1415 = vpop.f32.mrb[0].mxu0
      %v1416 = vadd.f32 0.0, %v1415
      %v1417 = vpop.f32.mrb[0].mxu0
      %1418 = vdwg.mxu0
      %v1419 = vadd.f32 %v1331, %v1389
      %v1420 = vadd.f32 %v1332, %v1392
      %v1421 = vadd.f32 %v1333, %v1397
      %v1422 = vadd.f32 %v1334, %v1400
      %v1423 = vadd.f32 %v1335, %v1405
      %v1424 = vadd.f32 %v1336, %v1408
      %v1425 = vadd.f32 %v1337, %v1413
      %v1426 = vadd.f32 %v1338, %v1416
      %v1427 = vld [vmem:[%s3] sm:$0x1]
      %v1429 = vlaneseq
      %v1430 = vshrl.u32 %v1429, 7
      %v1431 = vsub.s32 0, %v1430
      %v1432 = vrot.slane %v1427, %v1431
      %v1434 = vadd.f32 %v1419, %v1432
      %v1435 = vadd.f32 %v1420, %v1432
      %v1436 = vadd.f32 %v1421, %v1432
      %v1437 = vadd.f32 %v1422, %v1432
      %v1438 = vadd.f32 %v1423, %v1432
      %v1439 = vadd.f32 %v1424, %v1432
      %v1440 = vadd.f32 %v1425, %v1432
      %v1441 = vadd.f32 %v1426, %v1432
      %vm1442 = vcmask 261120
      %v1443 = vsel %vm1442, %v1434, 0.0
      %1444 = vadd.xlane.f32.xlu0 %v1443
      %v1445 = vpop.xlane.xlu0 %1444
      %v1446 = vsel %vm1442, %v1435, 0.0
      %1447 = vadd.xlane.f32.xlu0 %v1446
      %v1448 = vpop.xlane.xlu0 %1447
      %v1449 = vsel %vm1442, %v1436, 0.0
      %1450 = vadd.xlane.f32.xlu0 %v1449
      %v1451 = vpop.xlane.xlu0 %1450
      %v1452 = vsel %vm1442, %v1437, 0.0
      %1453 = vadd.xlane.f32.xlu0 %v1452
      %v1454 = vpop.xlane.xlu0 %1453
      %v1455 = vsel %vm1442, %v1438, 0.0
      %1456 = vadd.xlane.f32.xlu0 %v1455
      %v1457 = vpop.xlane.xlu0 %1456
      %v1458 = vsel %vm1442, %v1439, 0.0
      %1459 = vadd.xlane.f32.xlu0 %v1458
      %v1460 = vpop.xlane.xlu0 %1459
      %v1461 = vsel %vm1442, %v1440, 0.0
      %1462 = vadd.xlane.f32.xlu0 %v1461
      %v1463 = vpop.xlane.xlu0 %1462
      %v1464 = vsel %vm1442, %v1441, 0.0
      %1465 = vadd.xlane.f32.xlu0 %v1464
      %v1466 = vpop.xlane.xlu0 %1465
      %v1467 = vrcp.pop 32.0
      %v1468 = vmul.f32 %v1445, %v1467
      %v1469 = vmul.f32 %v1448, %v1467
      %v1470 = vmul.f32 %v1451, %v1467
      %v1471 = vmul.f32 %v1454, %v1467
      %v1472 = vmul.f32 %v1457, %v1467
      %v1473 = vmul.f32 %v1460, %v1467
      %v1474 = vmul.f32 %v1463, %v1467
      %v1475 = vmul.f32 %v1466, %v1467
      %v1476 = vsub.f32 %v1434, %v1468
      %v1477 = vsub.f32 %v1435, %v1469
      %v1478 = vsub.f32 %v1436, %v1470
      %v1479 = vsub.f32 %v1437, %v1471
      %v1480 = vsub.f32 %v1438, %v1472
      %v1481 = vsub.f32 %v1439, %v1473
      %v1482 = vsub.f32 %v1440, %v1474
      %v1483 = vsub.f32 %v1441, %v1475
      %v1484 = vmul.f32 %v1476, %v1476
      %v1485 = vmul.f32 %v1477, %v1477
      %v1486 = vmul.f32 %v1478, %v1478
      %v1487 = vmul.f32 %v1479, %v1479
      %v1488 = vmul.f32 %v1480, %v1480
      %v1489 = vmul.f32 %v1481, %v1481
      %v1490 = vmul.f32 %v1482, %v1482
      %v1491 = vmul.f32 %v1483, %v1483
      %v1492 = vsel %vm1442, %v1484, 0.0
      %1493 = vadd.xlane.f32.xlu0 %v1492
      %v1494 = vpop.xlane.xlu0 %1493
      %v1495 = vsel %vm1442, %v1485, 0.0
      %1496 = vadd.xlane.f32.xlu0 %v1495
      %v1497 = vpop.xlane.xlu0 %1496
      %v1498 = vsel %vm1442, %v1486, 0.0
      %1499 = vadd.xlane.f32.xlu0 %v1498
      %v1500 = vpop.xlane.xlu0 %1499
      %v1501 = vsel %vm1442, %v1487, 0.0
      %1502 = vadd.xlane.f32.xlu0 %v1501
      %v1503 = vpop.xlane.xlu0 %1502
      %v1504 = vsel %vm1442, %v1488, 0.0
      %1505 = vadd.xlane.f32.xlu0 %v1504
      %v1506 = vpop.xlane.xlu0 %1505
      %v1507 = vsel %vm1442, %v1489, 0.0
      %1508 = vadd.xlane.f32.xlu0 %v1507
      %v1509 = vpop.xlane.xlu0 %1508
      %v1510 = vsel %vm1442, %v1490, 0.0
      %1511 = vadd.xlane.f32.xlu0 %v1510
      %v1512 = vpop.xlane.xlu0 %1511
      %v1513 = vsel %vm1442, %v1491, 0.0
      %1514 = vadd.xlane.f32.xlu0 %v1513
      %v1515 = vpop.xlane.xlu0 %1514
      %v1516 = vmul.f32 %v1494, %v1467
      %v1517 = vmul.f32 %v1497, %v1467
      %v1518 = vmul.f32 %v1500, %v1467
      %v1519 = vmul.f32 %v1503, %v1467
      %v1520 = vmul.f32 %v1506, %v1467
      %v1521 = vmul.f32 %v1509, %v1467
      %v1522 = vmul.f32 %v1512, %v1467
      %v1523 = vmul.f32 %v1515, %v1467
      %v1524 = vadd.f32 %v1516, 1e-05
      %v1525 = vadd.f32 %v1517, 1e-05
      %v1526 = vadd.f32 %v1518, 1e-05
      %v1527 = vadd.f32 %v1519, 1e-05
      %v1528 = vadd.f32 %v1520, 1e-05
      %v1529 = vadd.f32 %v1521, 1e-05
      %v1530 = vadd.f32 %v1522, 1e-05
      %v1531 = vadd.f32 %v1523, 1e-05
      %v1532 = vrsqrt.pop %v1524
      %v1533 = vrsqrt.pop %v1525
      %v1534 = vrsqrt.pop %v1526
      %v1535 = vrsqrt.pop %v1527
      %v1536 = vrsqrt.pop %v1528
      %v1537 = vrsqrt.pop %v1529
      %v1538 = vrsqrt.pop %v1530
      %v1539 = vrsqrt.pop %v1531
      %v1540 = vmul.f32 %v1476, %v1532
      %v1541 = vmul.f32 %v1477, %v1533
      %v1542 = vmul.f32 %v1478, %v1534
      %v1543 = vmul.f32 %v1479, %v1535
      %v1544 = vmul.f32 %v1480, %v1536
      %v1545 = vmul.f32 %v1481, %v1537
      %v1546 = vmul.f32 %v1482, %v1538
      %v1547 = vmul.f32 %v1483, %v1539
      %v1548 = vld [vmem:[%s4] sm:$0x1]
      %v1550 = vlaneseq
      %v1551 = vshrl.u32 %v1550, 7
      %v1552 = vsub.s32 0, %v1551
      %v1553 = vrot.slane %v1548, %v1552
      %v1555 = vmul.f32 %v1540, %v1553
      %v1556 = vmul.f32 %v1541, %v1553
      %v1557 = vmul.f32 %v1542, %v1553
      %v1558 = vmul.f32 %v1543, %v1553
      %v1559 = vmul.f32 %v1544, %v1553
      %v1560 = vmul.f32 %v1545, %v1553
      %v1561 = vmul.f32 %v1546, %v1553
      %v1562 = vmul.f32 %v1547, %v1553
      %v1563 = vld [vmem:[%s5] sm:$0x1]
      %v1565 = vlaneseq
      %v1566 = vshrl.u32 %v1565, 7
      %v1567 = vsub.s32 0, %v1566
      %v1568 = vrot.slane %v1563, %v1567
      %v1570 = vadd.f32 %v1555, %v1568
      %v1571 = vadd.f32 %v1556, %v1568
      %v1572 = vadd.f32 %v1557, %v1568
      %v1573 = vadd.f32 %v1558, %v1568
      %v1574 = vadd.f32 %v1559, %v1568
      %v1575 = vadd.f32 %v1560, %v1568
      %v1576 = vadd.f32 %v1561, %v1568
      %v1577 = vadd.f32 %v1562, %v1568
      %v1578 = vpack.c.bf16 %v1570, %v1570
      %v1579 = vpack.c.bf16 %v1571, %v1571
      %v1580 = vpack.c.bf16 %v1572, %v1572
      %v1581 = vpack.c.bf16 %v1573, %v1573
      %v1582 = vpack.c.bf16 %v1574, %v1574
      %v1583 = vpack.c.bf16 %v1575, %v1575
      %v1584 = vpack.c.bf16 %v1576, %v1576
      %v1585 = vpack.c.bf16 %v1577, %v1577
      %vm1586 = vcmask 257024
      %1587 = vst.msk [vmem:[%s370] sm:$0xf] %vm1586, %v1578
      %1588 = vst.msk [vmem:[%s370 + $0x4] sm:$0xf] %vm1586, %v1579
      %1589 = vst.msk [vmem:[%s370 + $0x8] sm:$0xf] %vm1586, %v1580
      %1590 = vst.msk [vmem:[%s370 + $0xc] sm:$0xf] %vm1586, %v1581
      %1591 = vst.msk [vmem:[%s370 + $0x10] sm:$0xf] %vm1586, %v1582
      %1592 = vst.msk [vmem:[%s370 + $0x14] sm:$0xf] %vm1586, %v1583
      %1593 = vst.msk [vmem:[%s370 + $0x18] sm:$0xf] %vm1586, %v1584
      %1594 = vst.msk [vmem:[%s370 + $0x1c] sm:$0xf] %vm1586, %v1585
      %s1595 = smul.u32 8, %s22
      %p1596 = scmp.lt.s32.totalorder %s21, 1
      %s1597 = scalar_select %p1596, %s21, 1
      %p1598 = scmp.lt.s32.totalorder %s1595, 7
      %s1599 = scalar_select %p1598, %s1595, 7
      %s1600 = smul.addr %s1597, 8
      %s1601 = sadd.s32 %s1599, %s1600
      %s1602 = smul.addr %s1601, 4
      %s1603 = scalar_lea.vmem %s6, %s1602
      // Predicated region
      $region45: #{pht_forward.8} parent=43 // pred_check
        %p1604 = pneg %p193
      $region46: #{pht_forward.8} parent=43 // pred_check_branch
        %1606 = sbr.rel (%p1604) target = $region48
      $region47: #{pht_forward.8} parent=43 // pred_region
        %s1607 = smul.u32 8, %s22
      $region48: #{pht_forward.8} parent=43 // pred_fallthru
        _
    $region44: #{pht_forward.8} parent=5 // pred_fallthru
      _
    %p1608 = scmp.le.s32.totalorder 2, %s12
    // Predicated region
    $region49: #{pht_forward.8} parent=5 // pred_check
      %p1609 = pneg %p1608
    $region50: #{pht_forward.8} parent=5 // pred_check_branch
      %1611 = sbr.rel (%p1609) target = $region52
    $region51: #{pht_forward.8} parent=5 // pred_region
      %s1612 = ssub.s32 %s12, 2
      // Predicated region
      $region53: #{pht_forward.8} parent=51 // pred_check
        %p1613 = pneg %p199
      $region54: #{pht_forward.8} parent=51 // pred_check_branch
        %1615 = sbr.rel (%p1613) target = $region56
      $region55: #{pht_forward.8} parent=51 // pred_region
        %s1616 = smul.u32 8, %s24
        %p1617 = scmp.lt.s32.totalorder %s23, 1
        %s1618 = scalar_select %p1617, %s23, 1
        %p1619 = scmp.lt.s32.totalorder %s1616, 7
        %s1620 = scalar_select %p1619, %s1616, 7
        %s1621 = smul.addr %s1618, 8
        %s1622 = sadd.s32 %s1620, %s1621
        %s1623 = smul.addr %s1622, 4
        %s1624 = scalar_lea.vmem %s6, %s1623
      $region56: #{pht_forward.8} parent=51 // pred_fallthru
        _
    $region52: #{pht_forward.8} parent=5 // pred_fallthru
      _
  $region6: #{pht_forward.8} parent=0 // loop_footer
    %s16 = sadd.s32 1, %s12
  $region7: #{pht_forward.8} parent=0 // loop_footer_branch
    %11 = sbr.rel target = $region3
  $region8: #{pht_forward.8} parent=0 // loop_exit
    _

// kernel: pht_forward.15
$region0: #{pht_forward.15}
  #allocation0 [shape = 'u32[]', space=smem, size = 0x4, offset = 0x4, fixed_abs, tag = 'smem constant byte address 0x4 - core index']
  #allocation1 [shape = 'u32[144,128]{1,0:T(1,128)}', space=vmem, size = 0x12000, scoped, tag = 'internal scratch']
  %s0 = inlined_call_operand.vmem [shape: bf16[2,10,10,32], index: 0, kind: input, shape index: {}, may-alias: {0,1}]
  %s1 = inlined_call_operand.vmem [shape: bf16[2,10,10,32], index: 1, kind: input, shape index: {}, may-alias: {0,1}]
  %s2 = inlined_call_operand.vmem [shape: bf16[3,3,32,12], index: 2, kind: input, shape index: {}]
  %s3 = inlined_call_operand.vmem [shape: f32[1,12], index: 3, kind: input, shape index: {}]
  %s4 = inlined_call_operand.vmem [shape: f32[2,8,8,12], index: 4, kind: output, shape index: {}]
  %s5 = sld [smem:[#allocation0]]
  $region49: #{pht_forward.15} parent=0
    _
  %s7 = ssub.s32 1, %s5
  %s8 = scalar_select 0, %s7, %s5
  loop: start=0, step=1, limit=4
  $region2: #{pht_forward.15} parent=0 // loop_pre_header
    _
  $region3: #{pht_forward.15} parent=0 // loop_header
    %s10 = sphi 0, %s14
    %p11 = scmp.ge.s32.totalorder %s10, 4
    %s17 = sphi 0, %s29
    %s18 = sphi 0, %s25
    %s19 = sphi 0, %s17
    %s20 = sphi 0, %s18
    %s21 = sphi 0, %s19
    %s22 = sphi 0, %s20
    %s34 = sphi 0, %s36
    %s37 = sphi 0, %s34
    %s38 = sphi 0, %s37
    %s54 = sphi 0, %s38
    %s66 = sphi 0, %s68
    %s69 = sphi 0, %s66
    %s70 = sphi 0, %s69
    %s86 = sphi 0, %s70
    %s90 = sphi 0, %s90
    %s92 = sphi 0, %s90
    %s93 = sphi 0, %s92
    %s107 = sphi 0, %s93
    %s111 = sphi 0, %s111
    %s113 = sphi 0, %s111
    %s114 = sphi 0, %s113
    %s128 = sphi 0, %s114
    %s136 = sphi 0, %s138
    %s139 = sphi 0, %s136
    %s140 = sphi 0, %s139
    %s156 = sphi 0, %s140
  $region4: #{pht_forward.15} parent=0 // loop_header_branch
    %13 = sbr.rel (%p11) target = $region8
  $region5: #{pht_forward.15} parent=0 // loop_body
    %s15 = ssub.s32 %s10, 1
    %s16 = ssub.s32 %s10, 2
    %s23 = sadd.s32 1, %s18
    %p24 = scmp.ge.s32.totalorder %s23, 1
    %s25 = scalar_select %p24, 0, %s23
    %s26 = sadd.s32 1, %s17
    %s27 = scalar_select %p24, %s26, %s17
    %p28 = scmp.ge.s32.totalorder %s27, 2
    %s29 = scalar_select %p28, 0, %s27
    %s30 = ssub.s32 %s17, %s29
    %s31 = ssub.s32 %s18, %s25
    %s32 = sor.u32 %s30, %s31
    %p33 = scmp.eq.s32.totalorder %s32, 0
    %s35 = sadd.s32 %s34, 1
    %s36 = scalar_select %p33, %s34, %s35
    %p39 = pneg %p33
    %p40 = scmp.eq.s32.totalorder %s10, 1
    %p41 = por %p39, %p40
    %p42 = scmp.ne.s32.totalorder %s34, %s37
    %p43 = scmp.eq.s32.totalorder %s10, 0
    %p44 = por %p42, %p43
    %p45 = scmp.ne.s32.totalorder %s34, %s37
    %p46 = scmp.eq.s32.totalorder %s15, 1
    %p47 = por %p45, %p46
    %p48 = scmp.ne.s32.totalorder %s37, %s38
    %p49 = scmp.eq.s32.totalorder %s15, 0
    %p50 = por %p48, %p49
    %p51 = scmp.ne.s32.totalorder %s37, %s38
    %p52 = scmp.eq.s32.totalorder %s16, 1
    %p53 = por %p51, %p52
    %p55 = scmp.ne.s32.totalorder %s38, %s54
    %p56 = scmp.eq.s32.totalorder %s16, 0
    %p57 = por %p55, %p56
    %s58 = sadd.s32 %s18, 1
    %s59 = smul.u32 %s58, 4
    %s60 = sadd.s32 %s25, 1
    %s61 = smul.u32 %s60, 4
    %s62 = ssub.s32 %s17, %s29
    %s63 = ssub.s32 %s59, %s61
    %s64 = sor.u32 %s62, %s63
    %p65 = scmp.eq.s32.totalorder %s64, 0
    %s67 = sadd.s32 %s66, 1
    %s68 = scalar_select %p65, %s66, %s67
    %p71 = pneg %p65
    %p72 = scmp.eq.s32.totalorder %s10, 1
    %p73 = por %p71, %p72
    %p74 = scmp.ne.s32.totalorder %s66, %s69
    %p75 = scmp.eq.s32.totalorder %s10, 0
    %p76 = por %p74, %p75
    %p77 = scmp.ne.s32.totalorder %s66, %s69
    %p78 = scmp.eq.s32.totalorder %s15, 1
    %p79 = por %p77, %p78
    %p80 = scmp.ne.s32.totalorder %s69, %s70
    %p81 = scmp.eq.s32.totalorder %s15, 0
    %p82 = por %p80, %p81
    %p83 = scmp.ne.s32.totalorder %s69, %s70
    %p84 = scmp.eq.s32.totalorder %s16, 1
    %p85 = por %p83, %p84
    %p87 = scmp.ne.s32.totalorder %s70, %s86
    %p88 = scmp.eq.s32.totalorder %s16, 0
    %p89 = por %p87, %p88
    %s91 = sadd.s32 %s90, 1
    %p94 = scmp.eq.s32.totalorder %s10, 1
    %p95 = scmp.ne.s32.totalorder %s90, %s92
    %p96 = scmp.eq.s32.totalorder %s10, 0
    %p97 = por %p95, %p96
    %p98 = scmp.ne.s32.totalorder %s90, %s92
    %p99 = scmp.eq.s32.totalorder %s15, 1
    %p100 = por %p98, %p99
    %p101 = scmp.ne.s32.totalorder %s92, %s93
    %p102 = scmp.eq.s32.totalorder %s15, 0
    %p103 = por %p101, %p102
    %p104 = scmp.ne.s32.totalorder %s92, %s93
    %p105 = scmp.eq.s32.totalorder %s16, 1
    %p106 = por %p104, %p105
    %p108 = scmp.ne.s32.totalorder %s93, %s107
    %p109 = scmp.eq.s32.totalorder %s16, 0
    %p110 = por %p108, %p109
    %s112 = sadd.s32 %s111, 1
    %p115 = scmp.eq.s32.totalorder %s10, 1
    %p116 = scmp.ne.s32.totalorder %s111, %s113
    %p117 = scmp.eq.s32.totalorder %s10, 0
    %p118 = por %p116, %p117
    %p119 = scmp.ne.s32.totalorder %s111, %s113
    %p120 = scmp.eq.s32.totalorder %s15, 1
    %p121 = por %p119, %p120
    %p122 = scmp.ne.s32.totalorder %s113, %s114
    %p123 = scmp.eq.s32.totalorder %s15, 0
    %p124 = por %p122, %p123
    %p125 = scmp.ne.s32.totalorder %s113, %s114
    %p126 = scmp.eq.s32.totalorder %s16, 1
    %p127 = por %p125, %p126
    %p129 = scmp.ne.s32.totalorder %s114, %s128
    %p130 = scmp.eq.s32.totalorder %s16, 0
    %p131 = por %p129, %p130
    %s132 = ssub.s32 %s17, %s29
    %s133 = ssub.s32 %s18, %s25
    %s134 = sor.u32 %s132, %s133
    %p135 = scmp.eq.s32.totalorder %s134, 0
    %s137 = sadd.s32 %s136, 1
    %s138 = scalar_select %p135, %s136, %s137
    %p141 = pneg %p135
    %p142 = scmp.eq.s32.totalorder %s10, 1
    %p143 = por %p141, %p142
    %p144 = scmp.ne.s32.totalorder %s136, %s139
    %p145 = scmp.eq.s32.totalorder %s10, 0
    %p146 = por %p144, %p145
    %p147 = scmp.ne.s32.totalorder %s136, %s139
    %p148 = scmp.eq.s32.totalorder %s15, 1
    %p149 = por %p147, %p148
    %p150 = scmp.ne.s32.totalorder %s139, %s140
    %p151 = scmp.eq.s32.totalorder %s15, 0
    %p152 = por %p150, %p151
    %p153 = scmp.ne.s32.totalorder %s139, %s140
    %p154 = scmp.eq.s32.totalorder %s16, 1
    %p155 = por %p153, %p154
    %p157 = scmp.ne.s32.totalorder %s140, %s156
    %p158 = scmp.eq.s32.totalorder %s16, 0
    %p159 = por %p157, %p158
    %p160 = scmp.le.s32.totalorder 1, %s10
    %p161 = scmp.lt.s32.totalorder %s10, 3
    %p162 = pnand %p160, %p161
    %p163 = pneg %p162
    // Predicated region
    $region9: #{pht_forward.15} parent=5 // pred_check
      _
    $region10: #{pht_forward.15} parent=5 // pred_check_branch
      %165 = sbr.rel (%p162) target = $region12
    $region11: #{pht_forward.15} parent=5 // pred_region
      %s166 = ssub.s32 %s10, 1
      // Predicated region
      $region13: #{pht_forward.15} parent=11 // pred_check
        %p167 = pneg %p103
      $region14: #{pht_forward.15} parent=11 // pred_check_branch
        %169 = sbr.rel (%p167) target = $region16
      $region15: #{pht_forward.15} parent=11 // pred_region
        _
      $region16: #{pht_forward.15} parent=11 // pred_fallthru
        _
      // Predicated region
      $region17: #{pht_forward.15} parent=11 // pred_check
        %p170 = pneg %p124
      $region18: #{pht_forward.15} parent=11 // pred_check_branch
        %172 = sbr.rel (%p170) target = $region20
      $region19: #{pht_forward.15} parent=11 // pred_region
        _
      $region20: #{pht_forward.15} parent=11 // pred_fallthru
        _
    $region12: #{pht_forward.15} parent=5 // pred_fallthru
      _
    %p173 = scmp.lt.s32.totalorder %s10, 2
    // Predicated region
    $region21: #{pht_forward.15} parent=5 // pred_check
      %p174 = pneg %p173
    $region22: #{pht_forward.15} parent=5 // pred_check_branch
      %176 = sbr.rel (%p174) target = $region24
    $region23: #{pht_forward.15} parent=5 // pred_region
      // Predicated region
      $region25: #{pht_forward.15} parent=23 // pred_check
        %p177 = pneg %p44
      $region26: #{pht_forward.15} parent=23 // pred_check_branch
        %179 = sbr.rel (%p177) target = $region28
      $region27: #{pht_forward.15} parent=23 // pred_region
        %s180 = smul.u32 8, %s18
        %s181 = ssub.s32 10, %s180
        %p182 = scmp.lt.s32.totalorder %s181, 8
        %s183 = scalar_select %p182, %s181, 8
        %s184 = smul.u32 64, %s183
        %s185 = smul.u32 %s184, 2
        %p186 = scmp.lt.s32.totalorder %s17, 1
        %s187 = scalar_select %p186, %s17, 1
        %p188 = scmp.lt.s32.totalorder %s180, 9
        %s189 = scalar_select %p188, %s180, 9
        %s190 = smul.addr %s189, 2
        %s191 = smul.addr %s187, 20
        %s192 = sadd.s32 %s190, %s191
        %s193 = smul.addr %s192, 4
        %s194 = scalar_lea.vmem %s0, %s193
        %s195 = smul.u32 8, %s18
        %s196 = ssub.s32 10, %s195
        %p197 = scmp.lt.s32.totalorder %s196, 8
        %s198 = scalar_select %p197, %s196, 8
        %s199 = smul.u32 64, %s198
        %s200 = smul.u32 %s199, 2
      $region28: #{pht_forward.15} parent=23 // pred_fallthru
        _
      // Predicated region
      $region29: #{pht_forward.15} parent=23 // pred_check
        %p201 = pneg %p76
      $region30: #{pht_forward.15} parent=23 // pred_check_branch
        %203 = sbr.rel (%p201) target = $region32
      $region31: #{pht_forward.15} parent=23 // pred_region
        %s204 = sadd.s32 %s18, 1
        %s205 = smul.u32 %s204, 4
        %s206 = smul.u32 2, %s205
        %p207 = scmp.lt.s32.totalorder %s17, 1
        %s208 = scalar_select %p207, %s17, 1
        %p209 = scmp.lt.s32.totalorder %s206, 9
        %s210 = scalar_select %p209, %s206, 9
        %s211 = smul.addr %s210, 2
        %s212 = smul.addr %s208, 20
        %s213 = sadd.s32 %s211, %s212
        %s214 = smul.addr %s213, 4
        %s215 = scalar_lea.vmem %s1, %s214
        %s216 = sadd.s32 %s18, 1
        %s217 = smul.u32 %s216, 4
        %s218 = smul.u32 2, %s217
      $region32: #{pht_forward.15} parent=23 // pred_fallthru
        _
    $region24: #{pht_forward.15} parent=5 // pred_fallthru
      _
    %p219 = scmp.le.s32.totalorder 1, %s10
    %p220 = scmp.lt.s32.totalorder %s10, 3
    %p221 = pnand %p219, %p220
    %p222 = pneg %p221
    // Predicated region
    $region33: #{pht_forward.15} parent=5 // pred_check
      _
    $region34: #{pht_forward.15} parent=5 // pred_check_branch
      %224 = sbr.rel (%p221) target = $region36
    $region35: #{pht_forward.15} parent=5 // pred_region
      %s225 = ssub.s32 %s10, 1
      %s226 = smul.u32 8, %s20
      %s227 = ssub.s32 10, %s226
      %p228 = scmp.lt.s32.totalorder %s227, 8
      %s229 = scalar_select %p228, %s227, 8
      %s230 = smul.u32 64, %s229
      %s231 = smul.u32 %s230, 2
      %p232 = scmp.lt.s32.totalorder %s19, 1
      %s233 = scalar_select %p232, %s19, 1
      %p234 = scmp.lt.s32.totalorder %s226, 9
      %s235 = scalar_select %p234, %s226, 9
      %s236 = smul.addr %s235, 2
      %s237 = smul.addr %s233, 20
      %s238 = sadd.s32 %s236, %s237
      %s239 = smul.addr %s238, 4
      %s240 = scalar_lea.vmem %s0, %s239
      %p241 = pneg %p50
      %p242 = pneg %p47
      %s243 = sadd.s32 %s20, 1
      %s244 = smul.u32 %s243, 4
      %s245 = smul.u32 2, %s244
      %p246 = scmp.lt.s32.totalorder %s19, 1
      %s247 = scalar_select %p246, %s19, 1
      %p248 = scmp.lt.s32.totalorder %s245, 9
      %s249 = scalar_select %p248, %s245, 9
      %s250 = smul.addr %s249, 2
      %s251 = smul.addr %s247, 20
      %s252 = sadd.s32 %s250, %s251
      %s253 = smul.addr %s252, 4
      %s254 = scalar_lea.vmem %s1, %s253
      %p255 = pneg %p82
      %p256 = pneg %p79
      %p257 = pneg %p103
      %p258 = pneg %p100
      %p259 = pneg %p124
      %p260 = pneg %p121
      %p261 = pneg %p152
      %p262 = pneg %p149
      %s263 = smul.u32 8, %s20
      %p264 = scmp.lt.s32.totalorder %s19, 1
      %s265 = scalar_select %p264, %s19, 1
      %p266 = scmp.lt.s32.totalorder %s263, 7
      %s267 = scalar_select %p266, %s263, 7
      %s268 = smul.addr %s265, 8
      %s269 = sadd.s32 %s267, %s268
      %s270 = smul.addr %s269, 8
      %s271 = scalar_lea.vmem %s4, %s270
      %s272 = smul.u32 8, %s20
      %s273 = ssub.s32 10, %s272
      %p274 = scmp.lt.s32.totalorder %s273, 8
      %s275 = scalar_select %p274, %s273, 8
      %s276 = smul.u32 64, %s275
      %s277 = smul.u32 %s276, 2
      %p278 = scmp.lt.s32.totalorder %s19, 1
      %s279 = scalar_select %p278, %s19, 1
      %p280 = scmp.lt.s32.totalorder %s272, 9
      %s281 = scalar_select %p280, %s272, 9
      %s282 = smul.addr %s281, 2
      %s283 = smul.addr %s279, 20
      %s284 = sadd.s32 %s282, %s283
      %s285 = smul.addr %s284, 4
      %s286 = scalar_lea.vmem %s0, %s285
      %s287 = smul.u32 8, %s20
      %s288 = ssub.s32 10, %s287
      %p289 = scmp.lt.s32.totalorder %s288, 8
      %s290 = scalar_select %p289, %s288, 8
      %s291 = smul.u32 64, %s290
      %s292 = smul.u32 %s291, 2
      %s293 = sadd.s32 %s20, 1
      %s294 = smul.u32 %s293, 4
      %s295 = smul.u32 2, %s294
      %p296 = scmp.lt.s32.totalorder %s19, 1
      %s297 = scalar_select %p296, %s19, 1
      %p298 = scmp.lt.s32.totalorder %s295, 9
      %s299 = scalar_select %p298, %s295, 9
      %s300 = smul.addr %s299, 2
      %s301 = smul.addr %s297, 20
      %s302 = sadd.s32 %s300, %s301
      %s303 = smul.addr %s302, 4
      %s304 = scalar_lea.vmem %s1, %s303
      %s305 = sadd.s32 %s20, 1
      %s306 = smul.u32 %s305, 4
      %s307 = smul.u32 2, %s306
      %s308 = smul.u32 8, %s20
      %p309 = scmp.lt.s32.totalorder %s19, 1
      %s310 = scalar_select %p309, %s19, 1
      %p311 = scmp.lt.s32.totalorder %s308, 7
      %s312 = scalar_select %p311, %s308, 7
      %s313 = smul.addr %s310, 8
      %s314 = sadd.s32 %s312, %s313
      %s315 = smul.addr %s314, 8
      %s316 = scalar_lea.vmem %s4, %s315
      %s317 = smul.u32 8, %s20
      %v319 = vld [vmem:[%s286] sm:$0xf]
      %v320 = vld [vmem:[%s286 + $0x4] sm:$0x1]
      %v321 = vld [vmem:[%s286 + $0x8] sm:$0xf]
      %v322 = vld [vmem:[%s286 + $0xc] sm:$0x1]
      %v323 = vld [vmem:[%s286 + $0x10] sm:$0xf]
      %v324 = vld [vmem:[%s286 + $0x14] sm:$0x1]
      %v325 = vld [vmem:[%s286 + $0x18] sm:$0xf]
      %v326 = vld [vmem:[%s286 + $0x1c] sm:$0x1]
      %v327 = vld [vmem:[%s286 + $0x20] sm:$0xf]
      %v328 = vld [vmem:[%s286 + $0x24] sm:$0x1]
      %v329 = vld [vmem:[%s286 + $0x28] sm:$0xf]
      %v330 = vld [vmem:[%s286 + $0x2c] sm:$0x1]
      %v331 = vld [vmem:[%s286 + $0x30] sm:$0xf]
      %v332 = vld [vmem:[%s286 + $0x34] sm:$0x1]
      %v333 = vld [vmem:[%s286 + $0x38] sm:$0xf]
      %v334 = vld [vmem:[%s286 + $0x3c] sm:$0x1]
      %v335 = vld [vmem:[%s304] sm:$0xf]
      %v336 = vld [vmem:[%s304 + $0x4] sm:$0x1]
      %v337 = vld [vmem:[%s304 + $0x8] sm:$0xf]
      %v338 = vld [vmem:[%s304 + $0xc] sm:$0x1]
      %v339 = vld [vmem:[%s2] sm:$0xf]
      %v340 = vld [vmem:[%s2 + $0x4] sm:$0xf]
      %v341 = vld [vmem:[%s2 + $0x8] sm:$0xf]
      %v342 = vld [vmem:[%s2 + $0xc] sm:$0xf]
      %vm343 = vsmask.f32 3328
      %vm344 = vsmask.f32 7440
      %vm345 = vmor %vm343, %vm344
      %v347 = vshrl.u32 %v319, 16
      %v349 = vrot.slane %v347, 4
      %v350 = vshll.u32 %v319, 16
      %v352 = vrot.slane %v350, 5
      %v353 = vor.u32 %v349, %v352
      %v354 = vrot.slane %v353, 4
      %v356 = vshll.u32 %v320, 16
      %v358 = vrot.slane %v356, 5
      %v359 = vsel %vm345, %v354, %v358
      %v361 = vshrl.u32 %v321, 16
      %v363 = vrot.slane %v361, 4
      %v364 = vshll.u32 %v321, 16
      %v366 = vrot.slane %v364, 5
      %v367 = vor.u32 %v363, %v366
      %v368 = vrot.slane %v367, 4
      %v370 = vshll.u32 %v322, 16
      %v372 = vrot.slane %v370, 5
      %v373 = vsel %vm345, %v368, %v372
      %v375 = vshrl.u32 %v323, 16
      %v377 = vrot.slane %v375, 4
      %v378 = vshll.u32 %v323, 16
      %v380 = vrot.slane %v378, 5
      %v381 = vor.u32 %v377, %v380
      %v382 = vrot.slane %v381, 4
      %v384 = vshll.u32 %v324, 16
      %v386 = vrot.slane %v384, 5
      %v387 = vsel %vm345, %v382, %v386
      %v389 = vshrl.u32 %v325, 16
      %v391 = vrot.slane %v389, 4
      %v392 = vshll.u32 %v325, 16
      %v394 = vrot.slane %v392, 5
      %v395 = vor.u32 %v391, %v394
      %v396 = vrot.slane %v395, 4
      %v398 = vshll.u32 %v326, 16
      %v400 = vrot.slane %v398, 5
      %v401 = vsel %vm345, %v396, %v400
      %v403 = vshrl.u32 %v327, 16
      %v405 = vrot.slane %v403, 4
      %v406 = vshll.u32 %v327, 16
      %v408 = vrot.slane %v406, 5
      %v409 = vor.u32 %v405, %v408
      %v410 = vrot.slane %v409, 4
      %v412 = vshll.u32 %v328, 16
      %v414 = vrot.slane %v412, 5
      %v415 = vsel %vm345, %v410, %v414
      %v417 = vshrl.u32 %v329, 16
      %v419 = vrot.slane %v417, 4
      %v420 = vshll.u32 %v329, 16
      %v422 = vrot.slane %v420, 5
      %v423 = vor.u32 %v419, %v422
      %v424 = vrot.slane %v423, 4
      %v426 = vshll.u32 %v330, 16
      %v428 = vrot.slane %v426, 5
      %v429 = vsel %vm345, %v424, %v428
      %v431 = vshrl.u32 %v331, 16
      %v433 = vrot.slane %v431, 4
      %v434 = vshll.u32 %v331, 16
      %v436 = vrot.slane %v434, 5
      %v437 = vor.u32 %v433, %v436
      %v438 = vrot.slane %v437, 4
      %v440 = vshll.u32 %v332, 16
      %v442 = vrot.slane %v440, 5
      %v443 = vsel %vm345, %v438, %v442
      %v445 = vshrl.u32 %v333, 16
      %v447 = vrot.slane %v445, 4
      %v448 = vshll.u32 %v333, 16
      %v450 = vrot.slane %v448, 5
      %v451 = vor.u32 %v447, %v450
      %v452 = vrot.slane %v451, 4
      %v454 = vshll.u32 %v334, 16
      %v456 = vrot.slane %v454, 5
      %v457 = vsel %vm345, %v452, %v456
      %s458 = scalar_lea.vmem %s2, 16
      %v459 = vld [vmem:[%s458] sm:$0xf]
      %v460 = vld [vmem:[%s458 + $0x4] sm:$0xf]
      %v461 = vld [vmem:[%s458 + $0x8] sm:$0xf]
      %v462 = vld [vmem:[%s458 + $0xc] sm:$0xf]
      %v463 = vunpack.c.l.b16 %v359
      %v464 = vunpack.c.l.b16 %v373
      %v465 = vunpack.c.l.b16 %v387
      %v466 = vunpack.c.l.b16 %v401
      %v467 = vunpack.c.l.b16 %v415
      %v468 = vunpack.c.l.b16 %v429
      %v469 = vunpack.c.l.b16 %v443
      %v470 = vunpack.c.l.b16 %v457
      %v471 = vpack.c.b16 %v464, %v463
      %v472 = vpack.c.b16 %v466, %v465
      %v473 = vpack.c.b16 %v468, %v467
      %v474 = vpack.c.b16 %v470, %v469
      %v479 = vunpack.c.l.b16 %v459
      %v480 = vunpack.c.l.b16 %v460
      %v481 = vunpack.c.l.b16 %v461
      %v482 = vunpack.c.l.b16 %v462
      %v483 = vpack.c.b16 %v480, %v479
      %v484 = vpack.c.b16 %v482, %v481
      %vm487 = vcmask 261120
      %v489 = vsel %vm487, %v471, 0
      %v492 = vsel %vm487, %v472, 0
      %v495 = vsel %vm487, %v473, 0
      %v498 = vsel %vm487, %v474, 0
      %500 = vmatprep.subr.bf16.mxu0 0
      %501 = vmatpush1.bf16.msra.mxu0 %v483
      %502 = vmatprep.subr.bf16.mxu0 0
      %503 = vmatpush1.bf16.msra.mxu0 %v484
      %504 = vmatprep.subr.bf16.mxu0 0
      %505 = vmatpush1.bf16.msra.mxu0 0
      %506 = vmatprep.subr.bf16.mxu0 0
      %507 = vmatpush1.bf16.msra.mxu0 0
      %508 = vmatprep.subr.bf16.mxu0 0
      %509 = vmatpush1.bf16.msra.mxu0 0
      %510 = vmatprep.subr.bf16.mxu0 0
      %511 = vmatpush1.bf16.msra.mxu0 0
      %512 = vmatprep.subr.bf16.mxu0 0
      %513 = vmatpush1.bf16.msra.mxu0 0
      %514 = vmatprep.subr.bf16.mxu0 0
      %515 = vmatpush1.bf16.msra.mxu0 0
      %516 = vmatprep.subr.bf16.mxu0 0
      %517 = vmatpush1.bf16.msra.mxu0 0
      %518 = vmatprep.subr.bf16.mxu0 0
      %519 = vmatpush1.bf16.msra.mxu0 0
      %520 = vmatprep.subr.bf16.mxu0 0
      %521 = vmatpush1.bf16.msra.mxu0 0
      %522 = vmatprep.subr.bf16.mxu0 0
      %523 = vmatpush1.bf16.msra.mxu0 0
      %524 = vmatprep.subr.bf16.mxu0 0
      %525 = vmatpush1.bf16.msra.mxu0 0
      %526 = vmatprep.subr.bf16.mxu0 0
      %527 = vmatpush1.bf16.msra.mxu0 0
      %528 = vmatprep.subr.bf16.mxu0 0
      %529 = vmatpush1.bf16.msra.mxu0 0
      %530 = vmatprep.subr.bf16.mxu0 0
      %531 = vmatpush1.bf16.msra.mxu0 0
      %532 = vmatprep.mubr.bf16.mxu0 0
      %533 = vmatmul.mubr.bf16.gmra.mrb[0].mxu0 %v489
      %v534 = vpop.f32.mrb[0].mxu0
      %v535 = vadd.f32 0.0, %v534
      %v536 = vpop.f32.mrb[0].mxu0
      %v537 = vpop.f32.mrb[0].mxu0
      %v538 = vadd.f32 0.0, %v537
      %v539 = vpop.f32.mrb[0].mxu0
      %540 = vmatprep.mubr.bf16.mxu0 0
      %541 = vmatmul.mubr.bf16.gmra.mrb[0].mxu0 %v492
      %v542 = vpop.f32.mrb[0].mxu0
      %v543 = vadd.f32 0.0, %v542
      %v544 = vpop.f32.mrb[0].mxu0
      %v545 = vpop.f32.mrb[0].mxu0
      %v546 = vadd.f32 0.0, %v545
      %v547 = vpop.f32.mrb[0].mxu0
      %548 = vmatprep.mubr.bf16.mxu0 0
      %549 = vmatmul.mubr.bf16.gmra.mrb[0].mxu0 %v495
      %v550 = vpop.f32.mrb[0].mxu0
      %v551 = vadd.f32 0.0, %v550
      %v552 = vpop.f32.mrb[0].mxu0
      %v553 = vpop.f32.mrb[0].mxu0
      %v554 = vadd.f32 0.0, %v553
      %v555 = vpop.f32.mrb[0].mxu0
      %556 = vmatprep.mubr.bf16.mxu0 0
      %557 = vmatmul.mubr.bf16.gmra.mrb[0].mxu0 %v498
      %v558 = vpop.f32.mrb[0].mxu0
      %v559 = vadd.f32 0.0, %v558
      %v560 = vpop.f32.mrb[0].mxu0
      %v561 = vpop.f32.mrb[0].mxu0
      %v562 = vadd.f32 0.0, %v561
      %v563 = vpop.f32.mrb[0].mxu0
      %564 = vdwg.mxu0
      %v573 = vunpack.c.l.b16 %v319
      %v574 = vunpack.c.l.b16 %v321
      %v575 = vunpack.c.l.b16 %v323
      %v576 = vunpack.c.l.b16 %v325
      %v577 = vunpack.c.l.b16 %v327
      %v578 = vunpack.c.l.b16 %v329
      %v579 = vunpack.c.l.b16 %v331
      %v580 = vunpack.c.l.b16 %v333
      %v581 = vpack.c.b16 %v574, %v573
      %v582 = vpack.c.b16 %v576, %v575
      %v583 = vpack.c.b16 %v578, %v577
      %v584 = vpack.c.b16 %v580, %v579
      %v589 = vunpack.c.l.b16 %v339
      %v590 = vunpack.c.l.b16 %v340
      %v591 = vunpack.c.l.b16 %v341
      %v592 = vunpack.c.l.b16 %v342
      %v593 = vpack.c.b16 %v590, %v589
      %v594 = vpack.c.b16 %v592, %v591
      %v598 = vsel %vm487, %v581, 0
      %v601 = vsel %vm487, %v582, 0
      %v604 = vsel %vm487, %v583, 0
      %v607 = vsel %vm487, %v584, 0
      %609 = vmatprep.subr.bf16.mxu0 0
      %610 = vmatpush1.bf16.msra.mxu0 %v593
      %611 = vmatprep.subr.bf16.mxu0 0
      %612 = vmatpush1.bf16.msra.mxu0 %v594
      %613 = vmatprep.subr.bf16.mxu0 0
      %614 = vmatpush1.bf16.msra.mxu0 0
      %615 = vmatprep.subr.bf16.mxu0 0
      %616 = vmatpush1.bf16.msra.mxu0 0
      %617 = vmatprep.subr.bf16.mxu0 0
      %618 = vmatpush1.bf16.msra.mxu0 0
      %619 = vmatprep.subr.bf16.mxu0 0
      %620 = vmatpush1.bf16.msra.mxu0 0
      %621 = vmatprep.subr.bf16.mxu0 0
      %622 = vmatpush1.bf16.msra.mxu0 0
      %623 = vmatprep.subr.bf16.mxu0 0
      %624 = vmatpush1.bf16.msra.mxu0 0
      %625 = vmatprep.subr.bf16.mxu0 0
      %626 = vmatpush1.bf16.msra.mxu0 0
      %627 = vmatprep.subr.bf16.mxu0 0
      %628 = vmatpush1.bf16.msra.mxu0 0
      %629 = vmatprep.subr.bf16.mxu0 0
      %630 = vmatpush1.bf16.msra.mxu0 0
      %631 = vmatprep.subr.bf16.mxu0 0
      %632 = vmatpush1.bf16.msra.mxu0 0
      %633 = vmatprep.subr.bf16.mxu0 0
      %634 = vmatpush1.bf16.msra.mxu0 0
      %635 = vmatprep.subr.bf16.mxu0 0
      %636 = vmatpush1.bf16.msra.mxu0 0
      %637 = vmatprep.subr.bf16.mxu0 0
      %638 = vmatpush1.bf16.msra.mxu0 0
      %639 = vmatprep.subr.bf16.mxu0 0
      %640 = vmatpush1.bf16.msra.mxu0 0
      %641 = vmatprep.mubr.bf16.mxu0 0
      %642 = vmatmul.mubr.bf16.gmra.mrb[0].mxu0 %v598
      %v643 = vpop.f32.mrb[0].mxu0
      %v644 = vadd.f32 %v535, %v643
      %v645 = vpop.f32.mrb[0].mxu0
      %v646 = vpop.f32.mrb[0].mxu0
      %v647 = vadd.f32 %v538, %v646
      %v648 = vpop.f32.mrb[0].mxu0
      %649 = vmatprep.mubr.bf16.mxu0 0
      %650 = vmatmul.mubr.bf16.gmra.mrb[0].mxu0 %v601
      %v651 = vpop.f32.mrb[0].mxu0
      %v652 = vadd.f32 %v543, %v651
      %v653 = vpop.f32.mrb[0].mxu0
      %v654 = vpop.f32.mrb[0].mxu0
      %v655 = vadd.f32 %v546, %v654
      %v656 = vpop.f32.mrb[0].mxu0
      %657 = vmatprep.mubr.bf16.mxu0 0
      %658 = vmatmul.mubr.bf16.gmra.mrb[0].mxu0 %v604
      %v659 = vpop.f32.mrb[0].mxu0
      %v660 = vadd.f32 %v551, %v659
      %v661 = vpop.f32.mrb[0].mxu0
      %v662 = vpop.f32.mrb[0].mxu0
      %v663 = vadd.f32 %v554, %v662
      %v664 = vpop.f32.mrb[0].mxu0
      %665 = vmatprep.mubr.bf16.mxu0 0
      %666 = vmatmul.mubr.bf16.gmra.mrb[0].mxu0 %v607
      %v667 = vpop.f32.mrb[0].mxu0
      %v668 = vadd.f32 %v559, %v667
      %v669 = vpop.f32.mrb[0].mxu0
      %v670 = vpop.f32.mrb[0].mxu0
      %v671 = vadd.f32 %v562, %v670
      %v672 = vpop.f32.mrb[0].mxu0
      %673 = vdwg.mxu0
      %vm682 = vcmask 1042432
      %vm683 = vcmask 1046532
      %vm684 = vmor %vm682, %vm683
      %v685 = vrot.slane %v319, 5
      %v686 = vrot.slane %v685, 4
      %v687 = vrot.slane %v320, 5
      %v688 = vsel %vm684, %v686, %v687
      %v689 = vrot.slane %v321, 5
      %v690 = vrot.slane %v689, 4
      %v691 = vrot.slane %v322, 5
      %v692 = vsel %vm684, %v690, %v691
      %v693 = vrot.slane %v323, 5
      %v694 = vrot.slane %v693, 4
      %v695 = vrot.slane %v324, 5
      %v696 = vsel %vm684, %v694, %v695
      %v697 = vrot.slane %v325, 5
      %v698 = vrot.slane %v697, 4
      %v699 = vrot.slane %v326, 5
      %v700 = vsel %vm684, %v698, %v699
      %v701 = vrot.slane %v327, 5
      %v702 = vrot.slane %v701, 4
      %v703 = vrot.slane %v328, 5
      %v704 = vsel %vm684, %v702, %v703
      %v705 = vrot.slane %v329, 5
      %v706 = vrot.slane %v705, 4
      %v707 = vrot.slane %v330, 5
      %v708 = vsel %vm684, %v706, %v707
      %v709 = vrot.slane %v331, 5
      %v710 = vrot.slane %v709, 4
      %v711 = vrot.slane %v332, 5
      %v712 = vsel %vm684, %v710, %v711
      %v713 = vrot.slane %v333, 5
      %v714 = vrot.slane %v713, 4
      %v715 = vrot.slane %v334, 5
      %v716 = vsel %vm684, %v714, %v715
      %s717 = scalar_lea.vmem %s2, 32
      %v718 = vld [vmem:[%s717] sm:$0xf]
      %v719 = vld [vmem:[%s717 + $0x4] sm:$0xf]
      %v720 = vld [vmem:[%s717 + $0x8] sm:$0xf]
      %v721 = vld [vmem:[%s717 + $0xc] sm:$0xf]
      %v722 = vunpack.c.l.b16 %v688
      %v723 = vunpack.c.l.b16 %v692
      %v724 = vunpack.c.l.b16 %v696
      %v725 = vunpack.c.l.b16 %v700
      %v726 = vunpack.c.l.b16 %v704
      %v727 = vunpack.c.l.b16 %v708
      %v728 = vunpack.c.l.b16 %v712
      %v729 = vunpack.c.l.b16 %v716
      %v730 = vpack.c.b16 %v723, %v722
      %v731 = vpack.c.b16 %v725, %v724
      %v732 = vpack.c.b16 %v727, %v726
      %v733 = vpack.c.b16 %v729, %v728
      %v738 = vunpack.c.l.b16 %v718
      %v739 = vunpack.c.l.b16 %v719
      %v740 = vunpack.c.l.b16 %v720
      %v741 = vunpack.c.l.b16 %v721
      %v742 = vpack.c.b16 %v739, %v738
      %v743 = vpack.c.b16 %v741, %v740
      %v747 = vsel %vm487, %v730, 0
      %v750 = vsel %vm487, %v731, 0
      %v753 = vsel %vm487, %v732, 0
      %v756 = vsel %vm487, %v733, 0
      %758 = vmatprep.subr.bf16.mxu0 0
      %759 = vmatpush1.bf16.msra.mxu0 %v742
      %760 = vmatprep.subr.bf16.mxu0 0
      %761 = vmatpush1.bf16.msra.mxu0 %v743
      %762 = vmatprep.subr.bf16.mxu0 0
      %763 = vmatpush1.bf16.msra.mxu0 0
      %764 = vmatprep.subr.bf16.mxu0 0
      %765 = vmatpush1.bf16.msra.mxu0 0
      %766 = vmatprep.subr.bf16.mxu0 0
      %767 = vmatpush1.bf16.msra.mxu0 0
      %768 = vmatprep.subr.bf16.mxu0 0
      %769 = vmatpush1.bf16.msra.mxu0 0
      %770 = vmatprep.subr.bf16.mxu0 0
      %771 = vmatpush1.bf16.msra.mxu0 0
      %772 = vmatprep.subr.bf16.mxu0 0
      %773 = vmatpush1.bf16.msra.mxu0 0
      %774 = vmatprep.subr.bf16.mxu0 0
      %775 = vmatpush1.bf16.msra.mxu0 0
      %776 = vmatprep.subr.bf16.mxu0 0
      %777 = vmatpush1.bf16.msra.mxu0 0
      %778 = vmatprep.subr.bf16.mxu0 0
      %779 = vmatpush1.bf16.msra.mxu0 0
      %780 = vmatprep.subr.bf16.mxu0 0
      %781 = vmatpush1.bf16.msra.mxu0 0
      %782 = vmatprep.subr.bf16.mxu0 0
      %783 = vmatpush1.bf16.msra.mxu0 0
      %784 = vmatprep.subr.bf16.mxu0 0
      %785 = vmatpush1.bf16.msra.mxu0 0
      %786 = vmatprep.subr.bf16.mxu0 0
      %787 = vmatpush1.bf16.msra.mxu0 0
      %788 = vmatprep.subr.bf16.mxu0 0
      %789 = vmatpush1.bf16.msra.mxu0 0
      %790 = vmatprep.mubr.bf16.mxu0 0
      %791 = vmatmul.mubr.bf16.gmra.mrb[0].mxu0 %v747
      %v792 = vpop.f32.mrb[0].mxu0
      %v793 = vadd.f32 0.0, %v792
      %v794 = vpop.f32.mrb[0].mxu0
      %v795 = vpop.f32.mrb[0].mxu0
      %v796 = vadd.f32 0.0, %v795
      %v797 = vpop.f32.mrb[0].mxu0
      %798 = vmatprep.mubr.bf16.mxu0 0
      %799 = vmatmul.mubr.bf16.gmra.mrb[0].mxu0 %v750
      %v800 = vpop.f32.mrb[0].mxu0
      %v801 = vadd.f32 0.0, %v800
      %v802 = vpop.f32.mrb[0].mxu0
      %v803 = vpop.f32.mrb[0].mxu0
      %v804 = vadd.f32 0.0, %v803
      %v805 = vpop.f32.mrb[0].mxu0
      %806 = vmatprep.mubr.bf16.mxu0 0
      %807 = vmatmul.mubr.bf16.gmra.mrb[0].mxu0 %v753
      %v808 = vpop.f32.mrb[0].mxu0
      %v809 = vadd.f32 0.0, %v808
      %v810 = vpop.f32.mrb[0].mxu0
      %v811 = vpop.f32.mrb[0].mxu0
      %v812 = vadd.f32 0.0, %v811
      %v813 = vpop.f32.mrb[0].mxu0
      %814 = vmatprep.mubr.bf16.mxu0 0
      %815 = vmatmul.mubr.bf16.gmra.mrb[0].mxu0 %v756
      %v816 = vpop.f32.mrb[0].mxu0
      %v817 = vadd.f32 0.0, %v816
      %v818 = vpop.f32.mrb[0].mxu0
      %v819 = vpop.f32.mrb[0].mxu0
      %v820 = vadd.f32 0.0, %v819
      %v821 = vpop.f32.mrb[0].mxu0
      %822 = vdwg.mxu0
      %v823 = vadd.f32 %v644, %v793
      %v824 = vadd.f32 %v647, %v796
      %v825 = vadd.f32 %v652, %v801
      %v826 = vadd.f32 %v655, %v804
      %v827 = vadd.f32 %v660, %v809
      %v828 = vadd.f32 %v663, %v812
      %v829 = vadd.f32 %v668, %v817
      %v830 = vadd.f32 %v671, %v820
      %s831 = scalar_lea.vmem %s2, 48
      %v832 = vld [vmem:[%s831] sm:$0xf]
      %v833 = vld [vmem:[%s831 + $0x4] sm:$0xf]
      %v834 = vld [vmem:[%s831 + $0x8] sm:$0xf]
      %v835 = vld [vmem:[%s831 + $0xc] sm:$0xf]
      %v837 = vunpack.c.l.b16 %v335
      %v838 = vpack.c.b16 %v575, %v574
      %v839 = vpack.c.b16 %v577, %v576
      %v840 = vpack.c.b16 %v579, %v578
      %v841 = vpack.c.b16 %v837, %v580
      %v846 = vunpack.c.l.b16 %v832
      %v847 = vunpack.c.l.b16 %v833
      %v848 = vunpack.c.l.b16 %v834
      %v849 = vunpack.c.l.b16 %v835
      %v850 = vpack.c.b16 %v847, %v846
      %v851 = vpack.c.b16 %v849, %v848
      %v855 = vsel %vm487, %v838, 0
      %v858 = vsel %vm487, %v839, 0
      %v861 = vsel %vm487, %v840, 0
      %v864 = vsel %vm487, %v841, 0
      %866 = vmatprep.subr.bf16.mxu0 0
      %867 = vmatpush1.bf16.msra.mxu0 %v850
      %868 = vmatprep.subr.bf16.mxu0 0
      %869 = vmatpush1.bf16.msra.mxu0 %v851
      %870 = vmatprep.subr.bf16.mxu0 0
      %871 = vmatpush1.bf16.msra.mxu0 0
      %872 = vmatprep.subr.bf16.mxu0 0
      %873 = vmatpush1.bf16.msra.mxu0 0
      %874 = vmatprep.subr.bf16.mxu0 0
      %875 = vmatpush1.bf16.msra.mxu0 0
      %876 = vmatprep.subr.bf16.mxu0 0
      %877 = vmatpush1.bf16.msra.mxu0 0
      %878 = vmatprep.subr.bf16.mxu0 0
      %879 = vmatpush1.bf16.msra.mxu0 0
      %880 = vmatprep.subr.bf16.mxu0 0
      %881 = vmatpush1.bf16.msra.mxu0 0
      %882 = vmatprep.subr.bf16.mxu0 0
      %883 = vmatpush1.bf16.msra.mxu0 0
      %884 = vmatprep.subr.bf16.mxu0 0
      %885 = vmatpush1.bf16.msra.mxu0 0
      %886 = vmatprep.subr.bf16.mxu0 0
      %887 = vmatpush1.bf16.msra.mxu0 0
      %888 = vmatprep.subr.bf16.mxu0 0
      %889 = vmatpush1.bf16.msra.mxu0 0
      %890 = vmatprep.subr.bf16.mxu0 0
      %891 = vmatpush1.bf16.msra.mxu0 0
      %892 = vmatprep.subr.bf16.mxu0 0
      %893 = vmatpush1.bf16.msra.mxu0 0
      %894 = vmatprep.subr.bf16.mxu0 0
      %895 = vmatpush1.bf16.msra.mxu0 0
      %896 = vmatprep.subr.bf16.mxu0 0
      %897 = vmatpush1.bf16.msra.mxu0 0
      %898 = vmatprep.mubr.bf16.mxu0 0
      %899 = vmatmul.mubr.bf16.gmra.mrb[0].mxu0 %v855
      %v900 = vpop.f32.mrb[0].mxu0
      %v901 = vadd.f32 0.0, %v900
      %v902 = vpop.f32.mrb[0].mxu0
      %v903 = vpop.f32.mrb[0].mxu0
      %v904 = vadd.f32 0.0, %v903
      %v905 = vpop.f32.mrb[0].mxu0
      %906 = vmatprep.mubr.bf16.mxu0 0
      %907 = vmatmul.mubr.bf16.gmra.mrb[0].mxu0 %v858
      %v908 = vpop.f32.mrb[0].mxu0
      %v909 = vadd.f32 0.0, %v908
      %v910 = vpop.f32.mrb[0].mxu0
      %v911 = vpop.f32.mrb[0].mxu0
      %v912 = vadd.f32 0.0, %v911
      %v913 = vpop.f32.mrb[0].mxu0
      %914 = vmatprep.mubr.bf16.mxu0 0
      %915 = vmatmul.mubr.bf16.gmra.mrb[0].mxu0 %v861
      %v916 = vpop.f32.mrb[0].mxu0
      %v917 = vadd.f32 0.0, %v916
      %v918 = vpop.f32.mrb[0].mxu0
      %v919 = vpop.f32.mrb[0].mxu0
      %v920 = vadd.f32 0.0, %v919
      %v921 = vpop.f32.mrb[0].mxu0
      %922 = vmatprep.mubr.bf16.mxu0 0
      %923 = vmatmul.mubr.bf16.gmra.mrb[0].mxu0 %v864
      %v924 = vpop.f32.mrb[0].mxu0
      %v925 = vadd.f32 0.0, %v924
      %v926 = vpop.f32.mrb[0].mxu0
      %v927 = vpop.f32.mrb[0].mxu0
      %v928 = vadd.f32 0.0, %v927
      %v929 = vpop.f32.mrb[0].mxu0
      %930 = vdwg.mxu0
      %v931 = vadd.f32 %v823, %v901
      %v932 = vadd.f32 %v824, %v904
      %v933 = vadd.f32 %v825, %v909
      %v934 = vadd.f32 %v826, %v912
      %v935 = vadd.f32 %v827, %v917
      %v936 = vadd.f32 %v828, %v920
      %v937 = vadd.f32 %v829, %v925
      %v938 = vadd.f32 %v830, %v928
      %v940 = vshrl.u32 %v335, 16
      %v942 = vrot.slane %v940, 4
      %v943 = vshll.u32 %v335, 16
      %v945 = vrot.slane %v943, 5
      %v946 = vor.u32 %v942, %v945
      %v947 = vrot.slane %v946, 4
      %v949 = vshll.u32 %v336, 16
      %v951 = vrot.slane %v949, 5
      %v952 = vsel %vm345, %v947, %v951
      %s953 = scalar_lea.vmem %s2, 64
      %v954 = vld [vmem:[%s953] sm:$0xf]
      %v955 = vld [vmem:[%s953 + $0x4] sm:$0xf]
      %v956 = vld [vmem:[%s953 + $0x8] sm:$0xf]
      %v957 = vld [vmem:[%s953 + $0xc] sm:$0xf]
      %v958 = vunpack.c.l.b16 %v952
      %v959 = vpack.c.b16 %v465, %v464
      %v960 = vpack.c.b16 %v467, %v466
      %v961 = vpack.c.b16 %v469, %v468
      %v962 = vpack.c.b16 %v958, %v470
      %v967 = vunpack.c.l.b16 %v954
      %v968 = vunpack.c.l.b16 %v955
      %v969 = vunpack.c.l.b16 %v956
      %v970 = vunpack.c.l.b16 %v957
      %v971 = vpack.c.b16 %v968, %v967
      %v972 = vpack.c.b16 %v970, %v969
      %v976 = vsel %vm487, %v959, 0
      %v979 = vsel %vm487, %v960, 0
      %v982 = vsel %vm487, %v961, 0
      %v985 = vsel %vm487, %v962, 0
      %987 = vmatprep.subr.bf16.mxu0 0
      %988 = vmatpush1.bf16.msra.mxu0 %v971
      %989 = vmatprep.subr.bf16.mxu0 0
      %990 = vmatpush1.bf16.msra.mxu0 %v972
      %991 = vmatprep.subr.bf16.mxu0 0
      %992 = vmatpush1.bf16.msra.mxu0 0
      %993 = vmatprep.subr.bf16.mxu0 0
      %994 = vmatpush1.bf16.msra.mxu0 0
      %995 = vmatprep.subr.bf16.mxu0 0
      %996 = vmatpush1.bf16.msra.mxu0 0
      %997 = vmatprep.subr.bf16.mxu0 0
      %998 = vmatpush1.bf16.msra.mxu0 0
      %999 = vmatprep.subr.bf16.mxu0 0
      %1000 = vmatpush1.bf16.msra.mxu0 0
      %1001 = vmatprep.subr.bf16.mxu0 0
      %1002 = vmatpush1.bf16.msra.mxu0 0
      %1003 = vmatprep.subr.bf16.mxu0 0
      %1004 = vmatpush1.bf16.msra.mxu0 0
      %1005 = vmatprep.subr.bf16.mxu0 0
      %1006 = vmatpush1.bf16.msra.mxu0 0
      %1007 = vmatprep.subr.bf16.mxu0 0
      %1008 = vmatpush1.bf16.msra.mxu0 0
      %1009 = vmatprep.subr.bf16.mxu0 0
      %1010 = vmatpush1.bf16.msra.mxu0 0
      %1011 = vmatprep.subr.bf16.mxu0 0
      %1012 = vmatpush1.bf16.msra.mxu0 0
      %1013 = vmatprep.subr.bf16.mxu0 0
      %1014 = vmatpush1.bf16.msra.mxu0 0
      %1015 = vmatprep.subr.bf16.mxu0 0
      %1016 = vmatpush1.bf16.msra.mxu0 0
      %1017 = vmatprep.subr.bf16.mxu0 0
      %1018 = vmatpush1.bf16.msra.mxu0 0
      %1019 = vmatprep.mubr.bf16.mxu0 0
      %1020 = vmatmul.mubr.bf16.gmra.mrb[0].mxu0 %v976
      %v1021 = vpop.f32.mrb[0].mxu0
      %v1022 = vadd.f32 0.0, %v1021
      %v1023 = vpop.f32.mrb[0].mxu0
      %v1024 = vpop.f32.mrb[0].mxu0
      %v1025 = vadd.f32 0.0, %v1024
      %v1026 = vpop.f32.mrb[0].mxu0
      %1027 = vmatprep.mubr.bf16.mxu0 0
      %1028 = vmatmul.mubr.bf16.gmra.mrb[0].mxu0 %v979
      %v1029 = vpop.f32.mrb[0].mxu0
      %v1030 = vadd.f32 0.0, %v1029
      %v1031 = vpop.f32.mrb[0].mxu0
      %v1032 = vpop.f32.mrb[0].mxu0
      %v1033 = vadd.f32 0.0, %v1032
      %v1034 = vpop.f32.mrb[0].mxu0
      %1035 = vmatprep.mubr.bf16.mxu0 0
      %1036 = vmatmul.mubr.bf16.gmra.mrb[0].mxu0 %v982
      %v1037 = vpop.f32.mrb[0].mxu0
      %v1038 = vadd.f32 0.0, %v1037
      %v1039 = vpop.f32.mrb[0].mxu0
      %v1040 = vpop.f32.mrb[0].mxu0
      %v1041 = vadd.f32 0.0, %v1040
      %v1042 = vpop.f32.mrb[0].mxu0
      %1043 = vmatprep.mubr.bf16.mxu0 0
      %1044 = vmatmul.mubr.bf16.gmra.mrb[0].mxu0 %v985
      %v1045 = vpop.f32.mrb[0].mxu0
      %v1046 = vadd.f32 0.0, %v1045
      %v1047 = vpop.f32.mrb[0].mxu0
      %v1048 = vpop.f32.mrb[0].mxu0
      %v1049 = vadd.f32 0.0, %v1048
      %v1050 = vpop.f32.mrb[0].mxu0
      %1051 = vdwg.mxu0
      %v1052 = vadd.f32 %v931, %v1022
      %v1053 = vadd.f32 %v932, %v1025
      %v1054 = vadd.f32 %v933, %v1030
      %v1055 = vadd.f32 %v934, %v1033
      %v1056 = vadd.f32 %v935, %v1038
      %v1057 = vadd.f32 %v936, %v1041
      %v1058 = vadd.f32 %v937, %v1046
      %v1059 = vadd.f32 %v938, %v1049
      %v1061 = vrot.slane %v335, 5
      %v1062 = vrot.slane %v1061, 4
      %v1063 = vrot.slane %v336, 5
      %v1064 = vsel %vm684, %v1062, %v1063
      %s1065 = scalar_lea.vmem %s2, 80
      %v1066 = vld [vmem:[%s1065] sm:$0xf]
      %v1067 = vld [vmem:[%s1065 + $0x4] sm:$0xf]
      %v1068 = vld [vmem:[%s1065 + $0x8] sm:$0xf]
      %v1069 = vld [vmem:[%s1065 + $0xc] sm:$0xf]
      %v1070 = vunpack.c.l.b16 %v1064
      %v1071 = vpack.c.b16 %v724, %v723
      %v1072 = vpack.c.b16 %v726, %v725
      %v1073 = vpack.c.b16 %v728, %v727
      %v1074 = vpack.c.b16 %v1070, %v729
      %v1079 = vunpack.c.l.b16 %v1066
      %v1080 = vunpack.c.l.b16 %v1067
      %v1081 = vunpack.c.l.b16 %v1068
      %v1082 = vunpack.c.l.b16 %v1069
      %v1083 = vpack.c.b16 %v1080, %v1079
      %v1084 = vpack.c.b16 %v1082, %v1081
      %v1088 = vsel %vm487, %v1071, 0
      %v1091 = vsel %vm487, %v1072, 0
      %v1094 = vsel %vm487, %v1073, 0
      %v1097 = vsel %vm487, %v1074, 0
      %1099 = vmatprep.subr.bf16.mxu0 0
      %1100 = vmatpush1.bf16.msra.mxu0 %v1083
      %1101 = vmatprep.subr.bf16.mxu0 0
      %1102 = vmatpush1.bf16.msra.mxu0 %v1084
      %1103 = vmatprep.subr.bf16.mxu0 0
      %1104 = vmatpush1.bf16.msra.mxu0 0
      %1105 = vmatprep.subr.bf16.mxu0 0
      %1106 = vmatpush1.bf16.msra.mxu0 0
      %1107 = vmatprep.subr.bf16.mxu0 0
      %1108 = vmatpush1.bf16.msra.mxu0 0
      %1109 = vmatprep.subr.bf16.mxu0 0
      %1110 = vmatpush1.bf16.msra.mxu0 0
      %1111 = vmatprep.subr.bf16.mxu0 0
      %1112 = vmatpush1.bf16.msra.mxu0 0
      %1113 = vmatprep.subr.bf16.mxu0 0
      %1114 = vmatpush1.bf16.msra.mxu0 0
      %1115 = vmatprep.subr.bf16.mxu0 0
      %1116 = vmatpush1.bf16.msra.mxu0 0
      %1117 = vmatprep.subr.bf16.mxu0 0
      %1118 = vmatpush1.bf16.msra.mxu0 0
      %1119 = vmatprep.subr.bf16.mxu0 0
      %1120 = vmatpush1.bf16.msra.mxu0 0
      %1121 = vmatprep.subr.bf16.mxu0 0
      %1122 = vmatpush1.bf16.msra.mxu0 0
      %1123 = vmatprep.subr.bf16.mxu0 0
      %1124 = vmatpush1.bf16.msra.mxu0 0
      %1125 = vmatprep.subr.bf16.mxu0 0
      %1126 = vmatpush1.bf16.msra.mxu0 0
      %1127 = vmatprep.subr.bf16.mxu0 0
      %1128 = vmatpush1.bf16.msra.mxu0 0
      %1129 = vmatprep.subr.bf16.mxu0 0
      %1130 = vmatpush1.bf16.msra.mxu0 0
      %1131 = vmatprep.mubr.bf16.mxu0 0
      %1132 = vmatmul.mubr.bf16.gmra.mrb[0].mxu0 %v1088
      %v1133 = vpop.f32.mrb[0].mxu0
      %v1134 = vadd.f32 0.0, %v1133
      %v1135 = vpop.f32.mrb[0].mxu0
      %v1136 = vpop.f32.mrb[0].mxu0
      %v1137 = vadd.f32 0.0, %v1136
      %v1138 = vpop.f32.mrb[0].mxu0
      %1139 = vmatprep.mubr.bf16.mxu0 0
      %1140 = vmatmul.mubr.bf16.gmra.mrb[0].mxu0 %v1091
      %v1141 = vpop.f32.mrb[0].mxu0
      %v1142 = vadd.f32 0.0, %v1141
      %v1143 = vpop.f32.mrb[0].mxu0
      %v1144 = vpop.f32.mrb[0].mxu0
      %v1145 = vadd.f32 0.0, %v1144
      %v1146 = vpop.f32.mrb[0].mxu0
      %1147 = vmatprep.mubr.bf16.mxu0 0
      %1148 = vmatmul.mubr.bf16.gmra.mrb[0].mxu0 %v1094
      %v1149 = vpop.f32.mrb[0].mxu0
      %v1150 = vadd.f32 0.0, %v1149
      %v1151 = vpop.f32.mrb[0].mxu0
      %v1152 = vpop.f32.mrb[0].mxu0
      %v1153 = vadd.f32 0.0, %v1152
      %v1154 = vpop.f32.mrb[0].mxu0
      %1155 = vmatprep.mubr.bf16.mxu0 0
      %1156 = vmatmul.mubr.bf16.gmra.mrb[0].mxu0 %v1097
      %v1157 = vpop.f32.mrb[0].mxu0
      %v1158 = vadd.f32 0.0, %v1157
      %v1159 = vpop.f32.mrb[0].mxu0
      %v1160 = vpop.f32.mrb[0].mxu0
      %v1161 = vadd.f32 0.0, %v1160
      %v1162 = vpop.f32.mrb[0].mxu0
      %1163 = vdwg.mxu0
      %v1164 = vadd.f32 %v1052, %v1134
      %v1165 = vadd.f32 %v1053, %v1137
      %v1166 = vadd.f32 %v1054, %v1142
      %v1167 = vadd.f32 %v1055, %v1145
      %v1168 = vadd.f32 %v1056, %v1150
      %v1169 = vadd.f32 %v1057, %v1153
      %v1170 = vadd.f32 %v1058, %v1158
      %v1171 = vadd.f32 %v1059, %v1161
      %s1172 = scalar_lea.vmem %s2, 96
      %v1173 = vld [vmem:[%s1172] sm:$0xf]
      %v1174 = vld [vmem:[%s1172 + $0x4] sm:$0xf]
      %v1175 = vld [vmem:[%s1172 + $0x8] sm:$0xf]
      %v1176 = vld [vmem:[%s1172 + $0xc] sm:$0xf]
      %v1178 = vunpack.c.l.b16 %v337
      %v1179 = vpack.c.b16 %v1178, %v837
      %v1184 = vunpack.c.l.b16 %v1173
      %v1185 = vunpack.c.l.b16 %v1174
      %v1186 = vunpack.c.l.b16 %v1175
      %v1187 = vunpack.c.l.b16 %v1176
      %v1188 = vpack.c.b16 %v1185, %v1184
      %v1189 = vpack.c.b16 %v1187, %v1186
      %v1193 = vsel %vm487, %v1179, 0
      %1195 = vmatprep.subr.bf16.mxu0 0
      %1196 = vmatpush1.bf16.msra.mxu0 %v1188
      %1197 = vmatprep.subr.bf16.mxu0 0
      %1198 = vmatpush1.bf16.msra.mxu0 %v1189
      %1199 = vmatprep.subr.bf16.mxu0 0
      %1200 = vmatpush1.bf16.msra.mxu0 0
      %1201 = vmatprep.subr.bf16.mxu0 0
      %1202 = vmatpush1.bf16.msra.mxu0 0
      %1203 = vmatprep.subr.bf16.mxu0 0
      %1204 = vmatpush1.bf16.msra.mxu0 0
      %1205 = vmatprep.subr.bf16.mxu0 0
      %1206 = vmatpush1.bf16.msra.mxu0 0
      %1207 = vmatprep.subr.bf16.mxu0 0
      %1208 = vmatpush1.bf16.msra.mxu0 0
      %1209 = vmatprep.subr.bf16.mxu0 0
      %1210 = vmatpush1.bf16.msra.mxu0 0
      %1211 = vmatprep.subr.bf16.mxu0 0
      %1212 = vmatpush1.bf16.msra.mxu0 0
      %1213 = vmatprep.subr.bf16.mxu0 0
      %1214 = vmatpush1.bf16.msra.mxu0 0
      %1215 = vmatprep.subr.bf16.mxu0 0
      %1216 = vmatpush1.bf16.msra.mxu0 0
      %1217 = vmatprep.subr.bf16.mxu0 0
      %1218 = vmatpush1.bf16.msra.mxu0 0
      %1219 = vmatprep.subr.bf16.mxu0 0
      %1220 = vmatpush1.bf16.msra.mxu0 0
      %1221 = vmatprep.subr.bf16.mxu0 0
      %1222 = vmatpush1.bf16.msra.mxu0 0
      %1223 = vmatprep.subr.bf16.mxu0 0
      %1224 = vmatpush1.bf16.msra.mxu0 0
      %1225 = vmatprep.subr.bf16.mxu0 0
      %1226 = vmatpush1.bf16.msra.mxu0 0
      %1227 = vmatprep.mubr.bf16.mxu0 0
      %1228 = vmatmul.mubr.bf16.gmra.mrb[0].mxu0 %v601
      %v1229 = vpop.f32.mrb[0].mxu0
      %v1230 = vadd.f32 0.0, %v1229
      %v1231 = vpop.f32.mrb[0].mxu0
      %v1232 = vpop.f32.mrb[0].mxu0
      %v1233 = vadd.f32 0.0, %v1232
      %v1234 = vpop.f32.mrb[0].mxu0
      %1235 = vmatprep.mubr.bf16.mxu0 0
      %1236 = vmatmul.mubr.bf16.gmra.mrb[0].mxu0 %v604
      %v1237 = vpop.f32.mrb[0].mxu0
      %v1238 = vadd.f32 0.0, %v1237
      %v1239 = vpop.f32.mrb[0].mxu0
      %v1240 = vpop.f32.mrb[0].mxu0
      %v1241 = vadd.f32 0.0, %v1240
      %v1242 = vpop.f32.mrb[0].mxu0
      %1243 = vmatprep.mubr.bf16.mxu0 0
      %1244 = vmatmul.mubr.bf16.gmra.mrb[0].mxu0 %v607
      %v1245 = vpop.f32.mrb[0].mxu0
      %v1246 = vadd.f32 0.0, %v1245
      %v1247 = vpop.f32.mrb[0].mxu0
      %v1248 = vpop.f32.mrb[0].mxu0
      %v1249 = vadd.f32 0.0, %v1248
      %v1250 = vpop.f32.mrb[0].mxu0
      %1251 = vmatprep.mubr.bf16.mxu0 0
      %1252 = vmatmul.mubr.bf16.gmra.mrb[0].mxu0 %v1193
      %v1253 = vpop.f32.mrb[0].mxu0
      %v1254 = vadd.f32 0.0, %v1253
      %v1255 = vpop.f32.mrb[0].mxu0
      %v1256 = vpop.f32.mrb[0].mxu0
      %v1257 = vadd.f32 0.0, %v1256
      %v1258 = vpop.f32.mrb[0].mxu0
      %1259 = vdwg.mxu0
      %v1260 = vadd.f32 %v1164, %v1230
      %v1261 = vadd.f32 %v1165, %v1233
      %v1262 = vadd.f32 %v1166, %v1238
      %v1263 = vadd.f32 %v1167, %v1241
      %v1264 = vadd.f32 %v1168, %v1246
      %v1265 = vadd.f32 %v1169, %v1249
      %v1266 = vadd.f32 %v1170, %v1254
      %v1267 = vadd.f32 %v1171, %v1257
      %v1269 = vshrl.u32 %v337, 16
      %v1271 = vrot.slane %v1269, 4
      %v1272 = vshll.u32 %v337, 16
      %v1274 = vrot.slane %v1272, 5
      %v1275 = vor.u32 %v1271, %v1274
      %v1276 = vrot.slane %v1275, 4
      %v1278 = vshll.u32 %v338, 16
      %v1280 = vrot.slane %v1278, 5
      %v1281 = vsel %vm345, %v1276, %v1280
      %s1282 = scalar_lea.vmem %s2, 112
      %v1283 = vld [vmem:[%s1282] sm:$0xf]
      %v1284 = vld [vmem:[%s1282 + $0x4] sm:$0xf]
      %v1285 = vld [vmem:[%s1282 + $0x8] sm:$0xf]
      %v1286 = vld [vmem:[%s1282 + $0xc] sm:$0xf]
      %v1287 = vunpack.c.l.b16 %v1281
      %v1288 = vpack.c.b16 %v1287, %v958
      %v1293 = vunpack.c.l.b16 %v1283
      %v1294 = vunpack.c.l.b16 %v1284
      %v1295 = vunpack.c.l.b16 %v1285
      %v1296 = vunpack.c.l.b16 %v1286
      %v1297 = vpack.c.b16 %v1294, %v1293
      %v1298 = vpack.c.b16 %v1296, %v1295
      %v1302 = vsel %vm487, %v1288, 0
      %1304 = vmatprep.subr.bf16.mxu0 0
      %1305 = vmatpush1.bf16.msra.mxu0 %v1297
      %1306 = vmatprep.subr.bf16.mxu0 0
      %1307 = vmatpush1.bf16.msra.mxu0 %v1298
      %1308 = vmatprep.subr.bf16.mxu0 0
      %1309 = vmatpush1.bf16.msra.mxu0 0
      %1310 = vmatprep.subr.bf16.mxu0 0
      %1311 = vmatpush1.bf16.msra.mxu0 0
      %1312 = vmatprep.subr.bf16.mxu0 0
      %1313 = vmatpush1.bf16.msra.mxu0 0
      %1314 = vmatprep.subr.bf16.mxu0 0
      %1315 = vmatpush1.bf16.msra.mxu0 0
      %1316 = vmatprep.subr.bf16.mxu0 0
      %1317 = vmatpush1.bf16.msra.mxu0 0
      %1318 = vmatprep.subr.bf16.mxu0 0
      %1319 = vmatpush1.bf16.msra.mxu0 0
      %1320 = vmatprep.subr.bf16.mxu0 0
      %1321 = vmatpush1.bf16.msra.mxu0 0
      %1322 = vmatprep.subr.bf16.mxu0 0
      %1323 = vmatpush1.bf16.msra.mxu0 0
      %1324 = vmatprep.subr.bf16.mxu0 0
      %1325 = vmatpush1.bf16.msra.mxu0 0
      %1326 = vmatprep.subr.bf16.mxu0 0
      %1327 = vmatpush1.bf16.msra.mxu0 0
      %1328 = vmatprep.subr.bf16.mxu0 0
      %1329 = vmatpush1.bf16.msra.mxu0 0
      %1330 = vmatprep.subr.bf16.mxu0 0
      %1331 = vmatpush1.bf16.msra.mxu0 0
      %1332 = vmatprep.subr.bf16.mxu0 0
      %1333 = vmatpush1.bf16.msra.mxu0 0
      %1334 = vmatprep.subr.bf16.mxu0 0
      %1335 = vmatpush1.bf16.msra.mxu0 0
      %1336 = vmatprep.mubr.bf16.mxu0 0
      %1337 = vmatmul.mubr.bf16.gmra.mrb[0].mxu0 %v492
      %v1338 = vpop.f32.mrb[0].mxu0
      %v1339 = vadd.f32 0.0, %v1338
      %v1340 = vpop.f32.mrb[0].mxu0
      %v1341 = vpop.f32.mrb[0].mxu0
      %v1342 = vadd.f32 0.0, %v1341
      %v1343 = vpop.f32.mrb[0].mxu0
      %1344 = vmatprep.mubr.bf16.mxu0 0
      %1345 = vmatmul.mubr.bf16.gmra.mrb[0].mxu0 %v495
      %v1346 = vpop.f32.mrb[0].mxu0
      %v1347 = vadd.f32 0.0, %v1346
      %v1348 = vpop.f32.mrb[0].mxu0
      %v1349 = vpop.f32.mrb[0].mxu0
      %v1350 = vadd.f32 0.0, %v1349
      %v1351 = vpop.f32.mrb[0].mxu0
      %1352 = vmatprep.mubr.bf16.mxu0 0
      %1353 = vmatmul.mubr.bf16.gmra.mrb[0].mxu0 %v498
      %v1354 = vpop.f32.mrb[0].mxu0
      %v1355 = vadd.f32 0.0, %v1354
      %v1356 = vpop.f32.mrb[0].mxu0
      %v1357 = vpop.f32.mrb[0].mxu0
      %v1358 = vadd.f32 0.0, %v1357
      %v1359 = vpop.f32.mrb[0].mxu0
      %1360 = vmatprep.mubr.bf16.mxu0 0
      %1361 = vmatmul.mubr.bf16.gmra.mrb[0].mxu0 %v1302
      %v1362 = vpop.f32.mrb[0].mxu0
      %v1363 = vadd.f32 0.0, %v1362
      %v1364 = vpop.f32.mrb[0].mxu0
      %v1365 = vpop.f32.mrb[0].mxu0
      %v1366 = vadd.f32 0.0, %v1365
      %v1367 = vpop.f32.mrb[0].mxu0
      %1368 = vdwg.mxu0
      %v1369 = vadd.f32 %v1260, %v1339
      %v1370 = vadd.f32 %v1261, %v1342
      %v1371 = vadd.f32 %v1262, %v1347
      %v1372 = vadd.f32 %v1263, %v1350
      %v1373 = vadd.f32 %v1264, %v1355
      %v1374 = vadd.f32 %v1265, %v1358
      %v1375 = vadd.f32 %v1266, %v1363
      %v1376 = vadd.f32 %v1267, %v1366
      %v1378 = vrot.slane %v337, 5
      %v1379 = vrot.slane %v1378, 4
      %v1380 = vrot.slane %v338, 5
      %v1381 = vsel %vm684, %v1379, %v1380
      %s1382 = scalar_lea.vmem %s2, 128
      %v1383 = vld [vmem:[%s1382] sm:$0xf]
      %v1384 = vld [vmem:[%s1382 + $0x4] sm:$0xf]
      %v1385 = vld [vmem:[%s1382 + $0x8] sm:$0xf]
      %v1386 = vld [vmem:[%s1382 + $0xc] sm:$0xf]
      %v1387 = vunpack.c.l.b16 %v1381
      %v1388 = vpack.c.b16 %v1387, %v1070
      %v1393 = vunpack.c.l.b16 %v1383
      %v1394 = vunpack.c.l.b16 %v1384
      %v1395 = vunpack.c.l.b16 %v1385
      %v1396 = vunpack.c.l.b16 %v1386
      %v1397 = vpack.c.b16 %v1394, %v1393
      %v1398 = vpack.c.b16 %v1396, %v1395
      %v1402 = vsel %vm487, %v1388, 0
      %1404 = vmatprep.subr.bf16.mxu0 0
      %1405 = vmatpush1.bf16.msra.mxu0 %v1397
      %1406 = vmatprep.subr.bf16.mxu0 0
      %1407 = vmatpush1.bf16.msra.mxu0 %v1398
      %1408 = vmatprep.subr.bf16.mxu0 0
      %1409 = vmatpush1.bf16.msra.mxu0 0
      %1410 = vmatprep.subr.bf16.mxu0 0
      %1411 = vmatpush1.bf16.msra.mxu0 0
      %1412 = vmatprep.subr.bf16.mxu0 0
      %1413 = vmatpush1.bf16.msra.mxu0 0
      %1414 = vmatprep.subr.bf16.mxu0 0
      %1415 = vmatpush1.bf16.msra.mxu0 0
      %1416 = vmatprep.subr.bf16.mxu0 0
      %1417 = vmatpush1.bf16.msra.mxu0 0
      %1418 = vmatprep.subr.bf16.mxu0 0
      %1419 = vmatpush1.bf16.msra.mxu0 0
      %1420 = vmatprep.subr.bf16.mxu0 0
      %1421 = vmatpush1.bf16.msra.mxu0 0
      %1422 = vmatprep.subr.bf16.mxu0 0
      %1423 = vmatpush1.bf16.msra.mxu0 0
      %1424 = vmatprep.subr.bf16.mxu0 0
      %1425 = vmatpush1.bf16.msra.mxu0 0
      %1426 = vmatprep.subr.bf16.mxu0 0
      %1427 = vmatpush1.bf16.msra.mxu0 0
      %1428 = vmatprep.subr.bf16.mxu0 0
      %1429 = vmatpush1.bf16.msra.mxu0 0
      %1430 = vmatprep.subr.bf16.mxu0 0
      %1431 = vmatpush1.bf16.msra.mxu0 0
      %1432 = vmatprep.subr.bf16.mxu0 0
      %1433 = vmatpush1.bf16.msra.mxu0 0
      %1434 = vmatprep.subr.bf16.mxu0 0
      %1435 = vmatpush1.bf16.msra.mxu0 0
      %1436 = vmatprep.mubr.bf16.mxu0 0
      %1437 = vmatmul.mubr.bf16.gmra.mrb[0].mxu0 %v750
      %v1438 = vpop.f32.mrb[0].mxu0
      %v1439 = vadd.f32 0.0, %v1438
      %v1440 = vpop.f32.mrb[0].mxu0
      %v1441 = vpop.f32.mrb[0].mxu0
      %v1442 = vadd.f32 0.0, %v1441
      %v1443 = vpop.f32.mrb[0].mxu0
      %1444 = vmatprep.mubr.bf16.mxu0 0
      %1445 = vmatmul.mubr.bf16.gmra.mrb[0].mxu0 %v753
      %v1446 = vpop.f32.mrb[0].mxu0
      %v1447 = vadd.f32 0.0, %v1446
      %v1448 = vpop.f32.mrb[0].mxu0
      %v1449 = vpop.f32.mrb[0].mxu0
      %v1450 = vadd.f32 0.0, %v1449
      %v1451 = vpop.f32.mrb[0].mxu0
      %1452 = vmatprep.mubr.bf16.mxu0 0
      %1453 = vmatmul.mubr.bf16.gmra.mrb[0].mxu0 %v756
      %v1454 = vpop.f32.mrb[0].mxu0
      %v1455 = vadd.f32 0.0, %v1454
      %v1456 = vpop.f32.mrb[0].mxu0
      %v1457 = vpop.f32.mrb[0].mxu0
      %v1458 = vadd.f32 0.0, %v1457
      %v1459 = vpop.f32.mrb[0].mxu0
      %1460 = vmatprep.mubr.bf16.mxu0 0
      %1461 = vmatmul.mubr.bf16.gmra.mrb[0].mxu0 %v1402
      %v1462 = vpop.f32.mrb[0].mxu0
      %v1463 = vadd.f32 0.0, %v1462
      %v1464 = vpop.f32.mrb[0].mxu0
      %v1465 = vpop.f32.mrb[0].mxu0
      %v1466 = vadd.f32 0.0, %v1465
      %v1467 = vpop.f32.mrb[0].mxu0
      %1468 = vdwg.mxu0
      %v1469 = vadd.f32 %v1369, %v1439
      %v1470 = vadd.f32 %v1370, %v1442
      %v1471 = vadd.f32 %v1371, %v1447
      %v1472 = vadd.f32 %v1372, %v1450
      %v1473 = vadd.f32 %v1373, %v1455
      %v1474 = vadd.f32 %v1374, %v1458
      %v1475 = vadd.f32 %v1375, %v1463
      %v1476 = vadd.f32 %v1376, %v1466
      %v1477 = vld [vmem:[%s3] sm:$0x1]
      %v1479 = vlaneseq
      %v1480 = vshrl.u32 %v1479, 7
      %v1481 = vsub.s32 0, %v1480
      %v1482 = vrot.slane %v1477, %v1481
      %v1484 = vadd.f32 %v1469, %v1482
      %v1485 = vadd.f32 %v1470, %v1482
      %v1486 = vadd.f32 %v1471, %v1482
      %v1487 = vadd.f32 %v1472, %v1482
      %v1488 = vadd.f32 %v1473, %v1482
      %v1489 = vadd.f32 %v1474, %v1482
      %v1490 = vadd.f32 %v1475, %v1482
      %v1491 = vadd.f32 %v1476, %v1482
      %vm1492 = vcmask 97280
      %1493 = vst.msk [vmem:[%s316] sm:$0xff] %vm1492, %v1484
      %1494 = vst.msk [vmem:[%s316 + $0x8] sm:$0xff] %vm1492, %v1485
      %1495 = vst.msk [vmem:[%s316 + $0x10] sm:$0xff] %vm1492, %v1486
      %1496 = vst.msk [vmem:[%s316 + $0x18] sm:$0xff] %vm1492, %v1487
      %1497 = vst.msk [vmem:[%s316 + $0x20] sm:$0xff] %vm1492, %v1488
      %1498 = vst.msk [vmem:[%s316 + $0x28] sm:$0xff] %vm1492, %v1489
      %1499 = vst.msk [vmem:[%s316 + $0x30] sm:$0xff] %vm1492, %v1490
      %1500 = vst.msk [vmem:[%s316 + $0x38] sm:$0xff] %vm1492, %v1491
      %s1501 = smul.u32 8, %s20
      %p1502 = scmp.lt.s32.totalorder %s19, 1
      %s1503 = scalar_select %p1502, %s19, 1
      %p1504 = scmp.lt.s32.totalorder %s1501, 7
      %s1505 = scalar_select %p1504, %s1501, 7
      %s1506 = smul.addr %s1503, 8
      %s1507 = sadd.s32 %s1505, %s1506
      %s1508 = smul.addr %s1507, 8
      %s1509 = scalar_lea.vmem %s4, %s1508
      // Predicated region
      $region37: #{pht_forward.15} parent=35 // pred_check
        %p1510 = pneg %p149
      $region38: #{pht_forward.15} parent=35 // pred_check_branch
        %1512 = sbr.rel (%p1510) target = $region40
      $region39: #{pht_forward.15} parent=35 // pred_region
        %s1513 = smul.u32 8, %s20
      $region40: #{pht_forward.15} parent=35 // pred_fallthru
        _
    $region36: #{pht_forward.15} parent=5 // pred_fallthru
      _
    %p1514 = scmp.le.s32.totalorder 2, %s10
    // Predicated region
    $region41: #{pht_forward.15} parent=5 // pred_check
      %p1515 = pneg %p1514
    $region42: #{pht_forward.15} parent=5 // pred_check_branch
      %1517 = sbr.rel (%p1515) target = $region44
    $region43: #{pht_forward.15} parent=5 // pred_region
      %s1518 = ssub.s32 %s10, 2
      // Predicated region
      $region45: #{pht_forward.15} parent=43 // pred_check
        %p1519 = pneg %p155
      $region46: #{pht_forward.15} parent=43 // pred_check_branch
        %1521 = sbr.rel (%p1519) target = $region48
      $region47: #{pht_forward.15} parent=43 // pred_region
        %s1522 = smul.u32 8, %s22
        %p1523 = scmp.lt.s32.totalorder %s21, 1
        %s1524 = scalar_select %p1523, %s21, 1
        %p1525 = scmp.lt.s32.totalorder %s1522, 7
        %s1526 = scalar_select %p1525, %s1522, 7
        %s1527 = smul.addr %s1524, 8
        %s1528 = sadd.s32 %s1526, %s1527
        %s1529 = smul.addr %s1528, 8
        %s1530 = scalar_lea.vmem %s4, %s1529
      $region48: #{pht_forward.15} parent=43 // pred_fallthru
        _
    $region44: #{pht_forward.15} parent=5 // pred_fallthru
      _
  $region6: #{pht_forward.15} parent=0 // loop_footer
    %s14 = sadd.s32 1, %s10
  $region7: #{pht_forward.15} parent=0 // loop_footer_branch
    %9 = sbr.rel target = $region3
  $region8: #{pht_forward.15} parent=0 // loop_exit
    _

// kernel: pht_forward.9
$region0: #{pht_forward.9}
  #allocation0 [shape = 'u32[]', space=smem, size = 0x4, offset = 0x4, fixed_abs, tag = 'smem constant byte address 0x4 - core index']
  #allocation1 [shape = 'u32[144,128]{1,0:T(1,128)}', space=vmem, size = 0x12000, scoped, tag = 'internal scratch']
  %s0 = inlined_call_operand.vmem [shape: bf16[2,10,10,32], index: 0, kind: input, shape index: {}, may-alias: {0,1}]
  %s1 = inlined_call_operand.vmem [shape: bf16[2,10,10,32], index: 1, kind: input, shape index: {}, may-alias: {0,1}]
  %s2 = inlined_call_operand.vmem [shape: f32[1,32], index: 2, kind: input, shape index: {}]
  %s3 = inlined_call_operand.vmem [shape: f32[1,32], index: 3, kind: input, shape index: {}]
  %s4 = inlined_call_operand.vmem [shape: bf16[32,32], index: 4, kind: input, shape index: {}]
  %s5 = inlined_call_operand.vmem [shape: bf16[32,32], index: 5, kind: input, shape index: {}]
  %s6 = inlined_call_operand.vmem [shape: f32[3,3,32], index: 6, kind: input, shape index: {}]
  %s7 = inlined_call_operand.vmem [shape: f32[3,3,32], index: 7, kind: input, shape index: {}]
  %s8 = inlined_call_operand.vmem [shape: bf16[32,32], index: 8, kind: input, shape index: {}]
  %s9 = inlined_call_operand.vmem [shape: bf16[2,8,8,32], index: 9, kind: output, shape index: {}]
  %s10 = sld [smem:[#allocation0]]
  $region69: #{pht_forward.9} parent=0
    _
  %s12 = ssub.s32 1, %s10
  %s13 = scalar_select 0, %s12, %s10
  loop: start=0, step=1, limit=4
  $region2: #{pht_forward.9} parent=0 // loop_pre_header
    _
  $region3: #{pht_forward.9} parent=0 // loop_header
    %s15 = sphi 0, %s19
    %p16 = scmp.ge.s32.totalorder %s15, 4
    %s22 = sphi 0, %s34
    %s23 = sphi 0, %s30
    %s24 = sphi 0, %s22
    %s25 = sphi 0, %s23
    %s26 = sphi 0, %s24
    %s27 = sphi 0, %s25
    %s39 = sphi 0, %s41
    %s42 = sphi 0, %s39
    %s43 = sphi 0, %s42
    %s59 = sphi 0, %s43
    %s71 = sphi 0, %s73
    %s74 = sphi 0, %s71
    %s75 = sphi 0, %s74
    %s91 = sphi 0, %s75
    %s95 = sphi 0, %s95
    %s97 = sphi 0, %s95
    %s98 = sphi 0, %s97
    %s112 = sphi 0, %s98
    %s116 = sphi 0, %s116
    %s118 = sphi 0, %s116
    %s119 = sphi 0, %s118
    %s133 = sphi 0, %s119
    %s137 = sphi 0, %s137
    %s139 = sphi 0, %s137
    %s140 = sphi 0, %s139
    %s154 = sphi 0, %s140
    %s158 = sphi 0, %s158
    %s160 = sphi 0, %s158
    %s161 = sphi 0, %s160
    %s175 = sphi 0, %s161
    %s179 = sphi 0, %s179
    %s181 = sphi 0, %s179
    %s182 = sphi 0, %s181
    %s196 = sphi 0, %s182
    %s200 = sphi 0, %s200
    %s202 = sphi 0, %s200
    %s203 = sphi 0, %s202
    %s217 = sphi 0, %s203
    %s221 = sphi 0, %s221
    %s223 = sphi 0, %s221
    %s224 = sphi 0, %s223
    %s238 = sphi 0, %s224
    %s246 = sphi 0, %s248
    %s249 = sphi 0, %s246
    %s250 = sphi 0, %s249
    %s266 = sphi 0, %s250
  $region4: #{pht_forward.9} parent=0 // loop_header_branch
    %18 = sbr.rel (%p16) target = $region8
  $region5: #{pht_forward.9} parent=0 // loop_body
    %s20 = ssub.s32 %s15, 1
    %s21 = ssub.s32 %s15, 2
    %s28 = sadd.s32 1, %s23
    %p29 = scmp.ge.s32.totalorder %s28, 1
    %s30 = scalar_select %p29, 0, %s28
    %s31 = sadd.s32 1, %s22
    %s32 = scalar_select %p29, %s31, %s22
    %p33 = scmp.ge.s32.totalorder %s32, 2
    %s34 = scalar_select %p33, 0, %s32
    %s35 = ssub.s32 %s22, %s34
    %s36 = ssub.s32 %s23, %s30
    %s37 = sor.u32 %s35, %s36
    %p38 = scmp.eq.s32.totalorder %s37, 0
    %s40 = sadd.s32 %s39, 1
    %s41 = scalar_select %p38, %s39, %s40
    %p44 = pneg %p38
    %p45 = scmp.eq.s32.totalorder %s15, 1
    %p46 = por %p44, %p45
    %p47 = scmp.ne.s32.totalorder %s39, %s42
    %p48 = scmp.eq.s32.totalorder %s15, 0
    %p49 = por %p47, %p48
    %p50 = scmp.ne.s32.totalorder %s39, %s42
    %p51 = scmp.eq.s32.totalorder %s20, 1
    %p52 = por %p50, %p51
    %p53 = scmp.ne.s32.totalorder %s42, %s43
    %p54 = scmp.eq.s32.totalorder %s20, 0
    %p55 = por %p53, %p54
    %p56 = scmp.ne.s32.totalorder %s42, %s43
    %p57 = scmp.eq.s32.totalorder %s21, 1
    %p58 = por %p56, %p57
    %p60 = scmp.ne.s32.totalorder %s43, %s59
    %p61 = scmp.eq.s32.totalorder %s21, 0
    %p62 = por %p60, %p61
    %s63 = sadd.s32 %s23, 1
    %s64 = smul.u32 %s63, 4
    %s65 = sadd.s32 %s30, 1
    %s66 = smul.u32 %s65, 4
    %s67 = ssub.s32 %s22, %s34
    %s68 = ssub.s32 %s64, %s66
    %s69 = sor.u32 %s67, %s68
    %p70 = scmp.eq.s32.totalorder %s69, 0
    %s72 = sadd.s32 %s71, 1
    %s73 = scalar_select %p70, %s71, %s72
    %p76 = pneg %p70
    %p77 = scmp.eq.s32.totalorder %s15, 1
    %p78 = por %p76, %p77
    %p79 = scmp.ne.s32.totalorder %s71, %s74
    %p80 = scmp.eq.s32.totalorder %s15, 0
    %p81 = por %p79, %p80
    %p82 = scmp.ne.s32.totalorder %s71, %s74
    %p83 = scmp.eq.s32.totalorder %s20, 1
    %p84 = por %p82, %p83
    %p85 = scmp.ne.s32.totalorder %s74, %s75
    %p86 = scmp.eq.s32.totalorder %s20, 0
    %p87 = por %p85, %p86
    %p88 = scmp.ne.s32.totalorder %s74, %s75
    %p89 = scmp.eq.s32.totalorder %s21, 1
    %p90 = por %p88, %p89
    %p92 = scmp.ne.s32.totalorder %s75, %s91
    %p93 = scmp.eq.s32.totalorder %s21, 0
    %p94 = por %p92, %p93
    %s96 = sadd.s32 %s95, 1
    %p99 = scmp.eq.s32.totalorder %s15, 1
    %p100 = scmp.ne.s32.totalorder %s95, %s97
    %p101 = scmp.eq.s32.totalorder %s15, 0
    %p102 = por %p100, %p101
    %p103 = scmp.ne.s32.totalorder %s95, %s97
    %p104 = scmp.eq.s32.totalorder %s20, 1
    %p105 = por %p103, %p104
    %p106 = scmp.ne.s32.totalorder %s97, %s98
    %p107 = scmp.eq.s32.totalorder %s20, 0
    %p108 = por %p106, %p107
    %p109 = scmp.ne.s32.totalorder %s97, %s98
    %p110 = scmp.eq.s32.totalorder %s21, 1
    %p111 = por %p109, %p110
    %p113 = scmp.ne.s32.totalorder %s98, %s112
    %p114 = scmp.eq.s32.totalorder %s21, 0
    %p115 = por %p113, %p114
    %s117 = sadd.s32 %s116, 1
    %p120 = scmp.eq.s32.totalorder %s15, 1
    %p121 = scmp.ne.s32.totalorder %s116, %s118
    %p122 = scmp.eq.s32.totalorder %s15, 0
    %p123 = por %p121, %p122
    %p124 = scmp.ne.s32.totalorder %s116, %s118
    %p125 = scmp.eq.s32.totalorder %s20, 1
    %p126 = por %p124, %p125
    %p127 = scmp.ne.s32.totalorder %s118, %s119
    %p128 = scmp.eq.s32.totalorder %s20, 0
    %p129 = por %p127, %p128
    %p130 = scmp.ne.s32.totalorder %s118, %s119
    %p131 = scmp.eq.s32.totalorder %s21, 1
    %p132 = por %p130, %p131
    %p134 = scmp.ne.s32.totalorder %s119, %s133
    %p135 = scmp.eq.s32.totalorder %s21, 0
    %p136 = por %p134, %p135
    %s138 = sadd.s32 %s137, 1
    %p141 = scmp.eq.s32.totalorder %s15, 1
    %p142 = scmp.ne.s32.totalorder %s137, %s139
    %p143 = scmp.eq.s32.totalorder %s15, 0
    %p144 = por %p142, %p143
    %p145 = scmp.ne.s32.totalorder %s137, %s139
    %p146 = scmp.eq.s32.totalorder %s20, 1
    %p147 = por %p145, %p146
    %p148 = scmp.ne.s32.totalorder %s139, %s140
    %p149 = scmp.eq.s32.totalorder %s20, 0
    %p150 = por %p148, %p149
    %p151 = scmp.ne.s32.totalorder %s139, %s140
    %p152 = scmp.eq.s32.totalorder %s21, 1
    %p153 = por %p151, %p152
    %p155 = scmp.ne.s32.totalorder %s140, %s154
    %p156 = scmp.eq.s32.totalorder %s21, 0
    %p157 = por %p155, %p156
    %s159 = sadd.s32 %s158, 1
    %p162 = scmp.eq.s32.totalorder %s15, 1
    %p163 = scmp.ne.s32.totalorder %s158, %s160
    %p164 = scmp.eq.s32.totalorder %s15, 0
    %p165 = por %p163, %p164
    %p166 = scmp.ne.s32.totalorder %s158, %s160
    %p167 = scmp.eq.s32.totalorder %s20, 1
    %p168 = por %p166, %p167
    %p169 = scmp.ne.s32.totalorder %s160, %s161
    %p170 = scmp.eq.s32.totalorder %s20, 0
    %p171 = por %p169, %p170
    %p172 = scmp.ne.s32.totalorder %s160, %s161
    %p173 = scmp.eq.s32.totalorder %s21, 1
    %p174 = por %p172, %p173
    %p176 = scmp.ne.s32.totalorder %s161, %s175
    %p177 = scmp.eq.s32.totalorder %s21, 0
    %p178 = por %p176, %p177
    %s180 = sadd.s32 %s179, 1
    %p183 = scmp.eq.s32.totalorder %s15, 1
    %p184 = scmp.ne.s32.totalorder %s179, %s181
    %p185 = scmp.eq.s32.totalorder %s15, 0
    %p186 = por %p184, %p185
    %p187 = scmp.ne.s32.totalorder %s179, %s181
    %p188 = scmp.eq.s32.totalorder %s20, 1
    %p189 = por %p187, %p188
    %p190 = scmp.ne.s32.totalorder %s181, %s182
    %p191 = scmp.eq.s32.totalorder %s20, 0
    %p192 = por %p190, %p191
    %p193 = scmp.ne.s32.totalorder %s181, %s182
    %p194 = scmp.eq.s32.totalorder %s21, 1
    %p195 = por %p193, %p194
    %p197 = scmp.ne.s32.totalorder %s182, %s196
    %p198 = scmp.eq.s32.totalorder %s21, 0
    %p199 = por %p197, %p198
    %s201 = sadd.s32 %s200, 1
    %p204 = scmp.eq.s32.totalorder %s15, 1
    %p205 = scmp.ne.s32.totalorder %s200, %s202
    %p206 = scmp.eq.s32.totalorder %s15, 0
    %p207 = por %p205, %p206
    %p208 = scmp.ne.s32.totalorder %s200, %s202
    %p209 = scmp.eq.s32.totalorder %s20, 1
    %p210 = por %p208, %p209
    %p211 = scmp.ne.s32.totalorder %s202, %s203
    %p212 = scmp.eq.s32.totalorder %s20, 0
    %p213 = por %p211, %p212
    %p214 = scmp.ne.s32.totalorder %s202, %s203
    %p215 = scmp.eq.s32.totalorder %s21, 1
    %p216 = por %p214, %p215
    %p218 = scmp.ne.s32.totalorder %s203, %s217
    %p219 = scmp.eq.s32.totalorder %s21, 0
    %p220 = por %p218, %p219
    %s222 = sadd.s32 %s221, 1
    %p225 = scmp.eq.s32.totalorder %s15, 1
    %p226 = scmp.ne.s32.totalorder %s221, %s223
    %p227 = scmp.eq.s32.totalorder %s15, 0
    %p228 = por %p226, %p227
    %p229 = scmp.ne.s32.totalorder %s221, %s223
    %p230 = scmp.eq.s32.totalorder %s20, 1
    %p231 = por %p229, %p230
    %p232 = scmp.ne.s32.totalorder %s223, %s224
    %p233 = scmp.eq.s32.totalorder %s20, 0
    %p234 = por %p232, %p233
    %p235 = scmp.ne.s32.totalorder %s223, %s224
    %p236 = scmp.eq.s32.totalorder %s21, 1
    %p237 = por %p235, %p236
    %p239 = scmp.ne.s32.totalorder %s224, %s238
    %p240 = scmp.eq.s32.totalorder %s21, 0
    %p241 = por %p239, %p240
    %s242 = ssub.s32 %s22, %s34
    %s243 = ssub.s32 %s23, %s30
    %s244 = sor.u32 %s242, %s243
    %p245 = scmp.eq.s32.totalorder %s244, 0
    %s247 = sadd.s32 %s246, 1
    %s248 = scalar_select %p245, %s246, %s247
    %p251 = pneg %p245
    %p252 = scmp.eq.s32.totalorder %s15, 1
    %p253 = por %p251, %p252
    %p254 = scmp.ne.s32.totalorder %s246, %s249
    %p255 = scmp.eq.s32.totalorder %s15, 0
    %p256 = por %p254, %p255
    %p257 = scmp.ne.s32.totalorder %s246, %s249
    %p258 = scmp.eq.s32.totalorder %s20, 1
    %p259 = por %p257, %p258
    %p260 = scmp.ne.s32.totalorder %s249, %s250
    %p261 = scmp.eq.s32.totalorder %s20, 0
    %p262 = por %p260, %p261
    %p263 = scmp.ne.s32.totalorder %s249, %s250
    %p264 = scmp.eq.s32.totalorder %s21, 1
    %p265 = por %p263, %p264
    %p267 = scmp.ne.s32.totalorder %s250, %s266
    %p268 = scmp.eq.s32.totalorder %s21, 0
    %p269 = por %p267, %p268
    %p270 = scmp.le.s32.totalorder 1, %s15
    %p271 = scmp.lt.s32.totalorder %s15, 3
    %p272 = pnand %p270, %p271
    %p273 = pneg %p272
    // Predicated region
    $region9: #{pht_forward.9} parent=5 // pred_check
      _
    $region10: #{pht_forward.9} parent=5 // pred_check_branch
      %275 = sbr.rel (%p272) target = $region12
    $region11: #{pht_forward.9} parent=5 // pred_region
      %s276 = ssub.s32 %s15, 1
      // Predicated region
      $region13: #{pht_forward.9} parent=11 // pred_check
        %p277 = pneg %p108
      $region14: #{pht_forward.9} parent=11 // pred_check_branch
        %279 = sbr.rel (%p277) target = $region16
      $region15: #{pht_forward.9} parent=11 // pred_region
        _
      $region16: #{pht_forward.9} parent=11 // pred_fallthru
        _
      // Predicated region
      $region17: #{pht_forward.9} parent=11 // pred_check
        %p280 = pneg %p129
      $region18: #{pht_forward.9} parent=11 // pred_check_branch
        %282 = sbr.rel (%p280) target = $region20
      $region19: #{pht_forward.9} parent=11 // pred_region
        _
      $region20: #{pht_forward.9} parent=11 // pred_fallthru
        _
      // Predicated region
      $region21: #{pht_forward.9} parent=11 // pred_check
        %p283 = pneg %p150
      $region22: #{pht_forward.9} parent=11 // pred_check_branch
        %285 = sbr.rel (%p283) target = $region24
      $region23: #{pht_forward.9} parent=11 // pred_region
        _
      $region24: #{pht_forward.9} parent=11 // pred_fallthru
        _
      // Predicated region
      $region25: #{pht_forward.9} parent=11 // pred_check
        %p286 = pneg %p171
      $region26: #{pht_forward.9} parent=11 // pred_check_branch
        %288 = sbr.rel (%p286) target = $region28
      $region27: #{pht_forward.9} parent=11 // pred_region
        _
      $region28: #{pht_forward.9} parent=11 // pred_fallthru
        _
      // Predicated region
      $region29: #{pht_forward.9} parent=11 // pred_check
        %p289 = pneg %p192
      $region30: #{pht_forward.9} parent=11 // pred_check_branch
        %291 = sbr.rel (%p289) target = $region32
      $region31: #{pht_forward.9} parent=11 // pred_region
        _
      $region32: #{pht_forward.9} parent=11 // pred_fallthru
        _
      // Predicated region
      $region33: #{pht_forward.9} parent=11 // pred_check
        %p292 = pneg %p213
      $region34: #{pht_forward.9} parent=11 // pred_check_branch
        %294 = sbr.rel (%p292) target = $region36
      $region35: #{pht_forward.9} parent=11 // pred_region
        _
      $region36: #{pht_forward.9} parent=11 // pred_fallthru
        _
      // Predicated region
      $region37: #{pht_forward.9} parent=11 // pred_check
        %p295 = pneg %p234
      $region38: #{pht_forward.9} parent=11 // pred_check_branch
        %297 = sbr.rel (%p295) target = $region40
      $region39: #{pht_forward.9} parent=11 // pred_region
        _
      $region40: #{pht_forward.9} parent=11 // pred_fallthru
        _
    $region12: #{pht_forward.9} parent=5 // pred_fallthru
      _
    %p298 = scmp.lt.s32.totalorder %s15, 2
    // Predicated region
    $region41: #{pht_forward.9} parent=5 // pred_check
      %p299 = pneg %p298
    $region42: #{pht_forward.9} parent=5 // pred_check_branch
      %301 = sbr.rel (%p299) target = $region44
    $region43: #{pht_forward.9} parent=5 // pred_region
      // Predicated region
      $region45: #{pht_forward.9} parent=43 // pred_check
        %p302 = pneg %p49
      $region46: #{pht_forward.9} parent=43 // pred_check_branch
        %304 = sbr.rel (%p302) target = $region48
      $region47: #{pht_forward.9} parent=43 // pred_region
        %s305 = smul.u32 8, %s23
        %s306 = ssub.s32 10, %s305
        %p307 = scmp.lt.s32.totalorder %s306, 8
        %s308 = scalar_select %p307, %s306, 8
        %s309 = smul.u32 64, %s308
        %s310 = smul.u32 %s309, 2
        %p311 = scmp.lt.s32.totalorder %s22, 1
        %s312 = scalar_select %p311, %s22, 1
        %p313 = scmp.lt.s32.totalorder %s305, 9
        %s314 = scalar_select %p313, %s305, 9
        %s315 = smul.addr %s314, 2
        %s316 = smul.addr %s312, 20
        %s317 = sadd.s32 %s315, %s316
        %s318 = smul.addr %s317, 4
        %s319 = scalar_lea.vmem %s0, %s318
        %s320 = smul.u32 8, %s23
        %s321 = ssub.s32 10, %s320
        %p322 = scmp.lt.s32.totalorder %s321, 8
        %s323 = scalar_select %p322, %s321, 8
        %s324 = smul.u32 64, %s323
        %s325 = smul.u32 %s324, 2
      $region48: #{pht_forward.9} parent=43 // pred_fallthru
        _
      // Predicated region
      $region49: #{pht_forward.9} parent=43 // pred_check
        %p326 = pneg %p81
      $region50: #{pht_forward.9} parent=43 // pred_check_branch
        %328 = sbr.rel (%p326) target = $region52
      $region51: #{pht_forward.9} parent=43 // pred_region
        %s329 = sadd.s32 %s23, 1
        %s330 = smul.u32 %s329, 4
        %s331 = smul.u32 2, %s330
        %p332 = scmp.lt.s32.totalorder %s22, 1
        %s333 = scalar_select %p332, %s22, 1
        %p334 = scmp.lt.s32.totalorder %s331, 9
        %s335 = scalar_select %p334, %s331, 9
        %s336 = smul.addr %s335, 2
        %s337 = smul.addr %s333, 20
        %s338 = sadd.s32 %s336, %s337
        %s339 = smul.addr %s338, 4
        %s340 = scalar_lea.vmem %s1, %s339
        %s341 = sadd.s32 %s23, 1
        %s342 = smul.u32 %s341, 4
        %s343 = smul.u32 2, %s342
      $region52: #{pht_forward.9} parent=43 // pred_fallthru
        _
    $region44: #{pht_forward.9} parent=5 // pred_fallthru
      _
    %p344 = scmp.le.s32.totalorder 1, %s15
    %p345 = scmp.lt.s32.totalorder %s15, 3
    %p346 = pnand %p344, %p345
    %p347 = pneg %p346
    // Predicated region
    $region53: #{pht_forward.9} parent=5 // pred_check
      _
    $region54: #{pht_forward.9} parent=5 // pred_check_branch
      %349 = sbr.rel (%p346) target = $region56
    $region55: #{pht_forward.9} parent=5 // pred_region
      %s350 = ssub.s32 %s15, 1
      %s351 = smul.u32 8, %s25
      %s352 = ssub.s32 10, %s351
      %p353 = scmp.lt.s32.totalorder %s352, 8
      %s354 = scalar_select %p353, %s352, 8
      %s355 = smul.u32 64, %s354
      %s356 = smul.u32 %s355, 2
      %p357 = scmp.lt.s32.totalorder %s24, 1
      %s358 = scalar_select %p357, %s24, 1
      %p359 = scmp.lt.s32.totalorder %s351, 9
      %s360 = scalar_select %p359, %s351, 9
      %s361 = smul.addr %s360, 2
      %s362 = smul.addr %s358, 20
      %s363 = sadd.s32 %s361, %s362
      %s364 = smul.addr %s363, 4
      %s365 = scalar_lea.vmem %s0, %s364
      %p366 = pneg %p55
      %p367 = pneg %p52
      %s368 = sadd.s32 %s25, 1
      %s369 = smul.u32 %s368, 4
      %s370 = smul.u32 2, %s369
      %p371 = scmp.lt.s32.totalorder %s24, 1
      %s372 = scalar_select %p371, %s24, 1
      %p373 = scmp.lt.s32.totalorder %s370, 9
      %s374 = scalar_select %p373, %s370, 9
      %s375 = smul.addr %s374, 2
      %s376 = smul.addr %s372, 20
      %s377 = sadd.s32 %s375, %s376
      %s378 = smul.addr %s377, 4
      %s379 = scalar_lea.vmem %s1, %s378
      %p380 = pneg %p87
      %p381 = pneg %p84
      %p382 = pneg %p108
      %p383 = pneg %p105
      %p384 = pneg %p129
      %p385 = pneg %p126
      %p386 = pneg %p150
      %p387 = pneg %p147
      %p388 = pneg %p171
      %p389 = pneg %p168
      %p390 = pneg %p192
      %p391 = pneg %p189
      %p392 = pneg %p213
      %p393 = pneg %p210
      %p394 = pneg %p234
      %p395 = pneg %p231
      %p396 = pneg %p262
      %p397 = pneg %p259
      %s398 = smul.u32 8, %s25
      %p399 = scmp.lt.s32.totalorder %s24, 1
      %s400 = scalar_select %p399, %s24, 1
      %p401 = scmp.lt.s32.totalorder %s398, 7
      %s402 = scalar_select %p401, %s398, 7
      %s403 = smul.addr %s400, 8
      %s404 = sadd.s32 %s402, %s403
      %s405 = smul.addr %s404, 4
      %s406 = scalar_lea.vmem %s9, %s405
      %s407 = smul.u32 8, %s25
      %s408 = ssub.s32 10, %s407
      %p409 = scmp.lt.s32.totalorder %s408, 8
      %s410 = scalar_select %p409, %s408, 8
      %s411 = smul.u32 64, %s410
      %s412 = smul.u32 %s411, 2
      %p413 = scmp.lt.s32.totalorder %s24, 1
      %s414 = scalar_select %p413, %s24, 1
      %p415 = scmp.lt.s32.totalorder %s407, 9
      %s416 = scalar_select %p415, %s407, 9
      %s417 = smul.addr %s416, 2
      %s418 = smul.addr %s414, 20
      %s419 = sadd.s32 %s417, %s418
      %s420 = smul.addr %s419, 4
      %s421 = scalar_lea.vmem %s0, %s420
      %s422 = smul.u32 8, %s25
      %s423 = ssub.s32 10, %s422
      %p424 = scmp.lt.s32.totalorder %s423, 8
      %s425 = scalar_select %p424, %s423, 8
      %s426 = smul.u32 64, %s425
      %s427 = smul.u32 %s426, 2
      %s428 = sadd.s32 %s25, 1
      %s429 = smul.u32 %s428, 4
      %s430 = smul.u32 2, %s429
      %p431 = scmp.lt.s32.totalorder %s24, 1
      %s432 = scalar_select %p431, %s24, 1
      %p433 = scmp.lt.s32.totalorder %s430, 9
      %s434 = scalar_select %p433, %s430, 9
      %s435 = smul.addr %s434, 2
      %s436 = smul.addr %s432, 20
      %s437 = sadd.s32 %s435, %s436
      %s438 = smul.addr %s437, 4
      %s439 = scalar_lea.vmem %s1, %s438
      %s440 = sadd.s32 %s25, 1
      %s441 = smul.u32 %s440, 4
      %s442 = smul.u32 2, %s441
      %s443 = smul.u32 8, %s25
      %p444 = scmp.lt.s32.totalorder %s24, 1
      %s445 = scalar_select %p444, %s24, 1
      %p446 = scmp.lt.s32.totalorder %s443, 7
      %s447 = scalar_select %p446, %s443, 7
      %s448 = smul.addr %s445, 8
      %s449 = sadd.s32 %s447, %s448
      %s450 = smul.addr %s449, 4
      %s451 = scalar_lea.vmem %s9, %s450
      %s452 = smul.u32 8, %s25
      %v454 = vld [vmem:[%s421] sm:$0xf]
      %v455 = vld [vmem:[%s421 + $0x4] sm:$0x1]
      %v456 = vld [vmem:[%s421 + $0x8] sm:$0xf]
      %v457 = vld [vmem:[%s421 + $0xc] sm:$0x1]
      %v458 = vld [vmem:[%s421 + $0x10] sm:$0xf]
      %v459 = vld [vmem:[%s421 + $0x14] sm:$0x1]
      %v460 = vld [vmem:[%s421 + $0x18] sm:$0xf]
      %v461 = vld [vmem:[%s421 + $0x1c] sm:$0x1]
      %v462 = vld [vmem:[%s421 + $0x20] sm:$0xf]
      %v463 = vld [vmem:[%s421 + $0x24] sm:$0x1]
      %v464 = vld [vmem:[%s421 + $0x28] sm:$0xf]
      %v465 = vld [vmem:[%s421 + $0x2c] sm:$0x1]
      %v466 = vld [vmem:[%s421 + $0x30] sm:$0xf]
      %v467 = vld [vmem:[%s421 + $0x34] sm:$0x1]
      %v468 = vld [vmem:[%s421 + $0x38] sm:$0xf]
      %v469 = vld [vmem:[%s421 + $0x3c] sm:$0x1]
      %v470 = vld [vmem:[%s439] sm:$0xf]
      %v471 = vld [vmem:[%s439 + $0x4] sm:$0x1]
      %v472 = vld [vmem:[%s439 + $0x8] sm:$0xf]
      %v473 = vld [vmem:[%s439 + $0xc] sm:$0x1]
      %v474 = vunpack.c.l.bf16 %v454
      %v475 = vunpack.c.l.bf16 %v455
      %v476 = vunpack.c.l.bf16 %v456
      %v477 = vunpack.c.l.bf16 %v457
      %v478 = vunpack.c.l.bf16 %v458
      %v479 = vunpack.c.l.bf16 %v459
      %v480 = vunpack.c.l.bf16 %v460
      %v481 = vunpack.c.l.bf16 %v461
      %v482 = vunpack.c.l.bf16 %v462
      %v483 = vunpack.c.l.bf16 %v463
      %v484 = vunpack.c.l.bf16 %v464
      %v485 = vunpack.c.l.bf16 %v465
      %v486 = vunpack.c.l.bf16 %v466
      %v487 = vunpack.c.l.bf16 %v467
      %v488 = vunpack.c.l.bf16 %v468
      %v489 = vunpack.c.l.bf16 %v469
      %v490 = vunpack.c.l.bf16 %v470
      %v491 = vunpack.c.l.bf16 %v471
      %v492 = vunpack.c.l.bf16 %v472
      %v493 = vunpack.c.l.bf16 %v473
      %vm494 = vcmask 261120
      %v495 = vsel %vm494, %v474, 0.0
      %496 = vadd.xlane.f32.xlu0 %v495
      %v497 = vpop.xlane.xlu0 %496
      %vm498 = vcmask 254976
      %v499 = vsel %vm498, %v475, 0.0
      %500 = vadd.xlane.f32.xlu0 %v499
      %v501 = vpop.xlane.xlu0 %500
      %v502 = vsel %vm494, %v476, 0.0
      %503 = vadd.xlane.f32.xlu0 %v502
      %v504 = vpop.xlane.xlu0 %503
      %v505 = vsel %vm498, %v477, 0.0
      %506 = vadd.xlane.f32.xlu0 %v505
      %v507 = vpop.xlane.xlu0 %506
      %v508 = vsel %vm494, %v478, 0.0
      %509 = vadd.xlane.f32.xlu0 %v508
      %v510 = vpop.xlane.xlu0 %509
      %v511 = vsel %vm498, %v479, 0.0
      %512 = vadd.xlane.f32.xlu0 %v511
      %v513 = vpop.xlane.xlu0 %512
      %v514 = vsel %vm494, %v480, 0.0
      %515 = vadd.xlane.f32.xlu0 %v514
      %v516 = vpop.xlane.xlu0 %515
      %v517 = vsel %vm498, %v481, 0.0
      %518 = vadd.xlane.f32.xlu0 %v517
      %v519 = vpop.xlane.xlu0 %518
      %v520 = vsel %vm494, %v482, 0.0
      %521 = vadd.xlane.f32.xlu0 %v520
      %v522 = vpop.xlane.xlu0 %521
      %v523 = vsel %vm498, %v483, 0.0
      %524 = vadd.xlane.f32.xlu0 %v523
      %v525 = vpop.xlane.xlu0 %524
      %v526 = vsel %vm494, %v484, 0.0
      %527 = vadd.xlane.f32.xlu0 %v526
      %v528 = vpop.xlane.xlu0 %527
      %v529 = vsel %vm498, %v485, 0.0
      %530 = vadd.xlane.f32.xlu0 %v529
      %v531 = vpop.xlane.xlu0 %530
      %v532 = vsel %vm494, %v486, 0.0
      %533 = vadd.xlane.f32.xlu0 %v532
      %v534 = vpop.xlane.xlu0 %533
      %v535 = vsel %vm498, %v487, 0.0
      %536 = vadd.xlane.f32.xlu0 %v535
      %v537 = vpop.xlane.xlu0 %536
      %v538 = vsel %vm494, %v488, 0.0
      %539 = vadd.xlane.f32.xlu0 %v538
      %v540 = vpop.xlane.xlu0 %539
      %v541 = vsel %vm498, %v489, 0.0
      %542 = vadd.xlane.f32.xlu0 %v541
      %v543 = vpop.xlane.xlu0 %542
      %v544 = vsel %vm494, %v490, 0.0
      %545 = vadd.xlane.f32.xlu0 %v544
      %v546 = vpop.xlane.xlu0 %545
      %v547 = vsel %vm498, %v491, 0.0
      %548 = vadd.xlane.f32.xlu0 %v547
      %v549 = vpop.xlane.xlu0 %548
      %v550 = vsel %vm494, %v492, 0.0
      %551 = vadd.xlane.f32.xlu0 %v550
      %v552 = vpop.xlane.xlu0 %551
      %v553 = vsel %vm498, %v493, 0.0
      %554 = vadd.xlane.f32.xlu0 %v553
      %v555 = vpop.xlane.xlu0 %554
      %v556 = vrcp.pop 32.0
      %v557 = vmul.f32 %v497, %v556
      %v558 = vmul.f32 %v501, %v556
      %v559 = vmul.f32 %v504, %v556
      %v560 = vmul.f32 %v507, %v556
      %v561 = vmul.f32 %v510, %v556
      %v562 = vmul.f32 %v513, %v556
      %v563 = vmul.f32 %v516, %v556
      %v564 = vmul.f32 %v519, %v556
      %v565 = vmul.f32 %v522, %v556
      %v566 = vmul.f32 %v525, %v556
      %v567 = vmul.f32 %v528, %v556
      %v568 = vmul.f32 %v531, %v556
      %v569 = vmul.f32 %v534, %v556
      %v570 = vmul.f32 %v537, %v556
      %v571 = vmul.f32 %v540, %v556
      %v572 = vmul.f32 %v543, %v556
      %v573 = vmul.f32 %v546, %v556
      %v574 = vmul.f32 %v549, %v556
      %v575 = vmul.f32 %v552, %v556
      %v576 = vmul.f32 %v555, %v556
      %v577 = vsub.f32 %v474, %v557
      %v578 = vsub.f32 %v475, %v558
      %v579 = vsub.f32 %v476, %v559
      %v580 = vsub.f32 %v477, %v560
      %v581 = vsub.f32 %v478, %v561
      %v582 = vsub.f32 %v479, %v562
      %v583 = vsub.f32 %v480, %v563
      %v584 = vsub.f32 %v481, %v564
      %v585 = vsub.f32 %v482, %v565
      %v586 = vsub.f32 %v483, %v566
      %v587 = vsub.f32 %v484, %v567
      %v588 = vsub.f32 %v485, %v568
      %v589 = vsub.f32 %v486, %v569
      %v590 = vsub.f32 %v487, %v570
      %v591 = vsub.f32 %v488, %v571
      %v592 = vsub.f32 %v489, %v572
      %v593 = vsub.f32 %v490, %v573
      %v594 = vsub.f32 %v491, %v574
      %v595 = vsub.f32 %v492, %v575
      %v596 = vsub.f32 %v493, %v576
      %v597 = vmul.f32 %v577, %v577
      %v598 = vmul.f32 %v578, %v578
      %v599 = vmul.f32 %v579, %v579
      %v600 = vmul.f32 %v580, %v580
      %v601 = vmul.f32 %v581, %v581
      %v602 = vmul.f32 %v582, %v582
      %v603 = vmul.f32 %v583, %v583
      %v604 = vmul.f32 %v584, %v584
      %v605 = vmul.f32 %v585, %v585
      %v606 = vmul.f32 %v586, %v586
      %v607 = vmul.f32 %v587, %v587
      %v608 = vmul.f32 %v588, %v588
      %v609 = vmul.f32 %v589, %v589
      %v610 = vmul.f32 %v590, %v590
      %v611 = vmul.f32 %v591, %v591
      %v612 = vmul.f32 %v592, %v592
      %v613 = vmul.f32 %v593, %v593
      %v614 = vmul.f32 %v594, %v594
      %v615 = vmul.f32 %v595, %v595
      %v616 = vmul.f32 %v596, %v596
      %v617 = vsel %vm494, %v597, 0.0
      %618 = vadd.xlane.f32.xlu0 %v617
      %v619 = vpop.xlane.xlu0 %618
      %v620 = vsel %vm498, %v598, 0.0
      %621 = vadd.xlane.f32.xlu0 %v620
      %v622 = vpop.xlane.xlu0 %621
      %v623 = vsel %vm494, %v599, 0.0
      %624 = vadd.xlane.f32.xlu0 %v623
      %v625 = vpop.xlane.xlu0 %624
      %v626 = vsel %vm498, %v600, 0.0
      %627 = vadd.xlane.f32.xlu0 %v626
      %v628 = vpop.xlane.xlu0 %627
      %v629 = vsel %vm494, %v601, 0.0
      %630 = vadd.xlane.f32.xlu0 %v629
      %v631 = vpop.xlane.xlu0 %630
      %v632 = vsel %vm498, %v602, 0.0
      %633 = vadd.xlane.f32.xlu0 %v632
      %v634 = vpop.xlane.xlu0 %633
      %v635 = vsel %vm494, %v603, 0.0
      %636 = vadd.xlane.f32.xlu0 %v635
      %v637 = vpop.xlane.xlu0 %636
      %v638 = vsel %vm498, %v604, 0.0
      %639 = vadd.xlane.f32.xlu0 %v638
      %v640 = vpop.xlane.xlu0 %639
      %v641 = vsel %vm494, %v605, 0.0
      %642 = vadd.xlane.f32.xlu0 %v641
      %v643 = vpop.xlane.xlu0 %642
      %v644 = vsel %vm498, %v606, 0.0
      %645 = vadd.xlane.f32.xlu0 %v644
      %v646 = vpop.xlane.xlu0 %645
      %v647 = vsel %vm494, %v607, 0.0
      %648 = vadd.xlane.f32.xlu0 %v647
      %v649 = vpop.xlane.xlu0 %648
      %v650 = vsel %vm498, %v608, 0.0
      %651 = vadd.xlane.f32.xlu0 %v650
      %v652 = vpop.xlane.xlu0 %651
      %v653 = vsel %vm494, %v609, 0.0
      %654 = vadd.xlane.f32.xlu0 %v653
      %v655 = vpop.xlane.xlu0 %654
      %v656 = vsel %vm498, %v610, 0.0
      %657 = vadd.xlane.f32.xlu0 %v656
      %v658 = vpop.xlane.xlu0 %657
      %v659 = vsel %vm494, %v611, 0.0
      %660 = vadd.xlane.f32.xlu0 %v659
      %v661 = vpop.xlane.xlu0 %660
      %v662 = vsel %vm498, %v612, 0.0
      %663 = vadd.xlane.f32.xlu0 %v662
      %v664 = vpop.xlane.xlu0 %663
      %v665 = vsel %vm494, %v613, 0.0
      %666 = vadd.xlane.f32.xlu0 %v665
      %v667 = vpop.xlane.xlu0 %666
      %v668 = vsel %vm498, %v614, 0.0
      %669 = vadd.xlane.f32.xlu0 %v668
      %v670 = vpop.xlane.xlu0 %669
      %v671 = vsel %vm494, %v615, 0.0
      %672 = vadd.xlane.f32.xlu0 %v671
      %v673 = vpop.xlane.xlu0 %672
      %v674 = vsel %vm498, %v616, 0.0
      %675 = vadd.xlane.f32.xlu0 %v674
      %v676 = vpop.xlane.xlu0 %675
      %v677 = vmul.f32 %v619, %v556
      %v678 = vmul.f32 %v622, %v556
      %v679 = vmul.f32 %v625, %v556
      %v680 = vmul.f32 %v628, %v556
      %v681 = vmul.f32 %v631, %v556
      %v682 = vmul.f32 %v634, %v556
      %v683 = vmul.f32 %v637, %v556
      %v684 = vmul.f32 %v640, %v556
      %v685 = vmul.f32 %v643, %v556
      %v686 = vmul.f32 %v646, %v556
      %v687 = vmul.f32 %v649, %v556
      %v688 = vmul.f32 %v652, %v556
      %v689 = vmul.f32 %v655, %v556
      %v690 = vmul.f32 %v658, %v556
      %v691 = vmul.f32 %v661, %v556
      %v692 = vmul.f32 %v664, %v556
      %v693 = vmul.f32 %v667, %v556
      %v694 = vmul.f32 %v670, %v556
      %v695 = vmul.f32 %v673, %v556
      %v696 = vmul.f32 %v676, %v556
      %v697 = vadd.f32 %v677, 1e-05
      %v698 = vadd.f32 %v678, 1e-05
      %v699 = vadd.f32 %v679, 1e-05
      %v700 = vadd.f32 %v680, 1e-05
      %v701 = vadd.f32 %v681, 1e-05
      %v702 = vadd.f32 %v682, 1e-05
      %v703 = vadd.f32 %v683, 1e-05
      %v704 = vadd.f32 %v684, 1e-05
      %v705 = vadd.f32 %v685, 1e-05
      %v706 = vadd.f32 %v686, 1e-05
      %v707 = vadd.f32 %v687, 1e-05
      %v708 = vadd.f32 %v688, 1e-05
      %v709 = vadd.f32 %v689, 1e-05
      %v710 = vadd.f32 %v690, 1e-05
      %v711 = vadd.f32 %v691, 1e-05
      %v712 = vadd.f32 %v692, 1e-05
      %v713 = vadd.f32 %v693, 1e-05
      %v714 = vadd.f32 %v694, 1e-05
      %v715 = vadd.f32 %v695, 1e-05
      %v716 = vadd.f32 %v696, 1e-05
      %v717 = vrsqrt.pop %v697
      %v718 = vrsqrt.pop %v698
      %v719 = vrsqrt.pop %v699
      %v720 = vrsqrt.pop %v700
      %v721 = vrsqrt.pop %v701
      %v722 = vrsqrt.pop %v702
      %v723 = vrsqrt.pop %v703
      %v724 = vrsqrt.pop %v704
      %v725 = vrsqrt.pop %v705
      %v726 = vrsqrt.pop %v706
      %v727 = vrsqrt.pop %v707
      %v728 = vrsqrt.pop %v708
      %v729 = vrsqrt.pop %v709
      %v730 = vrsqrt.pop %v710
      %v731 = vrsqrt.pop %v711
      %v732 = vrsqrt.pop %v712
      %v733 = vrsqrt.pop %v713
      %v734 = vrsqrt.pop %v714
      %v735 = vrsqrt.pop %v715
      %v736 = vrsqrt.pop %v716
      %v737 = vmul.f32 %v577, %v717
      %v738 = vmul.f32 %v578, %v718
      %v739 = vmul.f32 %v579, %v719
      %v740 = vmul.f32 %v580, %v720
      %v741 = vmul.f32 %v581, %v721
      %v742 = vmul.f32 %v582, %v722
      %v743 = vmul.f32 %v583, %v723
      %v744 = vmul.f32 %v584, %v724
      %v745 = vmul.f32 %v585, %v725
      %v746 = vmul.f32 %v586, %v726
      %v747 = vmul.f32 %v587, %v727
      %v748 = vmul.f32 %v588, %v728
      %v749 = vmul.f32 %v589, %v729
      %v750 = vmul.f32 %v590, %v730
      %v751 = vmul.f32 %v591, %v731
      %v752 = vmul.f32 %v592, %v732
      %v753 = vmul.f32 %v593, %v733
      %v754 = vmul.f32 %v594, %v734
      %v755 = vmul.f32 %v595, %v735
      %v756 = vmul.f32 %v596, %v736
      %v757 = vld [vmem:[%s2] sm:$0x1]
      %v759 = vlaneseq
      %v760 = vshrl.u32 %v759, 7
      %v761 = vsub.s32 0, %v760
      %v762 = vrot.slane %v757, %v761
      %v764 = vmul.f32 %v737, %v762
      %v765 = vmul.f32 %v738, %v762
      %v766 = vmul.f32 %v739, %v762
      %v767 = vmul.f32 %v740, %v762
      %v768 = vmul.f32 %v741, %v762
      %v769 = vmul.f32 %v742, %v762
      %v770 = vmul.f32 %v743, %v762
      %v771 = vmul.f32 %v744, %v762
      %v772 = vmul.f32 %v745, %v762
      %v773 = vmul.f32 %v746, %v762
      %v774 = vmul.f32 %v747, %v762
      %v775 = vmul.f32 %v748, %v762
      %v776 = vmul.f32 %v749, %v762
      %v777 = vmul.f32 %v750, %v762
      %v778 = vmul.f32 %v751, %v762
      %v779 = vmul.f32 %v752, %v762
      %v780 = vmul.f32 %v753, %v762
      %v781 = vmul.f32 %v754, %v762
      %v782 = vmul.f32 %v755, %v762
      %v783 = vmul.f32 %v756, %v762
      %v784 = vld [vmem:[%s3] sm:$0x1]
      %v786 = vlaneseq
      %v787 = vshrl.u32 %v786, 7
      %v788 = vsub.s32 0, %v787
      %v789 = vrot.slane %v784, %v788
      %v791 = vadd.f32 %v764, %v789
      %v792 = vadd.f32 %v765, %v789
      %v793 = vadd.f32 %v766, %v789
      %v794 = vadd.f32 %v767, %v789
      %v795 = vadd.f32 %v768, %v789
      %v796 = vadd.f32 %v769, %v789
      %v797 = vadd.f32 %v770, %v789
      %v798 = vadd.f32 %v771, %v789
      %v799 = vadd.f32 %v772, %v789
      %v800 = vadd.f32 %v773, %v789
      %v801 = vadd.f32 %v774, %v789
      %v802 = vadd.f32 %v775, %v789
      %v803 = vadd.f32 %v776, %v789
      %v804 = vadd.f32 %v777, %v789
      %v805 = vadd.f32 %v778, %v789
      %v806 = vadd.f32 %v779, %v789
      %v807 = vadd.f32 %v780, %v789
      %v808 = vadd.f32 %v781, %v789
      %v809 = vadd.f32 %v782, %v789
      %v810 = vadd.f32 %v783, %v789
      %s811 = smul.u32 %s25, 8
      %v812 = vstv %s811
      %v813 = vadd.s32 %v812, 1
      %v814 = vadd.s32 %v812, 2
      %v815 = vadd.s32 %v812, 3
      %v816 = vadd.s32 %v812, 4
      %v817 = vadd.s32 %v812, 5
      %v818 = vadd.s32 %v812, 6
      %v819 = vadd.s32 %v812, 7
      %v820 = vadd.s32 %v812, 8
      %v821 = vadd.s32 %v812, 9
      %v822 = vlaneseq
      %v823 = vshrl.u32 %v822, 7
      %v824 = vadd.s32 %v823, 8
      %vm825 = vcmp.ge.s32.totalorder %v812, 1
      %vm826 = vcmp.ge.s32.totalorder %v813, 1
      %vm827 = vcmp.ge.s32.totalorder %v814, 1
      %vm828 = vcmp.ge.s32.totalorder %v815, 1
      %vm829 = vcmp.ge.s32.totalorder %v816, 1
      %vm830 = vcmp.ge.s32.totalorder %v817, 1
      %vm831 = vcmp.ge.s32.totalorder %v818, 1
      %vm832 = vcmp.ge.s32.totalorder %v819, 1
      %vm833 = vcmp.ge.s32.totalorder %v820, 1
      %vm834 = vcmp.ge.s32.totalorder %v821, 1
      %vm835 = vcmp.le.s32.totalorder %v812, 8
      %vm836 = vcmp.le.s32.totalorder %v813, 8
      %vm837 = vcmp.le.s32.totalorder %v814, 8
      %vm838 = vcmp.le.s32.totalorder %v815, 8
      %vm839 = vcmp.le.s32.totalorder %v816, 8
      %vm840 = vcmp.le.s32.totalorder %v817, 8
      %vm841 = vcmp.le.s32.totalorder %v818, 8
      %vm842 = vcmp.le.s32.totalorder %v819, 8
      %vm843 = vcmp.le.s32.totalorder %v820, 8
      %vm844 = vcmp.le.s32.totalorder %v821, 8
      %vm845 = vmand %vm825, %vm835
      %vm846 = vmand %vm826, %vm836
      %vm847 = vmand %vm827, %vm837
      %vm848 = vmand %vm828, %vm838
      %vm849 = vmand %vm829, %vm839
      %vm850 = vmand %vm830, %vm840
      %vm851 = vmand %vm831, %vm841
      %vm852 = vmand %vm832, %vm842
      %vm853 = vmand %vm833, %vm843
      %vm854 = vmand %vm834, %vm844
      %vm855 = vcmp.ge.s32.totalorder %v823, 1
      %vm856 = vcmp.ge.s32.totalorder %v824, 1
      %vm857 = vmand %vm845, %vm855
      %vm858 = vmand %vm845, %vm856
      %vm859 = vmand %vm846, %vm855
      %vm860 = vmand %vm846, %vm856
      %vm861 = vmand %vm847, %vm855
      %vm862 = vmand %vm847, %vm856
      %vm863 = vmand %vm848, %vm855
      %vm864 = vmand %vm848, %vm856
      %vm865 = vmand %vm849, %vm855
      %vm866 = vmand %vm849, %vm856
      %vm867 = vmand %vm850, %vm855
      %vm868 = vmand %vm850, %vm856
      %vm869 = vmand %vm851, %vm855
      %vm870 = vmand %vm851, %vm856
      %vm871 = vmand %vm852, %vm855
      %vm872 = vmand %vm852, %vm856
      %vm873 = vmand %vm853, %vm855
      %vm874 = vmand %vm853, %vm856
      %vm875 = vmand %vm854, %vm855
      %vm876 = vmand %vm854, %vm856
      %vm877 = vcmp.le.s32.totalorder %v823, 8
      %vm878 = vcmp.le.s32.totalorder %v824, 8
      %vm879 = vmand %vm857, %vm877
      %vm880 = vmand %vm858, %vm878
      %vm881 = vmand %vm859, %vm877
      %vm882 = vmand %vm860, %vm878
      %vm883 = vmand %vm861, %vm877
      %vm884 = vmand %vm862, %vm878
      %vm885 = vmand %vm863, %vm877
      %vm886 = vmand %vm864, %vm878
      %vm887 = vmand %vm865, %vm877
      %vm888 = vmand %vm866, %vm878
      %vm889 = vmand %vm867, %vm877
      %vm890 = vmand %vm868, %vm878
      %vm891 = vmand %vm869, %vm877
      %vm892 = vmand %vm870, %vm878
      %vm893 = vmand %vm871, %vm877
      %vm894 = vmand %vm872, %vm878
      %vm895 = vmand %vm873, %vm877
      %vm896 = vmand %vm874, %vm878
      %vm897 = vmand %vm875, %vm877
      %vm898 = vmand %vm876, %vm878
      %v899 = vsel %vm879, 1, 0
      %v900 = vsel %vm880, 1, 0
      %v901 = vsel %vm881, 1, 0
      %v902 = vsel %vm882, 1, 0
      %v903 = vsel %vm883, 1, 0
      %v904 = vsel %vm884, 1, 0
      %v905 = vsel %vm885, 1, 0
      %v906 = vsel %vm886, 1, 0
      %v907 = vsel %vm887, 1, 0
      %v908 = vsel %vm888, 1, 0
      %v909 = vsel %vm889, 1, 0
      %v910 = vsel %vm890, 1, 0
      %v911 = vsel %vm891, 1, 0
      %v912 = vsel %vm892, 1, 0
      %v913 = vsel %vm893, 1, 0
      %v914 = vsel %vm894, 1, 0
      %v915 = vsel %vm895, 1, 0
      %v916 = vsel %vm896, 1, 0
      %v917 = vsel %vm897, 1, 0
      %v918 = vsel %vm898, 1, 0
      %vm919 = vcmp.eq.s32.totalorder %v899, 1
      %vm920 = vcmp.eq.s32.totalorder %v900, 1
      %vm921 = vcmp.eq.s32.totalorder %v901, 1
      %vm922 = vcmp.eq.s32.totalorder %v902, 1
      %vm923 = vcmp.eq.s32.totalorder %v903, 1
      %vm924 = vcmp.eq.s32.totalorder %v904, 1
      %vm925 = vcmp.eq.s32.totalorder %v905, 1
      %vm926 = vcmp.eq.s32.totalorder %v906, 1
      %vm927 = vcmp.eq.s32.totalorder %v907, 1
      %vm928 = vcmp.eq.s32.totalorder %v908, 1
      %vm929 = vcmp.eq.s32.totalorder %v909, 1
      %vm930 = vcmp.eq.s32.totalorder %v910, 1
      %vm931 = vcmp.eq.s32.totalorder %v911, 1
      %vm932 = vcmp.eq.s32.totalorder %v912, 1
      %vm933 = vcmp.eq.s32.totalorder %v913, 1
      %vm934 = vcmp.eq.s32.totalorder %v914, 1
      %vm935 = vcmp.eq.s32.totalorder %v915, 1
      %vm936 = vcmp.eq.s32.totalorder %v916, 1
      %vm937 = vcmp.eq.s32.totalorder %v917, 1
      %vm938 = vcmp.eq.s32.totalorder %v918, 1
      %v939 = vsel %vm919, %v791, 0.0
      %v940 = vsel %vm920, %v792, 0.0
      %v941 = vsel %vm921, %v793, 0.0
      %v942 = vsel %vm922, %v794, 0.0
      %v943 = vsel %vm923, %v795, 0.0
      %v944 = vsel %vm924, %v796, 0.0
      %v945 = vsel %vm925, %v797, 0.0
      %v946 = vsel %vm926, %v798, 0.0
      %v947 = vsel %vm927, %v799, 0.0
      %v948 = vsel %vm928, %v800, 0.0
      %v949 = vsel %vm929, %v801, 0.0
      %v950 = vsel %vm930, %v802, 0.0
      %v951 = vsel %vm931, %v803, 0.0
      %v952 = vsel %vm932, %v804, 0.0
      %v953 = vsel %vm933, %v805, 0.0
      %v954 = vsel %vm934, %v806, 0.0
      %v955 = vsel %vm935, %v807, 0.0
      %v956 = vsel %vm936, %v808, 0.0
      %v957 = vsel %vm937, %v809, 0.0
      %v958 = vsel %vm938, %v810, 0.0
      %v979 = vcombine.high %v939, %v939
      %v981 = vunpack.c.l.s4 1983009808
      %v982 = vunpack.c.0.s8 %v981
      %v983 = vlaneseq
      %v984 = vshrl.u32 %v983, 7
      %v985 = vsub.s32 %v982, %v984
      %v986 = vrot.slane %v939, %v985
      %v988 = vunpack.c.l.s4 1983009808
      %v989 = vunpack.c.0.s8 %v988
      %v990 = vlaneseq
      %v991 = vshrl.u32 %v990, 7
      %v992 = vsub.s32 %v989, %v991
      %v993 = vrot.slane %v979, %v992
      %v994 = vcombine.high %v986, %v986
      %v995 = vcombine.high %v993, %v993
      %v997 = vunpack.c.l.s4 1983009808
      %v998 = vunpack.c.0.s8 %v997
      %v999 = vlaneseq
      %v1000 = vshrl.u32 %v999, 7
      %v1001 = vsub.s32 %v998, %v1000
      %v1002 = vrot.slane %v940, %v1001
      %v1003 = vcombine.high %v941, %v941
      %v1005 = vunpack.c.l.s4 1983009808
      %v1006 = vunpack.c.0.s8 %v1005
      %v1007 = vlaneseq
      %v1008 = vshrl.u32 %v1007, 7
      %v1009 = vsub.s32 %v1006, %v1008
      %v1010 = vrot.slane %v941, %v1009
      %v1012 = vunpack.c.l.s4 1983009808
      %v1013 = vunpack.c.0.s8 %v1012
      %v1014 = vlaneseq
      %v1015 = vshrl.u32 %v1014, 7
      %v1016 = vsub.s32 %v1013, %v1015
      %v1017 = vrot.slane %v1003, %v1016
      %v1018 = vcombine.high %v1010, %v1010
      %v1019 = vcombine.high %v1017, %v1017
      %v1021 = vunpack.c.l.s4 1983009808
      %v1022 = vunpack.c.0.s8 %v1021
      %v1023 = vlaneseq
      %v1024 = vshrl.u32 %v1023, 7
      %v1025 = vsub.s32 %v1022, %v1024
      %v1026 = vrot.slane %v942, %v1025
      %v1027 = vcombine.high %v943, %v943
      %v1029 = vunpack.c.l.s4 1983009808
      %v1030 = vunpack.c.0.s8 %v1029
      %v1031 = vlaneseq
      %v1032 = vshrl.u32 %v1031, 7
      %v1033 = vsub.s32 %v1030, %v1032
      %v1034 = vrot.slane %v943, %v1033
      %v1036 = vunpack.c.l.s4 1983009808
      %v1037 = vunpack.c.0.s8 %v1036
      %v1038 = vlaneseq
      %v1039 = vshrl.u32 %v1038, 7
      %v1040 = vsub.s32 %v1037, %v1039
      %v1041 = vrot.slane %v1027, %v1040
      %v1042 = vcombine.high %v1034, %v1034
      %v1043 = vcombine.high %v1041, %v1041
      %v1045 = vunpack.c.l.s4 1983009808
      %v1046 = vunpack.c.0.s8 %v1045
      %v1047 = vlaneseq
      %v1048 = vshrl.u32 %v1047, 7
      %v1049 = vsub.s32 %v1046, %v1048
      %v1050 = vrot.slane %v944, %v1049
      %v1051 = vcombine.high %v945, %v945
      %v1053 = vunpack.c.l.s4 1983009808
      %v1054 = vunpack.c.0.s8 %v1053
      %v1055 = vlaneseq
      %v1056 = vshrl.u32 %v1055, 7
      %v1057 = vsub.s32 %v1054, %v1056
      %v1058 = vrot.slane %v945, %v1057
      %v1060 = vunpack.c.l.s4 1983009808
      %v1061 = vunpack.c.0.s8 %v1060
      %v1062 = vlaneseq
      %v1063 = vshrl.u32 %v1062, 7
      %v1064 = vsub.s32 %v1061, %v1063
      %v1065 = vrot.slane %v1051, %v1064
      %v1066 = vcombine.high %v1058, %v1058
      %v1067 = vcombine.high %v1065, %v1065
      %v1069 = vunpack.c.l.s4 1983009808
      %v1070 = vunpack.c.0.s8 %v1069
      %v1071 = vlaneseq
      %v1072 = vshrl.u32 %v1071, 7
      %v1073 = vsub.s32 %v1070, %v1072
      %v1074 = vrot.slane %v946, %v1073
      %v1075 = vcombine.high %v947, %v947
      %v1077 = vunpack.c.l.s4 1983009808
      %v1078 = vunpack.c.0.s8 %v1077
      %v1079 = vlaneseq
      %v1080 = vshrl.u32 %v1079, 7
      %v1081 = vsub.s32 %v1078, %v1080
      %v1082 = vrot.slane %v947, %v1081
      %v1084 = vunpack.c.l.s4 1983009808
      %v1085 = vunpack.c.0.s8 %v1084
      %v1086 = vlaneseq
      %v1087 = vshrl.u32 %v1086, 7
      %v1088 = vsub.s32 %v1085, %v1087
      %v1089 = vrot.slane %v1075, %v1088
      %v1090 = vcombine.high %v1082, %v1082
      %v1091 = vcombine.high %v1089, %v1089
      %v1093 = vunpack.c.l.s4 1983009808
      %v1094 = vunpack.c.0.s8 %v1093
      %v1095 = vlaneseq
      %v1096 = vshrl.u32 %v1095, 7
      %v1097 = vsub.s32 %v1094, %v1096
      %v1098 = vrot.slane %v948, %v1097
      %v1099 = vcombine.high %v949, %v949
      %v1101 = vunpack.c.l.s4 1983009808
      %v1102 = vunpack.c.0.s8 %v1101
      %v1103 = vlaneseq
      %v1104 = vshrl.u32 %v1103, 7
      %v1105 = vsub.s32 %v1102, %v1104
      %v1106 = vrot.slane %v949, %v1105
      %v1108 = vunpack.c.l.s4 1983009808
      %v1109 = vunpack.c.0.s8 %v1108
      %v1110 = vlaneseq
      %v1111 = vshrl.u32 %v1110, 7
      %v1112 = vsub.s32 %v1109, %v1111
      %v1113 = vrot.slane %v1099, %v1112
      %v1114 = vcombine.high %v1106, %v1106
      %v1115 = vcombine.high %v1113, %v1113
      %v1117 = vunpack.c.l.s4 1983009808
      %v1118 = vunpack.c.0.s8 %v1117
      %v1119 = vlaneseq
      %v1120 = vshrl.u32 %v1119, 7
      %v1121 = vsub.s32 %v1118, %v1120
      %v1122 = vrot.slane %v950, %v1121
      %v1123 = vcombine.high %v951, %v951
      %v1125 = vunpack.c.l.s4 1983009808
      %v1126 = vunpack.c.0.s8 %v1125
      %v1127 = vlaneseq
      %v1128 = vshrl.u32 %v1127, 7
      %v1129 = vsub.s32 %v1126, %v1128
      %v1130 = vrot.slane %v951, %v1129
      %v1132 = vunpack.c.l.s4 1983009808
      %v1133 = vunpack.c.0.s8 %v1132
      %v1134 = vlaneseq
      %v1135 = vshrl.u32 %v1134, 7
      %v1136 = vsub.s32 %v1133, %v1135
      %v1137 = vrot.slane %v1123, %v1136
      %v1138 = vcombine.high %v1130, %v1130
      %v1139 = vcombine.high %v1137, %v1137
      %v1141 = vunpack.c.l.s4 1983009808
      %v1142 = vunpack.c.0.s8 %v1141
      %v1143 = vlaneseq
      %v1144 = vshrl.u32 %v1143, 7
      %v1145 = vsub.s32 %v1142, %v1144
      %v1146 = vrot.slane %v952, %v1145
      %v1147 = vcombine.high %v953, %v953
      %v1149 = vunpack.c.l.s4 1983009808
      %v1150 = vunpack.c.0.s8 %v1149
      %v1151 = vlaneseq
      %v1152 = vshrl.u32 %v1151, 7
      %v1153 = vsub.s32 %v1150, %v1152
      %v1154 = vrot.slane %v953, %v1153
      %v1156 = vunpack.c.l.s4 1983009808
      %v1157 = vunpack.c.0.s8 %v1156
      %v1158 = vlaneseq
      %v1159 = vshrl.u32 %v1158, 7
      %v1160 = vsub.s32 %v1157, %v1159
      %v1161 = vrot.slane %v1147, %v1160
      %v1162 = vcombine.high %v1154, %v1154
      %v1163 = vcombine.high %v1161, %v1161
      %v1165 = vunpack.c.l.s4 1983009808
      %v1166 = vunpack.c.0.s8 %v1165
      %v1167 = vlaneseq
      %v1168 = vshrl.u32 %v1167, 7
      %v1169 = vsub.s32 %v1166, %v1168
      %v1170 = vrot.slane %v954, %v1169
      %v1171 = vcombine.high %v955, %v955
      %v1173 = vunpack.c.l.s4 1983009808
      %v1174 = vunpack.c.0.s8 %v1173
      %v1175 = vlaneseq
      %v1176 = vshrl.u32 %v1175, 7
      %v1177 = vsub.s32 %v1174, %v1176
      %v1178 = vrot.slane %v955, %v1177
      %v1180 = vunpack.c.l.s4 1983009808
      %v1181 = vunpack.c.0.s8 %v1180
      %v1182 = vlaneseq
      %v1183 = vshrl.u32 %v1182, 7
      %v1184 = vsub.s32 %v1181, %v1183
      %v1185 = vrot.slane %v1171, %v1184
      %v1186 = vcombine.high %v1178, %v1178
      %v1187 = vcombine.high %v1185, %v1185
      %v1189 = vunpack.c.l.s4 1983009808
      %v1190 = vunpack.c.0.s8 %v1189
      %v1191 = vlaneseq
      %v1192 = vshrl.u32 %v1191, 7
      %v1193 = vsub.s32 %v1190, %v1192
      %v1194 = vrot.slane %v956, %v1193
      %v1195 = vcombine.high %v957, %v957
      %v1197 = vunpack.c.l.s4 1983009808
      %v1198 = vunpack.c.0.s8 %v1197
      %v1199 = vlaneseq
      %v1200 = vshrl.u32 %v1199, 7
      %v1201 = vsub.s32 %v1198, %v1200
      %v1202 = vrot.slane %v957, %v1201
      %v1204 = vunpack.c.l.s4 1983009808
      %v1205 = vunpack.c.0.s8 %v1204
      %v1206 = vlaneseq
      %v1207 = vshrl.u32 %v1206, 7
      %v1208 = vsub.s32 %v1205, %v1207
      %v1209 = vrot.slane %v1195, %v1208
      %v1210 = vcombine.high %v1202, %v1202
      %v1211 = vcombine.high %v1209, %v1209
      %v1213 = vunpack.c.l.s4 1983009808
      %v1214 = vunpack.c.0.s8 %v1213
      %v1215 = vlaneseq
      %v1216 = vshrl.u32 %v1215, 7
      %v1217 = vsub.s32 %v1214, %v1216
      %v1218 = vrot.slane %v958, %v1217
      %v1219 = vcombine.low %v986, %v994
      %v1220 = vcombine.low %v993, %v995
      %v1222 = vunpack.c.l.s4 1983009808
      %v1223 = vunpack.c.0.s8 %v1222
      %v1224 = vlaneseq
      %v1225 = vshrl.u32 %v1224, 7
      %v1226 = vsub.s32 %v1223, %v1225
      %v1227 = vrot.slane %v1219, %v1226
      %v1229 = vunpack.c.l.s4 1983009808
      %v1230 = vunpack.c.0.s8 %v1229
      %v1231 = vlaneseq
      %v1232 = vshrl.u32 %v1231, 7
      %v1233 = vsub.s32 %v1230, %v1232
      %v1234 = vrot.slane %v1220, %v1233
      %v1235 = vcombine.low %v1227, %v1234
      %v1236 = vcombine.low %v1002, %v1010
      %v1237 = vcombine.low %v1018, %v1017
      %v1239 = vunpack.c.l.s4 1983009808
      %v1240 = vunpack.c.0.s8 %v1239
      %v1241 = vlaneseq
      %v1242 = vshrl.u32 %v1241, 7
      %v1243 = vsub.s32 %v1240, %v1242
      %v1244 = vrot.slane %v1236, %v1243
      %v1246 = vunpack.c.l.s4 1983009808
      %v1247 = vunpack.c.0.s8 %v1246
      %v1248 = vlaneseq
      %v1249 = vshrl.u32 %v1248, 7
      %v1250 = vsub.s32 %v1247, %v1249
      %v1251 = vrot.slane %v1237, %v1250
      %v1252 = vcombine.low %v1244, %v1251
      %v1253 = vcombine.low %v1019, %v1026
      %v1254 = vcombine.low %v1034, %v1042
      %v1256 = vunpack.c.l.s4 1983009808
      %v1257 = vunpack.c.0.s8 %v1256
      %v1258 = vlaneseq
      %v1259 = vshrl.u32 %v1258, 7
      %v1260 = vsub.s32 %v1257, %v1259
      %v1261 = vrot.slane %v1253, %v1260
      %v1263 = vunpack.c.l.s4 1983009808
      %v1264 = vunpack.c.0.s8 %v1263
      %v1265 = vlaneseq
      %v1266 = vshrl.u32 %v1265, 7
      %v1267 = vsub.s32 %v1264, %v1266
      %v1268 = vrot.slane %v1254, %v1267
      %v1269 = vcombine.low %v1261, %v1268
      %v1270 = vcombine.low %v1041, %v1043
      %v1271 = vcombine.low %v1050, %v1058
      %v1273 = vunpack.c.l.s4 1983009808
      %v1274 = vunpack.c.0.s8 %v1273
      %v1275 = vlaneseq
      %v1276 = vshrl.u32 %v1275, 7
      %v1277 = vsub.s32 %v1274, %v1276
      %v1278 = vrot.slane %v1270, %v1277
      %v1280 = vunpack.c.l.s4 1983009808
      %v1281 = vunpack.c.0.s8 %v1280
      %v1282 = vlaneseq
      %v1283 = vshrl.u32 %v1282, 7
      %v1284 = vsub.s32 %v1281, %v1283
      %v1285 = vrot.slane %v1271, %v1284
      %v1286 = vcombine.low %v1278, %v1285
      %v1287 = vcombine.low %v1066, %v1065
      %v1288 = vcombine.low %v1067, %v1074
      %v1290 = vunpack.c.l.s4 1983009808
      %v1291 = vunpack.c.0.s8 %v1290
      %v1292 = vlaneseq
      %v1293 = vshrl.u32 %v1292, 7
      %v1294 = vsub.s32 %v1291, %v1293
      %v1295 = vrot.slane %v1287, %v1294
      %v1297 = vunpack.c.l.s4 1983009808
      %v1298 = vunpack.c.0.s8 %v1297
      %v1299 = vlaneseq
      %v1300 = vshrl.u32 %v1299, 7
      %v1301 = vsub.s32 %v1298, %v1300
      %v1302 = vrot.slane %v1288, %v1301
      %v1303 = vcombine.low %v1295, %v1302
      %v1304 = vcombine.low %v1082, %v1090
      %v1305 = vcombine.low %v1089, %v1091
      %v1307 = vunpack.c.l.s4 1983009808
      %v1308 = vunpack.c.0.s8 %v1307
      %v1309 = vlaneseq
      %v1310 = vshrl.u32 %v1309, 7
      %v1311 = vsub.s32 %v1308, %v1310
      %v1312 = vrot.slane %v1304, %v1311
      %v1314 = vunpack.c.l.s4 1983009808
      %v1315 = vunpack.c.0.s8 %v1314
      %v1316 = vlaneseq
      %v1317 = vshrl.u32 %v1316, 7
      %v1318 = vsub.s32 %v1315, %v1317
      %v1319 = vrot.slane %v1305, %v1318
      %v1320 = vcombine.low %v1312, %v1319
      %v1321 = vcombine.low %v1098, %v1106
      %v1322 = vcombine.low %v1114, %v1113
      %v1324 = vunpack.c.l.s4 1983009808
      %v1325 = vunpack.c.0.s8 %v1324
      %v1326 = vlaneseq
      %v1327 = vshrl.u32 %v1326, 7
      %v1328 = vsub.s32 %v1325, %v1327
      %v1329 = vrot.slane %v1321, %v1328
      %v1331 = vunpack.c.l.s4 1983009808
      %v1332 = vunpack.c.0.s8 %v1331
      %v1333 = vlaneseq
      %v1334 = vshrl.u32 %v1333, 7
      %v1335 = vsub.s32 %v1332, %v1334
      %v1336 = vrot.slane %v1322, %v1335
      %v1337 = vcombine.low %v1329, %v1336
      %v1338 = vcombine.low %v1115, %v1122
      %v1339 = vcombine.low %v1130, %v1138
      %v1341 = vunpack.c.l.s4 1983009808
      %v1342 = vunpack.c.0.s8 %v1341
      %v1343 = vlaneseq
      %v1344 = vshrl.u32 %v1343, 7
      %v1345 = vsub.s32 %v1342, %v1344
      %v1346 = vrot.slane %v1338, %v1345
      %v1348 = vunpack.c.l.s4 1983009808
      %v1349 = vunpack.c.0.s8 %v1348
      %v1350 = vlaneseq
      %v1351 = vshrl.u32 %v1350, 7
      %v1352 = vsub.s32 %v1349, %v1351
      %v1353 = vrot.slane %v1339, %v1352
      %v1354 = vcombine.low %v1346, %v1353
      %v1355 = vcombine.low %v1137, %v1139
      %v1356 = vcombine.low %v1146, %v1154
      %v1358 = vunpack.c.l.s4 1983009808
      %v1359 = vunpack.c.0.s8 %v1358
      %v1360 = vlaneseq
      %v1361 = vshrl.u32 %v1360, 7
      %v1362 = vsub.s32 %v1359, %v1361
      %v1363 = vrot.slane %v1355, %v1362
      %v1365 = vunpack.c.l.s4 1983009808
      %v1366 = vunpack.c.0.s8 %v1365
      %v1367 = vlaneseq
      %v1368 = vshrl.u32 %v1367, 7
      %v1369 = vsub.s32 %v1366, %v1368
      %v1370 = vrot.slane %v1356, %v1369
      %v1371 = vcombine.low %v1363, %v1370
      %v1372 = vcombine.low %v1162, %v1161
      %v1373 = vcombine.low %v1163, %v1170
      %v1375 = vunpack.c.l.s4 1983009808
      %v1376 = vunpack.c.0.s8 %v1375
      %v1377 = vlaneseq
      %v1378 = vshrl.u32 %v1377, 7
      %v1379 = vsub.s32 %v1376, %v1378
      %v1380 = vrot.slane %v1372, %v1379
      %v1382 = vunpack.c.l.s4 1983009808
      %v1383 = vunpack.c.0.s8 %v1382
      %v1384 = vlaneseq
      %v1385 = vshrl.u32 %v1384, 7
      %v1386 = vsub.s32 %v1383, %v1385
      %v1387 = vrot.slane %v1373, %v1386
      %v1388 = vcombine.low %v1380, %v1387
      %v1389 = vcombine.low %v1178, %v1186
      %v1390 = vcombine.low %v1185, %v1187
      %v1392 = vunpack.c.l.s4 1983009808
      %v1393 = vunpack.c.0.s8 %v1392
      %v1394 = vlaneseq
      %v1395 = vshrl.u32 %v1394, 7
      %v1396 = vsub.s32 %v1393, %v1395
      %v1397 = vrot.slane %v1389, %v1396
      %v1399 = vunpack.c.l.s4 1983009808
      %v1400 = vunpack.c.0.s8 %v1399
      %v1401 = vlaneseq
      %v1402 = vshrl.u32 %v1401, 7
      %v1403 = vsub.s32 %v1400, %v1402
      %v1404 = vrot.slane %v1390, %v1403
      %v1405 = vcombine.low %v1397, %v1404
      %v1406 = vcombine.low %v1194, %v1202
      %v1407 = vcombine.low %v1210, %v1209
      %v1409 = vunpack.c.l.s4 1983009808
      %v1410 = vunpack.c.0.s8 %v1409
      %v1411 = vlaneseq
      %v1412 = vshrl.u32 %v1411, 7
      %v1413 = vsub.s32 %v1410, %v1412
      %v1414 = vrot.slane %v1406, %v1413
      %v1416 = vunpack.c.l.s4 1983009808
      %v1417 = vunpack.c.0.s8 %v1416
      %v1418 = vlaneseq
      %v1419 = vshrl.u32 %v1418, 7
      %v1420 = vsub.s32 %v1417, %v1419
      %v1421 = vrot.slane %v1407, %v1420
      %v1422 = vcombine.low %v1414, %v1421
      %v1423 = vcombine.low %v1211, %v1218
      %v1425 = vunpack.c.l.s4 1983009808
      %v1426 = vunpack.c.0.s8 %v1425
      %v1427 = vlaneseq
      %v1428 = vshrl.u32 %v1427, 7
      %v1429 = vsub.s32 %v1426, %v1428
      %v1430 = vrot.slane %v1423, %v1429
      %v1444 = vpack.c.bf16 %v1252, %v1235
      %v1445 = vpack.c.bf16 %v1286, %v1269
      %v1446 = vpack.c.bf16 %v1320, %v1303
      %v1447 = vpack.c.bf16 %v1354, %v1337
      %v1448 = vpack.c.bf16 %v1388, %v1371
      %v1449 = vpack.c.bf16 %v1422, %v1405
      %v1450 = vpack.c.bf16 %v1430, %v1430
      %v1451 = vld [vmem:[%s4] sm:$0xf]
      %v1452 = vld [vmem:[%s4 + $0x4] sm:$0xf]
      %v1453 = vld [vmem:[%s4 + $0x8] sm:$0xf]
      %v1454 = vld [vmem:[%s4 + $0xc] sm:$0xf]
      %v1459 = vunpack.c.l.b16 %v1451
      %v1460 = vunpack.c.l.b16 %v1452
      %v1461 = vunpack.c.l.b16 %v1453
      %v1462 = vunpack.c.l.b16 %v1454
      %v1463 = vpack.c.b16 %v1460, %v1459
      %v1464 = vpack.c.b16 %v1462, %v1461
      %v1468 = vsel %vm494, %v1444, 0
      %v1471 = vsel %vm494, %v1445, 0
      %v1474 = vsel %vm494, %v1446, 0
      %v1477 = vsel %vm494, %v1447, 0
      %v1480 = vsel %vm494, %v1448, 0
      %v1483 = vsel %vm494, %v1449, 0
      %v1486 = vsel %vm494, %v1450, 0
      %1488 = vmatprep.subr.bf16.mxu0 0
      %1489 = vmatpush1.bf16.msra.mxu0 %v1463
      %1490 = vmatprep.subr.bf16.mxu0 0
      %1491 = vmatpush1.bf16.msra.mxu0 %v1464
      %1492 = vmatprep.subr.bf16.mxu0 0
      %1493 = vmatpush1.bf16.msra.mxu0 0
      %1494 = vmatprep.subr.bf16.mxu0 0
      %1495 = vmatpush1.bf16.msra.mxu0 0
      %1496 = vmatprep.subr.bf16.mxu0 0
      %1497 = vmatpush1.bf16.msra.mxu0 0
      %1498 = vmatprep.subr.bf16.mxu0 0
      %1499 = vmatpush1.bf16.msra.mxu0 0
      %1500 = vmatprep.subr.bf16.mxu0 0
      %1501 = vmatpush1.bf16.msra.mxu0 0
      %1502 = vmatprep.subr.bf16.mxu0 0
      %1503 = vmatpush1.bf16.msra.mxu0 0
      %1504 = vmatprep.subr.bf16.mxu0 0
      %1505 = vmatpush1.bf16.msra.mxu0 0
      %1506 = vmatprep.subr.bf16.mxu0 0
      %1507 = vmatpush1.bf16.msra.mxu0 0
      %1508 = vmatprep.subr.bf16.mxu0 0
      %1509 = vmatpush1.bf16.msra.mxu0 0
      %1510 = vmatprep.subr.bf16.mxu0 0
      %1511 = vmatpush1.bf16.msra.mxu0 0
      %1512 = vmatprep.subr.bf16.mxu0 0
      %1513 = vmatpush1.bf16.msra.mxu0 0
      %1514 = vmatprep.subr.bf16.mxu0 0
      %1515 = vmatpush1.bf16.msra.mxu0 0
      %1516 = vmatprep.subr.bf16.mxu0 0
      %1517 = vmatpush1.bf16.msra.mxu0 0
      %1518 = vmatprep.subr.bf16.mxu0 0
      %1519 = vmatpush1.bf16.msra.mxu0 0
      %1520 = vmatprep.mubr.bf16.mxu0 0
      %1521 = vmatmul.mubr.bf16.gmra.mrb[0].mxu0 %v1468
      %v1522 = vpop.f32.mrb[0].mxu0
      %v1523 = vadd.f32 0.0, %v1522
      %v1524 = vpop.f32.mrb[0].mxu0
      %v1525 = vpop.f32.mrb[0].mxu0
      %v1526 = vadd.f32 0.0, %v1525
      %v1527 = vpop.f32.mrb[0].mxu0
      %1528 = vmatprep.mubr.bf16.mxu0 0
      %1529 = vmatmul.mubr.bf16.gmra.mrb[0].mxu0 %v1471
      %v1530 = vpop.f32.mrb[0].mxu0
      %v1531 = vadd.f32 0.0, %v1530
      %v1532 = vpop.f32.mrb[0].mxu0
      %v1533 = vpop.f32.mrb[0].mxu0
      %v1534 = vadd.f32 0.0, %v1533
      %v1535 = vpop.f32.mrb[0].mxu0
      %1536 = vmatprep.mubr.bf16.mxu0 0
      %1537 = vmatmul.mubr.bf16.gmra.mrb[0].mxu0 %v1474
      %v1538 = vpop.f32.mrb[0].mxu0
      %v1539 = vadd.f32 0.0, %v1538
      %v1540 = vpop.f32.mrb[0].mxu0
      %v1541 = vpop.f32.mrb[0].mxu0
      %v1542 = vadd.f32 0.0, %v1541
      %v1543 = vpop.f32.mrb[0].mxu0
      %1544 = vmatprep.mubr.bf16.mxu0 0
      %1545 = vmatmul.mubr.bf16.gmra.mrb[0].mxu0 %v1477
      %v1546 = vpop.f32.mrb[0].mxu0
      %v1547 = vadd.f32 0.0, %v1546
      %v1548 = vpop.f32.mrb[0].mxu0
      %v1549 = vpop.f32.mrb[0].mxu0
      %v1550 = vadd.f32 0.0, %v1549
      %v1551 = vpop.f32.mrb[0].mxu0
      %1552 = vmatprep.mubr.bf16.mxu0 0
      %1553 = vmatmul.mubr.bf16.gmra.mrb[0].mxu0 %v1480
      %v1554 = vpop.f32.mrb[0].mxu0
      %v1555 = vadd.f32 0.0, %v1554
      %v1556 = vpop.f32.mrb[0].mxu0
      %v1557 = vpop.f32.mrb[0].mxu0
      %v1558 = vadd.f32 0.0, %v1557
      %v1559 = vpop.f32.mrb[0].mxu0
      %1560 = vmatprep.mubr.bf16.mxu0 0
      %1561 = vmatmul.mubr.bf16.gmra.mrb[0].mxu0 %v1483
      %v1562 = vpop.f32.mrb[0].mxu0
      %v1563 = vadd.f32 0.0, %v1562
      %v1564 = vpop.f32.mrb[0].mxu0
      %v1565 = vpop.f32.mrb[0].mxu0
      %v1566 = vadd.f32 0.0, %v1565
      %v1567 = vpop.f32.mrb[0].mxu0
      %1568 = vmatprep.mubr.bf16.mxu0 0
      %1569 = vmatmul.mubr.bf16.gmra.mrb[0].mxu0 %v1486
      %v1570 = vpop.f32.mrb[0].mxu0
      %v1571 = vadd.f32 0.0, %v1570
      %v1572 = vpop.f32.mrb[0].mxu0
      %v1573 = vpop.f32.mrb[0].mxu0
      %v1574 = vpop.f32.mrb[0].mxu0
      %1575 = vdwg.mxu0
      %v1576 = vld [vmem:[%s5] sm:$0xf]
      %v1577 = vld [vmem:[%s5 + $0x4] sm:$0xf]
      %v1578 = vld [vmem:[%s5 + $0x8] sm:$0xf]
      %v1579 = vld [vmem:[%s5 + $0xc] sm:$0xf]
      %v1584 = vunpack.c.l.b16 %v1576
      %v1585 = vunpack.c.l.b16 %v1577
      %v1586 = vunpack.c.l.b16 %v1578
      %v1587 = vunpack.c.l.b16 %v1579
      %v1588 = vpack.c.b16 %v1585, %v1584
      %v1589 = vpack.c.b16 %v1587, %v1586
      %1592 = vmatprep.subr.bf16.mxu0 0
      %1593 = vmatpush1.bf16.msra.mxu0 %v1588
      %1594 = vmatprep.subr.bf16.mxu0 0
      %1595 = vmatpush1.bf16.msra.mxu0 %v1589
      %1596 = vmatprep.subr.bf16.mxu0 0
      %1597 = vmatpush1.bf16.msra.mxu0 0
      %1598 = vmatprep.subr.bf16.mxu0 0
      %1599 = vmatpush1.bf16.msra.mxu0 0
      %1600 = vmatprep.subr.bf16.mxu0 0
      %1601 = vmatpush1.bf16.msra.mxu0 0
      %1602 = vmatprep.subr.bf16.mxu0 0
      %1603 = vmatpush1.bf16.msra.mxu0 0
      %1604 = vmatprep.subr.bf16.mxu0 0
      %1605 = vmatpush1.bf16.msra.mxu0 0
      %1606 = vmatprep.subr.bf16.mxu0 0
      %1607 = vmatpush1.bf16.msra.mxu0 0
      %1608 = vmatprep.subr.bf16.mxu0 0
      %1609 = vmatpush1.bf16.msra.mxu0 0
      %1610 = vmatprep.subr.bf16.mxu0 0
      %1611 = vmatpush1.bf16.msra.mxu0 0
      %1612 = vmatprep.subr.bf16.mxu0 0
      %1613 = vmatpush1.bf16.msra.mxu0 0
      %1614 = vmatprep.subr.bf16.mxu0 0
      %1615 = vmatpush1.bf16.msra.mxu0 0
      %1616 = vmatprep.subr.bf16.mxu0 0
      %1617 = vmatpush1.bf16.msra.mxu0 0
      %1618 = vmatprep.subr.bf16.mxu0 0
      %1619 = vmatpush1.bf16.msra.mxu0 0
      %1620 = vmatprep.subr.bf16.mxu0 0
      %1621 = vmatpush1.bf16.msra.mxu0 0
      %1622 = vmatprep.subr.bf16.mxu0 0
      %1623 = vmatpush1.bf16.msra.mxu0 0
      %1624 = vmatprep.mubr.bf16.mxu0 0
      %1625 = vmatmul.mubr.bf16.gmra.mrb[0].mxu0 %v1468
      %v1626 = vpop.f32.mrb[0].mxu0
      %v1627 = vadd.f32 0.0, %v1626
      %v1628 = vpop.f32.mrb[0].mxu0
      %v1629 = vpop.f32.mrb[0].mxu0
      %v1630 = vadd.f32 0.0, %v1629
      %v1631 = vpop.f32.mrb[0].mxu0
      %1632 = vmatprep.mubr.bf16.mxu0 0
      %1633 = vmatmul.mubr.bf16.gmra.mrb[0].mxu0 %v1471
      %v1634 = vpop.f32.mrb[0].mxu0
      %v1635 = vadd.f32 0.0, %v1634
      %v1636 = vpop.f32.mrb[0].mxu0
      %v1637 = vpop.f32.mrb[0].mxu0
      %v1638 = vadd.f32 0.0, %v1637
      %v1639 = vpop.f32.mrb[0].mxu0
      %1640 = vmatprep.mubr.bf16.mxu0 0
      %1641 = vmatmul.mubr.bf16.gmra.mrb[0].mxu0 %v1474
      %v1642 = vpop.f32.mrb[0].mxu0
      %v1643 = vadd.f32 0.0, %v1642
      %v1644 = vpop.f32.mrb[0].mxu0
      %v1645 = vpop.f32.mrb[0].mxu0
      %v1646 = vadd.f32 0.0, %v1645
      %v1647 = vpop.f32.mrb[0].mxu0
      %1648 = vmatprep.mubr.bf16.mxu0 0
      %1649 = vmatmul.mubr.bf16.gmra.mrb[0].mxu0 %v1477
      %v1650 = vpop.f32.mrb[0].mxu0
      %v1651 = vadd.f32 0.0, %v1650
      %v1652 = vpop.f32.mrb[0].mxu0
      %v1653 = vpop.f32.mrb[0].mxu0
      %v1654 = vadd.f32 0.0, %v1653
      %v1655 = vpop.f32.mrb[0].mxu0
      %1656 = vmatprep.mubr.bf16.mxu0 0
      %1657 = vmatmul.mubr.bf16.gmra.mrb[0].mxu0 %v1480
      %v1658 = vpop.f32.mrb[0].mxu0
      %v1659 = vadd.f32 0.0, %v1658
      %v1660 = vpop.f32.mrb[0].mxu0
      %v1661 = vpop.f32.mrb[0].mxu0
      %v1662 = vadd.f32 0.0, %v1661
      %v1663 = vpop.f32.mrb[0].mxu0
      %1664 = vmatprep.mubr.bf16.mxu0 0
      %1665 = vmatmul.mubr.bf16.gmra.mrb[0].mxu0 %v1483
      %v1666 = vpop.f32.mrb[0].mxu0
      %v1667 = vadd.f32 0.0, %v1666
      %v1668 = vpop.f32.mrb[0].mxu0
      %v1669 = vpop.f32.mrb[0].mxu0
      %v1670 = vadd.f32 0.0, %v1669
      %v1671 = vpop.f32.mrb[0].mxu0
      %1672 = vmatprep.mubr.bf16.mxu0 0
      %1673 = vmatmul.mubr.bf16.gmra.mrb[0].mxu0 %v1486
      %v1674 = vpop.f32.mrb[0].mxu0
      %v1675 = vadd.f32 0.0, %v1674
      %v1676 = vpop.f32.mrb[0].mxu0
      %v1677 = vpop.f32.mrb[0].mxu0
      %v1678 = vpop.f32.mrb[0].mxu0
      %1679 = vdwg.mxu0
      %v1693 = vcombine.high %v1523, %v1523
      %v1695 = vunpack.c.l.s4 1983009808
      %v1696 = vunpack.c.0.s8 %v1695
      %v1697 = vlaneseq
      %v1698 = vshrl.u32 %v1697, 7
      %v1699 = vsub.s32 %v1696, %v1698
      %v1700 = vrot.slane %v1523, %v1699
      %v1702 = vunpack.c.l.s4 1983009808
      %v1703 = vunpack.c.0.s8 %v1702
      %v1704 = vlaneseq
      %v1705 = vshrl.u32 %v1704, 7
      %v1706 = vsub.s32 %v1703, %v1705
      %v1707 = vrot.slane %v1693, %v1706
      %v1708 = vcombine.high %v1700, %v1700
      %v1709 = vcombine.high %v1707, %v1707
      %v1710 = vcombine.high %v1526, %v1526
      %v1712 = vunpack.c.l.s4 1983009808
      %v1713 = vunpack.c.0.s8 %v1712
      %v1714 = vlaneseq
      %v1715 = vshrl.u32 %v1714, 7
      %v1716 = vsub.s32 %v1713, %v1715
      %v1717 = vrot.slane %v1526, %v1716
      %v1719 = vunpack.c.l.s4 1983009808
      %v1720 = vunpack.c.0.s8 %v1719
      %v1721 = vlaneseq
      %v1722 = vshrl.u32 %v1721, 7
      %v1723 = vsub.s32 %v1720, %v1722
      %v1724 = vrot.slane %v1710, %v1723
      %v1725 = vcombine.high %v1717, %v1717
      %v1726 = vcombine.high %v1724, %v1724
      %v1727 = vcombine.high %v1531, %v1531
      %v1729 = vunpack.c.l.s4 1983009808
      %v1730 = vunpack.c.0.s8 %v1729
      %v1731 = vlaneseq
      %v1732 = vshrl.u32 %v1731, 7
      %v1733 = vsub.s32 %v1730, %v1732
      %v1734 = vrot.slane %v1531, %v1733
      %v1736 = vunpack.c.l.s4 1983009808
      %v1737 = vunpack.c.0.s8 %v1736
      %v1738 = vlaneseq
      %v1739 = vshrl.u32 %v1738, 7
      %v1740 = vsub.s32 %v1737, %v1739
      %v1741 = vrot.slane %v1727, %v1740
      %v1742 = vcombine.high %v1734, %v1734
      %v1743 = vcombine.high %v1741, %v1741
      %v1744 = vcombine.high %v1534, %v1534
      %v1746 = vunpack.c.l.s4 1983009808
      %v1747 = vunpack.c.0.s8 %v1746
      %v1748 = vlaneseq
      %v1749 = vshrl.u32 %v1748, 7
      %v1750 = vsub.s32 %v1747, %v1749
      %v1751 = vrot.slane %v1534, %v1750
      %v1753 = vunpack.c.l.s4 1983009808
      %v1754 = vunpack.c.0.s8 %v1753
      %v1755 = vlaneseq
      %v1756 = vshrl.u32 %v1755, 7
      %v1757 = vsub.s32 %v1754, %v1756
      %v1758 = vrot.slane %v1744, %v1757
      %v1759 = vcombine.high %v1751, %v1751
      %v1760 = vcombine.high %v1758, %v1758
      %v1761 = vcombine.high %v1539, %v1539
      %v1763 = vunpack.c.l.s4 1983009808
      %v1764 = vunpack.c.0.s8 %v1763
      %v1765 = vlaneseq
      %v1766 = vshrl.u32 %v1765, 7
      %v1767 = vsub.s32 %v1764, %v1766
      %v1768 = vrot.slane %v1539, %v1767
      %v1770 = vunpack.c.l.s4 1983009808
      %v1771 = vunpack.c.0.s8 %v1770
      %v1772 = vlaneseq
      %v1773 = vshrl.u32 %v1772, 7
      %v1774 = vsub.s32 %v1771, %v1773
      %v1775 = vrot.slane %v1761, %v1774
      %v1776 = vcombine.high %v1768, %v1768
      %v1777 = vcombine.high %v1775, %v1775
      %v1778 = vcombine.high %v1542, %v1542
      %v1780 = vunpack.c.l.s4 1983009808
      %v1781 = vunpack.c.0.s8 %v1780
      %v1782 = vlaneseq
      %v1783 = vshrl.u32 %v1782, 7
      %v1784 = vsub.s32 %v1781, %v1783
      %v1785 = vrot.slane %v1542, %v1784
      %v1787 = vunpack.c.l.s4 1983009808
      %v1788 = vunpack.c.0.s8 %v1787
      %v1789 = vlaneseq
      %v1790 = vshrl.u32 %v1789, 7
      %v1791 = vsub.s32 %v1788, %v1790
      %v1792 = vrot.slane %v1778, %v1791
      %v1793 = vcombine.high %v1785, %v1785
      %v1794 = vcombine.high %v1792, %v1792
      %v1795 = vcombine.high %v1547, %v1547
      %v1797 = vunpack.c.l.s4 1983009808
      %v1798 = vunpack.c.0.s8 %v1797
      %v1799 = vlaneseq
      %v1800 = vshrl.u32 %v1799, 7
      %v1801 = vsub.s32 %v1798, %v1800
      %v1802 = vrot.slane %v1547, %v1801
      %v1804 = vunpack.c.l.s4 1983009808
      %v1805 = vunpack.c.0.s8 %v1804
      %v1806 = vlaneseq
      %v1807 = vshrl.u32 %v1806, 7
      %v1808 = vsub.s32 %v1805, %v1807
      %v1809 = vrot.slane %v1795, %v1808
      %v1810 = vcombine.high %v1802, %v1802
      %v1811 = vcombine.high %v1809, %v1809
      %v1812 = vcombine.high %v1550, %v1550
      %v1814 = vunpack.c.l.s4 1983009808
      %v1815 = vunpack.c.0.s8 %v1814
      %v1816 = vlaneseq
      %v1817 = vshrl.u32 %v1816, 7
      %v1818 = vsub.s32 %v1815, %v1817
      %v1819 = vrot.slane %v1550, %v1818
      %v1821 = vunpack.c.l.s4 1983009808
      %v1822 = vunpack.c.0.s8 %v1821
      %v1823 = vlaneseq
      %v1824 = vshrl.u32 %v1823, 7
      %v1825 = vsub.s32 %v1822, %v1824
      %v1826 = vrot.slane %v1812, %v1825
      %v1827 = vcombine.high %v1819, %v1819
      %v1828 = vcombine.high %v1826, %v1826
      %v1829 = vcombine.high %v1555, %v1555
      %v1831 = vunpack.c.l.s4 1983009808
      %v1832 = vunpack.c.0.s8 %v1831
      %v1833 = vlaneseq
      %v1834 = vshrl.u32 %v1833, 7
      %v1835 = vsub.s32 %v1832, %v1834
      %v1836 = vrot.slane %v1555, %v1835
      %v1838 = vunpack.c.l.s4 1983009808
      %v1839 = vunpack.c.0.s8 %v1838
      %v1840 = vlaneseq
      %v1841 = vshrl.u32 %v1840, 7
      %v1842 = vsub.s32 %v1839, %v1841
      %v1843 = vrot.slane %v1829, %v1842
      %v1844 = vcombine.high %v1836, %v1836
      %v1845 = vcombine.high %v1843, %v1843
      %v1846 = vcombine.high %v1558, %v1558
      %v1848 = vunpack.c.l.s4 1983009808
      %v1849 = vunpack.c.0.s8 %v1848
      %v1850 = vlaneseq
      %v1851 = vshrl.u32 %v1850, 7
      %v1852 = vsub.s32 %v1849, %v1851
      %v1853 = vrot.slane %v1558, %v1852
      %v1855 = vunpack.c.l.s4 1983009808
      %v1856 = vunpack.c.0.s8 %v1855
      %v1857 = vlaneseq
      %v1858 = vshrl.u32 %v1857, 7
      %v1859 = vsub.s32 %v1856, %v1858
      %v1860 = vrot.slane %v1846, %v1859
      %v1861 = vcombine.high %v1853, %v1853
      %v1862 = vcombine.high %v1860, %v1860
      %v1863 = vcombine.high %v1563, %v1563
      %v1865 = vunpack.c.l.s4 1983009808
      %v1866 = vunpack.c.0.s8 %v1865
      %v1867 = vlaneseq
      %v1868 = vshrl.u32 %v1867, 7
      %v1869 = vsub.s32 %v1866, %v1868
      %v1870 = vrot.slane %v1563, %v1869
      %v1872 = vunpack.c.l.s4 1983009808
      %v1873 = vunpack.c.0.s8 %v1872
      %v1874 = vlaneseq
      %v1875 = vshrl.u32 %v1874, 7
      %v1876 = vsub.s32 %v1873, %v1875
      %v1877 = vrot.slane %v1863, %v1876
      %v1878 = vcombine.high %v1870, %v1870
      %v1879 = vcombine.high %v1877, %v1877
      %v1880 = vcombine.high %v1566, %v1566
      %v1882 = vunpack.c.l.s4 1983009808
      %v1883 = vunpack.c.0.s8 %v1882
      %v1884 = vlaneseq
      %v1885 = vshrl.u32 %v1884, 7
      %v1886 = vsub.s32 %v1883, %v1885
      %v1887 = vrot.slane %v1566, %v1886
      %v1889 = vunpack.c.l.s4 1983009808
      %v1890 = vunpack.c.0.s8 %v1889
      %v1891 = vlaneseq
      %v1892 = vshrl.u32 %v1891, 7
      %v1893 = vsub.s32 %v1890, %v1892
      %v1894 = vrot.slane %v1880, %v1893
      %v1895 = vcombine.high %v1887, %v1887
      %v1896 = vcombine.high %v1894, %v1894
      %v1898 = vunpack.c.l.s4 1983009808
      %v1899 = vunpack.c.0.s8 %v1898
      %v1900 = vlaneseq
      %v1901 = vshrl.u32 %v1900, 7
      %v1902 = vsub.s32 %v1899, %v1901
      %v1903 = vrot.slane %v1571, %v1902
      %v1904 = vcombine.high %v1903, %v1903
      %v1968 = vcombine.high %v1627, %v1627
      %v1970 = vunpack.c.l.s4 1983009808
      %v1971 = vunpack.c.0.s8 %v1970
      %v1972 = vlaneseq
      %v1973 = vshrl.u32 %v1972, 7
      %v1974 = vsub.s32 %v1971, %v1973
      %v1975 = vrot.slane %v1627, %v1974
      %v1977 = vunpack.c.l.s4 1983009808
      %v1978 = vunpack.c.0.s8 %v1977
      %v1979 = vlaneseq
      %v1980 = vshrl.u32 %v1979, 7
      %v1981 = vsub.s32 %v1978, %v1980
      %v1982 = vrot.slane %v1968, %v1981
      %v1983 = vcombine.high %v1975, %v1975
      %v1984 = vcombine.high %v1982, %v1982
      %v1985 = vcombine.high %v1630, %v1630
      %v1987 = vunpack.c.l.s4 1983009808
      %v1988 = vunpack.c.0.s8 %v1987
      %v1989 = vlaneseq
      %v1990 = vshrl.u32 %v1989, 7
      %v1991 = vsub.s32 %v1988, %v1990
      %v1992 = vrot.slane %v1630, %v1991
      %v1994 = vunpack.c.l.s4 1983009808
      %v1995 = vunpack.c.0.s8 %v1994
      %v1996 = vlaneseq
      %v1997 = vshrl.u32 %v1996, 7
      %v1998 = vsub.s32 %v1995, %v1997
      %v1999 = vrot.slane %v1985, %v1998
      %v2000 = vcombine.high %v1992, %v1992
      %v2001 = vcombine.high %v1999, %v1999
      %v2002 = vcombine.high %v1635, %v1635
      %v2004 = vunpack.c.l.s4 1983009808
      %v2005 = vunpack.c.0.s8 %v2004
      %v2006 = vlaneseq
      %v2007 = vshrl.u32 %v2006, 7
      %v2008 = vsub.s32 %v2005, %v2007
      %v2009 = vrot.slane %v1635, %v2008
      %v2011 = vunpack.c.l.s4 1983009808
      %v2012 = vunpack.c.0.s8 %v2011
      %v2013 = vlaneseq
      %v2014 = vshrl.u32 %v2013, 7
      %v2015 = vsub.s32 %v2012, %v2014
      %v2016 = vrot.slane %v2002, %v2015
      %v2017 = vcombine.high %v2009, %v2009
      %v2018 = vcombine.high %v2016, %v2016
      %v2019 = vcombine.high %v1638, %v1638
      %v2021 = vunpack.c.l.s4 1983009808
      %v2022 = vunpack.c.0.s8 %v2021
      %v2023 = vlaneseq
      %v2024 = vshrl.u32 %v2023, 7
      %v2025 = vsub.s32 %v2022, %v2024
      %v2026 = vrot.slane %v1638, %v2025
      %v2028 = vunpack.c.l.s4 1983009808
      %v2029 = vunpack.c.0.s8 %v2028
      %v2030 = vlaneseq
      %v2031 = vshrl.u32 %v2030, 7
      %v2032 = vsub.s32 %v2029, %v2031
      %v2033 = vrot.slane %v2019, %v2032
      %v2034 = vcombine.high %v2026, %v2026
      %v2035 = vcombine.high %v2033, %v2033
      %v2036 = vcombine.high %v1643, %v1643
      %v2038 = vunpack.c.l.s4 1983009808
      %v2039 = vunpack.c.0.s8 %v2038
      %v2040 = vlaneseq
      %v2041 = vshrl.u32 %v2040, 7
      %v2042 = vsub.s32 %v2039, %v2041
      %v2043 = vrot.slane %v1643, %v2042
      %v2045 = vunpack.c.l.s4 1983009808
      %v2046 = vunpack.c.0.s8 %v2045
      %v2047 = vlaneseq
      %v2048 = vshrl.u32 %v2047, 7
      %v2049 = vsub.s32 %v2046, %v2048
      %v2050 = vrot.slane %v2036, %v2049
      %v2051 = vcombine.high %v2043, %v2043
      %v2052 = vcombine.high %v2050, %v2050
      %v2053 = vcombine.high %v1646, %v1646
      %v2055 = vunpack.c.l.s4 1983009808
      %v2056 = vunpack.c.0.s8 %v2055
      %v2057 = vlaneseq
      %v2058 = vshrl.u32 %v2057, 7
      %v2059 = vsub.s32 %v2056, %v2058
      %v2060 = vrot.slane %v1646, %v2059
      %v2062 = vunpack.c.l.s4 1983009808
      %v2063 = vunpack.c.0.s8 %v2062
      %v2064 = vlaneseq
      %v2065 = vshrl.u32 %v2064, 7
      %v2066 = vsub.s32 %v2063, %v2065
      %v2067 = vrot.slane %v2053, %v2066
      %v2068 = vcombine.high %v2060, %v2060
      %v2069 = vcombine.high %v2067, %v2067
      %v2070 = vcombine.high %v1651, %v1651
      %v2072 = vunpack.c.l.s4 1983009808
      %v2073 = vunpack.c.0.s8 %v2072
      %v2074 = vlaneseq
      %v2075 = vshrl.u32 %v2074, 7
      %v2076 = vsub.s32 %v2073, %v2075
      %v2077 = vrot.slane %v1651, %v2076
      %v2079 = vunpack.c.l.s4 1983009808
      %v2080 = vunpack.c.0.s8 %v2079
      %v2081 = vlaneseq
      %v2082 = vshrl.u32 %v2081, 7
      %v2083 = vsub.s32 %v2080, %v2082
      %v2084 = vrot.slane %v2070, %v2083
      %v2085 = vcombine.high %v2077, %v2077
      %v2086 = vcombine.high %v2084, %v2084
      %v2087 = vcombine.high %v1654, %v1654
      %v2089 = vunpack.c.l.s4 1983009808
      %v2090 = vunpack.c.0.s8 %v2089
      %v2091 = vlaneseq
      %v2092 = vshrl.u32 %v2091, 7
      %v2093 = vsub.s32 %v2090, %v2092
      %v2094 = vrot.slane %v1654, %v2093
      %v2096 = vunpack.c.l.s4 1983009808
      %v2097 = vunpack.c.0.s8 %v2096
      %v2098 = vlaneseq
      %v2099 = vshrl.u32 %v2098, 7
      %v2100 = vsub.s32 %v2097, %v2099
      %v2101 = vrot.slane %v2087, %v2100
      %v2102 = vcombine.high %v2094, %v2094
      %v2103 = vcombine.high %v2101, %v2101
      %v2104 = vcombine.high %v1659, %v1659
      %v2106 = vunpack.c.l.s4 1983009808
      %v2107 = vunpack.c.0.s8 %v2106
      %v2108 = vlaneseq
      %v2109 = vshrl.u32 %v2108, 7
      %v2110 = vsub.s32 %v2107, %v2109
      %v2111 = vrot.slane %v1659, %v2110
      %v2113 = vunpack.c.l.s4 1983009808
      %v2114 = vunpack.c.0.s8 %v2113
      %v2115 = vlaneseq
      %v2116 = vshrl.u32 %v2115, 7
      %v2117 = vsub.s32 %v2114, %v2116
      %v2118 = vrot.slane %v2104, %v2117
      %v2119 = vcombine.high %v2111, %v2111
      %v2120 = vcombine.high %v2118, %v2118
      %v2121 = vcombine.high %v1662, %v1662
      %v2123 = vunpack.c.l.s4 1983009808
      %v2124 = vunpack.c.0.s8 %v2123
      %v2125 = vlaneseq
      %v2126 = vshrl.u32 %v2125, 7
      %v2127 = vsub.s32 %v2124, %v2126
      %v2128 = vrot.slane %v1662, %v2127
      %v2130 = vunpack.c.l.s4 1983009808
      %v2131 = vunpack.c.0.s8 %v2130
      %v2132 = vlaneseq
      %v2133 = vshrl.u32 %v2132, 7
      %v2134 = vsub.s32 %v2131, %v2133
      %v2135 = vrot.slane %v2121, %v2134
      %v2136 = vcombine.high %v2128, %v2128
      %v2137 = vcombine.high %v2135, %v2135
      %v2138 = vcombine.high %v1667, %v1667
      %v2140 = vunpack.c.l.s4 1983009808
      %v2141 = vunpack.c.0.s8 %v2140
      %v2142 = vlaneseq
      %v2143 = vshrl.u32 %v2142, 7
      %v2144 = vsub.s32 %v2141, %v2143
      %v2145 = vrot.slane %v1667, %v2144
      %v2147 = vunpack.c.l.s4 1983009808
      %v2148 = vunpack.c.0.s8 %v2147
      %v2149 = vlaneseq
      %v2150 = vshrl.u32 %v2149, 7
      %v2151 = vsub.s32 %v2148, %v2150
      %v2152 = vrot.slane %v2138, %v2151
      %v2153 = vcombine.high %v2145, %v2145
      %v2154 = vcombine.high %v2152, %v2152
      %v2155 = vcombine.high %v1670, %v1670
      %v2157 = vunpack.c.l.s4 1983009808
      %v2158 = vunpack.c.0.s8 %v2157
      %v2159 = vlaneseq
      %v2160 = vshrl.u32 %v2159, 7
      %v2161 = vsub.s32 %v2158, %v2160
      %v2162 = vrot.slane %v1670, %v2161
      %v2164 = vunpack.c.l.s4 1983009808
      %v2165 = vunpack.c.0.s8 %v2164
      %v2166 = vlaneseq
      %v2167 = vshrl.u32 %v2166, 7
      %v2168 = vsub.s32 %v2165, %v2167
      %v2169 = vrot.slane %v2155, %v2168
      %v2170 = vcombine.high %v2162, %v2162
      %v2171 = vcombine.high %v2169, %v2169
      %v2173 = vunpack.c.l.s4 1983009808
      %v2174 = vunpack.c.0.s8 %v2173
      %v2175 = vlaneseq
      %v2176 = vshrl.u32 %v2175, 7
      %v2177 = vsub.s32 %v2174, %v2176
      %v2178 = vrot.slane %v1675, %v2177
      %v2179 = vcombine.high %v2178, %v2178
      %v2230 = vld [vmem:[%s6] sm:$0x7]
      %v2231 = vld [vmem:[%s6 + $0x4] sm:$0x7]
      %v2232 = vld [vmem:[%s6 + $0x8] sm:$0x7]
      %v2233 = vld [vmem:[%s7] sm:$0x7]
      %v2234 = vld [vmem:[%s7 + $0x4] sm:$0x7]
      %v2235 = vld [vmem:[%s7 + $0x8] sm:$0x7]
      %v2236 = vlaneseq
      %v2237 = vshrl.u32 %v2236, 7
      %v2238 = vsub.s32 0, %v2237
      %v2239 = vrot.slane %v2230, %v2238
      %v2241 = vcombine.high %v2239, %v2239
      %v2243 = vunpack.c.l.s4 1983009808
      %v2244 = vunpack.c.0.s8 %v2243
      %v2245 = vlaneseq
      %v2246 = vshrl.u32 %v2245, 7
      %v2247 = vsub.s32 %v2244, %v2246
      %v2248 = vrot.slane %v2239, %v2247
      %v2250 = vunpack.c.l.s4 1983009808
      %v2251 = vunpack.c.0.s8 %v2250
      %v2252 = vlaneseq
      %v2253 = vshrl.u32 %v2252, 7
      %v2254 = vsub.s32 %v2251, %v2253
      %v2255 = vrot.slane %v2241, %v2254
      %v2256 = vcombine.high %v2248, %v2248
      %v2257 = vcombine.high %v2255, %v2255
      %v2262 = vmul.f32 %v1700, %v2248
      %v2263 = vmul.f32 %v1708, %v2256
      %v2264 = vmul.f32 %v1707, %v2255
      %v2265 = vmul.f32 %v1709, %v2257
      %v2266 = vmul.f32 %v1725, %v2248
      %v2267 = vmul.f32 %v1724, %v2256
      %v2268 = vmul.f32 %v1726, %v2255
      %v2269 = vmul.f32 %v1734, %v2257
      %v2270 = vmul.f32 %v1741, %v2248
      %v2271 = vmul.f32 %v1743, %v2256
      %v2272 = vmul.f32 %v1751, %v2255
      %v2273 = vmul.f32 %v1759, %v2257
      %v2274 = vmul.f32 %v1760, %v2248
      %v2275 = vmul.f32 %v1768, %v2256
      %v2276 = vmul.f32 %v1776, %v2255
      %v2277 = vmul.f32 %v1775, %v2257
      %v2278 = vmul.f32 %v1785, %v2248
      %v2279 = vmul.f32 %v1793, %v2256
      %v2280 = vmul.f32 %v1792, %v2255
      %v2281 = vmul.f32 %v1794, %v2257
      %v2282 = vmul.f32 %v1810, %v2248
      %v2283 = vmul.f32 %v1809, %v2256
      %v2284 = vmul.f32 %v1811, %v2255
      %v2285 = vmul.f32 %v1819, %v2257
      %v2286 = vmul.f32 %v1826, %v2248
      %v2287 = vmul.f32 %v1828, %v2256
      %v2288 = vmul.f32 %v1836, %v2255
      %v2289 = vmul.f32 %v1844, %v2257
      %v2290 = vmul.f32 %v1845, %v2248
      %v2291 = vmul.f32 %v1853, %v2256
      %v2292 = vmul.f32 %v1861, %v2255
      %v2293 = vmul.f32 %v1860, %v2257
      %v2294 = vadd.f32 %v2262, 0.0
      %v2295 = vadd.f32 %v2263, 0.0
      %v2296 = vadd.f32 %v2264, 0.0
      %v2297 = vadd.f32 %v2265, 0.0
      %v2298 = vadd.f32 %v2266, 0.0
      %v2299 = vadd.f32 %v2267, 0.0
      %v2300 = vadd.f32 %v2268, 0.0
      %v2301 = vadd.f32 %v2269, 0.0
      %v2302 = vadd.f32 %v2270, 0.0
      %v2303 = vadd.f32 %v2271, 0.0
      %v2304 = vadd.f32 %v2272, 0.0
      %v2305 = vadd.f32 %v2273, 0.0
      %v2306 = vadd.f32 %v2274, 0.0
      %v2307 = vadd.f32 %v2275, 0.0
      %v2308 = vadd.f32 %v2276, 0.0
      %v2309 = vadd.f32 %v2277, 0.0
      %v2310 = vadd.f32 %v2278, 0.0
      %v2311 = vadd.f32 %v2279, 0.0
      %v2312 = vadd.f32 %v2280, 0.0
      %v2313 = vadd.f32 %v2281, 0.0
      %v2314 = vadd.f32 %v2282, 0.0
      %v2315 = vadd.f32 %v2283, 0.0
      %v2316 = vadd.f32 %v2284, 0.0
      %v2317 = vadd.f32 %v2285, 0.0
      %v2318 = vadd.f32 %v2286, 0.0
      %v2319 = vadd.f32 %v2287, 0.0
      %v2320 = vadd.f32 %v2288, 0.0
      %v2321 = vadd.f32 %v2289, 0.0
      %v2322 = vadd.f32 %v2290, 0.0
      %v2323 = vadd.f32 %v2291, 0.0
      %v2324 = vadd.f32 %v2292, 0.0
      %v2325 = vadd.f32 %v2293, 0.0
      %v2326 = vlaneseq
      %v2327 = vshrl.u32 %v2326, 7
      %v2328 = vsub.s32 0, %v2327
      %v2329 = vrot.slane %v2233, %v2328
      %v2331 = vcombine.high %v2329, %v2329
      %v2333 = vunpack.c.l.s4 1983009808
      %v2334 = vunpack.c.0.s8 %v2333
      %v2335 = vlaneseq
      %v2336 = vshrl.u32 %v2335, 7
      %v2337 = vsub.s32 %v2334, %v2336
      %v2338 = vrot.slane %v2329, %v2337
      %v2340 = vunpack.c.l.s4 1983009808
      %v2341 = vunpack.c.0.s8 %v2340
      %v2342 = vlaneseq
      %v2343 = vshrl.u32 %v2342, 7
      %v2344 = vsub.s32 %v2341, %v2343
      %v2345 = vrot.slane %v2331, %v2344
      %v2346 = vcombine.high %v2338, %v2338
      %v2347 = vcombine.high %v2345, %v2345
      %v2352 = vmul.f32 %v1975, %v2338
      %v2353 = vmul.f32 %v1983, %v2346
      %v2354 = vmul.f32 %v1982, %v2345
      %v2355 = vmul.f32 %v1984, %v2347
      %v2356 = vmul.f32 %v2000, %v2338
      %v2357 = vmul.f32 %v1999, %v2346
      %v2358 = vmul.f32 %v2001, %v2345
      %v2359 = vmul.f32 %v2009, %v2347
      %v2360 = vmul.f32 %v2016, %v2338
      %v2361 = vmul.f32 %v2018, %v2346
      %v2362 = vmul.f32 %v2026, %v2345
      %v2363 = vmul.f32 %v2034, %v2347
      %v2364 = vmul.f32 %v2035, %v2338
      %v2365 = vmul.f32 %v2043, %v2346
      %v2366 = vmul.f32 %v2051, %v2345
      %v2367 = vmul.f32 %v2050, %v2347
      %v2368 = vmul.f32 %v2060, %v2338
      %v2369 = vmul.f32 %v2068, %v2346
      %v2370 = vmul.f32 %v2067, %v2345
      %v2371 = vmul.f32 %v2069, %v2347
      %v2372 = vmul.f32 %v2085, %v2338
      %v2373 = vmul.f32 %v2084, %v2346
      %v2374 = vmul.f32 %v2086, %v2345
      %v2375 = vmul.f32 %v2094, %v2347
      %v2376 = vmul.f32 %v2101, %v2338
      %v2377 = vmul.f32 %v2103, %v2346
      %v2378 = vmul.f32 %v2111, %v2345
      %v2379 = vmul.f32 %v2119, %v2347
      %v2380 = vmul.f32 %v2120, %v2338
      %v2381 = vmul.f32 %v2128, %v2346
      %v2382 = vmul.f32 %v2136, %v2345
      %v2383 = vmul.f32 %v2135, %v2347
      %v2384 = vadd.f32 %v2352, 0.0
      %v2385 = vadd.f32 %v2353, 0.0
      %v2386 = vadd.f32 %v2354, 0.0
      %v2387 = vadd.f32 %v2355, 0.0
      %v2388 = vadd.f32 %v2356, 0.0
      %v2389 = vadd.f32 %v2357, 0.0
      %v2390 = vadd.f32 %v2358, 0.0
      %v2391 = vadd.f32 %v2359, 0.0
      %v2392 = vadd.f32 %v2360, 0.0
      %v2393 = vadd.f32 %v2361, 0.0
      %v2394 = vadd.f32 %v2362, 0.0
      %v2395 = vadd.f32 %v2363, 0.0
      %v2396 = vadd.f32 %v2364, 0.0
      %v2397 = vadd.f32 %v2365, 0.0
      %v2398 = vadd.f32 %v2366, 0.0
      %v2399 = vadd.f32 %v2367, 0.0
      %v2400 = vadd.f32 %v2368, 0.0
      %v2401 = vadd.f32 %v2369, 0.0
      %v2402 = vadd.f32 %v2370, 0.0
      %v2403 = vadd.f32 %v2371, 0.0
      %v2404 = vadd.f32 %v2372, 0.0
      %v2405 = vadd.f32 %v2373, 0.0
      %v2406 = vadd.f32 %v2374, 0.0
      %v2407 = vadd.f32 %v2375, 0.0
      %v2408 = vadd.f32 %v2376, 0.0
      %v2409 = vadd.f32 %v2377, 0.0
      %v2410 = vadd.f32 %v2378, 0.0
      %v2411 = vadd.f32 %v2379, 0.0
      %v2412 = vadd.f32 %v2380, 0.0
      %v2413 = vadd.f32 %v2381, 0.0
      %v2414 = vadd.f32 %v2382, 0.0
      %v2415 = vadd.f32 %v2383, 0.0
      %v2416 = vlaneseq
      %v2417 = vshrl.u32 %v2416, 7
      %v2418 = vsub.s32 1, %v2417
      %v2419 = vrot.slane %v2230, %v2418
      %v2421 = vcombine.high %v2419, %v2419
      %v2423 = vunpack.c.l.s4 1983009808
      %v2424 = vunpack.c.0.s8 %v2423
      %v2425 = vlaneseq
      %v2426 = vshrl.u32 %v2425, 7
      %v2427 = vsub.s32 %v2424, %v2426
      %v2428 = vrot.slane %v2419, %v2427
      %v2430 = vunpack.c.l.s4 1983009808
      %v2431 = vunpack.c.0.s8 %v2430
      %v2432 = vlaneseq
      %v2433 = vshrl.u32 %v2432, 7
      %v2434 = vsub.s32 %v2431, %v2433
      %v2435 = vrot.slane %v2421, %v2434
      %v2436 = vcombine.high %v2428, %v2428
      %v2437 = vcombine.high %v2435, %v2435
      %vm2438 = vcmask 1040384
      %vm2439 = vcmask 1042434
      %vm2440 = vmor %vm2438, %vm2439
      %vm2441 = vcmask 1044484
      %vm2442 = vmor %vm2440, %vm2441
      %vm2443 = vcmask 1046534
      %vm2444 = vmor %vm2442, %vm2443
      %v2445 = vrot.slane %v2428, 7
      %v2446 = vrot.slane %v2445, 2
      %v2447 = vrot.slane %v2436, 7
      %v2448 = vsel %vm2444, %v2446, %v2447
      %v2449 = vrot.slane %v2447, 2
      %v2450 = vrot.slane %v2435, 7
      %v2451 = vsel %vm2444, %v2449, %v2450
      %v2452 = vrot.slane %v2450, 2
      %v2453 = vrot.slane %v2437, 7
      %v2454 = vsel %vm2444, %v2452, %v2453
      %v2455 = vrot.slane %v2453, 2
      %v2461 = vmul.f32 %v1700, %v2445
      %v2462 = vmul.f32 %v1708, %v2448
      %v2463 = vmul.f32 %v1707, %v2451
      %v2464 = vmul.f32 %v1709, %v2454
      %v2465 = vmul.f32 %v1717, %v2455
      %v2466 = vmul.f32 %v1725, %v2445
      %v2467 = vmul.f32 %v1724, %v2448
      %v2468 = vmul.f32 %v1726, %v2451
      %v2469 = vmul.f32 %v1734, %v2454
      %v2470 = vmul.f32 %v1742, %v2455
      %v2471 = vmul.f32 %v1741, %v2445
      %v2472 = vmul.f32 %v1743, %v2448
      %v2473 = vmul.f32 %v1751, %v2451
      %v2474 = vmul.f32 %v1759, %v2454
      %v2475 = vmul.f32 %v1758, %v2455
      %v2476 = vmul.f32 %v1760, %v2445
      %v2477 = vmul.f32 %v1768, %v2448
      %v2478 = vmul.f32 %v1776, %v2451
      %v2479 = vmul.f32 %v1775, %v2454
      %v2480 = vmul.f32 %v1777, %v2455
      %v2481 = vmul.f32 %v1785, %v2445
      %v2482 = vmul.f32 %v1793, %v2448
      %v2483 = vmul.f32 %v1792, %v2451
      %v2484 = vmul.f32 %v1794, %v2454
      %v2485 = vmul.f32 %v1802, %v2455
      %v2486 = vmul.f32 %v1810, %v2445
      %v2487 = vmul.f32 %v1809, %v2448
      %v2488 = vmul.f32 %v1811, %v2451
      %v2489 = vmul.f32 %v1819, %v2454
      %v2490 = vmul.f32 %v1827, %v2455
      %v2491 = vmul.f32 %v1826, %v2445
      %v2492 = vmul.f32 %v1828, %v2448
      %v2493 = vmul.f32 %v1836, %v2451
      %v2494 = vmul.f32 %v1844, %v2454
      %v2495 = vmul.f32 %v1843, %v2455
      %v2496 = vmul.f32 %v1845, %v2445
      %v2497 = vmul.f32 %v1853, %v2448
      %v2498 = vmul.f32 %v1861, %v2451
      %v2499 = vmul.f32 %v1860, %v2454
      %v2500 = vmul.f32 %v1862, %v2455
      %v2541 = vrot.slane %v2461, 7
      %v2542 = vrot.slane %v2541, 2
      %v2543 = vrot.slane %v2462, 7
      %v2544 = vsel %vm2444, %v2542, %v2543
      %v2545 = vrot.slane %v2543, 2
      %v2546 = vrot.slane %v2463, 7
      %v2547 = vsel %vm2444, %v2545, %v2546
      %v2548 = vrot.slane %v2546, 2
      %v2549 = vrot.slane %v2464, 7
      %v2550 = vsel %vm2444, %v2548, %v2549
      %v2551 = vrot.slane %v2549, 2
      %v2552 = vrot.slane %v2465, 7
      %v2553 = vsel %vm2444, %v2551, %v2552
      %v2554 = vrot.slane %v2466, 7
      %v2555 = vrot.slane %v2554, 2
      %v2556 = vrot.slane %v2467, 7
      %v2557 = vsel %vm2444, %v2555, %v2556
      %v2558 = vrot.slane %v2556, 2
      %v2559 = vrot.slane %v2468, 7
      %v2560 = vsel %vm2444, %v2558, %v2559
      %v2561 = vrot.slane %v2559, 2
      %v2562 = vrot.slane %v2469, 7
      %v2563 = vsel %vm2444, %v2561, %v2562
      %v2564 = vrot.slane %v2562, 2
      %v2565 = vrot.slane %v2470, 7
      %v2566 = vsel %vm2444, %v2564, %v2565
      %v2567 = vrot.slane %v2471, 7
      %v2568 = vrot.slane %v2567, 2
      %v2569 = vrot.slane %v2472, 7
      %v2570 = vsel %vm2444, %v2568, %v2569
      %v2571 = vrot.slane %v2569, 2
      %v2572 = vrot.slane %v2473, 7
      %v2573 = vsel %vm2444, %v2571, %v2572
      %v2574 = vrot.slane %v2572, 2
      %v2575 = vrot.slane %v2474, 7
      %v2576 = vsel %vm2444, %v2574, %v2575
      %v2577 = vrot.slane %v2575, 2
      %v2578 = vrot.slane %v2475, 7
      %v2579 = vsel %vm2444, %v2577, %v2578
      %v2580 = vrot.slane %v2476, 7
      %v2581 = vrot.slane %v2580, 2
      %v2582 = vrot.slane %v2477, 7
      %v2583 = vsel %vm2444, %v2581, %v2582
      %v2584 = vrot.slane %v2582, 2
      %v2585 = vrot.slane %v2478, 7
      %v2586 = vsel %vm2444, %v2584, %v2585
      %v2587 = vrot.slane %v2585, 2
      %v2588 = vrot.slane %v2479, 7
      %v2589 = vsel %vm2444, %v2587, %v2588
      %v2590 = vrot.slane %v2588, 2
      %v2591 = vrot.slane %v2480, 7
      %v2592 = vsel %vm2444, %v2590, %v2591
      %v2593 = vrot.slane %v2481, 7
      %v2594 = vrot.slane %v2593, 2
      %v2595 = vrot.slane %v2482, 7
      %v2596 = vsel %vm2444, %v2594, %v2595
      %v2597 = vrot.slane %v2595, 2
      %v2598 = vrot.slane %v2483, 7
      %v2599 = vsel %vm2444, %v2597, %v2598
      %v2600 = vrot.slane %v2598, 2
      %v2601 = vrot.slane %v2484, 7
      %v2602 = vsel %vm2444, %v2600, %v2601
      %v2603 = vrot.slane %v2601, 2
      %v2604 = vrot.slane %v2485, 7
      %v2605 = vsel %vm2444, %v2603, %v2604
      %v2606 = vrot.slane %v2486, 7
      %v2607 = vrot.slane %v2606, 2
      %v2608 = vrot.slane %v2487, 7
      %v2609 = vsel %vm2444, %v2607, %v2608
      %v2610 = vrot.slane %v2608, 2
      %v2611 = vrot.slane %v2488, 7
      %v2612 = vsel %vm2444, %v2610, %v2611
      %v2613 = vrot.slane %v2611, 2
      %v2614 = vrot.slane %v2489, 7
      %v2615 = vsel %vm2444, %v2613, %v2614
      %v2616 = vrot.slane %v2614, 2
      %v2617 = vrot.slane %v2490, 7
      %v2618 = vsel %vm2444, %v2616, %v2617
      %v2619 = vrot.slane %v2491, 7
      %v2620 = vrot.slane %v2619, 2
      %v2621 = vrot.slane %v2492, 7
      %v2622 = vsel %vm2444, %v2620, %v2621
      %v2623 = vrot.slane %v2621, 2
      %v2624 = vrot.slane %v2493, 7
      %v2625 = vsel %vm2444, %v2623, %v2624
      %v2626 = vrot.slane %v2624, 2
      %v2627 = vrot.slane %v2494, 7
      %v2628 = vsel %vm2444, %v2626, %v2627
      %v2629 = vrot.slane %v2627, 2
      %v2630 = vrot.slane %v2495, 7
      %v2631 = vsel %vm2444, %v2629, %v2630
      %v2632 = vrot.slane %v2496, 7
      %v2633 = vrot.slane %v2632, 2
      %v2634 = vrot.slane %v2497, 7
      %v2635 = vsel %vm2444, %v2633, %v2634
      %v2636 = vrot.slane %v2634, 2
      %v2637 = vrot.slane %v2498, 7
      %v2638 = vsel %vm2444, %v2636, %v2637
      %v2639 = vrot.slane %v2637, 2
      %v2640 = vrot.slane %v2499, 7
      %v2641 = vsel %vm2444, %v2639, %v2640
      %v2642 = vrot.slane %v2640, 2
      %v2643 = vrot.slane %v2500, 7
      %v2644 = vsel %vm2444, %v2642, %v2643
      %v2677 = vadd.f32 %v2294, %v2544
      %v2678 = vadd.f32 %v2295, %v2547
      %v2679 = vadd.f32 %v2296, %v2550
      %v2680 = vadd.f32 %v2297, %v2553
      %v2681 = vadd.f32 %v2298, %v2557
      %v2682 = vadd.f32 %v2299, %v2560
      %v2683 = vadd.f32 %v2300, %v2563
      %v2684 = vadd.f32 %v2301, %v2566
      %v2685 = vadd.f32 %v2302, %v2570
      %v2686 = vadd.f32 %v2303, %v2573
      %v2687 = vadd.f32 %v2304, %v2576
      %v2688 = vadd.f32 %v2305, %v2579
      %v2689 = vadd.f32 %v2306, %v2583
      %v2690 = vadd.f32 %v2307, %v2586
      %v2691 = vadd.f32 %v2308, %v2589
      %v2692 = vadd.f32 %v2309, %v2592
      %v2693 = vadd.f32 %v2310, %v2596
      %v2694 = vadd.f32 %v2311, %v2599
      %v2695 = vadd.f32 %v2312, %v2602
      %v2696 = vadd.f32 %v2313, %v2605
      %v2697 = vadd.f32 %v2314, %v2609
      %v2698 = vadd.f32 %v2315, %v2612
      %v2699 = vadd.f32 %v2316, %v2615
      %v2700 = vadd.f32 %v2317, %v2618
      %v2701 = vadd.f32 %v2318, %v2622
      %v2702 = vadd.f32 %v2319, %v2625
      %v2703 = vadd.f32 %v2320, %v2628
      %v2704 = vadd.f32 %v2321, %v2631
      %v2705 = vadd.f32 %v2322, %v2635
      %v2706 = vadd.f32 %v2323, %v2638
      %v2707 = vadd.f32 %v2324, %v2641
      %v2708 = vadd.f32 %v2325, %v2644
      %v2709 = vlaneseq
      %v2710 = vshrl.u32 %v2709, 7
      %v2711 = vsub.s32 1, %v2710
      %v2712 = vrot.slane %v2233, %v2711
      %v2714 = vcombine.high %v2712, %v2712
      %v2716 = vunpack.c.l.s4 1983009808
      %v2717 = vunpack.c.0.s8 %v2716
      %v2718 = vlaneseq
      %v2719 = vshrl.u32 %v2718, 7
      %v2720 = vsub.s32 %v2717, %v2719
      %v2721 = vrot.slane %v2712, %v2720
      %v2723 = vunpack.c.l.s4 1983009808
      %v2724 = vunpack.c.0.s8 %v2723
      %v2725 = vlaneseq
      %v2726 = vshrl.u32 %v2725, 7
      %v2727 = vsub.s32 %v2724, %v2726
      %v2728 = vrot.slane %v2714, %v2727
      %v2729 = vcombine.high %v2721, %v2721
      %v2730 = vcombine.high %v2728, %v2728
      %v2731 = vrot.slane %v2721, 7
      %v2732 = vrot.slane %v2731, 2
      %v2733 = vrot.slane %v2729, 7
      %v2734 = vsel %vm2444, %v2732, %v2733
      %v2735 = vrot.slane %v2733, 2
      %v2736 = vrot.slane %v2728, 7
      %v2737 = vsel %vm2444, %v2735, %v2736
      %v2738 = vrot.slane %v2736, 2
      %v2739 = vrot.slane %v2730, 7
      %v2740 = vsel %vm2444, %v2738, %v2739
      %v2741 = vrot.slane %v2739, 2
      %v2747 = vmul.f32 %v1975, %v2731
      %v2748 = vmul.f32 %v1983, %v2734
      %v2749 = vmul.f32 %v1982, %v2737
      %v2750 = vmul.f32 %v1984, %v2740
      %v2751 = vmul.f32 %v1992, %v2741
      %v2752 = vmul.f32 %v2000, %v2731
      %v2753 = vmul.f32 %v1999, %v2734
      %v2754 = vmul.f32 %v2001, %v2737
      %v2755 = vmul.f32 %v2009, %v2740
      %v2756 = vmul.f32 %v2017, %v2741
      %v2757 = vmul.f32 %v2016, %v2731
      %v2758 = vmul.f32 %v2018, %v2734
      %v2759 = vmul.f32 %v2026, %v2737
      %v2760 = vmul.f32 %v2034, %v2740
      %v2761 = vmul.f32 %v2033, %v2741
      %v2762 = vmul.f32 %v2035, %v2731
      %v2763 = vmul.f32 %v2043, %v2734
      %v2764 = vmul.f32 %v2051, %v2737
      %v2765 = vmul.f32 %v2050, %v2740
      %v2766 = vmul.f32 %v2052, %v2741
      %v2767 = vmul.f32 %v2060, %v2731
      %v2768 = vmul.f32 %v2068, %v2734
      %v2769 = vmul.f32 %v2067, %v2737
      %v2770 = vmul.f32 %v2069, %v2740
      %v2771 = vmul.f32 %v2077, %v2741
      %v2772 = vmul.f32 %v2085, %v2731
      %v2773 = vmul.f32 %v2084, %v2734
      %v2774 = vmul.f32 %v2086, %v2737
      %v2775 = vmul.f32 %v2094, %v2740
      %v2776 = vmul.f32 %v2102, %v2741
      %v2777 = vmul.f32 %v2101, %v2731
      %v2778 = vmul.f32 %v2103, %v2734
      %v2779 = vmul.f32 %v2111, %v2737
      %v2780 = vmul.f32 %v2119, %v2740
      %v2781 = vmul.f32 %v2118, %v2741
      %v2782 = vmul.f32 %v2120, %v2731
      %v2783 = vmul.f32 %v2128, %v2734
      %v2784 = vmul.f32 %v2136, %v2737
      %v2785 = vmul.f32 %v2135, %v2740
      %v2786 = vmul.f32 %v2137, %v2741
      %v2827 = vrot.slane %v2747, 7
      %v2828 = vrot.slane %v2827, 2
      %v2829 = vrot.slane %v2748, 7
      %v2830 = vsel %vm2444, %v2828, %v2829
      %v2831 = vrot.slane %v2829, 2
      %v2832 = vrot.slane %v2749, 7
      %v2833 = vsel %vm2444, %v2831, %v2832
      %v2834 = vrot.slane %v2832, 2
      %v2835 = vrot.slane %v2750, 7
      %v2836 = vsel %vm2444, %v2834, %v2835
      %v2837 = vrot.slane %v2835, 2
      %v2838 = vrot.slane %v2751, 7
      %v2839 = vsel %vm2444, %v2837, %v2838
      %v2840 = vrot.slane %v2752, 7
      %v2841 = vrot.slane %v2840, 2
      %v2842 = vrot.slane %v2753, 7
      %v2843 = vsel %vm2444, %v2841, %v2842
      %v2844 = vrot.slane %v2842, 2
      %v2845 = vrot.slane %v2754, 7
      %v2846 = vsel %vm2444, %v2844, %v2845
      %v2847 = vrot.slane %v2845, 2
      %v2848 = vrot.slane %v2755, 7
      %v2849 = vsel %vm2444, %v2847, %v2848
      %v2850 = vrot.slane %v2848, 2
      %v2851 = vrot.slane %v2756, 7
      %v2852 = vsel %vm2444, %v2850, %v2851
      %v2853 = vrot.slane %v2757, 7
      %v2854 = vrot.slane %v2853, 2
      %v2855 = vrot.slane %v2758, 7
      %v2856 = vsel %vm2444, %v2854, %v2855
      %v2857 = vrot.slane %v2855, 2
      %v2858 = vrot.slane %v2759, 7
      %v2859 = vsel %vm2444, %v2857, %v2858
      %v2860 = vrot.slane %v2858, 2
      %v2861 = vrot.slane %v2760, 7
      %v2862 = vsel %vm2444, %v2860, %v2861
      %v2863 = vrot.slane %v2861, 2
      %v2864 = vrot.slane %v2761, 7
      %v2865 = vsel %vm2444, %v2863, %v2864
      %v2866 = vrot.slane %v2762, 7
      %v2867 = vrot.slane %v2866, 2
      %v2868 = vrot.slane %v2763, 7
      %v2869 = vsel %vm2444, %v2867, %v2868
      %v2870 = vrot.slane %v2868, 2
      %v2871 = vrot.slane %v2764, 7
      %v2872 = vsel %vm2444, %v2870, %v2871
      %v2873 = vrot.slane %v2871, 2
      %v2874 = vrot.slane %v2765, 7
      %v2875 = vsel %vm2444, %v2873, %v2874
      %v2876 = vrot.slane %v2874, 2
      %v2877 = vrot.slane %v2766, 7
      %v2878 = vsel %vm2444, %v2876, %v2877
      %v2879 = vrot.slane %v2767, 7
      %v2880 = vrot.slane %v2879, 2
      %v2881 = vrot.slane %v2768, 7
      %v2882 = vsel %vm2444, %v2880, %v2881
      %v2883 = vrot.slane %v2881, 2
      %v2884 = vrot.slane %v2769, 7
      %v2885 = vsel %vm2444, %v2883, %v2884
      %v2886 = vrot.slane %v2884, 2
      %v2887 = vrot.slane %v2770, 7
      %v2888 = vsel %vm2444, %v2886, %v2887
      %v2889 = vrot.slane %v2887, 2
      %v2890 = vrot.slane %v2771, 7
      %v2891 = vsel %vm2444, %v2889, %v2890
      %v2892 = vrot.slane %v2772, 7
      %v2893 = vrot.slane %v2892, 2
      %v2894 = vrot.slane %v2773, 7
      %v2895 = vsel %vm2444, %v2893, %v2894
      %v2896 = vrot.slane %v2894, 2
      %v2897 = vrot.slane %v2774, 7
      %v2898 = vsel %vm2444, %v2896, %v2897
      %v2899 = vrot.slane %v2897, 2
      %v2900 = vrot.slane %v2775, 7
      %v2901 = vsel %vm2444, %v2899, %v2900
      %v2902 = vrot.slane %v2900, 2
      %v2903 = vrot.slane %v2776, 7
      %v2904 = vsel %vm2444, %v2902, %v2903
      %v2905 = vrot.slane %v2777, 7
      %v2906 = vrot.slane %v2905, 2
      %v2907 = vrot.slane %v2778, 7
      %v2908 = vsel %vm2444, %v2906, %v2907
      %v2909 = vrot.slane %v2907, 2
      %v2910 = vrot.slane %v2779, 7
      %v2911 = vsel %vm2444, %v2909, %v2910
      %v2912 = vrot.slane %v2910, 2
      %v2913 = vrot.slane %v2780, 7
      %v2914 = vsel %vm2444, %v2912, %v2913
      %v2915 = vrot.slane %v2913, 2
      %v2916 = vrot.slane %v2781, 7
      %v2917 = vsel %vm2444, %v2915, %v2916
      %v2918 = vrot.slane %v2782, 7
      %v2919 = vrot.slane %v2918, 2
      %v2920 = vrot.slane %v2783, 7
      %v2921 = vsel %vm2444, %v2919, %v2920
      %v2922 = vrot.slane %v2920, 2
      %v2923 = vrot.slane %v2784, 7
      %v2924 = vsel %vm2444, %v2922, %v2923
      %v2925 = vrot.slane %v2923, 2
      %v2926 = vrot.slane %v2785, 7
      %v2927 = vsel %vm2444, %v2925, %v2926
      %v2928 = vrot.slane %v2926, 2
      %v2929 = vrot.slane %v2786, 7
      %v2930 = vsel %vm2444, %v2928, %v2929
      %v2963 = vadd.f32 %v2384, %v2830
      %v2964 = vadd.f32 %v2385, %v2833
      %v2965 = vadd.f32 %v2386, %v2836
      %v2966 = vadd.f32 %v2387, %v2839
      %v2967 = vadd.f32 %v2388, %v2843
      %v2968 = vadd.f32 %v2389, %v2846
      %v2969 = vadd.f32 %v2390, %v2849
      %v2970 = vadd.f32 %v2391, %v2852
      %v2971 = vadd.f32 %v2392, %v2856
      %v2972 = vadd.f32 %v2393, %v2859
      %v2973 = vadd.f32 %v2394, %v2862
      %v2974 = vadd.f32 %v2395, %v2865
      %v2975 = vadd.f32 %v2396, %v2869
      %v2976 = vadd.f32 %v2397, %v2872
      %v2977 = vadd.f32 %v2398, %v2875
      %v2978 = vadd.f32 %v2399, %v2878
      %v2979 = vadd.f32 %v2400, %v2882
      %v2980 = vadd.f32 %v2401, %v2885
      %v2981 = vadd.f32 %v2402, %v2888
      %v2982 = vadd.f32 %v2403, %v2891
      %v2983 = vadd.f32 %v2404, %v2895
      %v2984 = vadd.f32 %v2405, %v2898
      %v2985 = vadd.f32 %v2406, %v2901
      %v2986 = vadd.f32 %v2407, %v2904
      %v2987 = vadd.f32 %v2408, %v2908
      %v2988 = vadd.f32 %v2409, %v2911
      %v2989 = vadd.f32 %v2410, %v2914
      %v2990 = vadd.f32 %v2411, %v2917
      %v2991 = vadd.f32 %v2412, %v2921
      %v2992 = vadd.f32 %v2413, %v2924
      %v2993 = vadd.f32 %v2414, %v2927
      %v2994 = vadd.f32 %v2415, %v2930
      %v2995 = vlaneseq
      %v2996 = vshrl.u32 %v2995, 7
      %v2997 = vsub.s32 2, %v2996
      %v2998 = vrot.slane %v2230, %v2997
      %v3000 = vcombine.high %v2998, %v2998
      %v3002 = vunpack.c.l.s4 1983009808
      %v3003 = vunpack.c.0.s8 %v3002
      %v3004 = vlaneseq
      %v3005 = vshrl.u32 %v3004, 7
      %v3006 = vsub.s32 %v3003, %v3005
      %v3007 = vrot.slane %v2998, %v3006
      %v3009 = vunpack.c.l.s4 1983009808
      %v3010 = vunpack.c.0.s8 %v3009
      %v3011 = vlaneseq
      %v3012 = vshrl.u32 %v3011, 7
      %v3013 = vsub.s32 %v3010, %v3012
      %v3014 = vrot.slane %v3000, %v3013
      %v3015 = vcombine.high %v3007, %v3007
      %v3016 = vcombine.high %v3014, %v3014
      %v3021 = vmul.f32 %v1708, %v3007
      %v3022 = vmul.f32 %v1707, %v3015
      %v3023 = vmul.f32 %v1709, %v3014
      %v3024 = vmul.f32 %v1717, %v3016
      %v3025 = vmul.f32 %v1724, %v3007
      %v3026 = vmul.f32 %v1726, %v3015
      %v3027 = vmul.f32 %v1734, %v3014
      %v3028 = vmul.f32 %v1742, %v3016
      %v3029 = vmul.f32 %v1743, %v3007
      %v3030 = vmul.f32 %v1751, %v3015
      %v3031 = vmul.f32 %v1759, %v3014
      %v3032 = vmul.f32 %v1758, %v3016
      %v3033 = vmul.f32 %v1768, %v3007
      %v3034 = vmul.f32 %v1776, %v3015
      %v3035 = vmul.f32 %v1775, %v3014
      %v3036 = vmul.f32 %v1777, %v3016
      %v3037 = vmul.f32 %v1793, %v3007
      %v3038 = vmul.f32 %v1792, %v3015
      %v3039 = vmul.f32 %v1794, %v3014
      %v3040 = vmul.f32 %v1802, %v3016
      %v3041 = vmul.f32 %v1809, %v3007
      %v3042 = vmul.f32 %v1811, %v3015
      %v3043 = vmul.f32 %v1819, %v3014
      %v3044 = vmul.f32 %v1827, %v3016
      %v3045 = vmul.f32 %v1828, %v3007
      %v3046 = vmul.f32 %v1836, %v3015
      %v3047 = vmul.f32 %v1844, %v3014
      %v3048 = vmul.f32 %v1843, %v3016
      %v3049 = vmul.f32 %v1853, %v3007
      %v3050 = vmul.f32 %v1861, %v3015
      %v3051 = vmul.f32 %v1860, %v3014
      %v3052 = vmul.f32 %v1862, %v3016
      %v3053 = vadd.f32 %v2677, %v3021
      %v3054 = vadd.f32 %v2678, %v3022
      %v3055 = vadd.f32 %v2679, %v3023
      %v3056 = vadd.f32 %v2680, %v3024
      %v3057 = vadd.f32 %v2681, %v3025
      %v3058 = vadd.f32 %v2682, %v3026
      %v3059 = vadd.f32 %v2683, %v3027
      %v3060 = vadd.f32 %v2684, %v3028
      %v3061 = vadd.f32 %v2685, %v3029
      %v3062 = vadd.f32 %v2686, %v3030
      %v3063 = vadd.f32 %v2687, %v3031
      %v3064 = vadd.f32 %v2688, %v3032
      %v3065 = vadd.f32 %v2689, %v3033
      %v3066 = vadd.f32 %v2690, %v3034
      %v3067 = vadd.f32 %v2691, %v3035
      %v3068 = vadd.f32 %v2692, %v3036
      %v3069 = vadd.f32 %v2693, %v3037
      %v3070 = vadd.f32 %v2694, %v3038
      %v3071 = vadd.f32 %v2695, %v3039
      %v3072 = vadd.f32 %v2696, %v3040
      %v3073 = vadd.f32 %v2697, %v3041
      %v3074 = vadd.f32 %v2698, %v3042
      %v3075 = vadd.f32 %v2699, %v3043
      %v3076 = vadd.f32 %v2700, %v3044
      %v3077 = vadd.f32 %v2701, %v3045
      %v3078 = vadd.f32 %v2702, %v3046
      %v3079 = vadd.f32 %v2703, %v3047
      %v3080 = vadd.f32 %v2704, %v3048
      %v3081 = vadd.f32 %v2705, %v3049
      %v3082 = vadd.f32 %v2706, %v3050
      %v3083 = vadd.f32 %v2707, %v3051
      %v3084 = vadd.f32 %v2708, %v3052
      %v3085 = vlaneseq
      %v3086 = vshrl.u32 %v3085, 7
      %v3087 = vsub.s32 2, %v3086
      %v3088 = vrot.slane %v2233, %v3087
      %v3090 = vcombine.high %v3088, %v3088
      %v3092 = vunpack.c.l.s4 1983009808
      %v3093 = vunpack.c.0.s8 %v3092
      %v3094 = vlaneseq
      %v3095 = vshrl.u32 %v3094, 7
      %v3096 = vsub.s32 %v3093, %v3095
      %v3097 = vrot.slane %v3088, %v3096
      %v3099 = vunpack.c.l.s4 1983009808
      %v3100 = vunpack.c.0.s8 %v3099
      %v3101 = vlaneseq
      %v3102 = vshrl.u32 %v3101, 7
      %v3103 = vsub.s32 %v3100, %v3102
      %v3104 = vrot.slane %v3090, %v3103
      %v3105 = vcombine.high %v3097, %v3097
      %v3106 = vcombine.high %v3104, %v3104
      %v3111 = vmul.f32 %v1983, %v3097
      %v3112 = vmul.f32 %v1982, %v3105
      %v3113 = vmul.f32 %v1984, %v3104
      %v3114 = vmul.f32 %v1992, %v3106
      %v3115 = vmul.f32 %v1999, %v3097
      %v3116 = vmul.f32 %v2001, %v3105
      %v3117 = vmul.f32 %v2009, %v3104
      %v3118 = vmul.f32 %v2017, %v3106
      %v3119 = vmul.f32 %v2018, %v3097
      %v3120 = vmul.f32 %v2026, %v3105
      %v3121 = vmul.f32 %v2034, %v3104
      %v3122 = vmul.f32 %v2033, %v3106
      %v3123 = vmul.f32 %v2043, %v3097
      %v3124 = vmul.f32 %v2051, %v3105
      %v3125 = vmul.f32 %v2050, %v3104
      %v3126 = vmul.f32 %v2052, %v3106
      %v3127 = vmul.f32 %v2068, %v3097
      %v3128 = vmul.f32 %v2067, %v3105
      %v3129 = vmul.f32 %v2069, %v3104
      %v3130 = vmul.f32 %v2077, %v3106
      %v3131 = vmul.f32 %v2084, %v3097
      %v3132 = vmul.f32 %v2086, %v3105
      %v3133 = vmul.f32 %v2094, %v3104
      %v3134 = vmul.f32 %v2102, %v3106
      %v3135 = vmul.f32 %v2103, %v3097
      %v3136 = vmul.f32 %v2111, %v3105
      %v3137 = vmul.f32 %v2119, %v3104
      %v3138 = vmul.f32 %v2118, %v3106
      %v3139 = vmul.f32 %v2128, %v3097
      %v3140 = vmul.f32 %v2136, %v3105
      %v3141 = vmul.f32 %v2135, %v3104
      %v3142 = vmul.f32 %v2137, %v3106
      %v3143 = vadd.f32 %v2963, %v3111
      %v3144 = vadd.f32 %v2964, %v3112
      %v3145 = vadd.f32 %v2965, %v3113
      %v3146 = vadd.f32 %v2966, %v3114
      %v3147 = vadd.f32 %v2967, %v3115
      %v3148 = vadd.f32 %v2968, %v3116
      %v3149 = vadd.f32 %v2969, %v3117
      %v3150 = vadd.f32 %v2970, %v3118
      %v3151 = vadd.f32 %v2971, %v3119
      %v3152 = vadd.f32 %v2972, %v3120
      %v3153 = vadd.f32 %v2973, %v3121
      %v3154 = vadd.f32 %v2974, %v3122
      %v3155 = vadd.f32 %v2975, %v3123
      %v3156 = vadd.f32 %v2976, %v3124
      %v3157 = vadd.f32 %v2977, %v3125
      %v3158 = vadd.f32 %v2978, %v3126
      %v3159 = vadd.f32 %v2979, %v3127
      %v3160 = vadd.f32 %v2980, %v3128
      %v3161 = vadd.f32 %v2981, %v3129
      %v3162 = vadd.f32 %v2982, %v3130
      %v3163 = vadd.f32 %v2983, %v3131
      %v3164 = vadd.f32 %v2984, %v3132
      %v3165 = vadd.f32 %v2985, %v3133
      %v3166 = vadd.f32 %v2986, %v3134
      %v3167 = vadd.f32 %v2987, %v3135
      %v3168 = vadd.f32 %v2988, %v3136
      %v3169 = vadd.f32 %v2989, %v3137
      %v3170 = vadd.f32 %v2990, %v3138
      %v3171 = vadd.f32 %v2991, %v3139
      %v3172 = vadd.f32 %v2992, %v3140
      %v3173 = vadd.f32 %v2993, %v3141
      %v3174 = vadd.f32 %v2994, %v3142
      %v3175 = vlaneseq
      %v3176 = vshrl.u32 %v3175, 7
      %v3177 = vsub.s32 0, %v3176
      %v3178 = vrot.slane %v2231, %v3177
      %v3180 = vcombine.high %v3178, %v3178
      %v3182 = vunpack.c.l.s4 1983009808
      %v3183 = vunpack.c.0.s8 %v3182
      %v3184 = vlaneseq
      %v3185 = vshrl.u32 %v3184, 7
      %v3186 = vsub.s32 %v3183, %v3185
      %v3187 = vrot.slane %v3178, %v3186
      %v3189 = vunpack.c.l.s4 1983009808
      %v3190 = vunpack.c.0.s8 %v3189
      %v3191 = vlaneseq
      %v3192 = vshrl.u32 %v3191, 7
      %v3193 = vsub.s32 %v3190, %v3192
      %v3194 = vrot.slane %v3180, %v3193
      %v3195 = vcombine.high %v3187, %v3187
      %v3196 = vcombine.high %v3194, %v3194
      %v3201 = vmul.f32 %v1725, %v3187
      %v3202 = vmul.f32 %v1724, %v3195
      %v3203 = vmul.f32 %v1726, %v3194
      %v3204 = vmul.f32 %v1734, %v3196
      %v3205 = vmul.f32 %v1741, %v3187
      %v3206 = vmul.f32 %v1743, %v3195
      %v3207 = vmul.f32 %v1751, %v3194
      %v3208 = vmul.f32 %v1759, %v3196
      %v3209 = vmul.f32 %v1760, %v3187
      %v3210 = vmul.f32 %v1768, %v3195
      %v3211 = vmul.f32 %v1776, %v3194
      %v3212 = vmul.f32 %v1775, %v3196
      %v3213 = vmul.f32 %v1785, %v3187
      %v3214 = vmul.f32 %v1793, %v3195
      %v3215 = vmul.f32 %v1792, %v3194
      %v3216 = vmul.f32 %v1794, %v3196
      %v3217 = vmul.f32 %v1810, %v3187
      %v3218 = vmul.f32 %v1809, %v3195
      %v3219 = vmul.f32 %v1811, %v3194
      %v3220 = vmul.f32 %v1819, %v3196
      %v3221 = vmul.f32 %v1826, %v3187
      %v3222 = vmul.f32 %v1828, %v3195
      %v3223 = vmul.f32 %v1836, %v3194
      %v3224 = vmul.f32 %v1844, %v3196
      %v3225 = vmul.f32 %v1845, %v3187
      %v3226 = vmul.f32 %v1853, %v3195
      %v3227 = vmul.f32 %v1861, %v3194
      %v3228 = vmul.f32 %v1860, %v3196
      %v3229 = vmul.f32 %v1870, %v3187
      %v3230 = vmul.f32 %v1878, %v3195
      %v3231 = vmul.f32 %v1877, %v3194
      %v3232 = vmul.f32 %v1879, %v3196
      %v3233 = vadd.f32 %v3053, %v3201
      %v3234 = vadd.f32 %v3054, %v3202
      %v3235 = vadd.f32 %v3055, %v3203
      %v3236 = vadd.f32 %v3056, %v3204
      %v3237 = vadd.f32 %v3057, %v3205
      %v3238 = vadd.f32 %v3058, %v3206
      %v3239 = vadd.f32 %v3059, %v3207
      %v3240 = vadd.f32 %v3060, %v3208
      %v3241 = vadd.f32 %v3061, %v3209
      %v3242 = vadd.f32 %v3062, %v3210
      %v3243 = vadd.f32 %v3063, %v3211
      %v3244 = vadd.f32 %v3064, %v3212
      %v3245 = vadd.f32 %v3065, %v3213
      %v3246 = vadd.f32 %v3066, %v3214
      %v3247 = vadd.f32 %v3067, %v3215
      %v3248 = vadd.f32 %v3068, %v3216
      %v3249 = vadd.f32 %v3069, %v3217
      %v3250 = vadd.f32 %v3070, %v3218
      %v3251 = vadd.f32 %v3071, %v3219
      %v3252 = vadd.f32 %v3072, %v3220
      %v3253 = vadd.f32 %v3073, %v3221
      %v3254 = vadd.f32 %v3074, %v3222
      %v3255 = vadd.f32 %v3075, %v3223
      %v3256 = vadd.f32 %v3076, %v3224
      %v3257 = vadd.f32 %v3077, %v3225
      %v3258 = vadd.f32 %v3078, %v3226
      %v3259 = vadd.f32 %v3079, %v3227
      %v3260 = vadd.f32 %v3080, %v3228
      %v3261 = vadd.f32 %v3081, %v3229
      %v3262 = vadd.f32 %v3082, %v3230
      %v3263 = vadd.f32 %v3083, %v3231
      %v3264 = vadd.f32 %v3084, %v3232
      %v3265 = vlaneseq
      %v3266 = vshrl.u32 %v3265, 7
      %v3267 = vsub.s32 0, %v3266
      %v3268 = vrot.slane %v2234, %v3267
      %v3270 = vcombine.high %v3268, %v3268
      %v3272 = vunpack.c.l.s4 1983009808
      %v3273 = vunpack.c.0.s8 %v3272
      %v3274 = vlaneseq
      %v3275 = vshrl.u32 %v3274, 7
      %v3276 = vsub.s32 %v3273, %v3275
      %v3277 = vrot.slane %v3268, %v3276
      %v3279 = vunpack.c.l.s4 1983009808
      %v3280 = vunpack.c.0.s8 %v3279
      %v3281 = vlaneseq
      %v3282 = vshrl.u32 %v3281, 7
      %v3283 = vsub.s32 %v3280, %v3282
      %v3284 = vrot.slane %v3270, %v3283
      %v3285 = vcombine.high %v3277, %v3277
      %v3286 = vcombine.high %v3284, %v3284
      %v3291 = vmul.f32 %v2000, %v3277
      %v3292 = vmul.f32 %v1999, %v3285
      %v3293 = vmul.f32 %v2001, %v3284
      %v3294 = vmul.f32 %v2009, %v3286
      %v3295 = vmul.f32 %v2016, %v3277
      %v3296 = vmul.f32 %v2018, %v3285
      %v3297 = vmul.f32 %v2026, %v3284
      %v3298 = vmul.f32 %v2034, %v3286
      %v3299 = vmul.f32 %v2035, %v3277
      %v3300 = vmul.f32 %v2043, %v3285
      %v3301 = vmul.f32 %v2051, %v3284
      %v3302 = vmul.f32 %v2050, %v3286
      %v3303 = vmul.f32 %v2060, %v3277
      %v3304 = vmul.f32 %v2068, %v3285
      %v3305 = vmul.f32 %v2067, %v3284
      %v3306 = vmul.f32 %v2069, %v3286
      %v3307 = vmul.f32 %v2085, %v3277
      %v3308 = vmul.f32 %v2084, %v3285
      %v3309 = vmul.f32 %v2086, %v3284
      %v3310 = vmul.f32 %v2094, %v3286
      %v3311 = vmul.f32 %v2101, %v3277
      %v3312 = vmul.f32 %v2103, %v3285
      %v3313 = vmul.f32 %v2111, %v3284
      %v3314 = vmul.f32 %v2119, %v3286
      %v3315 = vmul.f32 %v2120, %v3277
      %v3316 = vmul.f32 %v2128, %v3285
      %v3317 = vmul.f32 %v2136, %v3284
      %v3318 = vmul.f32 %v2135, %v3286
      %v3319 = vmul.f32 %v2145, %v3277
      %v3320 = vmul.f32 %v2153, %v3285
      %v3321 = vmul.f32 %v2152, %v3284
      %v3322 = vmul.f32 %v2154, %v3286
      %v3323 = vadd.f32 %v3143, %v3291
      %v3324 = vadd.f32 %v3144, %v3292
      %v3325 = vadd.f32 %v3145, %v3293
      %v3326 = vadd.f32 %v3146, %v3294
      %v3327 = vadd.f32 %v3147, %v3295
      %v3328 = vadd.f32 %v3148, %v3296
      %v3329 = vadd.f32 %v3149, %v3297
      %v3330 = vadd.f32 %v3150, %v3298
      %v3331 = vadd.f32 %v3151, %v3299
      %v3332 = vadd.f32 %v3152, %v3300
      %v3333 = vadd.f32 %v3153, %v3301
      %v3334 = vadd.f32 %v3154, %v3302
      %v3335 = vadd.f32 %v3155, %v3303
      %v3336 = vadd.f32 %v3156, %v3304
      %v3337 = vadd.f32 %v3157, %v3305
      %v3338 = vadd.f32 %v3158, %v3306
      %v3339 = vadd.f32 %v3159, %v3307
      %v3340 = vadd.f32 %v3160, %v3308
      %v3341 = vadd.f32 %v3161, %v3309
      %v3342 = vadd.f32 %v3162, %v3310
      %v3343 = vadd.f32 %v3163, %v3311
      %v3344 = vadd.f32 %v3164, %v3312
      %v3345 = vadd.f32 %v3165, %v3313
      %v3346 = vadd.f32 %v3166, %v3314
      %v3347 = vadd.f32 %v3167, %v3315
      %v3348 = vadd.f32 %v3168, %v3316
      %v3349 = vadd.f32 %v3169, %v3317
      %v3350 = vadd.f32 %v3170, %v3318
      %v3351 = vadd.f32 %v3171, %v3319
      %v3352 = vadd.f32 %v3172, %v3320
      %v3353 = vadd.f32 %v3173, %v3321
      %v3354 = vadd.f32 %v3174, %v3322
      %v3355 = vlaneseq
      %v3356 = vshrl.u32 %v3355, 7
      %v3357 = vsub.s32 1, %v3356
      %v3358 = vrot.slane %v2231, %v3357
      %v3360 = vcombine.high %v3358, %v3358
      %v3362 = vunpack.c.l.s4 1983009808
      %v3363 = vunpack.c.0.s8 %v3362
      %v3364 = vlaneseq
      %v3365 = vshrl.u32 %v3364, 7
      %v3366 = vsub.s32 %v3363, %v3365
      %v3367 = vrot.slane %v3358, %v3366
      %v3369 = vunpack.c.l.s4 1983009808
      %v3370 = vunpack.c.0.s8 %v3369
      %v3371 = vlaneseq
      %v3372 = vshrl.u32 %v3371, 7
      %v3373 = vsub.s32 %v3370, %v3372
      %v3374 = vrot.slane %v3360, %v3373
      %v3375 = vcombine.high %v3367, %v3367
      %v3376 = vcombine.high %v3374, %v3374
      %v3377 = vrot.slane %v3367, 7
      %v3378 = vrot.slane %v3377, 2
      %v3379 = vrot.slane %v3375, 7
      %v3380 = vsel %vm2444, %v3378, %v3379
      %v3381 = vrot.slane %v3379, 2
      %v3382 = vrot.slane %v3374, 7
      %v3383 = vsel %vm2444, %v3381, %v3382
      %v3384 = vrot.slane %v3382, 2
      %v3385 = vrot.slane %v3376, 7
      %v3386 = vsel %vm2444, %v3384, %v3385
      %v3387 = vrot.slane %v3385, 2
      %v3393 = vmul.f32 %v1725, %v3377
      %v3394 = vmul.f32 %v1724, %v3380
      %v3395 = vmul.f32 %v1726, %v3383
      %v3396 = vmul.f32 %v1734, %v3386
      %v3397 = vmul.f32 %v1742, %v3387
      %v3398 = vmul.f32 %v1741, %v3377
      %v3399 = vmul.f32 %v1743, %v3380
      %v3400 = vmul.f32 %v1751, %v3383
      %v3401 = vmul.f32 %v1759, %v3386
      %v3402 = vmul.f32 %v1758, %v3387
      %v3403 = vmul.f32 %v1760, %v3377
      %v3404 = vmul.f32 %v1768, %v3380
      %v3405 = vmul.f32 %v1776, %v3383
      %v3406 = vmul.f32 %v1775, %v3386
      %v3407 = vmul.f32 %v1777, %v3387
      %v3408 = vmul.f32 %v1785, %v3377
      %v3409 = vmul.f32 %v1793, %v3380
      %v3410 = vmul.f32 %v1792, %v3383
      %v3411 = vmul.f32 %v1794, %v3386
      %v3412 = vmul.f32 %v1802, %v3387
      %v3413 = vmul.f32 %v1810, %v3377
      %v3414 = vmul.f32 %v1809, %v3380
      %v3415 = vmul.f32 %v1811, %v3383
      %v3416 = vmul.f32 %v1819, %v3386
      %v3417 = vmul.f32 %v1827, %v3387
      %v3418 = vmul.f32 %v1826, %v3377
      %v3419 = vmul.f32 %v1828, %v3380
      %v3420 = vmul.f32 %v1836, %v3383
      %v3421 = vmul.f32 %v1844, %v3386
      %v3422 = vmul.f32 %v1843, %v3387
      %v3423 = vmul.f32 %v1845, %v3377
      %v3424 = vmul.f32 %v1853, %v3380
      %v3425 = vmul.f32 %v1861, %v3383
      %v3426 = vmul.f32 %v1860, %v3386
      %v3427 = vmul.f32 %v1862, %v3387
      %v3428 = vmul.f32 %v1870, %v3377
      %v3429 = vmul.f32 %v1878, %v3380
      %v3430 = vmul.f32 %v1877, %v3383
      %v3431 = vmul.f32 %v1879, %v3386
      %v3432 = vmul.f32 %v1887, %v3387
      %v3473 = vrot.slane %v3393, 7
      %v3474 = vrot.slane %v3473, 2
      %v3475 = vrot.slane %v3394, 7
      %v3476 = vsel %vm2444, %v3474, %v3475
      %v3477 = vrot.slane %v3475, 2
      %v3478 = vrot.slane %v3395, 7
      %v3479 = vsel %vm2444, %v3477, %v3478
      %v3480 = vrot.slane %v3478, 2
      %v3481 = vrot.slane %v3396, 7
      %v3482 = vsel %vm2444, %v3480, %v3481
      %v3483 = vrot.slane %v3481, 2
      %v3484 = vrot.slane %v3397, 7
      %v3485 = vsel %vm2444, %v3483, %v3484
      %v3486 = vrot.slane %v3398, 7
      %v3487 = vrot.slane %v3486, 2
      %v3488 = vrot.slane %v3399, 7
      %v3489 = vsel %vm2444, %v3487, %v3488
      %v3490 = vrot.slane %v3488, 2
      %v3491 = vrot.slane %v3400, 7
      %v3492 = vsel %vm2444, %v3490, %v3491
      %v3493 = vrot.slane %v3491, 2
      %v3494 = vrot.slane %v3401, 7
      %v3495 = vsel %vm2444, %v3493, %v3494
      %v3496 = vrot.slane %v3494, 2
      %v3497 = vrot.slane %v3402, 7
      %v3498 = vsel %vm2444, %v3496, %v3497
      %v3499 = vrot.slane %v3403, 7
      %v3500 = vrot.slane %v3499, 2
      %v3501 = vrot.slane %v3404, 7
      %v3502 = vsel %vm2444, %v3500, %v3501
      %v3503 = vrot.slane %v3501, 2
      %v3504 = vrot.slane %v3405, 7
      %v3505 = vsel %vm2444, %v3503, %v3504
      %v3506 = vrot.slane %v3504, 2
      %v3507 = vrot.slane %v3406, 7
      %v3508 = vsel %vm2444, %v3506, %v3507
      %v3509 = vrot.slane %v3507, 2
      %v3510 = vrot.slane %v3407, 7
      %v3511 = vsel %vm2444, %v3509, %v3510
      %v3512 = vrot.slane %v3408, 7
      %v3513 = vrot.slane %v3512, 2
      %v3514 = vrot.slane %v3409, 7
      %v3515 = vsel %vm2444, %v3513, %v3514
      %v3516 = vrot.slane %v3514, 2
      %v3517 = vrot.slane %v3410, 7
      %v3518 = vsel %vm2444, %v3516, %v3517
      %v3519 = vrot.slane %v3517, 2
      %v3520 = vrot.slane %v3411, 7
      %v3521 = vsel %vm2444, %v3519, %v3520
      %v3522 = vrot.slane %v3520, 2
      %v3523 = vrot.slane %v3412, 7
      %v3524 = vsel %vm2444, %v3522, %v3523
      %v3525 = vrot.slane %v3413, 7
      %v3526 = vrot.slane %v3525, 2
      %v3527 = vrot.slane %v3414, 7
      %v3528 = vsel %vm2444, %v3526, %v3527
      %v3529 = vrot.slane %v3527, 2
      %v3530 = vrot.slane %v3415, 7
      %v3531 = vsel %vm2444, %v3529, %v3530
      %v3532 = vrot.slane %v3530, 2
      %v3533 = vrot.slane %v3416, 7
      %v3534 = vsel %vm2444, %v3532, %v3533
      %v3535 = vrot.slane %v3533, 2
      %v3536 = vrot.slane %v3417, 7
      %v3537 = vsel %vm2444, %v3535, %v3536
      %v3538 = vrot.slane %v3418, 7
      %v3539 = vrot.slane %v3538, 2
      %v3540 = vrot.slane %v3419, 7
      %v3541 = vsel %vm2444, %v3539, %v3540
      %v3542 = vrot.slane %v3540, 2
      %v3543 = vrot.slane %v3420, 7
      %v3544 = vsel %vm2444, %v3542, %v3543
      %v3545 = vrot.slane %v3543, 2
      %v3546 = vrot.slane %v3421, 7
      %v3547 = vsel %vm2444, %v3545, %v3546
      %v3548 = vrot.slane %v3546, 2
      %v3549 = vrot.slane %v3422, 7
      %v3550 = vsel %vm2444, %v3548, %v3549
      %v3551 = vrot.slane %v3423, 7
      %v3552 = vrot.slane %v3551, 2
      %v3553 = vrot.slane %v3424, 7
      %v3554 = vsel %vm2444, %v3552, %v3553
      %v3555 = vrot.slane %v3553, 2
      %v3556 = vrot.slane %v3425, 7
      %v3557 = vsel %vm2444, %v3555, %v3556
      %v3558 = vrot.slane %v3556, 2
      %v3559 = vrot.slane %v3426, 7
      %v3560 = vsel %vm2444, %v3558, %v3559
      %v3561 = vrot.slane %v3559, 2
      %v3562 = vrot.slane %v3427, 7
      %v3563 = vsel %vm2444, %v3561, %v3562
      %v3564 = vrot.slane %v3428, 7
      %v3565 = vrot.slane %v3564, 2
      %v3566 = vrot.slane %v3429, 7
      %v3567 = vsel %vm2444, %v3565, %v3566
      %v3568 = vrot.slane %v3566, 2
      %v3569 = vrot.slane %v3430, 7
      %v3570 = vsel %vm2444, %v3568, %v3569
      %v3571 = vrot.slane %v3569, 2
      %v3572 = vrot.slane %v3431, 7
      %v3573 = vsel %vm2444, %v3571, %v3572
      %v3574 = vrot.slane %v3572, 2
      %v3575 = vrot.slane %v3432, 7
      %v3576 = vsel %vm2444, %v3574, %v3575
      %v3609 = vadd.f32 %v3233, %v3476
      %v3610 = vadd.f32 %v3234, %v3479
      %v3611 = vadd.f32 %v3235, %v3482
      %v3612 = vadd.f32 %v3236, %v3485
      %v3613 = vadd.f32 %v3237, %v3489
      %v3614 = vadd.f32 %v3238, %v3492
      %v3615 = vadd.f32 %v3239, %v3495
      %v3616 = vadd.f32 %v3240, %v3498
      %v3617 = vadd.f32 %v3241, %v3502
      %v3618 = vadd.f32 %v3242, %v3505
      %v3619 = vadd.f32 %v3243, %v3508
      %v3620 = vadd.f32 %v3244, %v3511
      %v3621 = vadd.f32 %v3245, %v3515
      %v3622 = vadd.f32 %v3246, %v3518
      %v3623 = vadd.f32 %v3247, %v3521
      %v3624 = vadd.f32 %v3248, %v3524
      %v3625 = vadd.f32 %v3249, %v3528
      %v3626 = vadd.f32 %v3250, %v3531
      %v3627 = vadd.f32 %v3251, %v3534
      %v3628 = vadd.f32 %v3252, %v3537
      %v3629 = vadd.f32 %v3253, %v3541
      %v3630 = vadd.f32 %v3254, %v3544
      %v3631 = vadd.f32 %v3255, %v3547
      %v3632 = vadd.f32 %v3256, %v3550
      %v3633 = vadd.f32 %v3257, %v3554
      %v3634 = vadd.f32 %v3258, %v3557
      %v3635 = vadd.f32 %v3259, %v3560
      %v3636 = vadd.f32 %v3260, %v3563
      %v3637 = vadd.f32 %v3261, %v3567
      %v3638 = vadd.f32 %v3262, %v3570
      %v3639 = vadd.f32 %v3263, %v3573
      %v3640 = vadd.f32 %v3264, %v3576
      %v3641 = vlaneseq
      %v3642 = vshrl.u32 %v3641, 7
      %v3643 = vsub.s32 1, %v3642
      %v3644 = vrot.slane %v2234, %v3643
      %v3646 = vcombine.high %v3644, %v3644
      %v3648 = vunpack.c.l.s4 1983009808
      %v3649 = vunpack.c.0.s8 %v3648
      %v3650 = vlaneseq
      %v3651 = vshrl.u32 %v3650, 7
      %v3652 = vsub.s32 %v3649, %v3651
      %v3653 = vrot.slane %v3644, %v3652
      %v3655 = vunpack.c.l.s4 1983009808
      %v3656 = vunpack.c.0.s8 %v3655
      %v3657 = vlaneseq
      %v3658 = vshrl.u32 %v3657, 7
      %v3659 = vsub.s32 %v3656, %v3658
      %v3660 = vrot.slane %v3646, %v3659
      %v3661 = vcombine.high %v3653, %v3653
      %v3662 = vcombine.high %v3660, %v3660
      %v3663 = vrot.slane %v3653, 7
      %v3664 = vrot.slane %v3663, 2
      %v3665 = vrot.slane %v3661, 7
      %v3666 = vsel %vm2444, %v3664, %v3665
      %v3667 = vrot.slane %v3665, 2
      %v3668 = vrot.slane %v3660, 7
      %v3669 = vsel %vm2444, %v3667, %v3668
      %v3670 = vrot.slane %v3668, 2
      %v3671 = vrot.slane %v3662, 7
      %v3672 = vsel %vm2444, %v3670, %v3671
      %v3673 = vrot.slane %v3671, 2
      %v3679 = vmul.f32 %v2000, %v3663
      %v3680 = vmul.f32 %v1999, %v3666
      %v3681 = vmul.f32 %v2001, %v3669
      %v3682 = vmul.f32 %v2009, %v3672
      %v3683 = vmul.f32 %v2017, %v3673
      %v3684 = vmul.f32 %v2016, %v3663
      %v3685 = vmul.f32 %v2018, %v3666
      %v3686 = vmul.f32 %v2026, %v3669
      %v3687 = vmul.f32 %v2034, %v3672
      %v3688 = vmul.f32 %v2033, %v3673
      %v3689 = vmul.f32 %v2035, %v3663
      %v3690 = vmul.f32 %v2043, %v3666
      %v3691 = vmul.f32 %v2051, %v3669
      %v3692 = vmul.f32 %v2050, %v3672
      %v3693 = vmul.f32 %v2052, %v3673
      %v3694 = vmul.f32 %v2060, %v3663
      %v3695 = vmul.f32 %v2068, %v3666
      %v3696 = vmul.f32 %v2067, %v3669
      %v3697 = vmul.f32 %v2069, %v3672
      %v3698 = vmul.f32 %v2077, %v3673
      %v3699 = vmul.f32 %v2085, %v3663
      %v3700 = vmul.f32 %v2084, %v3666
      %v3701 = vmul.f32 %v2086, %v3669
      %v3702 = vmul.f32 %v2094, %v3672
      %v3703 = vmul.f32 %v2102, %v3673
      %v3704 = vmul.f32 %v2101, %v3663
      %v3705 = vmul.f32 %v2103, %v3666
      %v3706 = vmul.f32 %v2111, %v3669
      %v3707 = vmul.f32 %v2119, %v3672
      %v3708 = vmul.f32 %v2118, %v3673
      %v3709 = vmul.f32 %v2120, %v3663
      %v3710 = vmul.f32 %v2128, %v3666
      %v3711 = vmul.f32 %v2136, %v3669
      %v3712 = vmul.f32 %v2135, %v3672
      %v3713 = vmul.f32 %v2137, %v3673
      %v3714 = vmul.f32 %v2145, %v3663
      %v3715 = vmul.f32 %v2153, %v3666
      %v3716 = vmul.f32 %v2152, %v3669
      %v3717 = vmul.f32 %v2154, %v3672
      %v3718 = vmul.f32 %v2162, %v3673
      %v3759 = vrot.slane %v3679, 7
      %v3760 = vrot.slane %v3759, 2
      %v3761 = vrot.slane %v3680, 7
      %v3762 = vsel %vm2444, %v3760, %v3761
      %v3763 = vrot.slane %v3761, 2
      %v3764 = vrot.slane %v3681, 7
      %v3765 = vsel %vm2444, %v3763, %v3764
      %v3766 = vrot.slane %v3764, 2
      %v3767 = vrot.slane %v3682, 7
      %v3768 = vsel %vm2444, %v3766, %v3767
      %v3769 = vrot.slane %v3767, 2
      %v3770 = vrot.slane %v3683, 7
      %v3771 = vsel %vm2444, %v3769, %v3770
      %v3772 = vrot.slane %v3684, 7
      %v3773 = vrot.slane %v3772, 2
      %v3774 = vrot.slane %v3685, 7
      %v3775 = vsel %vm2444, %v3773, %v3774
      %v3776 = vrot.slane %v3774, 2
      %v3777 = vrot.slane %v3686, 7
      %v3778 = vsel %vm2444, %v3776, %v3777
      %v3779 = vrot.slane %v3777, 2
      %v3780 = vrot.slane %v3687, 7
      %v3781 = vsel %vm2444, %v3779, %v3780
      %v3782 = vrot.slane %v3780, 2
      %v3783 = vrot.slane %v3688, 7
      %v3784 = vsel %vm2444, %v3782, %v3783
      %v3785 = vrot.slane %v3689, 7
      %v3786 = vrot.slane %v3785, 2
      %v3787 = vrot.slane %v3690, 7
      %v3788 = vsel %vm2444, %v3786, %v3787
      %v3789 = vrot.slane %v3787, 2
      %v3790 = vrot.slane %v3691, 7
      %v3791 = vsel %vm2444, %v3789, %v3790
      %v3792 = vrot.slane %v3790, 2
      %v3793 = vrot.slane %v3692, 7
      %v3794 = vsel %vm2444, %v3792, %v3793
      %v3795 = vrot.slane %v3793, 2
      %v3796 = vrot.slane %v3693, 7
      %v3797 = vsel %vm2444, %v3795, %v3796
      %v3798 = vrot.slane %v3694, 7
      %v3799 = vrot.slane %v3798, 2
      %v3800 = vrot.slane %v3695, 7
      %v3801 = vsel %vm2444, %v3799, %v3800
      %v3802 = vrot.slane %v3800, 2
      %v3803 = vrot.slane %v3696, 7
      %v3804 = vsel %vm2444, %v3802, %v3803
      %v3805 = vrot.slane %v3803, 2
      %v3806 = vrot.slane %v3697, 7
      %v3807 = vsel %vm2444, %v3805, %v3806
      %v3808 = vrot.slane %v3806, 2
      %v3809 = vrot.slane %v3698, 7
      %v3810 = vsel %vm2444, %v3808, %v3809
      %v3811 = vrot.slane %v3699, 7
      %v3812 = vrot.slane %v3811, 2
      %v3813 = vrot.slane %v3700, 7
      %v3814 = vsel %vm2444, %v3812, %v3813
      %v3815 = vrot.slane %v3813, 2
      %v3816 = vrot.slane %v3701, 7
      %v3817 = vsel %vm2444, %v3815, %v3816
      %v3818 = vrot.slane %v3816, 2
      %v3819 = vrot.slane %v3702, 7
      %v3820 = vsel %vm2444, %v3818, %v3819
      %v3821 = vrot.slane %v3819, 2
      %v3822 = vrot.slane %v3703, 7
      %v3823 = vsel %vm2444, %v3821, %v3822
      %v3824 = vrot.slane %v3704, 7
      %v3825 = vrot.slane %v3824, 2
      %v3826 = vrot.slane %v3705, 7
      %v3827 = vsel %vm2444, %v3825, %v3826
      %v3828 = vrot.slane %v3826, 2
      %v3829 = vrot.slane %v3706, 7
      %v3830 = vsel %vm2444, %v3828, %v3829
      %v3831 = vrot.slane %v3829, 2
      %v3832 = vrot.slane %v3707, 7
      %v3833 = vsel %vm2444, %v3831, %v3832
      %v3834 = vrot.slane %v3832, 2
      %v3835 = vrot.slane %v3708, 7
      %v3836 = vsel %vm2444, %v3834, %v3835
      %v3837 = vrot.slane %v3709, 7
      %v3838 = vrot.slane %v3837, 2
      %v3839 = vrot.slane %v3710, 7
      %v3840 = vsel %vm2444, %v3838, %v3839
      %v3841 = vrot.slane %v3839, 2
      %v3842 = vrot.slane %v3711, 7
      %v3843 = vsel %vm2444, %v3841, %v3842
      %v3844 = vrot.slane %v3842, 2
      %v3845 = vrot.slane %v3712, 7
      %v3846 = vsel %vm2444, %v3844, %v3845
      %v3847 = vrot.slane %v3845, 2
      %v3848 = vrot.slane %v3713, 7
      %v3849 = vsel %vm2444, %v3847, %v3848
      %v3850 = vrot.slane %v3714, 7
      %v3851 = vrot.slane %v3850, 2
      %v3852 = vrot.slane %v3715, 7
      %v3853 = vsel %vm2444, %v3851, %v3852
      %v3854 = vrot.slane %v3852, 2
      %v3855 = vrot.slane %v3716, 7
      %v3856 = vsel %vm2444, %v3854, %v3855
      %v3857 = vrot.slane %v3855, 2
      %v3858 = vrot.slane %v3717, 7
      %v3859 = vsel %vm2444, %v3857, %v3858
      %v3860 = vrot.slane %v3858, 2
      %v3861 = vrot.slane %v3718, 7
      %v3862 = vsel %vm2444, %v3860, %v3861
      %v3895 = vadd.f32 %v3323, %v3762
      %v3896 = vadd.f32 %v3324, %v3765
      %v3897 = vadd.f32 %v3325, %v3768
      %v3898 = vadd.f32 %v3326, %v3771
      %v3899 = vadd.f32 %v3327, %v3775
      %v3900 = vadd.f32 %v3328, %v3778
      %v3901 = vadd.f32 %v3329, %v3781
      %v3902 = vadd.f32 %v3330, %v3784
      %v3903 = vadd.f32 %v3331, %v3788
      %v3904 = vadd.f32 %v3332, %v3791
      %v3905 = vadd.f32 %v3333, %v3794
      %v3906 = vadd.f32 %v3334, %v3797
      %v3907 = vadd.f32 %v3335, %v3801
      %v3908 = vadd.f32 %v3336, %v3804
      %v3909 = vadd.f32 %v3337, %v3807
      %v3910 = vadd.f32 %v3338, %v3810
      %v3911 = vadd.f32 %v3339, %v3814
      %v3912 = vadd.f32 %v3340, %v3817
      %v3913 = vadd.f32 %v3341, %v3820
      %v3914 = vadd.f32 %v3342, %v3823
      %v3915 = vadd.f32 %v3343, %v3827
      %v3916 = vadd.f32 %v3344, %v3830
      %v3917 = vadd.f32 %v3345, %v3833
      %v3918 = vadd.f32 %v3346, %v3836
      %v3919 = vadd.f32 %v3347, %v3840
      %v3920 = vadd.f32 %v3348, %v3843
      %v3921 = vadd.f32 %v3349, %v3846
      %v3922 = vadd.f32 %v3350, %v3849
      %v3923 = vadd.f32 %v3351, %v3853
      %v3924 = vadd.f32 %v3352, %v3856
      %v3925 = vadd.f32 %v3353, %v3859
      %v3926 = vadd.f32 %v3354, %v3862
      %v3927 = vlaneseq
      %v3928 = vshrl.u32 %v3927, 7
      %v3929 = vsub.s32 2, %v3928
      %v3930 = vrot.slane %v2231, %v3929
      %v3932 = vcombine.high %v3930, %v3930
      %v3934 = vunpack.c.l.s4 1983009808
      %v3935 = vunpack.c.0.s8 %v3934
      %v3936 = vlaneseq
      %v3937 = vshrl.u32 %v3936, 7
      %v3938 = vsub.s32 %v3935, %v3937
      %v3939 = vrot.slane %v3930, %v3938
      %v3941 = vunpack.c.l.s4 1983009808
      %v3942 = vunpack.c.0.s8 %v3941
      %v3943 = vlaneseq
      %v3944 = vshrl.u32 %v3943, 7
      %v3945 = vsub.s32 %v3942, %v3944
      %v3946 = vrot.slane %v3932, %v3945
      %v3947 = vcombine.high %v3939, %v3939
      %v3948 = vcombine.high %v3946, %v3946
      %v3953 = vmul.f32 %v1724, %v3939
      %v3954 = vmul.f32 %v1726, %v3947
      %v3955 = vmul.f32 %v1734, %v3946
      %v3956 = vmul.f32 %v1742, %v3948
      %v3957 = vmul.f32 %v1743, %v3939
      %v3958 = vmul.f32 %v1751, %v3947
      %v3959 = vmul.f32 %v1759, %v3946
      %v3960 = vmul.f32 %v1758, %v3948
      %v3961 = vmul.f32 %v1768, %v3939
      %v3962 = vmul.f32 %v1776, %v3947
      %v3963 = vmul.f32 %v1775, %v3946
      %v3964 = vmul.f32 %v1777, %v3948
      %v3965 = vmul.f32 %v1793, %v3939
      %v3966 = vmul.f32 %v1792, %v3947
      %v3967 = vmul.f32 %v1794, %v3946
      %v3968 = vmul.f32 %v1802, %v3948
      %v3969 = vmul.f32 %v1809, %v3939
      %v3970 = vmul.f32 %v1811, %v3947
      %v3971 = vmul.f32 %v1819, %v3946
      %v3972 = vmul.f32 %v1827, %v3948
      %v3973 = vmul.f32 %v1828, %v3939
      %v3974 = vmul.f32 %v1836, %v3947
      %v3975 = vmul.f32 %v1844, %v3946
      %v3976 = vmul.f32 %v1843, %v3948
      %v3977 = vmul.f32 %v1853, %v3939
      %v3978 = vmul.f32 %v1861, %v3947
      %v3979 = vmul.f32 %v1860, %v3946
      %v3980 = vmul.f32 %v1862, %v3948
      %v3981 = vmul.f32 %v1878, %v3939
      %v3982 = vmul.f32 %v1877, %v3947
      %v3983 = vmul.f32 %v1879, %v3946
      %v3984 = vmul.f32 %v1887, %v3948
      %v3985 = vadd.f32 %v3609, %v3953
      %v3986 = vadd.f32 %v3610, %v3954
      %v3987 = vadd.f32 %v3611, %v3955
      %v3988 = vadd.f32 %v3612, %v3956
      %v3989 = vadd.f32 %v3613, %v3957
      %v3990 = vadd.f32 %v3614, %v3958
      %v3991 = vadd.f32 %v3615, %v3959
      %v3992 = vadd.f32 %v3616, %v3960
      %v3993 = vadd.f32 %v3617, %v3961
      %v3994 = vadd.f32 %v3618, %v3962
      %v3995 = vadd.f32 %v3619, %v3963
      %v3996 = vadd.f32 %v3620, %v3964
      %v3997 = vadd.f32 %v3621, %v3965
      %v3998 = vadd.f32 %v3622, %v3966
      %v3999 = vadd.f32 %v3623, %v3967
      %v4000 = vadd.f32 %v3624, %v3968
      %v4001 = vadd.f32 %v3625, %v3969
      %v4002 = vadd.f32 %v3626, %v3970
      %v4003 = vadd.f32 %v3627, %v3971
      %v4004 = vadd.f32 %v3628, %v3972
      %v4005 = vadd.f32 %v3629, %v3973
      %v4006 = vadd.f32 %v3630, %v3974
      %v4007 = vadd.f32 %v3631, %v3975
      %v4008 = vadd.f32 %v3632, %v3976
      %v4009 = vadd.f32 %v3633, %v3977
      %v4010 = vadd.f32 %v3634, %v3978
      %v4011 = vadd.f32 %v3635, %v3979
      %v4012 = vadd.f32 %v3636, %v3980
      %v4013 = vadd.f32 %v3637, %v3981
      %v4014 = vadd.f32 %v3638, %v3982
      %v4015 = vadd.f32 %v3639, %v3983
      %v4016 = vadd.f32 %v3640, %v3984
      %v4017 = vlaneseq
      %v4018 = vshrl.u32 %v4017, 7
      %v4019 = vsub.s32 2, %v4018
      %v4020 = vrot.slane %v2234, %v4019
      %v4022 = vcombine.high %v4020, %v4020
      %v4024 = vunpack.c.l.s4 1983009808
      %v4025 = vunpack.c.0.s8 %v4024
      %v4026 = vlaneseq
      %v4027 = vshrl.u32 %v4026, 7
      %v4028 = vsub.s32 %v4025, %v4027
      %v4029 = vrot.slane %v4020, %v4028
      %v4031 = vunpack.c.l.s4 1983009808
      %v4032 = vunpack.c.0.s8 %v4031
      %v4033 = vlaneseq
      %v4034 = vshrl.u32 %v4033, 7
      %v4035 = vsub.s32 %v4032, %v4034
      %v4036 = vrot.slane %v4022, %v4035
      %v4037 = vcombine.high %v4029, %v4029
      %v4038 = vcombine.high %v4036, %v4036
      %v4043 = vmul.f32 %v1999, %v4029
      %v4044 = vmul.f32 %v2001, %v4037
      %v4045 = vmul.f32 %v2009, %v4036
      %v4046 = vmul.f32 %v2017, %v4038
      %v4047 = vmul.f32 %v2018, %v4029
      %v4048 = vmul.f32 %v2026, %v4037
      %v4049 = vmul.f32 %v2034, %v4036
      %v4050 = vmul.f32 %v2033, %v4038
      %v4051 = vmul.f32 %v2043, %v4029
      %v4052 = vmul.f32 %v2051, %v4037
      %v4053 = vmul.f32 %v2050, %v4036
      %v4054 = vmul.f32 %v2052, %v4038
      %v4055 = vmul.f32 %v2068, %v4029
      %v4056 = vmul.f32 %v2067, %v4037
      %v4057 = vmul.f32 %v2069, %v4036
      %v4058 = vmul.f32 %v2077, %v4038
      %v4059 = vmul.f32 %v2084, %v4029
      %v4060 = vmul.f32 %v2086, %v4037
      %v4061 = vmul.f32 %v2094, %v4036
      %v4062 = vmul.f32 %v2102, %v4038
      %v4063 = vmul.f32 %v2103, %v4029
      %v4064 = vmul.f32 %v2111, %v4037
      %v4065 = vmul.f32 %v2119, %v4036
      %v4066 = vmul.f32 %v2118, %v4038
      %v4067 = vmul.f32 %v2128, %v4029
      %v4068 = vmul.f32 %v2136, %v4037
      %v4069 = vmul.f32 %v2135, %v4036
      %v4070 = vmul.f32 %v2137, %v4038
      %v4071 = vmul.f32 %v2153, %v4029
      %v4072 = vmul.f32 %v2152, %v4037
      %v4073 = vmul.f32 %v2154, %v4036
      %v4074 = vmul.f32 %v2162, %v4038
      %v4075 = vadd.f32 %v3895, %v4043
      %v4076 = vadd.f32 %v3896, %v4044
      %v4077 = vadd.f32 %v3897, %v4045
      %v4078 = vadd.f32 %v3898, %v4046
      %v4079 = vadd.f32 %v3899, %v4047
      %v4080 = vadd.f32 %v3900, %v4048
      %v4081 = vadd.f32 %v3901, %v4049
      %v4082 = vadd.f32 %v3902, %v4050
      %v4083 = vadd.f32 %v3903, %v4051
      %v4084 = vadd.f32 %v3904, %v4052
      %v4085 = vadd.f32 %v3905, %v4053
      %v4086 = vadd.f32 %v3906, %v4054
      %v4087 = vadd.f32 %v3907, %v4055
      %v4088 = vadd.f32 %v3908, %v4056
      %v4089 = vadd.f32 %v3909, %v4057
      %v4090 = vadd.f32 %v3910, %v4058
      %v4091 = vadd.f32 %v3911, %v4059
      %v4092 = vadd.f32 %v3912, %v4060
      %v4093 = vadd.f32 %v3913, %v4061
      %v4094 = vadd.f32 %v3914, %v4062
      %v4095 = vadd.f32 %v3915, %v4063
      %v4096 = vadd.f32 %v3916, %v4064
      %v4097 = vadd.f32 %v3917, %v4065
      %v4098 = vadd.f32 %v3918, %v4066
      %v4099 = vadd.f32 %v3919, %v4067
      %v4100 = vadd.f32 %v3920, %v4068
      %v4101 = vadd.f32 %v3921, %v4069
      %v4102 = vadd.f32 %v3922, %v4070
      %v4103 = vadd.f32 %v3923, %v4071
      %v4104 = vadd.f32 %v3924, %v4072
      %v4105 = vadd.f32 %v3925, %v4073
      %v4106 = vadd.f32 %v3926, %v4074
      %v4107 = vlaneseq
      %v4108 = vshrl.u32 %v4107, 7
      %v4109 = vsub.s32 0, %v4108
      %v4110 = vrot.slane %v2232, %v4109
      %v4112 = vcombine.high %v4110, %v4110
      %v4114 = vunpack.c.l.s4 1983009808
      %v4115 = vunpack.c.0.s8 %v4114
      %v4116 = vlaneseq
      %v4117 = vshrl.u32 %v4116, 7
      %v4118 = vsub.s32 %v4115, %v4117
      %v4119 = vrot.slane %v4110, %v4118
      %v4121 = vunpack.c.l.s4 1983009808
      %v4122 = vunpack.c.0.s8 %v4121
      %v4123 = vlaneseq
      %v4124 = vshrl.u32 %v4123, 7
      %v4125 = vsub.s32 %v4122, %v4124
      %v4126 = vrot.slane %v4112, %v4125
      %v4127 = vcombine.high %v4119, %v4119
      %v4128 = vcombine.high %v4126, %v4126
      %v4133 = vmul.f32 %v1741, %v4119
      %v4134 = vmul.f32 %v1743, %v4127
      %v4135 = vmul.f32 %v1751, %v4126
      %v4136 = vmul.f32 %v1759, %v4128
      %v4137 = vmul.f32 %v1760, %v4119
      %v4138 = vmul.f32 %v1768, %v4127
      %v4139 = vmul.f32 %v1776, %v4126
      %v4140 = vmul.f32 %v1775, %v4128
      %v4141 = vmul.f32 %v1785, %v4119
      %v4142 = vmul.f32 %v1793, %v4127
      %v4143 = vmul.f32 %v1792, %v4126
      %v4144 = vmul.f32 %v1794, %v4128
      %v4145 = vmul.f32 %v1810, %v4119
      %v4146 = vmul.f32 %v1809, %v4127
      %v4147 = vmul.f32 %v1811, %v4126
      %v4148 = vmul.f32 %v1819, %v4128
      %v4149 = vmul.f32 %v1826, %v4119
      %v4150 = vmul.f32 %v1828, %v4127
      %v4151 = vmul.f32 %v1836, %v4126
      %v4152 = vmul.f32 %v1844, %v4128
      %v4153 = vmul.f32 %v1845, %v4119
      %v4154 = vmul.f32 %v1853, %v4127
      %v4155 = vmul.f32 %v1861, %v4126
      %v4156 = vmul.f32 %v1860, %v4128
      %v4157 = vmul.f32 %v1870, %v4119
      %v4158 = vmul.f32 %v1878, %v4127
      %v4159 = vmul.f32 %v1877, %v4126
      %v4160 = vmul.f32 %v1879, %v4128
      %v4161 = vmul.f32 %v1895, %v4119
      %v4162 = vmul.f32 %v1894, %v4127
      %v4163 = vmul.f32 %v1896, %v4126
      %v4164 = vmul.f32 %v1903, %v4128
      %v4165 = vadd.f32 %v3985, %v4133
      %v4166 = vadd.f32 %v3986, %v4134
      %v4167 = vadd.f32 %v3987, %v4135
      %v4168 = vadd.f32 %v3988, %v4136
      %v4169 = vadd.f32 %v3989, %v4137
      %v4170 = vadd.f32 %v3990, %v4138
      %v4171 = vadd.f32 %v3991, %v4139
      %v4172 = vadd.f32 %v3992, %v4140
      %v4173 = vadd.f32 %v3993, %v4141
      %v4174 = vadd.f32 %v3994, %v4142
      %v4175 = vadd.f32 %v3995, %v4143
      %v4176 = vadd.f32 %v3996, %v4144
      %v4177 = vadd.f32 %v3997, %v4145
      %v4178 = vadd.f32 %v3998, %v4146
      %v4179 = vadd.f32 %v3999, %v4147
      %v4180 = vadd.f32 %v4000, %v4148
      %v4181 = vadd.f32 %v4001, %v4149
      %v4182 = vadd.f32 %v4002, %v4150
      %v4183 = vadd.f32 %v4003, %v4151
      %v4184 = vadd.f32 %v4004, %v4152
      %v4185 = vadd.f32 %v4005, %v4153
      %v4186 = vadd.f32 %v4006, %v4154
      %v4187 = vadd.f32 %v4007, %v4155
      %v4188 = vadd.f32 %v4008, %v4156
      %v4189 = vadd.f32 %v4009, %v4157
      %v4190 = vadd.f32 %v4010, %v4158
      %v4191 = vadd.f32 %v4011, %v4159
      %v4192 = vadd.f32 %v4012, %v4160
      %v4193 = vadd.f32 %v4013, %v4161
      %v4194 = vadd.f32 %v4014, %v4162
      %v4195 = vadd.f32 %v4015, %v4163
      %v4196 = vadd.f32 %v4016, %v4164
      %v4197 = vlaneseq
      %v4198 = vshrl.u32 %v4197, 7
      %v4199 = vsub.s32 0, %v4198
      %v4200 = vrot.slane %v2235, %v4199
      %v4202 = vcombine.high %v4200, %v4200
      %v4204 = vunpack.c.l.s4 1983009808
      %v4205 = vunpack.c.0.s8 %v4204
      %v4206 = vlaneseq
      %v4207 = vshrl.u32 %v4206, 7
      %v4208 = vsub.s32 %v4205, %v4207
      %v4209 = vrot.slane %v4200, %v4208
      %v4211 = vunpack.c.l.s4 1983009808
      %v4212 = vunpack.c.0.s8 %v4211
      %v4213 = vlaneseq
      %v4214 = vshrl.u32 %v4213, 7
      %v4215 = vsub.s32 %v4212, %v4214
      %v4216 = vrot.slane %v4202, %v4215
      %v4217 = vcombine.high %v4209, %v4209
      %v4218 = vcombine.high %v4216, %v4216
      %v4223 = vmul.f32 %v2016, %v4209
      %v4224 = vmul.f32 %v2018, %v4217
      %v4225 = vmul.f32 %v2026, %v4216
      %v4226 = vmul.f32 %v2034, %v4218
      %v4227 = vmul.f32 %v2035, %v4209
      %v4228 = vmul.f32 %v2043, %v4217
      %v4229 = vmul.f32 %v2051, %v4216
      %v4230 = vmul.f32 %v2050, %v4218
      %v4231 = vmul.f32 %v2060, %v4209
      %v4232 = vmul.f32 %v2068, %v4217
      %v4233 = vmul.f32 %v2067, %v4216
      %v4234 = vmul.f32 %v2069, %v4218
      %v4235 = vmul.f32 %v2085, %v4209
      %v4236 = vmul.f32 %v2084, %v4217
      %v4237 = vmul.f32 %v2086, %v4216
      %v4238 = vmul.f32 %v2094, %v4218
      %v4239 = vmul.f32 %v2101, %v4209
      %v4240 = vmul.f32 %v2103, %v4217
      %v4241 = vmul.f32 %v2111, %v4216
      %v4242 = vmul.f32 %v2119, %v4218
      %v4243 = vmul.f32 %v2120, %v4209
      %v4244 = vmul.f32 %v2128, %v4217
      %v4245 = vmul.f32 %v2136, %v4216
      %v4246 = vmul.f32 %v2135, %v4218
      %v4247 = vmul.f32 %v2145, %v4209
      %v4248 = vmul.f32 %v2153, %v4217
      %v4249 = vmul.f32 %v2152, %v4216
      %v4250 = vmul.f32 %v2154, %v4218
      %v4251 = vmul.f32 %v2170, %v4209
      %v4252 = vmul.f32 %v2169, %v4217
      %v4253 = vmul.f32 %v2171, %v4216
      %v4254 = vmul.f32 %v2178, %v4218
      %v4255 = vadd.f32 %v4075, %v4223
      %v4256 = vadd.f32 %v4076, %v4224
      %v4257 = vadd.f32 %v4077, %v4225
      %v4258 = vadd.f32 %v4078, %v4226
      %v4259 = vadd.f32 %v4079, %v4227
      %v4260 = vadd.f32 %v4080, %v4228
      %v4261 = vadd.f32 %v4081, %v4229
      %v4262 = vadd.f32 %v4082, %v4230
      %v4263 = vadd.f32 %v4083, %v4231
      %v4264 = vadd.f32 %v4084, %v4232
      %v4265 = vadd.f32 %v4085, %v4233
      %v4266 = vadd.f32 %v4086, %v4234
      %v4267 = vadd.f32 %v4087, %v4235
      %v4268 = vadd.f32 %v4088, %v4236
      %v4269 = vadd.f32 %v4089, %v4237
      %v4270 = vadd.f32 %v4090, %v4238
      %v4271 = vadd.f32 %v4091, %v4239
      %v4272 = vadd.f32 %v4092, %v4240
      %v4273 = vadd.f32 %v4093, %v4241
      %v4274 = vadd.f32 %v4094, %v4242
      %v4275 = vadd.f32 %v4095, %v4243
      %v4276 = vadd.f32 %v4096, %v4244
      %v4277 = vadd.f32 %v4097, %v4245
      %v4278 = vadd.f32 %v4098, %v4246
      %v4279 = vadd.f32 %v4099, %v4247
      %v4280 = vadd.f32 %v4100, %v4248
      %v4281 = vadd.f32 %v4101, %v4249
      %v4282 = vadd.f32 %v4102, %v4250
      %v4283 = vadd.f32 %v4103, %v4251
      %v4284 = vadd.f32 %v4104, %v4252
      %v4285 = vadd.f32 %v4105, %v4253
      %v4286 = vadd.f32 %v4106, %v4254
      %v4287 = vlaneseq
      %v4288 = vshrl.u32 %v4287, 7
      %v4289 = vsub.s32 1, %v4288
      %v4290 = vrot.slane %v2232, %v4289
      %v4292 = vcombine.high %v4290, %v4290
      %v4294 = vunpack.c.l.s4 1983009808
      %v4295 = vunpack.c.0.s8 %v4294
      %v4296 = vlaneseq
      %v4297 = vshrl.u32 %v4296, 7
      %v4298 = vsub.s32 %v4295, %v4297
      %v4299 = vrot.slane %v4290, %v4298
      %v4301 = vunpack.c.l.s4 1983009808
      %v4302 = vunpack.c.0.s8 %v4301
      %v4303 = vlaneseq
      %v4304 = vshrl.u32 %v4303, 7
      %v4305 = vsub.s32 %v4302, %v4304
      %v4306 = vrot.slane %v4292, %v4305
      %v4307 = vcombine.high %v4299, %v4299
      %v4308 = vcombine.high %v4306, %v4306
      %v4309 = vrot.slane %v4299, 7
      %v4310 = vrot.slane %v4309, 2
      %v4311 = vrot.slane %v4307, 7
      %v4312 = vsel %vm2444, %v4310, %v4311
      %v4313 = vrot.slane %v4311, 2
      %v4314 = vrot.slane %v4306, 7
      %v4315 = vsel %vm2444, %v4313, %v4314
      %v4316 = vrot.slane %v4314, 2
      %v4317 = vrot.slane %v4308, 7
      %v4318 = vsel %vm2444, %v4316, %v4317
      %v4319 = vrot.slane %v4317, 2
      %v4325 = vmul.f32 %v1741, %v4309
      %v4326 = vmul.f32 %v1743, %v4312
      %v4327 = vmul.f32 %v1751, %v4315
      %v4328 = vmul.f32 %v1759, %v4318
      %v4329 = vmul.f32 %v1758, %v4319
      %v4330 = vmul.f32 %v1760, %v4309
      %v4331 = vmul.f32 %v1768, %v4312
      %v4332 = vmul.f32 %v1776, %v4315
      %v4333 = vmul.f32 %v1775, %v4318
      %v4334 = vmul.f32 %v1777, %v4319
      %v4335 = vmul.f32 %v1785, %v4309
      %v4336 = vmul.f32 %v1793, %v4312
      %v4337 = vmul.f32 %v1792, %v4315
      %v4338 = vmul.f32 %v1794, %v4318
      %v4339 = vmul.f32 %v1802, %v4319
      %v4340 = vmul.f32 %v1810, %v4309
      %v4341 = vmul.f32 %v1809, %v4312
      %v4342 = vmul.f32 %v1811, %v4315
      %v4343 = vmul.f32 %v1819, %v4318
      %v4344 = vmul.f32 %v1827, %v4319
      %v4345 = vmul.f32 %v1826, %v4309
      %v4346 = vmul.f32 %v1828, %v4312
      %v4347 = vmul.f32 %v1836, %v4315
      %v4348 = vmul.f32 %v1844, %v4318
      %v4349 = vmul.f32 %v1843, %v4319
      %v4350 = vmul.f32 %v1845, %v4309
      %v4351 = vmul.f32 %v1853, %v4312
      %v4352 = vmul.f32 %v1861, %v4315
      %v4353 = vmul.f32 %v1860, %v4318
      %v4354 = vmul.f32 %v1862, %v4319
      %v4355 = vmul.f32 %v1870, %v4309
      %v4356 = vmul.f32 %v1878, %v4312
      %v4357 = vmul.f32 %v1877, %v4315
      %v4358 = vmul.f32 %v1879, %v4318
      %v4359 = vmul.f32 %v1887, %v4319
      %v4360 = vmul.f32 %v1895, %v4309
      %v4361 = vmul.f32 %v1894, %v4312
      %v4362 = vmul.f32 %v1896, %v4315
      %v4363 = vmul.f32 %v1903, %v4318
      %v4364 = vmul.f32 %v1904, %v4319
      %v4405 = vrot.slane %v4325, 7
      %v4406 = vrot.slane %v4405, 2
      %v4407 = vrot.slane %v4326, 7
      %v4408 = vsel %vm2444, %v4406, %v4407
      %v4409 = vrot.slane %v4407, 2
      %v4410 = vrot.slane %v4327, 7
      %v4411 = vsel %vm2444, %v4409, %v4410
      %v4412 = vrot.slane %v4410, 2
      %v4413 = vrot.slane %v4328, 7
      %v4414 = vsel %vm2444, %v4412, %v4413
      %v4415 = vrot.slane %v4413, 2
      %v4416 = vrot.slane %v4329, 7
      %v4417 = vsel %vm2444, %v4415, %v4416
      %v4418 = vrot.slane %v4330, 7
      %v4419 = vrot.slane %v4418, 2
      %v4420 = vrot.slane %v4331, 7
      %v4421 = vsel %vm2444, %v4419, %v4420
      %v4422 = vrot.slane %v4420, 2
      %v4423 = vrot.slane %v4332, 7
      %v4424 = vsel %vm2444, %v4422, %v4423
      %v4425 = vrot.slane %v4423, 2
      %v4426 = vrot.slane %v4333, 7
      %v4427 = vsel %vm2444, %v4425, %v4426
      %v4428 = vrot.slane %v4426, 2
      %v4429 = vrot.slane %v4334, 7
      %v4430 = vsel %vm2444, %v4428, %v4429
      %v4431 = vrot.slane %v4335, 7
      %v4432 = vrot.slane %v4431, 2
      %v4433 = vrot.slane %v4336, 7
      %v4434 = vsel %vm2444, %v4432, %v4433
      %v4435 = vrot.slane %v4433, 2
      %v4436 = vrot.slane %v4337, 7
      %v4437 = vsel %vm2444, %v4435, %v4436
      %v4438 = vrot.slane %v4436, 2
      %v4439 = vrot.slane %v4338, 7
      %v4440 = vsel %vm2444, %v4438, %v4439
      %v4441 = vrot.slane %v4439, 2
      %v4442 = vrot.slane %v4339, 7
      %v4443 = vsel %vm2444, %v4441, %v4442
      %v4444 = vrot.slane %v4340, 7
      %v4445 = vrot.slane %v4444, 2
      %v4446 = vrot.slane %v4341, 7
      %v4447 = vsel %vm2444, %v4445, %v4446
      %v4448 = vrot.slane %v4446, 2
      %v4449 = vrot.slane %v4342, 7
      %v4450 = vsel %vm2444, %v4448, %v4449
      %v4451 = vrot.slane %v4449, 2
      %v4452 = vrot.slane %v4343, 7
      %v4453 = vsel %vm2444, %v4451, %v4452
      %v4454 = vrot.slane %v4452, 2
      %v4455 = vrot.slane %v4344, 7
      %v4456 = vsel %vm2444, %v4454, %v4455
      %v4457 = vrot.slane %v4345, 7
      %v4458 = vrot.slane %v4457, 2
      %v4459 = vrot.slane %v4346, 7
      %v4460 = vsel %vm2444, %v4458, %v4459
      %v4461 = vrot.slane %v4459, 2
      %v4462 = vrot.slane %v4347, 7
      %v4463 = vsel %vm2444, %v4461, %v4462
      %v4464 = vrot.slane %v4462, 2
      %v4465 = vrot.slane %v4348, 7
      %v4466 = vsel %vm2444, %v4464, %v4465
      %v4467 = vrot.slane %v4465, 2
      %v4468 = vrot.slane %v4349, 7
      %v4469 = vsel %vm2444, %v4467, %v4468
      %v4470 = vrot.slane %v4350, 7
      %v4471 = vrot.slane %v4470, 2
      %v4472 = vrot.slane %v4351, 7
      %v4473 = vsel %vm2444, %v4471, %v4472
      %v4474 = vrot.slane %v4472, 2
      %v4475 = vrot.slane %v4352, 7
      %v4476 = vsel %vm2444, %v4474, %v4475
      %v4477 = vrot.slane %v4475, 2
      %v4478 = vrot.slane %v4353, 7
      %v4479 = vsel %vm2444, %v4477, %v4478
      %v4480 = vrot.slane %v4478, 2
      %v4481 = vrot.slane %v4354, 7
      %v4482 = vsel %vm2444, %v4480, %v4481
      %v4483 = vrot.slane %v4355, 7
      %v4484 = vrot.slane %v4483, 2
      %v4485 = vrot.slane %v4356, 7
      %v4486 = vsel %vm2444, %v4484, %v4485
      %v4487 = vrot.slane %v4485, 2
      %v4488 = vrot.slane %v4357, 7
      %v4489 = vsel %vm2444, %v4487, %v4488
      %v4490 = vrot.slane %v4488, 2
      %v4491 = vrot.slane %v4358, 7
      %v4492 = vsel %vm2444, %v4490, %v4491
      %v4493 = vrot.slane %v4491, 2
      %v4494 = vrot.slane %v4359, 7
      %v4495 = vsel %vm2444, %v4493, %v4494
      %v4496 = vrot.slane %v4360, 7
      %v4497 = vrot.slane %v4496, 2
      %v4498 = vrot.slane %v4361, 7
      %v4499 = vsel %vm2444, %v4497, %v4498
      %v4500 = vrot.slane %v4498, 2
      %v4501 = vrot.slane %v4362, 7
      %v4502 = vsel %vm2444, %v4500, %v4501
      %v4503 = vrot.slane %v4501, 2
      %v4504 = vrot.slane %v4363, 7
      %v4505 = vsel %vm2444, %v4503, %v4504
      %v4506 = vrot.slane %v4504, 2
      %v4507 = vrot.slane %v4364, 7
      %v4508 = vsel %vm2444, %v4506, %v4507
      %v4541 = vadd.f32 %v4165, %v4408
      %v4542 = vadd.f32 %v4166, %v4411
      %v4543 = vadd.f32 %v4167, %v4414
      %v4544 = vadd.f32 %v4168, %v4417
      %v4545 = vadd.f32 %v4169, %v4421
      %v4546 = vadd.f32 %v4170, %v4424
      %v4547 = vadd.f32 %v4171, %v4427
      %v4548 = vadd.f32 %v4172, %v4430
      %v4549 = vadd.f32 %v4173, %v4434
      %v4550 = vadd.f32 %v4174, %v4437
      %v4551 = vadd.f32 %v4175, %v4440
      %v4552 = vadd.f32 %v4176, %v4443
      %v4553 = vadd.f32 %v4177, %v4447
      %v4554 = vadd.f32 %v4178, %v4450
      %v4555 = vadd.f32 %v4179, %v4453
      %v4556 = vadd.f32 %v4180, %v4456
      %v4557 = vadd.f32 %v4181, %v4460
      %v4558 = vadd.f32 %v4182, %v4463
      %v4559 = vadd.f32 %v4183, %v4466
      %v4560 = vadd.f32 %v4184, %v4469
      %v4561 = vadd.f32 %v4185, %v4473
      %v4562 = vadd.f32 %v4186, %v4476
      %v4563 = vadd.f32 %v4187, %v4479
      %v4564 = vadd.f32 %v4188, %v4482
      %v4565 = vadd.f32 %v4189, %v4486
      %v4566 = vadd.f32 %v4190, %v4489
      %v4567 = vadd.f32 %v4191, %v4492
      %v4568 = vadd.f32 %v4192, %v4495
      %v4569 = vadd.f32 %v4193, %v4499
      %v4570 = vadd.f32 %v4194, %v4502
      %v4571 = vadd.f32 %v4195, %v4505
      %v4572 = vadd.f32 %v4196, %v4508
      %v4573 = vlaneseq
      %v4574 = vshrl.u32 %v4573, 7
      %v4575 = vsub.s32 1, %v4574
      %v4576 = vrot.slane %v2235, %v4575
      %v4578 = vcombine.high %v4576, %v4576
      %v4580 = vunpack.c.l.s4 1983009808
      %v4581 = vunpack.c.0.s8 %v4580
      %v4582 = vlaneseq
      %v4583 = vshrl.u32 %v4582, 7
      %v4584 = vsub.s32 %v4581, %v4583
      %v4585 = vrot.slane %v4576, %v4584
      %v4587 = vunpack.c.l.s4 1983009808
      %v4588 = vunpack.c.0.s8 %v4587
      %v4589 = vlaneseq
      %v4590 = vshrl.u32 %v4589, 7
      %v4591 = vsub.s32 %v4588, %v4590
      %v4592 = vrot.slane %v4578, %v4591
      %v4593 = vcombine.high %v4585, %v4585
      %v4594 = vcombine.high %v4592, %v4592
      %v4595 = vrot.slane %v4585, 7
      %v4596 = vrot.slane %v4595, 2
      %v4597 = vrot.slane %v4593, 7
      %v4598 = vsel %vm2444, %v4596, %v4597
      %v4599 = vrot.slane %v4597, 2
      %v4600 = vrot.slane %v4592, 7
      %v4601 = vsel %vm2444, %v4599, %v4600
      %v4602 = vrot.slane %v4600, 2
      %v4603 = vrot.slane %v4594, 7
      %v4604 = vsel %vm2444, %v4602, %v4603
      %v4605 = vrot.slane %v4603, 2
      %v4611 = vmul.f32 %v2016, %v4595
      %v4612 = vmul.f32 %v2018, %v4598
      %v4613 = vmul.f32 %v2026, %v4601
      %v4614 = vmul.f32 %v2034, %v4604
      %v4615 = vmul.f32 %v2033, %v4605
      %v4616 = vmul.f32 %v2035, %v4595
      %v4617 = vmul.f32 %v2043, %v4598
      %v4618 = vmul.f32 %v2051, %v4601
      %v4619 = vmul.f32 %v2050, %v4604
      %v4620 = vmul.f32 %v2052, %v4605
      %v4621 = vmul.f32 %v2060, %v4595
      %v4622 = vmul.f32 %v2068, %v4598
      %v4623 = vmul.f32 %v2067, %v4601
      %v4624 = vmul.f32 %v2069, %v4604
      %v4625 = vmul.f32 %v2077, %v4605
      %v4626 = vmul.f32 %v2085, %v4595
      %v4627 = vmul.f32 %v2084, %v4598
      %v4628 = vmul.f32 %v2086, %v4601
      %v4629 = vmul.f32 %v2094, %v4604
      %v4630 = vmul.f32 %v2102, %v4605
      %v4631 = vmul.f32 %v2101, %v4595
      %v4632 = vmul.f32 %v2103, %v4598
      %v4633 = vmul.f32 %v2111, %v4601
      %v4634 = vmul.f32 %v2119, %v4604
      %v4635 = vmul.f32 %v2118, %v4605
      %v4636 = vmul.f32 %v2120, %v4595
      %v4637 = vmul.f32 %v2128, %v4598
      %v4638 = vmul.f32 %v2136, %v4601
      %v4639 = vmul.f32 %v2135, %v4604
      %v4640 = vmul.f32 %v2137, %v4605
      %v4641 = vmul.f32 %v2145, %v4595
      %v4642 = vmul.f32 %v2153, %v4598
      %v4643 = vmul.f32 %v2152, %v4601
      %v4644 = vmul.f32 %v2154, %v4604
      %v4645 = vmul.f32 %v2162, %v4605
      %v4646 = vmul.f32 %v2170, %v4595
      %v4647 = vmul.f32 %v2169, %v4598
      %v4648 = vmul.f32 %v2171, %v4601
      %v4649 = vmul.f32 %v2178, %v4604
      %v4650 = vmul.f32 %v2179, %v4605
      %v4691 = vrot.slane %v4611, 7
      %v4692 = vrot.slane %v4691, 2
      %v4693 = vrot.slane %v4612, 7
      %v4694 = vsel %vm2444, %v4692, %v4693
      %v4695 = vrot.slane %v4693, 2
      %v4696 = vrot.slane %v4613, 7
      %v4697 = vsel %vm2444, %v4695, %v4696
      %v4698 = vrot.slane %v4696, 2
      %v4699 = vrot.slane %v4614, 7
      %v4700 = vsel %vm2444, %v4698, %v4699
      %v4701 = vrot.slane %v4699, 2
      %v4702 = vrot.slane %v4615, 7
      %v4703 = vsel %vm2444, %v4701, %v4702
      %v4704 = vrot.slane %v4616, 7
      %v4705 = vrot.slane %v4704, 2
      %v4706 = vrot.slane %v4617, 7
      %v4707 = vsel %vm2444, %v4705, %v4706
      %v4708 = vrot.slane %v4706, 2
      %v4709 = vrot.slane %v4618, 7
      %v4710 = vsel %vm2444, %v4708, %v4709
      %v4711 = vrot.slane %v4709, 2
      %v4712 = vrot.slane %v4619, 7
      %v4713 = vsel %vm2444, %v4711, %v4712
      %v4714 = vrot.slane %v4712, 2
      %v4715 = vrot.slane %v4620, 7
      %v4716 = vsel %vm2444, %v4714, %v4715
      %v4717 = vrot.slane %v4621, 7
      %v4718 = vrot.slane %v4717, 2
      %v4719 = vrot.slane %v4622, 7
      %v4720 = vsel %vm2444, %v4718, %v4719
      %v4721 = vrot.slane %v4719, 2
      %v4722 = vrot.slane %v4623, 7
      %v4723 = vsel %vm2444, %v4721, %v4722
      %v4724 = vrot.slane %v4722, 2
      %v4725 = vrot.slane %v4624, 7
      %v4726 = vsel %vm2444, %v4724, %v4725
      %v4727 = vrot.slane %v4725, 2
      %v4728 = vrot.slane %v4625, 7
      %v4729 = vsel %vm2444, %v4727, %v4728
      %v4730 = vrot.slane %v4626, 7
      %v4731 = vrot.slane %v4730, 2
      %v4732 = vrot.slane %v4627, 7
      %v4733 = vsel %vm2444, %v4731, %v4732
      %v4734 = vrot.slane %v4732, 2
      %v4735 = vrot.slane %v4628, 7
      %v4736 = vsel %vm2444, %v4734, %v4735
      %v4737 = vrot.slane %v4735, 2
      %v4738 = vrot.slane %v4629, 7
      %v4739 = vsel %vm2444, %v4737, %v4738
      %v4740 = vrot.slane %v4738, 2
      %v4741 = vrot.slane %v4630, 7
      %v4742 = vsel %vm2444, %v4740, %v4741
      %v4743 = vrot.slane %v4631, 7
      %v4744 = vrot.slane %v4743, 2
      %v4745 = vrot.slane %v4632, 7
      %v4746 = vsel %vm2444, %v4744, %v4745
      %v4747 = vrot.slane %v4745, 2
      %v4748 = vrot.slane %v4633, 7
      %v4749 = vsel %vm2444, %v4747, %v4748
      %v4750 = vrot.slane %v4748, 2
      %v4751 = vrot.slane %v4634, 7
      %v4752 = vsel %vm2444, %v4750, %v4751
      %v4753 = vrot.slane %v4751, 2
      %v4754 = vrot.slane %v4635, 7
      %v4755 = vsel %vm2444, %v4753, %v4754
      %v4756 = vrot.slane %v4636, 7
      %v4757 = vrot.slane %v4756, 2
      %v4758 = vrot.slane %v4637, 7
      %v4759 = vsel %vm2444, %v4757, %v4758
      %v4760 = vrot.slane %v4758, 2
      %v4761 = vrot.slane %v4638, 7
      %v4762 = vsel %vm2444, %v4760, %v4761
      %v4763 = vrot.slane %v4761, 2
      %v4764 = vrot.slane %v4639, 7
      %v4765 = vsel %vm2444, %v4763, %v4764
      %v4766 = vrot.slane %v4764, 2
      %v4767 = vrot.slane %v4640, 7
      %v4768 = vsel %vm2444, %v4766, %v4767
      %v4769 = vrot.slane %v4641, 7
      %v4770 = vrot.slane %v4769, 2
      %v4771 = vrot.slane %v4642, 7
      %v4772 = vsel %vm2444, %v4770, %v4771
      %v4773 = vrot.slane %v4771, 2
      %v4774 = vrot.slane %v4643, 7
      %v4775 = vsel %vm2444, %v4773, %v4774
      %v4776 = vrot.slane %v4774, 2
      %v4777 = vrot.slane %v4644, 7
      %v4778 = vsel %vm2444, %v4776, %v4777
      %v4779 = vrot.slane %v4777, 2
      %v4780 = vrot.slane %v4645, 7
      %v4781 = vsel %vm2444, %v4779, %v4780
      %v4782 = vrot.slane %v4646, 7
      %v4783 = vrot.slane %v4782, 2
      %v4784 = vrot.slane %v4647, 7
      %v4785 = vsel %vm2444, %v4783, %v4784
      %v4786 = vrot.slane %v4784, 2
      %v4787 = vrot.slane %v4648, 7
      %v4788 = vsel %vm2444, %v4786, %v4787
      %v4789 = vrot.slane %v4787, 2
      %v4790 = vrot.slane %v4649, 7
      %v4791 = vsel %vm2444, %v4789, %v4790
      %v4792 = vrot.slane %v4790, 2
      %v4793 = vrot.slane %v4650, 7
      %v4794 = vsel %vm2444, %v4792, %v4793
      %v4827 = vadd.f32 %v4255, %v4694
      %v4828 = vadd.f32 %v4256, %v4697
      %v4829 = vadd.f32 %v4257, %v4700
      %v4830 = vadd.f32 %v4258, %v4703
      %v4831 = vadd.f32 %v4259, %v4707
      %v4832 = vadd.f32 %v4260, %v4710
      %v4833 = vadd.f32 %v4261, %v4713
      %v4834 = vadd.f32 %v4262, %v4716
      %v4835 = vadd.f32 %v4263, %v4720
      %v4836 = vadd.f32 %v4264, %v4723
      %v4837 = vadd.f32 %v4265, %v4726
      %v4838 = vadd.f32 %v4266, %v4729
      %v4839 = vadd.f32 %v4267, %v4733
      %v4840 = vadd.f32 %v4268, %v4736
      %v4841 = vadd.f32 %v4269, %v4739
      %v4842 = vadd.f32 %v4270, %v4742
      %v4843 = vadd.f32 %v4271, %v4746
      %v4844 = vadd.f32 %v4272, %v4749
      %v4845 = vadd.f32 %v4273, %v4752
      %v4846 = vadd.f32 %v4274, %v4755
      %v4847 = vadd.f32 %v4275, %v4759
      %v4848 = vadd.f32 %v4276, %v4762
      %v4849 = vadd.f32 %v4277, %v4765
      %v4850 = vadd.f32 %v4278, %v4768
      %v4851 = vadd.f32 %v4279, %v4772
      %v4852 = vadd.f32 %v4280, %v4775
      %v4853 = vadd.f32 %v4281, %v4778
      %v4854 = vadd.f32 %v4282, %v4781
      %v4855 = vadd.f32 %v4283, %v4785
      %v4856 = vadd.f32 %v4284, %v4788
      %v4857 = vadd.f32 %v4285, %v4791
      %v4858 = vadd.f32 %v4286, %v4794
      %v4859 = vlaneseq
      %v4860 = vshrl.u32 %v4859, 7
      %v4861 = vsub.s32 2, %v4860
      %v4862 = vrot.slane %v2232, %v4861
      %v4864 = vcombine.high %v4862, %v4862
      %v4866 = vunpack.c.l.s4 1983009808
      %v4867 = vunpack.c.0.s8 %v4866
      %v4868 = vlaneseq
      %v4869 = vshrl.u32 %v4868, 7
      %v4870 = vsub.s32 %v4867, %v4869
      %v4871 = vrot.slane %v4862, %v4870
      %v4873 = vunpack.c.l.s4 1983009808
      %v4874 = vunpack.c.0.s8 %v4873
      %v4875 = vlaneseq
      %v4876 = vshrl.u32 %v4875, 7
      %v4877 = vsub.s32 %v4874, %v4876
      %v4878 = vrot.slane %v4864, %v4877
      %v4879 = vcombine.high %v4871, %v4871
      %v4880 = vcombine.high %v4878, %v4878
      %v4885 = vmul.f32 %v1743, %v4871
      %v4886 = vmul.f32 %v1751, %v4879
      %v4887 = vmul.f32 %v1759, %v4878
      %v4888 = vmul.f32 %v1758, %v4880
      %v4889 = vmul.f32 %v1768, %v4871
      %v4890 = vmul.f32 %v1776, %v4879
      %v4891 = vmul.f32 %v1775, %v4878
      %v4892 = vmul.f32 %v1777, %v4880
      %v4893 = vmul.f32 %v1793, %v4871
      %v4894 = vmul.f32 %v1792, %v4879
      %v4895 = vmul.f32 %v1794, %v4878
      %v4896 = vmul.f32 %v1802, %v4880
      %v4897 = vmul.f32 %v1809, %v4871
      %v4898 = vmul.f32 %v1811, %v4879
      %v4899 = vmul.f32 %v1819, %v4878
      %v4900 = vmul.f32 %v1827, %v4880
      %v4901 = vmul.f32 %v1828, %v4871
      %v4902 = vmul.f32 %v1836, %v4879
      %v4903 = vmul.f32 %v1844, %v4878
      %v4904 = vmul.f32 %v1843, %v4880
      %v4905 = vmul.f32 %v1853, %v4871
      %v4906 = vmul.f32 %v1861, %v4879
      %v4907 = vmul.f32 %v1860, %v4878
      %v4908 = vmul.f32 %v1862, %v4880
      %v4909 = vmul.f32 %v1878, %v4871
      %v4910 = vmul.f32 %v1877, %v4879
      %v4911 = vmul.f32 %v1879, %v4878
      %v4912 = vmul.f32 %v1887, %v4880
      %v4913 = vmul.f32 %v1894, %v4871
      %v4914 = vmul.f32 %v1896, %v4879
      %v4915 = vmul.f32 %v1903, %v4878
      %v4916 = vmul.f32 %v1904, %v4880
      %v4917 = vadd.f32 %v4541, %v4885
      %v4918 = vadd.f32 %v4542, %v4886
      %v4919 = vadd.f32 %v4543, %v4887
      %v4920 = vadd.f32 %v4544, %v4888
      %v4921 = vadd.f32 %v4545, %v4889
      %v4922 = vadd.f32 %v4546, %v4890
      %v4923 = vadd.f32 %v4547, %v4891
      %v4924 = vadd.f32 %v4548, %v4892
      %v4925 = vadd.f32 %v4549, %v4893
      %v4926 = vadd.f32 %v4550, %v4894
      %v4927 = vadd.f32 %v4551, %v4895
      %v4928 = vadd.f32 %v4552, %v4896
      %v4929 = vadd.f32 %v4553, %v4897
      %v4930 = vadd.f32 %v4554, %v4898
      %v4931 = vadd.f32 %v4555, %v4899
      %v4932 = vadd.f32 %v4556, %v4900
      %v4933 = vadd.f32 %v4557, %v4901
      %v4934 = vadd.f32 %v4558, %v4902
      %v4935 = vadd.f32 %v4559, %v4903
      %v4936 = vadd.f32 %v4560, %v4904
      %v4937 = vadd.f32 %v4561, %v4905
      %v4938 = vadd.f32 %v4562, %v4906
      %v4939 = vadd.f32 %v4563, %v4907
      %v4940 = vadd.f32 %v4564, %v4908
      %v4941 = vadd.f32 %v4565, %v4909
      %v4942 = vadd.f32 %v4566, %v4910
      %v4943 = vadd.f32 %v4567, %v4911
      %v4944 = vadd.f32 %v4568, %v4912
      %v4945 = vadd.f32 %v4569, %v4913
      %v4946 = vadd.f32 %v4570, %v4914
      %v4947 = vadd.f32 %v4571, %v4915
      %v4948 = vadd.f32 %v4572, %v4916
      %v4949 = vlaneseq
      %v4950 = vshrl.u32 %v4949, 7
      %v4951 = vsub.s32 2, %v4950
      %v4952 = vrot.slane %v2235, %v4951
      %v4954 = vcombine.high %v4952, %v4952
      %v4956 = vunpack.c.l.s4 1983009808
      %v4957 = vunpack.c.0.s8 %v4956
      %v4958 = vlaneseq
      %v4959 = vshrl.u32 %v4958, 7
      %v4960 = vsub.s32 %v4957, %v4959
      %v4961 = vrot.slane %v4952, %v4960
      %v4963 = vunpack.c.l.s4 1983009808
      %v4964 = vunpack.c.0.s8 %v4963
      %v4965 = vlaneseq
      %v4966 = vshrl.u32 %v4965, 7
      %v4967 = vsub.s32 %v4964, %v4966
      %v4968 = vrot.slane %v4954, %v4967
      %v4969 = vcombine.high %v4961, %v4961
      %v4970 = vcombine.high %v4968, %v4968
      %v4975 = vmul.f32 %v2018, %v4961
      %v4976 = vmul.f32 %v2026, %v4969
      %v4977 = vmul.f32 %v2034, %v4968
      %v4978 = vmul.f32 %v2033, %v4970
      %v4979 = vmul.f32 %v2043, %v4961
      %v4980 = vmul.f32 %v2051, %v4969
      %v4981 = vmul.f32 %v2050, %v4968
      %v4982 = vmul.f32 %v2052, %v4970
      %v4983 = vmul.f32 %v2068, %v4961
      %v4984 = vmul.f32 %v2067, %v4969
      %v4985 = vmul.f32 %v2069, %v4968
      %v4986 = vmul.f32 %v2077, %v4970
      %v4987 = vmul.f32 %v2084, %v4961
      %v4988 = vmul.f32 %v2086, %v4969
      %v4989 = vmul.f32 %v2094, %v4968
      %v4990 = vmul.f32 %v2102, %v4970
      %v4991 = vmul.f32 %v2103, %v4961
      %v4992 = vmul.f32 %v2111, %v4969
      %v4993 = vmul.f32 %v2119, %v4968
      %v4994 = vmul.f32 %v2118, %v4970
      %v4995 = vmul.f32 %v2128, %v4961
      %v4996 = vmul.f32 %v2136, %v4969
      %v4997 = vmul.f32 %v2135, %v4968
      %v4998 = vmul.f32 %v2137, %v4970
      %v4999 = vmul.f32 %v2153, %v4961
      %v5000 = vmul.f32 %v2152, %v4969
      %v5001 = vmul.f32 %v2154, %v4968
      %v5002 = vmul.f32 %v2162, %v4970
      %v5003 = vmul.f32 %v2169, %v4961
      %v5004 = vmul.f32 %v2171, %v4969
      %v5005 = vmul.f32 %v2178, %v4968
      %v5006 = vmul.f32 %v2179, %v4970
      %v5007 = vadd.f32 %v4827, %v4975
      %v5008 = vadd.f32 %v4828, %v4976
      %v5009 = vadd.f32 %v4829, %v4977
      %v5010 = vadd.f32 %v4830, %v4978
      %v5011 = vadd.f32 %v4831, %v4979
      %v5012 = vadd.f32 %v4832, %v4980
      %v5013 = vadd.f32 %v4833, %v4981
      %v5014 = vadd.f32 %v4834, %v4982
      %v5015 = vadd.f32 %v4835, %v4983
      %v5016 = vadd.f32 %v4836, %v4984
      %v5017 = vadd.f32 %v4837, %v4985
      %v5018 = vadd.f32 %v4838, %v4986
      %v5019 = vadd.f32 %v4839, %v4987
      %v5020 = vadd.f32 %v4840, %v4988
      %v5021 = vadd.f32 %v4841, %v4989
      %v5022 = vadd.f32 %v4842, %v4990
      %v5023 = vadd.f32 %v4843, %v4991
      %v5024 = vadd.f32 %v4844, %v4992
      %v5025 = vadd.f32 %v4845, %v4993
      %v5026 = vadd.f32 %v4846, %v4994
      %v5027 = vadd.f32 %v4847, %v4995
      %v5028 = vadd.f32 %v4848, %v4996
      %v5029 = vadd.f32 %v4849, %v4997
      %v5030 = vadd.f32 %v4850, %v4998
      %v5031 = vadd.f32 %v4851, %v4999
      %v5032 = vadd.f32 %v4852, %v5000
      %v5033 = vadd.f32 %v4853, %v5001
      %v5034 = vadd.f32 %v4854, %v5002
      %v5035 = vadd.f32 %v4855, %v5003
      %v5036 = vadd.f32 %v4856, %v5004
      %v5037 = vadd.f32 %v4857, %v5005
      %v5038 = vadd.f32 %v4858, %v5006
      %v5039 = vmul.f32 %v4917, 0.5
      %v5040 = vmul.f32 %v4918, 0.5
      %v5041 = vmul.f32 %v4919, 0.5
      %v5042 = vmul.f32 %v4920, 0.5
      %v5043 = vmul.f32 %v4921, 0.5
      %v5044 = vmul.f32 %v4922, 0.5
      %v5045 = vmul.f32 %v4923, 0.5
      %v5046 = vmul.f32 %v4924, 0.5
      %v5047 = vmul.f32 %v4925, 0.5
      %v5048 = vmul.f32 %v4926, 0.5
      %v5049 = vmul.f32 %v4927, 0.5
      %v5050 = vmul.f32 %v4928, 0.5
      %v5051 = vmul.f32 %v4929, 0.5
      %v5052 = vmul.f32 %v4930, 0.5
      %v5053 = vmul.f32 %v4931, 0.5
      %v5054 = vmul.f32 %v4932, 0.5
      %v5055 = vmul.f32 %v4933, 0.5
      %v5056 = vmul.f32 %v4934, 0.5
      %v5057 = vmul.f32 %v4935, 0.5
      %v5058 = vmul.f32 %v4936, 0.5
      %v5059 = vmul.f32 %v4937, 0.5
      %v5060 = vmul.f32 %v4938, 0.5
      %v5061 = vmul.f32 %v4939, 0.5
      %v5062 = vmul.f32 %v4940, 0.5
      %v5063 = vmul.f32 %v4941, 0.5
      %v5064 = vmul.f32 %v4942, 0.5
      %v5065 = vmul.f32 %v4943, 0.5
      %v5066 = vmul.f32 %v4944, 0.5
      %v5067 = vmul.f32 %v4945, 0.5
      %v5068 = vmul.f32 %v4946, 0.5
      %v5069 = vmul.f32 %v4947, 0.5
      %v5070 = vmul.f32 %v4948, 0.5
      %v5071 = vmul.f32 %v4917, 0.70710677
      %v5072 = vmul.f32 %v4918, 0.70710677
      %v5073 = vmul.f32 %v4919, 0.70710677
      %v5074 = vmul.f32 %v4920, 0.70710677
      %v5075 = vmul.f32 %v4921, 0.70710677
      %v5076 = vmul.f32 %v4922, 0.70710677
      %v5077 = vmul.f32 %v4923, 0.70710677
      %v5078 = vmul.f32 %v4924, 0.70710677
      %v5079 = vmul.f32 %v4925, 0.70710677
      %v5080 = vmul.f32 %v4926, 0.70710677
      %v5081 = vmul.f32 %v4927, 0.70710677
      %v5082 = vmul.f32 %v4928, 0.70710677
      %v5083 = vmul.f32 %v4929, 0.70710677
      %v5084 = vmul.f32 %v4930, 0.70710677
      %v5085 = vmul.f32 %v4931, 0.70710677
      %v5086 = vmul.f32 %v4932, 0.70710677
      %v5087 = vmul.f32 %v4933, 0.70710677
      %v5088 = vmul.f32 %v4934, 0.70710677
      %v5089 = vmul.f32 %v4935, 0.70710677
      %v5090 = vmul.f32 %v4936, 0.70710677
      %v5091 = vmul.f32 %v4937, 0.70710677
      %v5092 = vmul.f32 %v4938, 0.70710677
      %v5093 = vmul.f32 %v4939, 0.70710677
      %v5094 = vmul.f32 %v4940, 0.70710677
      %v5095 = vmul.f32 %v4941, 0.70710677
      %v5096 = vmul.f32 %v4942, 0.70710677
      %v5097 = vmul.f32 %v4943, 0.70710677
      %v5098 = vmul.f32 %v4944, 0.70710677
      %v5099 = vmul.f32 %v4945, 0.70710677
      %v5100 = vmul.f32 %v4946, 0.70710677
      %v5101 = vmul.f32 %v4947, 0.70710677
      %v5102 = vmul.f32 %v4948, 0.70710677
      %vm5103 = vcmp.ge.f32.partialorder %v5071, 0.0
      %vm5104 = vcmp.ge.f32.partialorder %v5072, 0.0
      %vm5105 = vcmp.ge.f32.partialorder %v5073, 0.0
      %vm5106 = vcmp.ge.f32.partialorder %v5074, 0.0
      %vm5107 = vcmp.ge.f32.partialorder %v5075, 0.0
      %vm5108 = vcmp.ge.f32.partialorder %v5076, 0.0
      %vm5109 = vcmp.ge.f32.partialorder %v5077, 0.0
      %vm5110 = vcmp.ge.f32.partialorder %v5078, 0.0
      %vm5111 = vcmp.ge.f32.partialorder %v5079, 0.0
      %vm5112 = vcmp.ge.f32.partialorder %v5080, 0.0
      %vm5113 = vcmp.ge.f32.partialorder %v5081, 0.0
      %vm5114 = vcmp.ge.f32.partialorder %v5082, 0.0
      %vm5115 = vcmp.ge.f32.partialorder %v5083, 0.0
      %vm5116 = vcmp.ge.f32.partialorder %v5084, 0.0
      %vm5117 = vcmp.ge.f32.partialorder %v5085, 0.0
      %vm5118 = vcmp.ge.f32.partialorder %v5086, 0.0
      %vm5119 = vcmp.ge.f32.partialorder %v5087, 0.0
      %vm5120 = vcmp.ge.f32.partialorder %v5088, 0.0
      %vm5121 = vcmp.ge.f32.partialorder %v5089, 0.0
      %vm5122 = vcmp.ge.f32.partialorder %v5090, 0.0
      %vm5123 = vcmp.ge.f32.partialorder %v5091, 0.0
      %vm5124 = vcmp.ge.f32.partialorder %v5092, 0.0
      %vm5125 = vcmp.ge.f32.partialorder %v5093, 0.0
      %vm5126 = vcmp.ge.f32.partialorder %v5094, 0.0
      %vm5127 = vcmp.ge.f32.partialorder %v5095, 0.0
      %vm5128 = vcmp.ge.f32.partialorder %v5096, 0.0
      %vm5129 = vcmp.ge.f32.partialorder %v5097, 0.0
      %vm5130 = vcmp.ge.f32.partialorder %v5098, 0.0
      %vm5131 = vcmp.ge.f32.partialorder %v5099, 0.0
      %vm5132 = vcmp.ge.f32.partialorder %v5100, 0.0
      %vm5133 = vcmp.ge.f32.partialorder %v5101, 0.0
      %vm5134 = vcmp.ge.f32.partialorder %v5102, 0.0
      %v5135 = vsel %vm5103, 1.0, -1.0
      %v5136 = vsel %vm5104, 1.0, -1.0
      %v5137 = vsel %vm5105, 1.0, -1.0
      %v5138 = vsel %vm5106, 1.0, -1.0
      %v5139 = vsel %vm5107, 1.0, -1.0
      %v5140 = vsel %vm5108, 1.0, -1.0
      %v5141 = vsel %vm5109, 1.0, -1.0
      %v5142 = vsel %vm5110, 1.0, -1.0
      %v5143 = vsel %vm5111, 1.0, -1.0
      %v5144 = vsel %vm5112, 1.0, -1.0
      %v5145 = vsel %vm5113, 1.0, -1.0
      %v5146 = vsel %vm5114, 1.0, -1.0
      %v5147 = vsel %vm5115, 1.0, -1.0
      %v5148 = vsel %vm5116, 1.0, -1.0
      %v5149 = vsel %vm5117, 1.0, -1.0
      %v5150 = vsel %vm5118, 1.0, -1.0
      %v5151 = vsel %vm5119, 1.0, -1.0
      %v5152 = vsel %vm5120, 1.0, -1.0
      %v5153 = vsel %vm5121, 1.0, -1.0
      %v5154 = vsel %vm5122, 1.0, -1.0
      %v5155 = vsel %vm5123, 1.0, -1.0
      %v5156 = vsel %vm5124, 1.0, -1.0
      %v5157 = vsel %vm5125, 1.0, -1.0
      %v5158 = vsel %vm5126, 1.0, -1.0
      %v5159 = vsel %vm5127, 1.0, -1.0
      %v5160 = vsel %vm5128, 1.0, -1.0
      %v5161 = vsel %vm5129, 1.0, -1.0
      %v5162 = vsel %vm5130, 1.0, -1.0
      %v5163 = vsel %vm5131, 1.0, -1.0
      %v5164 = vsel %vm5132, 1.0, -1.0
      %v5165 = vsel %vm5133, 1.0, -1.0
      %v5166 = vsel %vm5134, 1.0, -1.0
      %v5167 = vand.u32 2147483647, %v5071
      %v5168 = vand.u32 2147483647, %v5072
      %v5169 = vand.u32 2147483647, %v5073
      %v5170 = vand.u32 2147483647, %v5074
      %v5171 = vand.u32 2147483647, %v5075
      %v5172 = vand.u32 2147483647, %v5076
      %v5173 = vand.u32 2147483647, %v5077
      %v5174 = vand.u32 2147483647, %v5078
      %v5175 = vand.u32 2147483647, %v5079
      %v5176 = vand.u32 2147483647, %v5080
      %v5177 = vand.u32 2147483647, %v5081
      %v5178 = vand.u32 2147483647, %v5082
      %v5179 = vand.u32 2147483647, %v5083
      %v5180 = vand.u32 2147483647, %v5084
      %v5181 = vand.u32 2147483647, %v5085
      %v5182 = vand.u32 2147483647, %v5086
      %v5183 = vand.u32 2147483647, %v5087
      %v5184 = vand.u32 2147483647, %v5088
      %v5185 = vand.u32 2147483647, %v5089
      %v5186 = vand.u32 2147483647, %v5090
      %v5187 = vand.u32 2147483647, %v5091
      %v5188 = vand.u32 2147483647, %v5092
      %v5189 = vand.u32 2147483647, %v5093
      %v5190 = vand.u32 2147483647, %v5094
      %v5191 = vand.u32 2147483647, %v5095
      %v5192 = vand.u32 2147483647, %v5096
      %v5193 = vand.u32 2147483647, %v5097
      %v5194 = vand.u32 2147483647, %v5098
      %v5195 = vand.u32 2147483647, %v5099
      %v5196 = vand.u32 2147483647, %v5100
      %v5197 = vand.u32 2147483647, %v5101
      %v5198 = vand.u32 2147483647, %v5102
      %v5199 = vmul.f32 %v5167, 0.3275911
      %v5200 = vmul.f32 %v5168, 0.3275911
      %v5201 = vmul.f32 %v5169, 0.3275911
      %v5202 = vmul.f32 %v5170, 0.3275911
      %v5203 = vmul.f32 %v5171, 0.3275911
      %v5204 = vmul.f32 %v5172, 0.3275911
      %v5205 = vmul.f32 %v5173, 0.3275911
      %v5206 = vmul.f32 %v5174, 0.3275911
      %v5207 = vmul.f32 %v5175, 0.3275911
      %v5208 = vmul.f32 %v5176, 0.3275911
      %v5209 = vmul.f32 %v5177, 0.3275911
      %v5210 = vmul.f32 %v5178, 0.3275911
      %v5211 = vmul.f32 %v5179, 0.3275911
      %v5212 = vmul.f32 %v5180, 0.3275911
      %v5213 = vmul.f32 %v5181, 0.3275911
      %v5214 = vmul.f32 %v5182, 0.3275911
      %v5215 = vmul.f32 %v5183, 0.3275911
      %v5216 = vmul.f32 %v5184, 0.3275911
      %v5217 = vmul.f32 %v5185, 0.3275911
      %v5218 = vmul.f32 %v5186, 0.3275911
      %v5219 = vmul.f32 %v5187, 0.3275911
      %v5220 = vmul.f32 %v5188, 0.3275911
      %v5221 = vmul.f32 %v5189, 0.3275911
      %v5222 = vmul.f32 %v5190, 0.3275911
      %v5223 = vmul.f32 %v5191, 0.3275911
      %v5224 = vmul.f32 %v5192, 0.3275911
      %v5225 = vmul.f32 %v5193, 0.3275911
      %v5226 = vmul.f32 %v5194, 0.3275911
      %v5227 = vmul.f32 %v5195, 0.3275911
      %v5228 = vmul.f32 %v5196, 0.3275911
      %v5229 = vmul.f32 %v5197, 0.3275911
      %v5230 = vmul.f32 %v5198, 0.3275911
      %v5231 = vadd.f32 %v5199, 1.0
      %v5232 = vadd.f32 %v5200, 1.0
      %v5233 = vadd.f32 %v5201, 1.0
      %v5234 = vadd.f32 %v5202, 1.0
      %v5235 = vadd.f32 %v5203, 1.0
      %v5236 = vadd.f32 %v5204, 1.0
      %v5237 = vadd.f32 %v5205, 1.0
      %v5238 = vadd.f32 %v5206, 1.0
      %v5239 = vadd.f32 %v5207, 1.0
      %v5240 = vadd.f32 %v5208, 1.0
      %v5241 = vadd.f32 %v5209, 1.0
      %v5242 = vadd.f32 %v5210, 1.0
      %v5243 = vadd.f32 %v5211, 1.0
      %v5244 = vadd.f32 %v5212, 1.0
      %v5245 = vadd.f32 %v5213, 1.0
      %v5246 = vadd.f32 %v5214, 1.0
      %v5247 = vadd.f32 %v5215, 1.0
      %v5248 = vadd.f32 %v5216, 1.0
      %v5249 = vadd.f32 %v5217, 1.0
      %v5250 = vadd.f32 %v5218, 1.0
      %v5251 = vadd.f32 %v5219, 1.0
      %v5252 = vadd.f32 %v5220, 1.0
      %v5253 = vadd.f32 %v5221, 1.0
      %v5254 = vadd.f32 %v5222, 1.0
      %v5255 = vadd.f32 %v5223, 1.0
      %v5256 = vadd.f32 %v5224, 1.0
      %v5257 = vadd.f32 %v5225, 1.0
      %v5258 = vadd.f32 %v5226, 1.0
      %v5259 = vadd.f32 %v5227, 1.0
      %v5260 = vadd.f32 %v5228, 1.0
      %v5261 = vadd.f32 %v5229, 1.0
      %v5262 = vadd.f32 %v5230, 1.0
      %v5263 = vrcp.pop %v5231
      %v5264 = vmul.f32 1.0, %v5263
      %v5265 = vrcp.pop %v5232
      %v5266 = vmul.f32 1.0, %v5265
      %v5267 = vrcp.pop %v5233
      %v5268 = vmul.f32 1.0, %v5267
      %v5269 = vrcp.pop %v5234
      %v5270 = vmul.f32 1.0, %v5269
      %v5271 = vrcp.pop %v5235
      %v5272 = vmul.f32 1.0, %v5271
      %v5273 = vrcp.pop %v5236
      %v5274 = vmul.f32 1.0, %v5273
      %v5275 = vrcp.pop %v5237
      %v5276 = vmul.f32 1.0, %v5275
      %v5277 = vrcp.pop %v5238
      %v5278 = vmul.f32 1.0, %v5277
      %v5279 = vrcp.pop %v5239
      %v5280 = vmul.f32 1.0, %v5279
      %v5281 = vrcp.pop %v5240
      %v5282 = vmul.f32 1.0, %v5281
      %v5283 = vrcp.pop %v5241
      %v5284 = vmul.f32 1.0, %v5283
      %v5285 = vrcp.pop %v5242
      %v5286 = vmul.f32 1.0, %v5285
      %v5287 = vrcp.pop %v5243
      %v5288 = vmul.f32 1.0, %v5287
      %v5289 = vrcp.pop %v5244
      %v5290 = vmul.f32 1.0, %v5289
      %v5291 = vrcp.pop %v5245
      %v5292 = vmul.f32 1.0, %v5291
      %v5293 = vrcp.pop %v5246
      %v5294 = vmul.f32 1.0, %v5293
      %v5295 = vrcp.pop %v5247
      %v5296 = vmul.f32 1.0, %v5295
      %v5297 = vrcp.pop %v5248
      %v5298 = vmul.f32 1.0, %v5297
      %v5299 = vrcp.pop %v5249
      %v5300 = vmul.f32 1.0, %v5299
      %v5301 = vrcp.pop %v5250
      %v5302 = vmul.f32 1.0, %v5301
      %v5303 = vrcp.pop %v5251
      %v5304 = vmul.f32 1.0, %v5303
      %v5305 = vrcp.pop %v5252
      %v5306 = vmul.f32 1.0, %v5305
      %v5307 = vrcp.pop %v5253
      %v5308 = vmul.f32 1.0, %v5307
      %v5309 = vrcp.pop %v5254
      %v5310 = vmul.f32 1.0, %v5309
      %v5311 = vrcp.pop %v5255
      %v5312 = vmul.f32 1.0, %v5311
      %v5313 = vrcp.pop %v5256
      %v5314 = vmul.f32 1.0, %v5313
      %v5315 = vrcp.pop %v5257
      %v5316 = vmul.f32 1.0, %v5315
      %v5317 = vrcp.pop %v5258
      %v5318 = vmul.f32 1.0, %v5317
      %v5319 = vrcp.pop %v5259
      %v5320 = vmul.f32 1.0, %v5319
      %v5321 = vrcp.pop %v5260
      %v5322 = vmul.f32 1.0, %v5321
      %v5323 = vrcp.pop %v5261
      %v5324 = vmul.f32 1.0, %v5323
      %v5325 = vrcp.pop %v5262
      %v5326 = vmul.f32 1.0, %v5325
      %v5327 = vmul.f32 %v5264, 1.0614054
      %v5328 = vmul.f32 %v5266, 1.0614054
      %v5329 = vmul.f32 %v5268, 1.0614054
      %v5330 = vmul.f32 %v5270, 1.0614054
      %v5331 = vmul.f32 %v5272, 1.0614054
      %v5332 = vmul.f32 %v5274, 1.0614054
      %v5333 = vmul.f32 %v5276, 1.0614054
      %v5334 = vmul.f32 %v5278, 1.0614054
      %v5335 = vmul.f32 %v5280, 1.0614054
      %v5336 = vmul.f32 %v5282, 1.0614054
      %v5337 = vmul.f32 %v5284, 1.0614054
      %v5338 = vmul.f32 %v5286, 1.0614054
      %v5339 = vmul.f32 %v5288, 1.0614054
      %v5340 = vmul.f32 %v5290, 1.0614054
      %v5341 = vmul.f32 %v5292, 1.0614054
      %v5342 = vmul.f32 %v5294, 1.0614054
      %v5343 = vmul.f32 %v5296, 1.0614054
      %v5344 = vmul.f32 %v5298, 1.0614054
      %v5345 = vmul.f32 %v5300, 1.0614054
      %v5346 = vmul.f32 %v5302, 1.0614054
      %v5347 = vmul.f32 %v5304, 1.0614054
      %v5348 = vmul.f32 %v5306, 1.0614054
      %v5349 = vmul.f32 %v5308, 1.0614054
      %v5350 = vmul.f32 %v5310, 1.0614054
      %v5351 = vmul.f32 %v5312, 1.0614054
      %v5352 = vmul.f32 %v5314, 1.0614054
      %v5353 = vmul.f32 %v5316, 1.0614054
      %v5354 = vmul.f32 %v5318, 1.0614054
      %v5355 = vmul.f32 %v5320, 1.0614054
      %v5356 = vmul.f32 %v5322, 1.0614054
      %v5357 = vmul.f32 %v5324, 1.0614054
      %v5358 = vmul.f32 %v5326, 1.0614054
      %v5359 = vadd.f32 %v5327, -1.4531521
      %v5360 = vadd.f32 %v5328, -1.4531521
      %v5361 = vadd.f32 %v5329, -1.4531521
      %v5362 = vadd.f32 %v5330, -1.4531521
      %v5363 = vadd.f32 %v5331, -1.4531521
      %v5364 = vadd.f32 %v5332, -1.4531521
      %v5365 = vadd.f32 %v5333, -1.4531521
      %v5366 = vadd.f32 %v5334, -1.4531521
      %v5367 = vadd.f32 %v5335, -1.4531521
      %v5368 = vadd.f32 %v5336, -1.4531521
      %v5369 = vadd.f32 %v5337, -1.4531521
      %v5370 = vadd.f32 %v5338, -1.4531521
      %v5371 = vadd.f32 %v5339, -1.4531521
      %v5372 = vadd.f32 %v5340, -1.4531521
      %v5373 = vadd.f32 %v5341, -1.4531521
      %v5374 = vadd.f32 %v5342, -1.4531521
      %v5375 = vadd.f32 %v5343, -1.4531521
      %v5376 = vadd.f32 %v5344, -1.4531521
      %v5377 = vadd.f32 %v5345, -1.4531521
      %v5378 = vadd.f32 %v5346, -1.4531521
      %v5379 = vadd.f32 %v5347, -1.4531521
      %v5380 = vadd.f32 %v5348, -1.4531521
      %v5381 = vadd.f32 %v5349, -1.4531521
      %v5382 = vadd.f32 %v5350, -1.4531521
      %v5383 = vadd.f32 %v5351, -1.4531521
      %v5384 = vadd.f32 %v5352, -1.4531521
      %v5385 = vadd.f32 %v5353, -1.4531521
      %v5386 = vadd.f32 %v5354, -1.4531521
      %v5387 = vadd.f32 %v5355, -1.4531521
      %v5388 = vadd.f32 %v5356, -1.4531521
      %v5389 = vadd.f32 %v5357, -1.4531521
      %v5390 = vadd.f32 %v5358, -1.4531521
      %v5391 = vmul.f32 %v5359, %v5264
      %v5392 = vmul.f32 %v5360, %v5266
      %v5393 = vmul.f32 %v5361, %v5268
      %v5394 = vmul.f32 %v5362, %v5270
      %v5395 = vmul.f32 %v5363, %v5272
      %v5396 = vmul.f32 %v5364, %v5274
      %v5397 = vmul.f32 %v5365, %v5276
      %v5398 = vmul.f32 %v5366, %v5278
      %v5399 = vmul.f32 %v5367, %v5280
      %v5400 = vmul.f32 %v5368, %v5282
      %v5401 = vmul.f32 %v5369, %v5284
      %v5402 = vmul.f32 %v5370, %v5286
      %v5403 = vmul.f32 %v5371, %v5288
      %v5404 = vmul.f32 %v5372, %v5290
      %v5405 = vmul.f32 %v5373, %v5292
      %v5406 = vmul.f32 %v5374, %v5294
      %v5407 = vmul.f32 %v5375, %v5296
      %v5408 = vmul.f32 %v5376, %v5298
      %v5409 = vmul.f32 %v5377, %v5300
      %v5410 = vmul.f32 %v5378, %v5302
      %v5411 = vmul.f32 %v5379, %v5304
      %v5412 = vmul.f32 %v5380, %v5306
      %v5413 = vmul.f32 %v5381, %v5308
      %v5414 = vmul.f32 %v5382, %v5310
      %v5415 = vmul.f32 %v5383, %v5312
      %v5416 = vmul.f32 %v5384, %v5314
      %v5417 = vmul.f32 %v5385, %v5316
      %v5418 = vmul.f32 %v5386, %v5318
      %v5419 = vmul.f32 %v5387, %v5320
      %v5420 = vmul.f32 %v5388, %v5322
      %v5421 = vmul.f32 %v5389, %v5324
      %v5422 = vmul.f32 %v5390, %v5326
      %v5423 = vadd.f32 %v5391, 1.4214138
      %v5424 = vadd.f32 %v5392, 1.4214138
      %v5425 = vadd.f32 %v5393, 1.4214138
      %v5426 = vadd.f32 %v5394, 1.4214138
      %v5427 = vadd.f32 %v5395, 1.4214138
      %v5428 = vadd.f32 %v5396, 1.4214138
      %v5429 = vadd.f32 %v5397, 1.4214138
      %v5430 = vadd.f32 %v5398, 1.4214138
      %v5431 = vadd.f32 %v5399, 1.4214138
      %v5432 = vadd.f32 %v5400, 1.4214138
      %v5433 = vadd.f32 %v5401, 1.4214138
      %v5434 = vadd.f32 %v5402, 1.4214138
      %v5435 = vadd.f32 %v5403, 1.4214138
      %v5436 = vadd.f32 %v5404, 1.4214138
      %v5437 = vadd.f32 %v5405, 1.4214138
      %v5438 = vadd.f32 %v5406, 1.4214138
      %v5439 = vadd.f32 %v5407, 1.4214138
      %v5440 = vadd.f32 %v5408, 1.4214138
      %v5441 = vadd.f32 %v5409, 1.4214138
      %v5442 = vadd.f32 %v5410, 1.4214138
      %v5443 = vadd.f32 %v5411, 1.4214138
      %v5444 = vadd.f32 %v5412, 1.4214138
      %v5445 = vadd.f32 %v5413, 1.4214138
      %v5446 = vadd.f32 %v5414, 1.4214138
      %v5447 = vadd.f32 %v5415, 1.4214138
      %v5448 = vadd.f32 %v5416, 1.4214138
      %v5449 = vadd.f32 %v5417, 1.4214138
      %v5450 = vadd.f32 %v5418, 1.4214138
      %v5451 = vadd.f32 %v5419, 1.4214138
      %v5452 = vadd.f32 %v5420, 1.4214138
      %v5453 = vadd.f32 %v5421, 1.4214138
      %v5454 = vadd.f32 %v5422, 1.4214138
      %v5455 = vmul.f32 %v5423, %v5264
      %v5456 = vmul.f32 %v5424, %v5266
      %v5457 = vmul.f32 %v5425, %v5268
      %v5458 = vmul.f32 %v5426, %v5270
      %v5459 = vmul.f32 %v5427, %v5272
      %v5460 = vmul.f32 %v5428, %v5274
      %v5461 = vmul.f32 %v5429, %v5276
      %v5462 = vmul.f32 %v5430, %v5278
      %v5463 = vmul.f32 %v5431, %v5280
      %v5464 = vmul.f32 %v5432, %v5282
      %v5465 = vmul.f32 %v5433, %v5284
      %v5466 = vmul.f32 %v5434, %v5286
      %v5467 = vmul.f32 %v5435, %v5288
      %v5468 = vmul.f32 %v5436, %v5290
      %v5469 = vmul.f32 %v5437, %v5292
      %v5470 = vmul.f32 %v5438, %v5294
      %v5471 = vmul.f32 %v5439, %v5296
      %v5472 = vmul.f32 %v5440, %v5298
      %v5473 = vmul.f32 %v5441, %v5300
      %v5474 = vmul.f32 %v5442, %v5302
      %v5475 = vmul.f32 %v5443, %v5304
      %v5476 = vmul.f32 %v5444, %v5306
      %v5477 = vmul.f32 %v5445, %v5308
      %v5478 = vmul.f32 %v5446, %v5310
      %v5479 = vmul.f32 %v5447, %v5312
      %v5480 = vmul.f32 %v5448, %v5314
      %v5481 = vmul.f32 %v5449, %v5316
      %v5482 = vmul.f32 %v5450, %v5318
      %v5483 = vmul.f32 %v5451, %v5320
      %v5484 = vmul.f32 %v5452, %v5322
      %v5485 = vmul.f32 %v5453, %v5324
      %v5486 = vmul.f32 %v5454, %v5326
      %v5487 = vadd.f32 %v5455, -0.28449672
      %v5488 = vadd.f32 %v5456, -0.28449672
      %v5489 = vadd.f32 %v5457, -0.28449672
      %v5490 = vadd.f32 %v5458, -0.28449672
      %v5491 = vadd.f32 %v5459, -0.28449672
      %v5492 = vadd.f32 %v5460, -0.28449672
      %v5493 = vadd.f32 %v5461, -0.28449672
      %v5494 = vadd.f32 %v5462, -0.28449672
      %v5495 = vadd.f32 %v5463, -0.28449672
      %v5496 = vadd.f32 %v5464, -0.28449672
      %v5497 = vadd.f32 %v5465, -0.28449672
      %v5498 = vadd.f32 %v5466, -0.28449672
      %v5499 = vadd.f32 %v5467, -0.28449672
      %v5500 = vadd.f32 %v5468, -0.28449672
      %v5501 = vadd.f32 %v5469, -0.28449672
      %v5502 = vadd.f32 %v5470, -0.28449672
      %v5503 = vadd.f32 %v5471, -0.28449672
      %v5504 = vadd.f32 %v5472, -0.28449672
      %v5505 = vadd.f32 %v5473, -0.28449672
      %v5506 = vadd.f32 %v5474, -0.28449672
      %v5507 = vadd.f32 %v5475, -0.28449672
      %v5508 = vadd.f32 %v5476, -0.28449672
      %v5509 = vadd.f32 %v5477, -0.28449672
      %v5510 = vadd.f32 %v5478, -0.28449672
      %v5511 = vadd.f32 %v5479, -0.28449672
      %v5512 = vadd.f32 %v5480, -0.28449672
      %v5513 = vadd.f32 %v5481, -0.28449672
      %v5514 = vadd.f32 %v5482, -0.28449672
      %v5515 = vadd.f32 %v5483, -0.28449672
      %v5516 = vadd.f32 %v5484, -0.28449672
      %v5517 = vadd.f32 %v5485, -0.28449672
      %v5518 = vadd.f32 %v5486, -0.28449672
      %v5519 = vmul.f32 %v5487, %v5264
      %v5520 = vmul.f32 %v5488, %v5266
      %v5521 = vmul.f32 %v5489, %v5268
      %v5522 = vmul.f32 %v5490, %v5270
      %v5523 = vmul.f32 %v5491, %v5272
      %v5524 = vmul.f32 %v5492, %v5274
      %v5525 = vmul.f32 %v5493, %v5276
      %v5526 = vmul.f32 %v5494, %v5278
      %v5527 = vmul.f32 %v5495, %v5280
      %v5528 = vmul.f32 %v5496, %v5282
      %v5529 = vmul.f32 %v5497, %v5284
      %v5530 = vmul.f32 %v5498, %v5286
      %v5531 = vmul.f32 %v5499, %v5288
      %v5532 = vmul.f32 %v5500, %v5290
      %v5533 = vmul.f32 %v5501, %v5292
      %v5534 = vmul.f32 %v5502, %v5294
      %v5535 = vmul.f32 %v5503, %v5296
      %v5536 = vmul.f32 %v5504, %v5298
      %v5537 = vmul.f32 %v5505, %v5300
      %v5538 = vmul.f32 %v5506, %v5302
      %v5539 = vmul.f32 %v5507, %v5304
      %v5540 = vmul.f32 %v5508, %v5306
      %v5541 = vmul.f32 %v5509, %v5308
      %v5542 = vmul.f32 %v5510, %v5310
      %v5543 = vmul.f32 %v5511, %v5312
      %v5544 = vmul.f32 %v5512, %v5314
      %v5545 = vmul.f32 %v5513, %v5316
      %v5546 = vmul.f32 %v5514, %v5318
      %v5547 = vmul.f32 %v5515, %v5320
      %v5548 = vmul.f32 %v5516, %v5322
      %v5549 = vmul.f32 %v5517, %v5324
      %v5550 = vmul.f32 %v5518, %v5326
      %v5551 = vadd.f32 %v5519, 0.2548296
      %v5552 = vadd.f32 %v5520, 0.2548296
      %v5553 = vadd.f32 %v5521, 0.2548296
      %v5554 = vadd.f32 %v5522, 0.2548296
      %v5555 = vadd.f32 %v5523, 0.2548296
      %v5556 = vadd.f32 %v5524, 0.2548296
      %v5557 = vadd.f32 %v5525, 0.2548296
      %v5558 = vadd.f32 %v5526, 0.2548296
      %v5559 = vadd.f32 %v5527, 0.2548296
      %v5560 = vadd.f32 %v5528, 0.2548296
      %v5561 = vadd.f32 %v5529, 0.2548296
      %v5562 = vadd.f32 %v5530, 0.2548296
      %v5563 = vadd.f32 %v5531, 0.2548296
      %v5564 = vadd.f32 %v5532, 0.2548296
      %v5565 = vadd.f32 %v5533, 0.2548296
      %v5566 = vadd.f32 %v5534, 0.2548296
      %v5567 = vadd.f32 %v5535, 0.2548296
      %v5568 = vadd.f32 %v5536, 0.2548296
      %v5569 = vadd.f32 %v5537, 0.2548296
      %v5570 = vadd.f32 %v5538, 0.2548296
      %v5571 = vadd.f32 %v5539, 0.2548296
      %v5572 = vadd.f32 %v5540, 0.2548296
      %v5573 = vadd.f32 %v5541, 0.2548296
      %v5574 = vadd.f32 %v5542, 0.2548296
      %v5575 = vadd.f32 %v5543, 0.2548296
      %v5576 = vadd.f32 %v5544, 0.2548296
      %v5577 = vadd.f32 %v5545, 0.2548296
      %v5578 = vadd.f32 %v5546, 0.2548296
      %v5579 = vadd.f32 %v5547, 0.2548296
      %v5580 = vadd.f32 %v5548, 0.2548296
      %v5581 = vadd.f32 %v5549, 0.2548296
      %v5582 = vadd.f32 %v5550, 0.2548296
      %v5583 = vmul.f32 %v5551, %v5264
      %v5584 = vmul.f32 %v5552, %v5266
      %v5585 = vmul.f32 %v5553, %v5268
      %v5586 = vmul.f32 %v5554, %v5270
      %v5587 = vmul.f32 %v5555, %v5272
      %v5588 = vmul.f32 %v5556, %v5274
      %v5589 = vmul.f32 %v5557, %v5276
      %v5590 = vmul.f32 %v5558, %v5278
      %v5591 = vmul.f32 %v5559, %v5280
      %v5592 = vmul.f32 %v5560, %v5282
      %v5593 = vmul.f32 %v5561, %v5284
      %v5594 = vmul.f32 %v5562, %v5286
      %v5595 = vmul.f32 %v5563, %v5288
      %v5596 = vmul.f32 %v5564, %v5290
      %v5597 = vmul.f32 %v5565, %v5292
      %v5598 = vmul.f32 %v5566, %v5294
      %v5599 = vmul.f32 %v5567, %v5296
      %v5600 = vmul.f32 %v5568, %v5298
      %v5601 = vmul.f32 %v5569, %v5300
      %v5602 = vmul.f32 %v5570, %v5302
      %v5603 = vmul.f32 %v5571, %v5304
      %v5604 = vmul.f32 %v5572, %v5306
      %v5605 = vmul.f32 %v5573, %v5308
      %v5606 = vmul.f32 %v5574, %v5310
      %v5607 = vmul.f32 %v5575, %v5312
      %v5608 = vmul.f32 %v5576, %v5314
      %v5609 = vmul.f32 %v5577, %v5316
      %v5610 = vmul.f32 %v5578, %v5318
      %v5611 = vmul.f32 %v5579, %v5320
      %v5612 = vmul.f32 %v5580, %v5322
      %v5613 = vmul.f32 %v5581, %v5324
      %v5614 = vmul.f32 %v5582, %v5326
      %v5615 = vsub.f32 0.0, %v5167
      %v5616 = vsub.f32 0.0, %v5168
      %v5617 = vsub.f32 0.0, %v5169
      %v5618 = vsub.f32 0.0, %v5170
      %v5619 = vsub.f32 0.0, %v5171
      %v5620 = vsub.f32 0.0, %v5172
      %v5621 = vsub.f32 0.0, %v5173
      %v5622 = vsub.f32 0.0, %v5174
      %v5623 = vsub.f32 0.0, %v5175
      %v5624 = vsub.f32 0.0, %v5176
      %v5625 = vsub.f32 0.0, %v5177
      %v5626 = vsub.f32 0.0, %v5178
      %v5627 = vsub.f32 0.0, %v5179
      %v5628 = vsub.f32 0.0, %v5180
      %v5629 = vsub.f32 0.0, %v5181
      %v5630 = vsub.f32 0.0, %v5182
      %v5631 = vsub.f32 0.0, %v5183
      %v5632 = vsub.f32 0.0, %v5184
      %v5633 = vsub.f32 0.0, %v5185
      %v5634 = vsub.f32 0.0, %v5186
      %v5635 = vsub.f32 0.0, %v5187
      %v5636 = vsub.f32 0.0, %v5188
      %v5637 = vsub.f32 0.0, %v5189
      %v5638 = vsub.f32 0.0, %v5190
      %v5639 = vsub.f32 0.0, %v5191
      %v5640 = vsub.f32 0.0, %v5192
      %v5641 = vsub.f32 0.0, %v5193
      %v5642 = vsub.f32 0.0, %v5194
      %v5643 = vsub.f32 0.0, %v5195
      %v5644 = vsub.f32 0.0, %v5196
      %v5645 = vsub.f32 0.0, %v5197
      %v5646 = vsub.f32 0.0, %v5198
      %v5647 = vmul.f32 %v5615, %v5167
      %v5648 = vmul.f32 %v5616, %v5168
      %v5649 = vmul.f32 %v5617, %v5169
      %v5650 = vmul.f32 %v5618, %v5170
      %v5651 = vmul.f32 %v5619, %v5171
      %v5652 = vmul.f32 %v5620, %v5172
      %v5653 = vmul.f32 %v5621, %v5173
      %v5654 = vmul.f32 %v5622, %v5174
      %v5655 = vmul.f32 %v5623, %v5175
      %v5656 = vmul.f32 %v5624, %v5176
      %v5657 = vmul.f32 %v5625, %v5177
      %v5658 = vmul.f32 %v5626, %v5178
      %v5659 = vmul.f32 %v5627, %v5179
      %v5660 = vmul.f32 %v5628, %v5180
      %v5661 = vmul.f32 %v5629, %v5181
      %v5662 = vmul.f32 %v5630, %v5182
      %v5663 = vmul.f32 %v5631, %v5183
      %v5664 = vmul.f32 %v5632, %v5184
      %v5665 = vmul.f32 %v5633, %v5185
      %v5666 = vmul.f32 %v5634, %v5186
      %v5667 = vmul.f32 %v5635, %v5187
      %v5668 = vmul.f32 %v5636, %v5188
      %v5669 = vmul.f32 %v5637, %v5189
      %v5670 = vmul.f32 %v5638, %v5190
      %v5671 = vmul.f32 %v5639, %v5191
      %v5672 = vmul.f32 %v5640, %v5192
      %v5673 = vmul.f32 %v5641, %v5193
      %v5674 = vmul.f32 %v5642, %v5194
      %v5675 = vmul.f32 %v5643, %v5195
      %v5676 = vmul.f32 %v5644, %v5196
      %v5677 = vmul.f32 %v5645, %v5197
      %v5678 = vmul.f32 %v5646, %v5198
      %v5679 = vmul.f32 %v5647, 1.442695
      %v5680 = vpow.pop %v5679
      %v5681 = vmul.f32 %v5648, 1.442695
      %v5682 = vpow.pop %v5681
      %v5683 = vmul.f32 %v5649, 1.442695
      %v5684 = vpow.pop %v5683
      %v5685 = vmul.f32 %v5650, 1.442695
      %v5686 = vpow.pop %v5685
      %v5687 = vmul.f32 %v5651, 1.442695
      %v5688 = vpow.pop %v5687
      %v5689 = vmul.f32 %v5652, 1.442695
      %v5690 = vpow.pop %v5689
      %v5691 = vmul.f32 %v5653, 1.442695
      %v5692 = vpow.pop %v5691
      %v5693 = vmul.f32 %v5654, 1.442695
      %v5694 = vpow.pop %v5693
      %v5695 = vmul.f32 %v5655, 1.442695
      %v5696 = vpow.pop %v5695
      %v5697 = vmul.f32 %v5656, 1.442695
      %v5698 = vpow.pop %v5697
      %v5699 = vmul.f32 %v5657, 1.442695
      %v5700 = vpow.pop %v5699
      %v5701 = vmul.f32 %v5658, 1.442695
      %v5702 = vpow.pop %v5701
      %v5703 = vmul.f32 %v5659, 1.442695
      %v5704 = vpow.pop %v5703
      %v5705 = vmul.f32 %v5660, 1.442695
      %v5706 = vpow.pop %v5705
      %v5707 = vmul.f32 %v5661, 1.442695
      %v5708 = vpow.pop %v5707
      %v5709 = vmul.f32 %v5662, 1.442695
      %v5710 = vpow.pop %v5709
      %v5711 = vmul.f32 %v5663, 1.442695
      %v5712 = vpow.pop %v5711
      %v5713 = vmul.f32 %v5664, 1.442695
      %v5714 = vpow.pop %v5713
      %v5715 = vmul.f32 %v5665, 1.442695
      %v5716 = vpow.pop %v5715
      %v5717 = vmul.f32 %v5666, 1.442695
      %v5718 = vpow.pop %v5717
      %v5719 = vmul.f32 %v5667, 1.442695
      %v5720 = vpow.pop %v5719
      %v5721 = vmul.f32 %v5668, 1.442695
      %v5722 = vpow.pop %v5721
      %v5723 = vmul.f32 %v5669, 1.442695
      %v5724 = vpow.pop %v5723
      %v5725 = vmul.f32 %v5670, 1.442695
      %v5726 = vpow.pop %v5725
      %v5727 = vmul.f32 %v5671, 1.442695
      %v5728 = vpow.pop %v5727
      %v5729 = vmul.f32 %v5672, 1.442695
      %v5730 = vpow.pop %v5729
      %v5731 = vmul.f32 %v5673, 1.442695
      %v5732 = vpow.pop %v5731
      %v5733 = vmul.f32 %v5674, 1.442695
      %v5734 = vpow.pop %v5733
      %v5735 = vmul.f32 %v5675, 1.442695
      %v5736 = vpow.pop %v5735
      %v5737 = vmul.f32 %v5676, 1.442695
      %v5738 = vpow.pop %v5737
      %v5739 = vmul.f32 %v5677, 1.442695
      %v5740 = vpow.pop %v5739
      %v5741 = vmul.f32 %v5678, 1.442695
      %v5742 = vpow.pop %v5741
      %v5743 = vmul.f32 %v5583, %v5680
      %v5744 = vmul.f32 %v5584, %v5682
      %v5745 = vmul.f32 %v5585, %v5684
      %v5746 = vmul.f32 %v5586, %v5686
      %v5747 = vmul.f32 %v5587, %v5688
      %v5748 = vmul.f32 %v5588, %v5690
      %v5749 = vmul.f32 %v5589, %v5692
      %v5750 = vmul.f32 %v5590, %v5694
      %v5751 = vmul.f32 %v5591, %v5696
      %v5752 = vmul.f32 %v5592, %v5698
      %v5753 = vmul.f32 %v5593, %v5700
      %v5754 = vmul.f32 %v5594, %v5702
      %v5755 = vmul.f32 %v5595, %v5704
      %v5756 = vmul.f32 %v5596, %v5706
      %v5757 = vmul.f32 %v5597, %v5708
      %v5758 = vmul.f32 %v5598, %v5710
      %v5759 = vmul.f32 %v5599, %v5712
      %v5760 = vmul.f32 %v5600, %v5714
      %v5761 = vmul.f32 %v5601, %v5716
      %v5762 = vmul.f32 %v5602, %v5718
      %v5763 = vmul.f32 %v5603, %v5720
      %v5764 = vmul.f32 %v5604, %v5722
      %v5765 = vmul.f32 %v5605, %v5724
      %v5766 = vmul.f32 %v5606, %v5726
      %v5767 = vmul.f32 %v5607, %v5728
      %v5768 = vmul.f32 %v5608, %v5730
      %v5769 = vmul.f32 %v5609, %v5732
      %v5770 = vmul.f32 %v5610, %v5734
      %v5771 = vmul.f32 %v5611, %v5736
      %v5772 = vmul.f32 %v5612, %v5738
      %v5773 = vmul.f32 %v5613, %v5740
      %v5774 = vmul.f32 %v5614, %v5742
      %v5775 = vsub.f32 1.0, %v5743
      %v5776 = vsub.f32 1.0, %v5744
      %v5777 = vsub.f32 1.0, %v5745
      %v5778 = vsub.f32 1.0, %v5746
      %v5779 = vsub.f32 1.0, %v5747
      %v5780 = vsub.f32 1.0, %v5748
      %v5781 = vsub.f32 1.0, %v5749
      %v5782 = vsub.f32 1.0, %v5750
      %v5783 = vsub.f32 1.0, %v5751
      %v5784 = vsub.f32 1.0, %v5752
      %v5785 = vsub.f32 1.0, %v5753
      %v5786 = vsub.f32 1.0, %v5754
      %v5787 = vsub.f32 1.0, %v5755
      %v5788 = vsub.f32 1.0, %v5756
      %v5789 = vsub.f32 1.0, %v5757
      %v5790 = vsub.f32 1.0, %v5758
      %v5791 = vsub.f32 1.0, %v5759
      %v5792 = vsub.f32 1.0, %v5760
      %v5793 = vsub.f32 1.0, %v5761
      %v5794 = vsub.f32 1.0, %v5762
      %v5795 = vsub.f32 1.0, %v5763
      %v5796 = vsub.f32 1.0, %v5764
      %v5797 = vsub.f32 1.0, %v5765
      %v5798 = vsub.f32 1.0, %v5766
      %v5799 = vsub.f32 1.0, %v5767
      %v5800 = vsub.f32 1.0, %v5768
      %v5801 = vsub.f32 1.0, %v5769
      %v5802 = vsub.f32 1.0, %v5770
      %v5803 = vsub.f32 1.0, %v5771
      %v5804 = vsub.f32 1.0, %v5772
      %v5805 = vsub.f32 1.0, %v5773
      %v5806 = vsub.f32 1.0, %v5774
      %v5807 = vmul.f32 %v5135, %v5775
      %v5808 = vmul.f32 %v5136, %v5776
      %v5809 = vmul.f32 %v5137, %v5777
      %v5810 = vmul.f32 %v5138, %v5778
      %v5811 = vmul.f32 %v5139, %v5779
      %v5812 = vmul.f32 %v5140, %v5780
      %v5813 = vmul.f32 %v5141, %v5781
      %v5814 = vmul.f32 %v5142, %v5782
      %v5815 = vmul.f32 %v5143, %v5783
      %v5816 = vmul.f32 %v5144, %v5784
      %v5817 = vmul.f32 %v5145, %v5785
      %v5818 = vmul.f32 %v5146, %v5786
      %v5819 = vmul.f32 %v5147, %v5787
      %v5820 = vmul.f32 %v5148, %v5788
      %v5821 = vmul.f32 %v5149, %v5789
      %v5822 = vmul.f32 %v5150, %v5790
      %v5823 = vmul.f32 %v5151, %v5791
      %v5824 = vmul.f32 %v5152, %v5792
      %v5825 = vmul.f32 %v5153, %v5793
      %v5826 = vmul.f32 %v5154, %v5794
      %v5827 = vmul.f32 %v5155, %v5795
      %v5828 = vmul.f32 %v5156, %v5796
      %v5829 = vmul.f32 %v5157, %v5797
      %v5830 = vmul.f32 %v5158, %v5798
      %v5831 = vmul.f32 %v5159, %v5799
      %v5832 = vmul.f32 %v5160, %v5800
      %v5833 = vmul.f32 %v5161, %v5801
      %v5834 = vmul.f32 %v5162, %v5802
      %v5835 = vmul.f32 %v5163, %v5803
      %v5836 = vmul.f32 %v5164, %v5804
      %v5837 = vmul.f32 %v5165, %v5805
      %v5838 = vmul.f32 %v5166, %v5806
      %v5839 = vadd.f32 %v5807, 1.0
      %v5840 = vadd.f32 %v5808, 1.0
      %v5841 = vadd.f32 %v5809, 1.0
      %v5842 = vadd.f32 %v5810, 1.0
      %v5843 = vadd.f32 %v5811, 1.0
      %v5844 = vadd.f32 %v5812, 1.0
      %v5845 = vadd.f32 %v5813, 1.0
      %v5846 = vadd.f32 %v5814, 1.0
      %v5847 = vadd.f32 %v5815, 1.0
      %v5848 = vadd.f32 %v5816, 1.0
      %v5849 = vadd.f32 %v5817, 1.0
      %v5850 = vadd.f32 %v5818, 1.0
      %v5851 = vadd.f32 %v5819, 1.0
      %v5852 = vadd.f32 %v5820, 1.0
      %v5853 = vadd.f32 %v5821, 1.0
      %v5854 = vadd.f32 %v5822, 1.0
      %v5855 = vadd.f32 %v5823, 1.0
      %v5856 = vadd.f32 %v5824, 1.0
      %v5857 = vadd.f32 %v5825, 1.0
      %v5858 = vadd.f32 %v5826, 1.0
      %v5859 = vadd.f32 %v5827, 1.0
      %v5860 = vadd.f32 %v5828, 1.0
      %v5861 = vadd.f32 %v5829, 1.0
      %v5862 = vadd.f32 %v5830, 1.0
      %v5863 = vadd.f32 %v5831, 1.0
      %v5864 = vadd.f32 %v5832, 1.0
      %v5865 = vadd.f32 %v5833, 1.0
      %v5866 = vadd.f32 %v5834, 1.0
      %v5867 = vadd.f32 %v5835, 1.0
      %v5868 = vadd.f32 %v5836, 1.0
      %v5869 = vadd.f32 %v5837, 1.0
      %v5870 = vadd.f32 %v5838, 1.0
      %v5871 = vmul.f32 %v5039, %v5839
      %v5872 = vmul.f32 %v5040, %v5840
      %v5873 = vmul.f32 %v5041, %v5841
      %v5874 = vmul.f32 %v5042, %v5842
      %v5875 = vmul.f32 %v5043, %v5843
      %v5876 = vmul.f32 %v5044, %v5844
      %v5877 = vmul.f32 %v5045, %v5845
      %v5878 = vmul.f32 %v5046, %v5846
      %v5879 = vmul.f32 %v5047, %v5847
      %v5880 = vmul.f32 %v5048, %v5848
      %v5881 = vmul.f32 %v5049, %v5849
      %v5882 = vmul.f32 %v5050, %v5850
      %v5883 = vmul.f32 %v5051, %v5851
      %v5884 = vmul.f32 %v5052, %v5852
      %v5885 = vmul.f32 %v5053, %v5853
      %v5886 = vmul.f32 %v5054, %v5854
      %v5887 = vmul.f32 %v5055, %v5855
      %v5888 = vmul.f32 %v5056, %v5856
      %v5889 = vmul.f32 %v5057, %v5857
      %v5890 = vmul.f32 %v5058, %v5858
      %v5891 = vmul.f32 %v5059, %v5859
      %v5892 = vmul.f32 %v5060, %v5860
      %v5893 = vmul.f32 %v5061, %v5861
      %v5894 = vmul.f32 %v5062, %v5862
      %v5895 = vmul.f32 %v5063, %v5863
      %v5896 = vmul.f32 %v5064, %v5864
      %v5897 = vmul.f32 %v5065, %v5865
      %v5898 = vmul.f32 %v5066, %v5866
      %v5899 = vmul.f32 %v5067, %v5867
      %v5900 = vmul.f32 %v5068, %v5868
      %v5901 = vmul.f32 %v5069, %v5869
      %v5902 = vmul.f32 %v5070, %v5870
      %v5903 = vmul.f32 %v5871, %v5007
      %v5904 = vmul.f32 %v5872, %v5008
      %v5905 = vmul.f32 %v5873, %v5009
      %v5906 = vmul.f32 %v5874, %v5010
      %v5907 = vmul.f32 %v5875, %v5011
      %v5908 = vmul.f32 %v5876, %v5012
      %v5909 = vmul.f32 %v5877, %v5013
      %v5910 = vmul.f32 %v5878, %v5014
      %v5911 = vmul.f32 %v5879, %v5015
      %v5912 = vmul.f32 %v5880, %v5016
      %v5913 = vmul.f32 %v5881, %v5017
      %v5914 = vmul.f32 %v5882, %v5018
      %v5915 = vmul.f32 %v5883, %v5019
      %v5916 = vmul.f32 %v5884, %v5020
      %v5917 = vmul.f32 %v5885, %v5021
      %v5918 = vmul.f32 %v5886, %v5022
      %v5919 = vmul.f32 %v5887, %v5023
      %v5920 = vmul.f32 %v5888, %v5024
      %v5921 = vmul.f32 %v5889, %v5025
      %v5922 = vmul.f32 %v5890, %v5026
      %v5923 = vmul.f32 %v5891, %v5027
      %v5924 = vmul.f32 %v5892, %v5028
      %v5925 = vmul.f32 %v5893, %v5029
      %v5926 = vmul.f32 %v5894, %v5030
      %v5927 = vmul.f32 %v5895, %v5031
      %v5928 = vmul.f32 %v5896, %v5032
      %v5929 = vmul.f32 %v5897, %v5033
      %v5930 = vmul.f32 %v5898, %v5034
      %v5931 = vmul.f32 %v5899, %v5035
      %v5932 = vmul.f32 %v5900, %v5036
      %v5933 = vmul.f32 %v5901, %v5037
      %v5934 = vmul.f32 %v5902, %v5038
      %v5967 = vcombine.low %v5903, %v5904
      %v5968 = vcombine.low %v5905, %v5906
      %v5970 = vunpack.c.l.s4 1983009808
      %v5971 = vunpack.c.0.s8 %v5970
      %v5972 = vlaneseq
      %v5973 = vshrl.u32 %v5972, 7
      %v5974 = vsub.s32 %v5971, %v5973
      %v5975 = vrot.slane %v5967, %v5974
      %v5977 = vunpack.c.l.s4 1983009808
      %v5978 = vunpack.c.0.s8 %v5977
      %v5979 = vlaneseq
      %v5980 = vshrl.u32 %v5979, 7
      %v5981 = vsub.s32 %v5978, %v5980
      %v5982 = vrot.slane %v5968, %v5981
      %v5983 = vcombine.low %v5975, %v5982
      %v5984 = vcombine.low %v5907, %v5908
      %v5985 = vcombine.low %v5909, %v5910
      %v5987 = vunpack.c.l.s4 1983009808
      %v5988 = vunpack.c.0.s8 %v5987
      %v5989 = vlaneseq
      %v5990 = vshrl.u32 %v5989, 7
      %v5991 = vsub.s32 %v5988, %v5990
      %v5992 = vrot.slane %v5984, %v5991
      %v5994 = vunpack.c.l.s4 1983009808
      %v5995 = vunpack.c.0.s8 %v5994
      %v5996 = vlaneseq
      %v5997 = vshrl.u32 %v5996, 7
      %v5998 = vsub.s32 %v5995, %v5997
      %v5999 = vrot.slane %v5985, %v5998
      %v6000 = vcombine.low %v5992, %v5999
      %v6001 = vcombine.low %v5911, %v5912
      %v6002 = vcombine.low %v5913, %v5914
      %v6004 = vunpack.c.l.s4 1983009808
      %v6005 = vunpack.c.0.s8 %v6004
      %v6006 = vlaneseq
      %v6007 = vshrl.u32 %v6006, 7
      %v6008 = vsub.s32 %v6005, %v6007
      %v6009 = vrot.slane %v6001, %v6008
      %v6011 = vunpack.c.l.s4 1983009808
      %v6012 = vunpack.c.0.s8 %v6011
      %v6013 = vlaneseq
      %v6014 = vshrl.u32 %v6013, 7
      %v6015 = vsub.s32 %v6012, %v6014
      %v6016 = vrot.slane %v6002, %v6015
      %v6017 = vcombine.low %v6009, %v6016
      %v6018 = vcombine.low %v5915, %v5916
      %v6019 = vcombine.low %v5917, %v5918
      %v6021 = vunpack.c.l.s4 1983009808
      %v6022 = vunpack.c.0.s8 %v6021
      %v6023 = vlaneseq
      %v6024 = vshrl.u32 %v6023, 7
      %v6025 = vsub.s32 %v6022, %v6024
      %v6026 = vrot.slane %v6018, %v6025
      %v6028 = vunpack.c.l.s4 1983009808
      %v6029 = vunpack.c.0.s8 %v6028
      %v6030 = vlaneseq
      %v6031 = vshrl.u32 %v6030, 7
      %v6032 = vsub.s32 %v6029, %v6031
      %v6033 = vrot.slane %v6019, %v6032
      %v6034 = vcombine.low %v6026, %v6033
      %v6035 = vcombine.low %v5919, %v5920
      %v6036 = vcombine.low %v5921, %v5922
      %v6038 = vunpack.c.l.s4 1983009808
      %v6039 = vunpack.c.0.s8 %v6038
      %v6040 = vlaneseq
      %v6041 = vshrl.u32 %v6040, 7
      %v6042 = vsub.s32 %v6039, %v6041
      %v6043 = vrot.slane %v6035, %v6042
      %v6045 = vunpack.c.l.s4 1983009808
      %v6046 = vunpack.c.0.s8 %v6045
      %v6047 = vlaneseq
      %v6048 = vshrl.u32 %v6047, 7
      %v6049 = vsub.s32 %v6046, %v6048
      %v6050 = vrot.slane %v6036, %v6049
      %v6051 = vcombine.low %v6043, %v6050
      %v6052 = vcombine.low %v5923, %v5924
      %v6053 = vcombine.low %v5925, %v5926
      %v6055 = vunpack.c.l.s4 1983009808
      %v6056 = vunpack.c.0.s8 %v6055
      %v6057 = vlaneseq
      %v6058 = vshrl.u32 %v6057, 7
      %v6059 = vsub.s32 %v6056, %v6058
      %v6060 = vrot.slane %v6052, %v6059
      %v6062 = vunpack.c.l.s4 1983009808
      %v6063 = vunpack.c.0.s8 %v6062
      %v6064 = vlaneseq
      %v6065 = vshrl.u32 %v6064, 7
      %v6066 = vsub.s32 %v6063, %v6065
      %v6067 = vrot.slane %v6053, %v6066
      %v6068 = vcombine.low %v6060, %v6067
      %v6069 = vcombine.low %v5927, %v5928
      %v6070 = vcombine.low %v5929, %v5930
      %v6072 = vunpack.c.l.s4 1983009808
      %v6073 = vunpack.c.0.s8 %v6072
      %v6074 = vlaneseq
      %v6075 = vshrl.u32 %v6074, 7
      %v6076 = vsub.s32 %v6073, %v6075
      %v6077 = vrot.slane %v6069, %v6076
      %v6079 = vunpack.c.l.s4 1983009808
      %v6080 = vunpack.c.0.s8 %v6079
      %v6081 = vlaneseq
      %v6082 = vshrl.u32 %v6081, 7
      %v6083 = vsub.s32 %v6080, %v6082
      %v6084 = vrot.slane %v6070, %v6083
      %v6085 = vcombine.low %v6077, %v6084
      %v6086 = vcombine.low %v5931, %v5932
      %v6087 = vcombine.low %v5933, %v5934
      %v6089 = vunpack.c.l.s4 1983009808
      %v6090 = vunpack.c.0.s8 %v6089
      %v6091 = vlaneseq
      %v6092 = vshrl.u32 %v6091, 7
      %v6093 = vsub.s32 %v6090, %v6092
      %v6094 = vrot.slane %v6086, %v6093
      %v6096 = vunpack.c.l.s4 1983009808
      %v6097 = vunpack.c.0.s8 %v6096
      %v6098 = vlaneseq
      %v6099 = vshrl.u32 %v6098, 7
      %v6100 = vsub.s32 %v6097, %v6099
      %v6101 = vrot.slane %v6087, %v6100
      %v6102 = vcombine.low %v6094, %v6101
      %v6111 = vpack.c.bf16 %v6000, %v5983
      %v6112 = vpack.c.bf16 %v6034, %v6017
      %v6113 = vpack.c.bf16 %v6068, %v6051
      %v6114 = vpack.c.bf16 %v6102, %v6085
      %v6115 = vld [vmem:[%s8] sm:$0xf]
      %v6116 = vld [vmem:[%s8 + $0x4] sm:$0xf]
      %v6117 = vld [vmem:[%s8 + $0x8] sm:$0xf]
      %v6118 = vld [vmem:[%s8 + $0xc] sm:$0xf]
      %v6123 = vunpack.c.l.b16 %v6115
      %v6124 = vunpack.c.l.b16 %v6116
      %v6125 = vunpack.c.l.b16 %v6117
      %v6126 = vunpack.c.l.b16 %v6118
      %v6127 = vpack.c.b16 %v6124, %v6123
      %v6128 = vpack.c.b16 %v6126, %v6125
      %v6132 = vsel %vm494, %v6111, 0
      %v6135 = vsel %vm494, %v6112, 0
      %v6138 = vsel %vm494, %v6113, 0
      %v6141 = vsel %vm494, %v6114, 0
      %6143 = vmatprep.subr.bf16.mxu0 0
      %6144 = vmatpush1.bf16.msra.mxu0 %v6127
      %6145 = vmatprep.subr.bf16.mxu0 0
      %6146 = vmatpush1.bf16.msra.mxu0 %v6128
      %6147 = vmatprep.subr.bf16.mxu0 0
      %6148 = vmatpush1.bf16.msra.mxu0 0
      %6149 = vmatprep.subr.bf16.mxu0 0
      %6150 = vmatpush1.bf16.msra.mxu0 0
      %6151 = vmatprep.subr.bf16.mxu0 0
      %6152 = vmatpush1.bf16.msra.mxu0 0
      %6153 = vmatprep.subr.bf16.mxu0 0
      %6154 = vmatpush1.bf16.msra.mxu0 0
      %6155 = vmatprep.subr.bf16.mxu0 0
      %6156 = vmatpush1.bf16.msra.mxu0 0
      %6157 = vmatprep.subr.bf16.mxu0 0
      %6158 = vmatpush1.bf16.msra.mxu0 0
      %6159 = vmatprep.subr.bf16.mxu0 0
      %6160 = vmatpush1.bf16.msra.mxu0 0
      %6161 = vmatprep.subr.bf16.mxu0 0
      %6162 = vmatpush1.bf16.msra.mxu0 0
      %6163 = vmatprep.subr.bf16.mxu0 0
      %6164 = vmatpush1.bf16.msra.mxu0 0
      %6165 = vmatprep.subr.bf16.mxu0 0
      %6166 = vmatpush1.bf16.msra.mxu0 0
      %6167 = vmatprep.subr.bf16.mxu0 0
      %6168 = vmatpush1.bf16.msra.mxu0 0
      %6169 = vmatprep.subr.bf16.mxu0 0
      %6170 = vmatpush1.bf16.msra.mxu0 0
      %6171 = vmatprep.subr.bf16.mxu0 0
      %6172 = vmatpush1.bf16.msra.mxu0 0
      %6173 = vmatprep.subr.bf16.mxu0 0
      %6174 = vmatpush1.bf16.msra.mxu0 0
      %6175 = vmatprep.mubr.bf16.mxu0 0
      %6176 = vmatmul.mubr.bf16.gmra.mrb[0].mxu0 %v6132
      %v6177 = vpop.f32.mrb[0].mxu0
      %v6178 = vadd.f32 0.0, %v6177
      %v6179 = vpop.f32.mrb[0].mxu0
      %v6180 = vpop.f32.mrb[0].mxu0
      %v6181 = vadd.f32 0.0, %v6180
      %v6182 = vpop.f32.mrb[0].mxu0
      %6183 = vmatprep.mubr.bf16.mxu0 0
      %6184 = vmatmul.mubr.bf16.gmra.mrb[0].mxu0 %v6135
      %v6185 = vpop.f32.mrb[0].mxu0
      %v6186 = vadd.f32 0.0, %v6185
      %v6187 = vpop.f32.mrb[0].mxu0
      %v6188 = vpop.f32.mrb[0].mxu0
      %v6189 = vadd.f32 0.0, %v6188
      %v6190 = vpop.f32.mrb[0].mxu0
      %6191 = vmatprep.mubr.bf16.mxu0 0
      %6192 = vmatmul.mubr.bf16.gmra.mrb[0].mxu0 %v6138
      %v6193 = vpop.f32.mrb[0].mxu0
      %v6194 = vadd.f32 0.0, %v6193
      %v6195 = vpop.f32.mrb[0].mxu0
      %v6196 = vpop.f32.mrb[0].mxu0
      %v6197 = vadd.f32 0.0, %v6196
      %v6198 = vpop.f32.mrb[0].mxu0
      %6199 = vmatprep.mubr.bf16.mxu0 0
      %6200 = vmatmul.mubr.bf16.gmra.mrb[0].mxu0 %v6141
      %v6201 = vpop.f32.mrb[0].mxu0
      %v6202 = vadd.f32 0.0, %v6201
      %v6203 = vpop.f32.mrb[0].mxu0
      %v6204 = vpop.f32.mrb[0].mxu0
      %v6205 = vadd.f32 0.0, %v6204
      %v6206 = vpop.f32.mrb[0].mxu0
      %6207 = vdwg.mxu0
      %v6216 = vrot.slane %v6178, 7
      %v6217 = vrot.slane %v6181, 7
      %v6218 = vrot.slane %v6186, 7
      %v6219 = vrot.slane %v6189, 7
      %v6220 = vrot.slane %v6194, 7
      %v6221 = vrot.slane %v6197, 7
      %v6222 = vrot.slane %v6202, 7
      %v6223 = vrot.slane %v6205, 7
      %v6232 = vadd.f32 %v476, %v6216
      %v6233 = vadd.f32 %v477, %v6216
      %v6234 = vadd.f32 %v478, %v6217
      %v6235 = vadd.f32 %v479, %v6217
      %v6236 = vadd.f32 %v480, %v6218
      %v6237 = vadd.f32 %v481, %v6218
      %v6238 = vadd.f32 %v482, %v6219
      %v6239 = vadd.f32 %v483, %v6219
      %v6240 = vadd.f32 %v484, %v6220
      %v6241 = vadd.f32 %v485, %v6220
      %v6242 = vadd.f32 %v486, %v6221
      %v6243 = vadd.f32 %v487, %v6221
      %v6244 = vadd.f32 %v488, %v6222
      %v6245 = vadd.f32 %v489, %v6222
      %v6246 = vadd.f32 %v490, %v6223
      %v6247 = vadd.f32 %v491, %v6223
      %v6248 = vpack.c.bf16 %v6233, %v6232
      %v6249 = vpack.c.bf16 %v6235, %v6234
      %v6250 = vpack.c.bf16 %v6237, %v6236
      %v6251 = vpack.c.bf16 %v6239, %v6238
      %v6252 = vpack.c.bf16 %v6241, %v6240
      %v6253 = vpack.c.bf16 %v6243, %v6242
      %v6254 = vpack.c.bf16 %v6245, %v6244
      %v6255 = vpack.c.bf16 %v6247, %v6246
      %v6264 = vunpack.c.l.b16 %v6248
      %v6265 = vunpack.c.h.b16 %v6248
      %v6266 = vunpack.c.l.b16 %v6249
      %v6267 = vunpack.c.h.b16 %v6249
      %v6268 = vunpack.c.l.b16 %v6250
      %v6269 = vunpack.c.h.b16 %v6250
      %v6270 = vunpack.c.l.b16 %v6251
      %v6271 = vunpack.c.h.b16 %v6251
      %v6272 = vunpack.c.l.b16 %v6252
      %v6273 = vunpack.c.h.b16 %v6252
      %v6274 = vunpack.c.l.b16 %v6253
      %v6275 = vunpack.c.h.b16 %v6253
      %v6276 = vunpack.c.l.b16 %v6254
      %v6277 = vunpack.c.h.b16 %v6254
      %v6278 = vunpack.c.l.b16 %v6255
      %v6279 = vunpack.c.h.b16 %v6255
      %v6280 = vpack.c.b16 %v6264, %v6264
      %v6281 = vpack.c.b16 %v6265, %v6265
      %v6282 = vpack.c.b16 %v6266, %v6266
      %v6283 = vpack.c.b16 %v6267, %v6267
      %v6284 = vpack.c.b16 %v6268, %v6268
      %v6285 = vpack.c.b16 %v6269, %v6269
      %v6286 = vpack.c.b16 %v6270, %v6270
      %v6287 = vpack.c.b16 %v6271, %v6271
      %v6288 = vpack.c.b16 %v6272, %v6272
      %v6289 = vpack.c.b16 %v6273, %v6273
      %v6290 = vpack.c.b16 %v6274, %v6274
      %v6291 = vpack.c.b16 %v6275, %v6275
      %v6292 = vpack.c.b16 %v6276, %v6276
      %v6293 = vpack.c.b16 %v6277, %v6277
      %v6294 = vpack.c.b16 %v6278, %v6278
      %v6295 = vpack.c.b16 %v6279, %v6279
      %vm6296 = vsmask.f32 3328
      %vm6297 = vsmask.f32 7440
      %vm6298 = vmor %vm6296, %vm6297
      %v6300 = vshrl.u32 %v6280, 16
      %v6302 = vrot.slane %v6300, 4
      %v6303 = vshll.u32 %v6280, 16
      %v6305 = vrot.slane %v6303, 5
      %v6306 = vor.u32 %v6302, %v6305
      %v6307 = vrot.slane %v6306, 4
      %v6309 = vshll.u32 %v6281, 16
      %v6311 = vrot.slane %v6309, 5
      %v6312 = vsel %vm6298, %v6307, %v6311
      %v6314 = vshrl.u32 %v6282, 16
      %v6316 = vrot.slane %v6314, 4
      %v6317 = vshll.u32 %v6282, 16
      %v6319 = vrot.slane %v6317, 5
      %v6320 = vor.u32 %v6316, %v6319
      %v6321 = vrot.slane %v6320, 4
      %v6323 = vshll.u32 %v6283, 16
      %v6325 = vrot.slane %v6323, 5
      %v6326 = vsel %vm6298, %v6321, %v6325
      %v6328 = vshrl.u32 %v6284, 16
      %v6330 = vrot.slane %v6328, 4
      %v6331 = vshll.u32 %v6284, 16
      %v6333 = vrot.slane %v6331, 5
      %v6334 = vor.u32 %v6330, %v6333
      %v6335 = vrot.slane %v6334, 4
      %v6337 = vshll.u32 %v6285, 16
      %v6339 = vrot.slane %v6337, 5
      %v6340 = vsel %vm6298, %v6335, %v6339
      %v6342 = vshrl.u32 %v6286, 16
      %v6344 = vrot.slane %v6342, 4
      %v6345 = vshll.u32 %v6286, 16
      %v6347 = vrot.slane %v6345, 5
      %v6348 = vor.u32 %v6344, %v6347
      %v6349 = vrot.slane %v6348, 4
      %v6351 = vshll.u32 %v6287, 16
      %v6353 = vrot.slane %v6351, 5
      %v6354 = vsel %vm6298, %v6349, %v6353
      %v6356 = vshrl.u32 %v6288, 16
      %v6358 = vrot.slane %v6356, 4
      %v6359 = vshll.u32 %v6288, 16
      %v6361 = vrot.slane %v6359, 5
      %v6362 = vor.u32 %v6358, %v6361
      %v6363 = vrot.slane %v6362, 4
      %v6365 = vshll.u32 %v6289, 16
      %v6367 = vrot.slane %v6365, 5
      %v6368 = vsel %vm6298, %v6363, %v6367
      %v6370 = vshrl.u32 %v6290, 16
      %v6372 = vrot.slane %v6370, 4
      %v6373 = vshll.u32 %v6290, 16
      %v6375 = vrot.slane %v6373, 5
      %v6376 = vor.u32 %v6372, %v6375
      %v6377 = vrot.slane %v6376, 4
      %v6379 = vshll.u32 %v6291, 16
      %v6381 = vrot.slane %v6379, 5
      %v6382 = vsel %vm6298, %v6377, %v6381
      %v6384 = vshrl.u32 %v6292, 16
      %v6386 = vrot.slane %v6384, 4
      %v6387 = vshll.u32 %v6292, 16
      %v6389 = vrot.slane %v6387, 5
      %v6390 = vor.u32 %v6386, %v6389
      %v6391 = vrot.slane %v6390, 4
      %v6393 = vshll.u32 %v6293, 16
      %v6395 = vrot.slane %v6393, 5
      %v6396 = vsel %vm6298, %v6391, %v6395
      %v6398 = vshrl.u32 %v6294, 16
      %v6400 = vrot.slane %v6398, 4
      %v6401 = vshll.u32 %v6294, 16
      %v6403 = vrot.slane %v6401, 5
      %v6404 = vor.u32 %v6400, %v6403
      %v6405 = vrot.slane %v6404, 4
      %v6407 = vshll.u32 %v6295, 16
      %v6409 = vrot.slane %v6407, 5
      %v6410 = vsel %vm6298, %v6405, %v6409
      %vm6419 = vcmask 257024
      %6420 = vst.msk [vmem:[%s451] sm:$0xf] %vm6419, %v6312
      %6421 = vst.msk [vmem:[%s451 + $0x4] sm:$0xf] %vm6419, %v6326
      %6422 = vst.msk [vmem:[%s451 + $0x8] sm:$0xf] %vm6419, %v6340
      %6423 = vst.msk [vmem:[%s451 + $0xc] sm:$0xf] %vm6419, %v6354
      %6424 = vst.msk [vmem:[%s451 + $0x10] sm:$0xf] %vm6419, %v6368
      %6425 = vst.msk [vmem:[%s451 + $0x14] sm:$0xf] %vm6419, %v6382
      %6426 = vst.msk [vmem:[%s451 + $0x18] sm:$0xf] %vm6419, %v6396
      %6427 = vst.msk [vmem:[%s451 + $0x1c] sm:$0xf] %vm6419, %v6410
      %s6428 = smul.u32 8, %s25
      %p6429 = scmp.lt.s32.totalorder %s24, 1
      %s6430 = scalar_select %p6429, %s24, 1
      %p6431 = scmp.lt.s32.totalorder %s6428, 7
      %s6432 = scalar_select %p6431, %s6428, 7
      %s6433 = smul.addr %s6430, 8
      %s6434 = sadd.s32 %s6432, %s6433
      %s6435 = smul.addr %s6434, 4
      %s6436 = scalar_lea.vmem %s9, %s6435
      // Predicated region
      $region57: #{pht_forward.9} parent=55 // pred_check
        %p6437 = pneg %p259
      $region58: #{pht_forward.9} parent=55 // pred_check_branch
        %6439 = sbr.rel (%p6437) target = $region60
      $region59: #{pht_forward.9} parent=55 // pred_region
        %s6440 = smul.u32 8, %s25
      $region60: #{pht_forward.9} parent=55 // pred_fallthru
        _
    $region56: #{pht_forward.9} parent=5 // pred_fallthru
      _
    %p6441 = scmp.le.s32.totalorder 2, %s15
    // Predicated region
    $region61: #{pht_forward.9} parent=5 // pred_check
      %p6442 = pneg %p6441
    $region62: #{pht_forward.9} parent=5 // pred_check_branch
      %6444 = sbr.rel (%p6442) target = $region64
    $region63: #{pht_forward.9} parent=5 // pred_region
      %s6445 = ssub.s32 %s15, 2
      // Predicated region
      $region65: #{pht_forward.9} parent=63 // pred_check
        %p6446 = pneg %p265
      $region66: #{pht_forward.9} parent=63 // pred_check_branch
        %6448 = sbr.rel (%p6446) target = $region68
      $region67: #{pht_forward.9} parent=63 // pred_region
        %s6449 = smul.u32 8, %s27
        %p6450 = scmp.lt.s32.totalorder %s26, 1
        %s6451 = scalar_select %p6450, %s26, 1
        %p6452 = scmp.lt.s32.totalorder %s6449, 7
        %s6453 = scalar_select %p6452, %s6449, 7
        %s6454 = smul.addr %s6451, 8
        %s6455 = sadd.s32 %s6453, %s6454
        %s6456 = smul.addr %s6455, 4
        %s6457 = scalar_lea.vmem %s9, %s6456
      $region68: #{pht_forward.9} parent=63 // pred_fallthru
        _
    $region64: #{pht_forward.9} parent=5 // pred_fallthru
      _
  $region6: #{pht_forward.9} parent=0 // loop_footer
    %s19 = sadd.s32 1, %s15
  $region7: #{pht_forward.9} parent=0 // loop_footer_branch
    %14 = sbr.rel target = $region3
  $region8: #{pht_forward.9} parent=0 // loop_exit
    _

</llo_original>
